<compile_context>
chip_gen: v6e
topology: v6e:2x2x1
jax: 0.10.0
libtpu: 0.0.40
codegen_flags: <defaults>
</compile_context>

<pallas_src>
import numpy as np

import jax
import jax.numpy as jnp
from jax.experimental import pallas as pl
from jax.experimental.pallas import tpu as pltpu


# Layer geometry for 28x28 MNIST, three 3x3 stride-2 pad-1 convs, 4x4 avg pool:
#   L1: 1x28x28  -> 16x14x14   input padded to H=30, W=32 (W mult-of-8)
#   L2: 16x14x14 -> 16x7x7     activation padded to H=15(rows 0 pad), W=16
#   L3: 16x7x7   -> 10x4x4     activation padded to H=9 (rows 0,8 pad), W=10
_L1 = dict(cin=1,  cout=16, wp_in=32, wo=14, wp_out=16, off=1)
_L2 = dict(cin=16, cout=16, wp_in=16, wo=7,  wp_out=10, off=1)
_L3 = dict(cin=16, cout=10, wp_in=10, wo=4,  wp_out=4,  off=0)


# ------------------------------ Pallas kernel ------------------------------ #

def _fused_mnist_kernel(x_ref, w1_ref, t1_ref, w2_ref, t2_ref, w3_ref, t3_ref,
                        pool_ref, o_ref, a2_ref, a3_ref):
    tb = o_ref.shape[1]

    # ---- conv1: x (30*32, TB) bf16 -> a2 rows 1..14 of (15*256, TB) bf16 ----
    w1 = w1_ref[...]                                    # (256, 96)  bf16
    t1 = t1_ref[...]                                    # (256, 1)   f32
    # Top conv2 pad row.  Re-zeroed every step (scratch persists per core; with
    # "parallel" grid semantics a core may never run program_id == 0).
    a2_ref[pl.ds(0, 256), :] = jnp.zeros((256, tb), jnp.bfloat16)
    for o in range(14):
        win = x_ref[pl.ds(64 * o, 96), :]               # padded rows 2o..2o+2
        acc = jnp.dot(w1, win, preferred_element_type=jnp.float32)
        a2_ref[pl.ds(256 * (o + 1), 256), :] = (
            jnp.maximum(acc + t1, 0.0).astype(jnp.bfloat16))

    # ---- conv2: a2 (15*256, TB) -> a3 rows 1..7 of (9*160, TB) bf16 ---------
    w2 = w2_ref[...]                                    # (160, 768) bf16
    t2 = t2_ref[...]                                    # (160, 1)   f32
    a3_ref[pl.ds(0, 160), :] = jnp.zeros((160, tb), jnp.bfloat16)        # top pad
    a3_ref[pl.ds(8 * 160, 160), :] = jnp.zeros((160, tb), jnp.bfloat16)  # bottom pad
    for o in range(7):
        win = a2_ref[pl.ds(512 * o, 768), :]            # a2 rows 2o..2o+2
        acc = jnp.dot(w2, win, preferred_element_type=jnp.float32)
        a3_ref[pl.ds(160 * (o + 1), 160), :] = (
            jnp.maximum(acc + t2, 0.0).astype(jnp.bfloat16))

    # ---- conv3 + fused 4x4 avg-pool -----------------------------------------
    w3 = w3_ref[...]                                    # (40, 480) bf16
    t3 = t3_ref[...]                                    # (40, 1)   f32
    rows = []
    for o in range(4):
        win = a3_ref[pl.ds(320 * o, 480), :]            # a3 rows 2o..2o+2
        acc = jnp.dot(w3, win, preferred_element_type=jnp.float32)
        rows.append(jnp.maximum(acc + t3, 0.0))
    feat = jnp.concatenate(rows, axis=0)                # (160, TB) f32
    # (10, 160) pool matrix sums all 16 spatial positions per channel * 1/16.
    o_ref[...] = jnp.dot(pool_ref[...], feat, preferred_element_type=jnp.float32)


# --------------------------- weight pre-packing ----------------------------- #

def _band_weight(w, cfg):
    """PyTorch OIHW conv weight -> banded (Cout*Wp_out, 3*Cin*Wp_in) matrix."""
    w = np.asarray(w, np.float32)                       # (cout, cin, 3, 3)
    k = cfg["cin"] * cfg["wp_in"]
    B = np.zeros((cfg["cout"] * cfg["wp_out"], 3 * k), np.float32)
    for kh in range(3):
        for co in range(cfg["cout"]):
            for ci in range(cfg["cin"]):
                for o in range(cfg["wo"]):
                    for kw in range(3):
                        B[co * cfg["wp_out"] + cfg["off"] + o,
                          kh * k + ci * cfg["wp_in"] + 2 * o + kw] = w[co, ci, kh, kw]
    return B


def _band_bias(b, cfg):
    b = np.asarray(b, np.float32)
    beta = np.zeros((cfg["cout"] * cfg["wp_out"], 1), np.float32)
    for co in range(cfg["cout"]):
        s = co * cfg["wp_out"] + cfg["off"]
        beta[s:s + cfg["wo"], 0] = b[co]
    return beta


def _pool_matrix():
    P = np.zeros((10, 160), np.float32)
    for h in range(4):
        for c in range(10):
            P[c, h * 40 + c * 4: h * 40 + c * 4 + 4] = 1.0 / 16.0
    return P


def pack_params(params):
    """One-time packing (outside the jitted forward).  Conv weights in bf16."""
    (w1, b1), (w2, b2), (w3, b3) = params["conv1"], params["conv2"], params["conv3"]
    return dict(
        w1=jnp.asarray(_band_weight(w1, _L1), jnp.bfloat16),
        t1=jnp.asarray(_band_bias(b1, _L1)),
        w2=jnp.asarray(_band_weight(w2, _L2), jnp.bfloat16),
        t2=jnp.asarray(_band_bias(b2, _L2)),
        w3=jnp.asarray(_band_weight(w3, _L3), jnp.bfloat16),
        t3=jnp.asarray(_band_bias(b3, _L3)),
        pool=jnp.asarray(_pool_matrix()),
    )


# ------------------------------ forward pass -------------------------------- #

def _tile_batch(n):
    """Batch tile (lanes) per grid step; >=2 steps whenever batch >= 256."""
    g = -(-n // 128)                       # number of 128-lane groups
    tb = 128 * min(4, max(1, g // 2))      # TB in {128, 256, 384, 512}
    n_pad = -(-n // tb) * tb
    return tb, n_pad


@jax.jit
def mnist_cnn_forward(packed, xb):
    # xb: (N, 784) (anything reshapable to (-1, 1, 28, 28), NCHW semantics)
    x = xb.reshape(-1, 28, 28).astype(jnp.bfloat16)
    n = x.shape[0]
    tb, n_pad = _tile_batch(n)
    # Batch pad to a tile multiple; H pad (1,1) -> 30; W pad (1,3) -> 32 so the
    # flattened (H*W, batch) slab keeps conv windows sublane-tile aligned.
    x = jnp.pad(x, ((0, n_pad - n), (1, 1), (1, 3)))
    x = jnp.transpose(x, (1, 2, 0)).reshape(30 * 32, n_pad)   # (960, Np), lanes=batch

    flops_per_img = 2 * (14 * 256 * 96 + 7 * 160 * 768 + 4 * 40 * 480 + 10 * 160)
    param_bytes = sum(int(v.size) * v.dtype.itemsize for v in packed.values())
    cost = pl.CostEstimate(
        flops=flops_per_img * n_pad,
        transcendentals=0,
        bytes_accessed=n_pad * (960 * 2 + 10 * 4) + param_bytes)

    out = pl.pallas_call(
        _fused_mnist_kernel,
        out_shape=jax.ShapeDtypeStruct((10, n_pad), jnp.float32),
        grid_spec=pltpu.PrefetchScalarGridSpec(
            num_scalar_prefetch=0,
            grid=(n_pad // tb,),
            in_specs=[
                pl.BlockSpec((960, tb), lambda i: (0, i)),      # input slab
                pl.BlockSpec((256, 96), lambda i: (0, 0)),      # conv1 banded W
                pl.BlockSpec((256, 1), lambda i: (0, 0)),       # conv1 bias
                pl.BlockSpec((160, 768), lambda i: (0, 0)),     # conv2 banded W
                pl.BlockSpec((160, 1), lambda i: (0, 0)),       # conv2 bias
                pl.BlockSpec((40, 480), lambda i: (0, 0)),      # conv3 banded W
                pl.BlockSpec((40, 1), lambda i: (0, 0)),        # conv3 bias
                pl.BlockSpec((10, 160), lambda i: (0, 0)),      # avg-pool matrix
            ],
            out_specs=pl.BlockSpec((10, tb), lambda i: (0, i)),
            scratch_shapes=[
                pltpu.VMEM((15 * 256, tb), jnp.bfloat16),  # padded conv1 output
                pltpu.VMEM((9 * 160, tb), jnp.bfloat16),   # padded conv2 output
            ]),
        compiler_params=pltpu.CompilerParams(
            dimension_semantics=("parallel",),
            vmem_limit_bytes=48 * 1024 * 1024),
        cost_estimate=cost,
    )(x, packed["w1"], packed["t1"], packed["w2"], packed["t2"],
      packed["w3"], packed["t3"], packed["pool"])

    return jnp.transpose(out)[:n]                         # (N, 10) f32


# -------------------------- init + pure-JAX reference ----------------------- #

def init_params(key):
    # PyTorch Conv2d default init: U(-b, b), b = 1/sqrt(fan_in)
    def conv_init(k_, cout, cin, ksz):
        kw_, kb_ = jax.random.split(k_)
        bound = 1.0 / float(np.sqrt(cin * ksz * ksz))
        w = jax.random.uniform(kw_, (cout, cin, ksz, ksz), jnp.float32, -bound, bound)
        b = jax.random.uniform(kb_, (cout,), jnp.float32, -bound, bound)
        return w, b

    k1, k2, k3 = jax.random.split(key, 3)
    return {"conv1": conv_init(k1, 16, 1, 3),
            "conv2": conv_init(k2, 16, 16, 3),
            "conv3": conv_init(k3, 10, 16, 3)}


def ref_forward(params, xb):
    x = xb.reshape(-1, 1, 28, 28)
    for name in ("conv1", "conv2", "conv3"):
        w, b = params[name]
        x = jax.lax.conv_general_dilated(
            x, w, window_strides=(2, 2), padding=((1, 1), (1, 1)),
            dimension_numbers=("NCHW", "OIHW", "NCHW"))
        x = jax.nn.relu(x + b.reshape(1, -1, 1, 1))
    return jnp.mean(x, axis=(2, 3))                       # avg_pool2d(4) + flatten


if __name__ == "__main__":
    key = jax.random.PRNGKey(0)
    k_param, k_in = jax.random.split(key)
    params = init_params(k_param)
    packed = pack_params(params)

    N = 4
    xb = jax.random.normal(k_in, (N, 784), dtype=jnp.float32)

    out = mnist_cnn_forward(packed, xb)
    out = jax.block_until_ready(out)

    ref = ref_forward(params, xb)
    assert out.shape == (N, 10), out.shape
    # Tolerance accounts for bf16 matmul operands / bf16 activation storage
    # (accumulation, bias and ReLU are f32); reference is pure f32.
    assert jnp.allclose(out, ref, atol=2e-2, rtol=2e-2), (
        float(jnp.max(jnp.abs(out - ref))))

    print("KERNEL_OK")
</pallas_src>

<mosaic_0001>
module attributes {stable_mosaic.version = 11 : i64} {
  func.func @_fused_mnist_kernel(%arg0: i32, %arg1: memref<960x128xbf16, #tpu.memory_space<vmem>>, %arg2: memref<256x96xbf16, #tpu.memory_space<vmem>>, %arg3: memref<256x1xf32, #tpu.memory_space<vmem>>, %arg4: memref<160x768xbf16, #tpu.memory_space<vmem>>, %arg5: memref<160x1xf32, #tpu.memory_space<vmem>>, %arg6: memref<40x480xbf16, #tpu.memory_space<vmem>>, %arg7: memref<40x1xf32, #tpu.memory_space<vmem>>, %arg8: memref<10x160xf32, #tpu.memory_space<vmem>>, %arg9: memref<10x128xf32, #tpu.memory_space<vmem>>, %arg10: memref<3840x128xbf16, #tpu.memory_space<vmem>>, %arg11: memref<1440x128xbf16, #tpu.memory_space<vmem>>) attributes {dimension_semantics = [#tpu.dimension_semantics<parallel>], iteration_bounds = array<i64: 1>, scalar_prefetch = 0 : i64, scratch_operands = 2 : i64, tpu.core_type = #tpu.core_type<tc>, window_params = [{transform_indices = @transform_0, window_bounds = array<i64: 960, 128>}, {pipeline_mode = #tpu.pipeline_mode<synchronous>, transform_indices = @transform_1, window_bounds = array<i64: 256, 96>}, {pipeline_mode = #tpu.pipeline_mode<synchronous>, transform_indices = @transform_2, window_bounds = array<i64: 256, 1>}, {pipeline_mode = #tpu.pipeline_mode<synchronous>, transform_indices = @transform_3, window_bounds = array<i64: 160, 768>}, {pipeline_mode = #tpu.pipeline_mode<synchronous>, transform_indices = @transform_4, window_bounds = array<i64: 160, 1>}, {pipeline_mode = #tpu.pipeline_mode<synchronous>, transform_indices = @transform_5, window_bounds = array<i64: 40, 480>}, {pipeline_mode = #tpu.pipeline_mode<synchronous>, transform_indices = @transform_6, window_bounds = array<i64: 40, 1>}, {pipeline_mode = #tpu.pipeline_mode<synchronous>, transform_indices = @transform_7, window_bounds = array<i64: 10, 160>}, {transform_indices = @transform_8, window_bounds = array<i64: 10, 128>}]} {
    %c0 = arith.constant 0 : index
    %c0_0 = arith.constant 0 : index
    %0 = vector.load %arg2[%c0, %c0_0] : memref<256x96xbf16, #tpu.memory_space<vmem>>, vector<256x96xbf16>
    %c0_1 = arith.constant 0 : index
    %c0_2 = arith.constant 0 : index
    %1 = vector.load %arg3[%c0_1, %c0_2] : memref<256x1xf32, #tpu.memory_space<vmem>>, vector<256x1xf32>
    %cst = arith.constant 0.000000e+00 : bf16
    %2 = vector.broadcast %cst : bf16 to vector<256x128xbf16>
    %c0_3 = arith.constant 0 : index
    %c0_4 = arith.constant 0 : index
    %3 = vector.load %arg10[%c0_3, %c0_4] : memref<3840x128xbf16, #tpu.memory_space<vmem>>, vector<256x128xbf16>
    tpu.vector_store %arg10[%c0_3, %c0_4], %2 {strides = array<i32>} : memref<3840x128xbf16, #tpu.memory_space<vmem>>, vector<256x128xbf16>,
    %c0_5 = arith.constant 0 : index
    %c0_6 = arith.constant 0 : index
    %4 = vector.load %arg1[%c0_5, %c0_6] : memref<960x128xbf16, #tpu.memory_space<vmem>>, vector<96x128xbf16>
    %cst_7 = arith.constant dense<0.000000e+00> : vector<256x128xf32>
    %5 = tpu.matmul %0, %4, %cst_7 {dimension_numbers = #tpu.dot_dimension_numbers<[1], [0], [0], [1], [0, 0, 1, 1], [], []>} : vector<256x96xbf16>, vector<96x128xbf16>, vector<256x128xf32> -> vector<256x128xf32>
    %6 = vector.broadcast %1 : vector<256x1xf32> to vector<256x128xf32>
    %7 = arith.addf %5, %6 : vector<256x128xf32>
    %cst_8 = arith.constant 0.000000e+00 : f32
    %8 = vector.broadcast %cst_8 : f32 to vector<256x128xf32>
    %9 = arith.maximumf %7, %8 : vector<256x128xf32>
    %10 = arith.truncf %9 : vector<256x128xf32> to vector<256x128xbf16>
    %c256 = arith.constant 256 : index
    %c0_9 = arith.constant 0 : index
    %11 = vector.load %arg10[%c256, %c0_9] : memref<3840x128xbf16, #tpu.memory_space<vmem>>, vector<256x128xbf16>
    tpu.vector_store %arg10[%c256, %c0_9], %10 {strides = array<i32>} : memref<3840x128xbf16, #tpu.memory_space<vmem>>, vector<256x128xbf16>,
    %c64 = arith.constant 64 : index
    %c0_10 = arith.constant 0 : index
    %12 = vector.load %arg1[%c64, %c0_10] : memref<960x128xbf16, #tpu.memory_space<vmem>>, vector<96x128xbf16>
    %cst_11 = arith.constant dense<0.000000e+00> : vector<256x128xf32>
    %13 = tpu.matmul %0, %12, %cst_11 {dimension_numbers = #tpu.dot_dimension_numbers<[1], [0], [0], [1], [0, 0, 1, 1], [], []>} : vector<256x96xbf16>, vector<96x128xbf16>, vector<256x128xf32> -> vector<256x128xf32>
    %14 = vector.broadcast %1 : vector<256x1xf32> to vector<256x128xf32>
    %15 = arith.addf %13, %14 : vector<256x128xf32>
    %cst_12 = arith.constant 0.000000e+00 : f32
    %16 = vector.broadcast %cst_12 : f32 to vector<256x128xf32>
    %17 = arith.maximumf %15, %16 : vector<256x128xf32>
    %18 = arith.truncf %17 : vector<256x128xf32> to vector<256x128xbf16>
    %c512 = arith.constant 512 : index
    %c0_13 = arith.constant 0 : index
    %19 = vector.load %arg10[%c512, %c0_13] : memref<3840x128xbf16, #tpu.memory_space<vmem>>, vector<256x128xbf16>
    tpu.vector_store %arg10[%c512, %c0_13], %18 {strides = array<i32>} : memref<3840x128xbf16, #tpu.memory_space<vmem>>, vector<256x128xbf16>,
    %c128 = arith.constant 128 : index
    %c0_14 = arith.constant 0 : index
    %20 = vector.load %arg1[%c128, %c0_14] : memref<960x128xbf16, #tpu.memory_space<vmem>>, vector<96x128xbf16>
    %cst_15 = arith.constant dense<0.000000e+00> : vector<256x128xf32>
    %21 = tpu.matmul %0, %20, %cst_15 {dimension_numbers = #tpu.dot_dimension_numbers<[1], [0], [0], [1], [0, 0, 1, 1], [], []>} : vector<256x96xbf16>, vector<96x128xbf16>, vector<256x128xf32> -> vector<256x128xf32>
    %22 = vector.broadcast %1 : vector<256x1xf32> to vector<256x128xf32>
    %23 = arith.addf %21, %22 : vector<256x128xf32>
    %cst_16 = arith.constant 0.000000e+00 : f32
    %24 = vector.broadcast %cst_16 : f32 to vector<256x128xf32>
    %25 = arith.maximumf %23, %24 : vector<256x128xf32>
    %26 = arith.truncf %25 : vector<256x128xf32> to vector<256x128xbf16>
    %c768 = arith.constant 768 : index
    %c0_17 = arith.constant 0 : index
    %27 = vector.load %arg10[%c768, %c0_17] : memref<3840x128xbf16, #tpu.memory_space<vmem>>, vector<256x128xbf16>
    tpu.vector_store %arg10[%c768, %c0_17], %26 {strides = array<i32>} : memref<3840x128xbf16, #tpu.memory_space<vmem>>, vector<256x128xbf16>,
    %c192 = arith.constant 192 : index
    %c0_18 = arith.constant 0 : index
    %28 = vector.load %arg1[%c192, %c0_18] : memref<960x128xbf16, #tpu.memory_space<vmem>>, vector<96x128xbf16>
    %cst_19 = arith.constant dense<0.000000e+00> : vector<256x128xf32>
    %29 = tpu.matmul %0, %28, %cst_19 {dimension_numbers = #tpu.dot_dimension_numbers<[1], [0], [0], [1], [0, 0, 1, 1], [], []>} : vector<256x96xbf16>, vector<96x128xbf16>, vector<256x128xf32> -> vector<256x128xf32>
    %30 = vector.broadcast %1 : vector<256x1xf32> to vector<256x128xf32>
    %31 = arith.addf %29, %30 : vector<256x128xf32>
    %cst_20 = arith.constant 0.000000e+00 : f32
    %32 = vector.broadcast %cst_20 : f32 to vector<256x128xf32>
    %33 = arith.maximumf %31, %32 : vector<256x128xf32>
    %34 = arith.truncf %33 : vector<256x128xf32> to vector<256x128xbf16>
    %c1024 = arith.constant 1024 : index
    %c0_21 = arith.constant 0 : index
    %35 = vector.load %arg10[%c1024, %c0_21] : memref<3840x128xbf16, #tpu.memory_space<vmem>>, vector<256x128xbf16>
    tpu.vector_store %arg10[%c1024, %c0_21], %34 {strides = array<i32>} : memref<3840x128xbf16, #tpu.memory_space<vmem>>, vector<256x128xbf16>,
    %c256_22 = arith.constant 256 : index
    %c0_23 = arith.constant 0 : index
    %36 = vector.load %arg1[%c256_22, %c0_23] : memref<960x128xbf16, #tpu.memory_space<vmem>>, vector<96x128xbf16>
    %cst_24 = arith.constant dense<0.000000e+00> : vector<256x128xf32>
    %37 = tpu.matmul %0, %36, %cst_24 {dimension_numbers = #tpu.dot_dimension_numbers<[1], [0], [0], [1], [0, 0, 1, 1], [], []>} : vector<256x96xbf16>, vector<96x128xbf16>, vector<256x128xf32> -> vector<256x128xf32>
    %38 = vector.broadcast %1 : vector<256x1xf32> to vector<256x128xf32>
    %39 = arith.addf %37, %38 : vector<256x128xf32>
    %cst_25 = arith.constant 0.000000e+00 : f32
    %40 = vector.broadcast %cst_25 : f32 to vector<256x128xf32>
    %41 = arith.maximumf %39, %40 : vector<256x128xf32>
    %42 = arith.truncf %41 : vector<256x128xf32> to vector<256x128xbf16>
    %c1280 = arith.constant 1280 : index
    %c0_26 = arith.constant 0 : index
    %43 = vector.load %arg10[%c1280, %c0_26] : memref<3840x128xbf16, #tpu.memory_space<vmem>>, vector<256x128xbf16>
    tpu.vector_store %arg10[%c1280, %c0_26], %42 {strides = array<i32>} : memref<3840x128xbf16, #tpu.memory_space<vmem>>, vector<256x128xbf16>,
    %c320 = arith.constant 320 : index
    %c0_27 = arith.constant 0 : index
    %44 = vector.load %arg1[%c320, %c0_27] : memref<960x128xbf16, #tpu.memory_space<vmem>>, vector<96x128xbf16>
    %cst_28 = arith.constant dense<0.000000e+00> : vector<256x128xf32>
    %45 = tpu.matmul %0, %44, %cst_28 {dimension_numbers = #tpu.dot_dimension_numbers<[1], [0], [0], [1], [0, 0, 1, 1], [], []>} : vector<256x96xbf16>, vector<96x128xbf16>, vector<256x128xf32> -> vector<256x128xf32>
    %46 = vector.broadcast %1 : vector<256x1xf32> to vector<256x128xf32>
    %47 = arith.addf %45, %46 : vector<256x128xf32>
    %cst_29 = arith.constant 0.000000e+00 : f32
    %48 = vector.broadcast %cst_29 : f32 to vector<256x128xf32>
    %49 = arith.maximumf %47, %48 : vector<256x128xf32>
    %50 = arith.truncf %49 : vector<256x128xf32> to vector<256x128xbf16>
    %c1536 = arith.constant 1536 : index
    %c0_30 = arith.constant 0 : index
    %51 = vector.load %arg10[%c1536, %c0_30] : memref<3840x128xbf16, #tpu.memory_space<vmem>>, vector<256x128xbf16>
    tpu.vector_store %arg10[%c1536, %c0_30], %50 {strides = array<i32>} : memref<3840x128xbf16, #tpu.memory_space<vmem>>, vector<256x128xbf16>,
    %c384 = arith.constant 384 : index
    %c0_31 = arith.constant 0 : index
    %52 = vector.load %arg1[%c384, %c0_31] : memref<960x128xbf16, #tpu.memory_space<vmem>>, vector<96x128xbf16>
    %cst_32 = arith.constant dense<0.000000e+00> : vector<256x128xf32>
    %53 = tpu.matmul %0, %52, %cst_32 {dimension_numbers = #tpu.dot_dimension_numbers<[1], [0], [0], [1], [0, 0, 1, 1], [], []>} : vector<256x96xbf16>, vector<96x128xbf16>, vector<256x128xf32> -> vector<256x128xf32>
    %54 = vector.broadcast %1 : vector<256x1xf32> to vector<256x128xf32>
    %55 = arith.addf %53, %54 : vector<256x128xf32>
    %cst_33 = arith.constant 0.000000e+00 : f32
    %56 = vector.broadcast %cst_33 : f32 to vector<256x128xf32>
    %57 = arith.maximumf %55, %56 : vector<256x128xf32>
    %58 = arith.truncf %57 : vector<256x128xf32> to vector<256x128xbf16>
    %c1792 = arith.constant 1792 : index
    %c0_34 = arith.constant 0 : index
    %59 = vector.load %arg10[%c1792, %c0_34] : memref<3840x128xbf16, #tpu.memory_space<vmem>>, vector<256x128xbf16>
    tpu.vector_store %arg10[%c1792, %c0_34], %58 {strides = array<i32>} : memref<3840x128xbf16, #tpu.memory_space<vmem>>, vector<256x128xbf16>,
    %c448 = arith.constant 448 : index
    %c0_35 = arith.constant 0 : index
    %60 = vector.load %arg1[%c448, %c0_35] : memref<960x128xbf16, #tpu.memory_space<vmem>>, vector<96x128xbf16>
    %cst_36 = arith.constant dense<0.000000e+00> : vector<256x128xf32>
    %61 = tpu.matmul %0, %60, %cst_36 {dimension_numbers = #tpu.dot_dimension_numbers<[1], [0], [0], [1], [0, 0, 1, 1], [], []>} : vector<256x96xbf16>, vector<96x128xbf16>, vector<256x128xf32> -> vector<256x128xf32>
    %62 = vector.broadcast %1 : vector<256x1xf32> to vector<256x128xf32>
    %63 = arith.addf %61, %62 : vector<256x128xf32>
    %cst_37 = arith.constant 0.000000e+00 : f32
    %64 = vector.broadcast %cst_37 : f32 to vector<256x128xf32>
    %65 = arith.maximumf %63, %64 : vector<256x128xf32>
    %66 = arith.truncf %65 : vector<256x128xf32> to vector<256x128xbf16>
    %c2048 = arith.constant 2048 : index
    %c0_38 = arith.constant 0 : index
    %67 = vector.load %arg10[%c2048, %c0_38] : memref<3840x128xbf16, #tpu.memory_space<vmem>>, vector<256x128xbf16>
    tpu.vector_store %arg10[%c2048, %c0_38], %66 {strides = array<i32>} : memref<3840x128xbf16, #tpu.memory_space<vmem>>, vector<256x128xbf16>,
    %c512_39 = arith.constant 512 : index
    %c0_40 = arith.constant 0 : index
    %68 = vector.load %arg1[%c512_39, %c0_40] : memref<960x128xbf16, #tpu.memory_space<vmem>>, vector<96x128xbf16>
    %cst_41 = arith.constant dense<0.000000e+00> : vector<256x128xf32>
    %69 = tpu.matmul %0, %68, %cst_41 {dimension_numbers = #tpu.dot_dimension_numbers<[1], [0], [0], [1], [0, 0, 1, 1], [], []>} : vector<256x96xbf16>, vector<96x128xbf16>, vector<256x128xf32> -> vector<256x128xf32>
    %70 = vector.broadcast %1 : vector<256x1xf32> to vector<256x128xf32>
    %71 = arith.addf %69, %70 : vector<256x128xf32>
    %cst_42 = arith.constant 0.000000e+00 : f32
    %72 = vector.broadcast %cst_42 : f32 to vector<256x128xf32>
    %73 = arith.maximumf %71, %72 : vector<256x128xf32>
    %74 = arith.truncf %73 : vector<256x128xf32> to vector<256x128xbf16>
    %c2304 = arith.constant 2304 : index
    %c0_43 = arith.constant 0 : index
    %75 = vector.load %arg10[%c2304, %c0_43] : memref<3840x128xbf16, #tpu.memory_space<vmem>>, vector<256x128xbf16>
    tpu.vector_store %arg10[%c2304, %c0_43], %74 {strides = array<i32>} : memref<3840x128xbf16, #tpu.memory_space<vmem>>, vector<256x128xbf16>,
    %c576 = arith.constant 576 : index
    %c0_44 = arith.constant 0 : index
    %76 = vector.load %arg1[%c576, %c0_44] : memref<960x128xbf16, #tpu.memory_space<vmem>>, vector<96x128xbf16>
    %cst_45 = arith.constant dense<0.000000e+00> : vector<256x128xf32>
    %77 = tpu.matmul %0, %76, %cst_45 {dimension_numbers = #tpu.dot_dimension_numbers<[1], [0], [0], [1], [0, 0, 1, 1], [], []>} : vector<256x96xbf16>, vector<96x128xbf16>, vector<256x128xf32> -> vector<256x128xf32>
    %78 = vector.broadcast %1 : vector<256x1xf32> to vector<256x128xf32>
    %79 = arith.addf %77, %78 : vector<256x128xf32>
    %cst_46 = arith.constant 0.000000e+00 : f32
    %80 = vector.broadcast %cst_46 : f32 to vector<256x128xf32>
    %81 = arith.maximumf %79, %80 : vector<256x128xf32>
    %82 = arith.truncf %81 : vector<256x128xf32> to vector<256x128xbf16>
    %c2560 = arith.constant 2560 : index
    %c0_47 = arith.constant 0 : index
    %83 = vector.load %arg10[%c2560, %c0_47] : memref<3840x128xbf16, #tpu.memory_space<vmem>>, vector<256x128xbf16>
    tpu.vector_store %arg10[%c2560, %c0_47], %82 {strides = array<i32>} : memref<3840x128xbf16, #tpu.memory_space<vmem>>, vector<256x128xbf16>,
    %c640 = arith.constant 640 : index
    %c0_48 = arith.constant 0 : index
    %84 = vector.load %arg1[%c640, %c0_48] : memref<960x128xbf16, #tpu.memory_space<vmem>>, vector<96x128xbf16>
    %cst_49 = arith.constant dense<0.000000e+00> : vector<256x128xf32>
    %85 = tpu.matmul %0, %84, %cst_49 {dimension_numbers = #tpu.dot_dimension_numbers<[1], [0], [0], [1], [0, 0, 1, 1], [], []>} : vector<256x96xbf16>, vector<96x128xbf16>, vector<256x128xf32> -> vector<256x128xf32>
    %86 = vector.broadcast %1 : vector<256x1xf32> to vector<256x128xf32>
    %87 = arith.addf %85, %86 : vector<256x128xf32>
    %cst_50 = arith.constant 0.000000e+00 : f32
    %88 = vector.broadcast %cst_50 : f32 to vector<256x128xf32>
    %89 = arith.maximumf %87, %88 : vector<256x128xf32>
    %90 = arith.truncf %89 : vector<256x128xf32> to vector<256x128xbf16>
    %c2816 = arith.constant 2816 : index
    %c0_51 = arith.constant 0 : index
    %91 = vector.load %arg10[%c2816, %c0_51] : memref<3840x128xbf16, #tpu.memory_space<vmem>>, vector<256x128xbf16>
    tpu.vector_store %arg10[%c2816, %c0_51], %90 {strides = array<i32>} : memref<3840x128xbf16, #tpu.memory_space<vmem>>, vector<256x128xbf16>,
    %c704 = arith.constant 704 : index
    %c0_52 = arith.constant 0 : index
    %92 = vector.load %arg1[%c704, %c0_52] : memref<960x128xbf16, #tpu.memory_space<vmem>>, vector<96x128xbf16>
    %cst_53 = arith.constant dense<0.000000e+00> : vector<256x128xf32>
    %93 = tpu.matmul %0, %92, %cst_53 {dimension_numbers = #tpu.dot_dimension_numbers<[1], [0], [0], [1], [0, 0, 1, 1], [], []>} : vector<256x96xbf16>, vector<96x128xbf16>, vector<256x128xf32> -> vector<256x128xf32>
    %94 = vector.broadcast %1 : vector<256x1xf32> to vector<256x128xf32>
    %95 = arith.addf %93, %94 : vector<256x128xf32>
    %cst_54 = arith.constant 0.000000e+00 : f32
    %96 = vector.broadcast %cst_54 : f32 to vector<256x128xf32>
    %97 = arith.maximumf %95, %96 : vector<256x128xf32>
    %98 = arith.truncf %97 : vector<256x128xf32> to vector<256x128xbf16>
    %c3072 = arith.constant 3072 : index
    %c0_55 = arith.constant 0 : index
    %99 = vector.load %arg10[%c3072, %c0_55] : memref<3840x128xbf16, #tpu.memory_space<vmem>>, vector<256x128xbf16>
    tpu.vector_store %arg10[%c3072, %c0_55], %98 {strides = array<i32>} : memref<3840x128xbf16, #tpu.memory_space<vmem>>, vector<256x128xbf16>,
    %c768_56 = arith.constant 768 : index
    %c0_57 = arith.constant 0 : index
    %100 = vector.load %arg1[%c768_56, %c0_57] : memref<960x128xbf16, #tpu.memory_space<vmem>>, vector<96x128xbf16>
    %cst_58 = arith.constant dense<0.000000e+00> : vector<256x128xf32>
    %101 = tpu.matmul %0, %100, %cst_58 {dimension_numbers = #tpu.dot_dimension_numbers<[1], [0], [0], [1], [0, 0, 1, 1], [], []>} : vector<256x96xbf16>, vector<96x128xbf16>, vector<256x128xf32> -> vector<256x128xf32>
    %102 = vector.broadcast %1 : vector<256x1xf32> to vector<256x128xf32>
    %103 = arith.addf %101, %102 : vector<256x128xf32>
    %cst_59 = arith.constant 0.000000e+00 : f32
    %104 = vector.broadcast %cst_59 : f32 to vector<256x128xf32>
    %105 = arith.maximumf %103, %104 : vector<256x128xf32>
    %106 = arith.truncf %105 : vector<256x128xf32> to vector<256x128xbf16>
    %c3328 = arith.constant 3328 : index
    %c0_60 = arith.constant 0 : index
    %107 = vector.load %arg10[%c3328, %c0_60] : memref<3840x128xbf16, #tpu.memory_space<vmem>>, vector<256x128xbf16>
    tpu.vector_store %arg10[%c3328, %c0_60], %106 {strides = array<i32>} : memref<3840x128xbf16, #tpu.memory_space<vmem>>, vector<256x128xbf16>,
    %c832 = arith.constant 832 : index
    %c0_61 = arith.constant 0 : index
    %108 = vector.load %arg1[%c832, %c0_61] : memref<960x128xbf16, #tpu.memory_space<vmem>>, vector<96x128xbf16>
    %cst_62 = arith.constant dense<0.000000e+00> : vector<256x128xf32>
    %109 = tpu.matmul %0, %108, %cst_62 {dimension_numbers = #tpu.dot_dimension_numbers<[1], [0], [0], [1], [0, 0, 1, 1], [], []>} : vector<256x96xbf16>, vector<96x128xbf16>, vector<256x128xf32> -> vector<256x128xf32>
    %110 = vector.broadcast %1 : vector<256x1xf32> to vector<256x128xf32>
    %111 = arith.addf %109, %110 : vector<256x128xf32>
    %cst_63 = arith.constant 0.000000e+00 : f32
    %112 = vector.broadcast %cst_63 : f32 to vector<256x128xf32>
    %113 = arith.maximumf %111, %112 : vector<256x128xf32>
    %114 = arith.truncf %113 : vector<256x128xf32> to vector<256x128xbf16>
    %c3584 = arith.constant 3584 : index
    %c0_64 = arith.constant 0 : index
    %115 = vector.load %arg10[%c3584, %c0_64] : memref<3840x128xbf16, #tpu.memory_space<vmem>>, vector<256x128xbf16>
    tpu.vector_store %arg10[%c3584, %c0_64], %114 {strides = array<i32>} : memref<3840x128xbf16, #tpu.memory_space<vmem>>, vector<256x128xbf16>,
    %c0_65 = arith.constant 0 : index
    %c0_66 = arith.constant 0 : index
    %116 = vector.load %arg4[%c0_65, %c0_66] : memref<160x768xbf16, #tpu.memory_space<vmem>>, vector<160x768xbf16>
    %c0_67 = arith.constant 0 : index
    %c0_68 = arith.constant 0 : index
    %117 = vector.load %arg5[%c0_67, %c0_68] : memref<160x1xf32, #tpu.memory_space<vmem>>, vector<160x1xf32>
    %cst_69 = arith.constant 0.000000e+00 : bf16
    %118 = vector.broadcast %cst_69 : bf16 to vector<160x128xbf16>
    %c0_70 = arith.constant 0 : index
    %c0_71 = arith.constant 0 : index
    %119 = vector.load %arg11[%c0_70, %c0_71] : memref<1440x128xbf16, #tpu.memory_space<vmem>>, vector<160x128xbf16>
    tpu.vector_store %arg11[%c0_70, %c0_71], %118 {strides = array<i32>} : memref<1440x128xbf16, #tpu.memory_space<vmem>>, vector<160x128xbf16>,
    %cst_72 = arith.constant 0.000000e+00 : bf16
    %120 = vector.broadcast %cst_72 : bf16 to vector<160x128xbf16>
    %c1280_73 = arith.constant 1280 : index
    %c0_74 = arith.constant 0 : index
    %121 = vector.load %arg11[%c1280_73, %c0_74] : memref<1440x128xbf16, #tpu.memory_space<vmem>>, vector<160x128xbf16>
    tpu.vector_store %arg11[%c1280_73, %c0_74], %120 {strides = array<i32>} : memref<1440x128xbf16, #tpu.memory_space<vmem>>, vector<160x128xbf16>,
    %c0_75 = arith.constant 0 : index
    %c0_76 = arith.constant 0 : index
    %122 = vector.load %arg10[%c0_75, %c0_76] : memref<3840x128xbf16, #tpu.memory_space<vmem>>, vector<768x128xbf16>
    %cst_77 = arith.constant dense<0.000000e+00> : vector<160x128xf32>
    %123 = tpu.matmul %116, %122, %cst_77 {dimension_numbers = #tpu.dot_dimension_numbers<[1], [0], [0], [1], [0, 0, 1, 1], [], []>} : vector<160x768xbf16>, vector<768x128xbf16>, vector<160x128xf32> -> vector<160x128xf32>
    %124 = vector.broadcast %117 : vector<160x1xf32> to vector<160x128xf32>
    %125 = arith.addf %123, %124 : vector<160x128xf32>
    %cst_78 = arith.constant 0.000000e+00 : f32
    %126 = vector.broadcast %cst_78 : f32 to vector<160x128xf32>
    %127 = arith.maximumf %125, %126 : vector<160x128xf32>
    %128 = arith.truncf %127 : vector<160x128xf32> to vector<160x128xbf16>
    %c160 = arith.constant 160 : index
    %c0_79 = arith.constant 0 : index
    %129 = vector.load %arg11[%c160, %c0_79] : memref<1440x128xbf16, #tpu.memory_space<vmem>>, vector<160x128xbf16>
    tpu.vector_store %arg11[%c160, %c0_79], %128 {strides = array<i32>} : memref<1440x128xbf16, #tpu.memory_space<vmem>>, vector<160x128xbf16>,
    %c512_80 = arith.constant 512 : index
    %c0_81 = arith.constant 0 : index
    %130 = vector.load %arg10[%c512_80, %c0_81] : memref<3840x128xbf16, #tpu.memory_space<vmem>>, vector<768x128xbf16>
    %cst_82 = arith.constant dense<0.000000e+00> : vector<160x128xf32>
    %131 = tpu.matmul %116, %130, %cst_82 {dimension_numbers = #tpu.dot_dimension_numbers<[1], [0], [0], [1], [0, 0, 1, 1], [], []>} : vector<160x768xbf16>, vector<768x128xbf16>, vector<160x128xf32> -> vector<160x128xf32>
    %132 = vector.broadcast %117 : vector<160x1xf32> to vector<160x128xf32>
    %133 = arith.addf %131, %132 : vector<160x128xf32>
    %cst_83 = arith.constant 0.000000e+00 : f32
    %134 = vector.broadcast %cst_83 : f32 to vector<160x128xf32>
    %135 = arith.maximumf %133, %134 : vector<160x128xf32>
    %136 = arith.truncf %135 : vector<160x128xf32> to vector<160x128xbf16>
    %c320_84 = arith.constant 320 : index
    %c0_85 = arith.constant 0 : index
    %137 = vector.load %arg11[%c320_84, %c0_85] : memref<1440x128xbf16, #tpu.memory_space<vmem>>, vector<160x128xbf16>
    tpu.vector_store %arg11[%c320_84, %c0_85], %136 {strides = array<i32>} : memref<1440x128xbf16, #tpu.memory_space<vmem>>, vector<160x128xbf16>,
    %c1024_86 = arith.constant 1024 : index
    %c0_87 = arith.constant 0 : index
    %138 = vector.load %arg10[%c1024_86, %c0_87] : memref<3840x128xbf16, #tpu.memory_space<vmem>>, vector<768x128xbf16>
    %cst_88 = arith.constant dense<0.000000e+00> : vector<160x128xf32>
    %139 = tpu.matmul %116, %138, %cst_88 {dimension_numbers = #tpu.dot_dimension_numbers<[1], [0], [0], [1], [0, 0, 1, 1], [], []>} : vector<160x768xbf16>, vector<768x128xbf16>, vector<160x128xf32> -> vector<160x128xf32>
    %140 = vector.broadcast %117 : vector<160x1xf32> to vector<160x128xf32>
    %141 = arith.addf %139, %140 : vector<160x128xf32>
    %cst_89 = arith.constant 0.000000e+00 : f32
    %142 = vector.broadcast %cst_89 : f32 to vector<160x128xf32>
    %143 = arith.maximumf %141, %142 : vector<160x128xf32>
    %144 = arith.truncf %143 : vector<160x128xf32> to vector<160x128xbf16>
    %c480 = arith.constant 480 : index
    %c0_90 = arith.constant 0 : index
    %145 = vector.load %arg11[%c480, %c0_90] : memref<1440x128xbf16, #tpu.memory_space<vmem>>, vector<160x128xbf16>
    tpu.vector_store %arg11[%c480, %c0_90], %144 {strides = array<i32>} : memref<1440x128xbf16, #tpu.memory_space<vmem>>, vector<160x128xbf16>,
    %c1536_91 = arith.constant 1536 : index
    %c0_92 = arith.constant 0 : index
    %146 = vector.load %arg10[%c1536_91, %c0_92] : memref<3840x128xbf16, #tpu.memory_space<vmem>>, vector<768x128xbf16>
    %cst_93 = arith.constant dense<0.000000e+00> : vector<160x128xf32>
    %147 = tpu.matmul %116, %146, %cst_93 {dimension_numbers = #tpu.dot_dimension_numbers<[1], [0], [0], [1], [0, 0, 1, 1], [], []>} : vector<160x768xbf16>, vector<768x128xbf16>, vector<160x128xf32> -> vector<160x128xf32>
    %148 = vector.broadcast %117 : vector<160x1xf32> to vector<160x128xf32>
    %149 = arith.addf %147, %148 : vector<160x128xf32>
    %cst_94 = arith.constant 0.000000e+00 : f32
    %150 = vector.broadcast %cst_94 : f32 to vector<160x128xf32>
    %151 = arith.maximumf %149, %150 : vector<160x128xf32>
    %152 = arith.truncf %151 : vector<160x128xf32> to vector<160x128xbf16>
    %c640_95 = arith.constant 640 : index
    %c0_96 = arith.constant 0 : index
    %153 = vector.load %arg11[%c640_95, %c0_96] : memref<1440x128xbf16, #tpu.memory_space<vmem>>, vector<160x128xbf16>
    tpu.vector_store %arg11[%c640_95, %c0_96], %152 {strides = array<i32>} : memref<1440x128xbf16, #tpu.memory_space<vmem>>, vector<160x128xbf16>,
    %c2048_97 = arith.constant 2048 : index
    %c0_98 = arith.constant 0 : index
    %154 = vector.load %arg10[%c2048_97, %c0_98] : memref<3840x128xbf16, #tpu.memory_space<vmem>>, vector<768x128xbf16>
    %cst_99 = arith.constant dense<0.000000e+00> : vector<160x128xf32>
    %155 = tpu.matmul %116, %154, %cst_99 {dimension_numbers = #tpu.dot_dimension_numbers<[1], [0], [0], [1], [0, 0, 1, 1], [], []>} : vector<160x768xbf16>, vector<768x128xbf16>, vector<160x128xf32> -> vector<160x128xf32>
    %156 = vector.broadcast %117 : vector<160x1xf32> to vector<160x128xf32>
    %157 = arith.addf %155, %156 : vector<160x128xf32>
    %cst_100 = arith.constant 0.000000e+00 : f32
    %158 = vector.broadcast %cst_100 : f32 to vector<160x128xf32>
    %159 = arith.maximumf %157, %158 : vector<160x128xf32>
    %160 = arith.truncf %159 : vector<160x128xf32> to vector<160x128xbf16>
    %c800 = arith.constant 800 : index
    %c0_101 = arith.constant 0 : index
    %161 = vector.load %arg11[%c800, %c0_101] : memref<1440x128xbf16, #tpu.memory_space<vmem>>, vector<160x128xbf16>
    tpu.vector_store %arg11[%c800, %c0_101], %160 {strides = array<i32>} : memref<1440x128xbf16, #tpu.memory_space<vmem>>, vector<160x128xbf16>,
    %c2560_102 = arith.constant 2560 : index
    %c0_103 = arith.constant 0 : index
    %162 = vector.load %arg10[%c2560_102, %c0_103] : memref<3840x128xbf16, #tpu.memory_space<vmem>>, vector<768x128xbf16>
    %cst_104 = arith.constant dense<0.000000e+00> : vector<160x128xf32>
    %163 = tpu.matmul %116, %162, %cst_104 {dimension_numbers = #tpu.dot_dimension_numbers<[1], [0], [0], [1], [0, 0, 1, 1], [], []>} : vector<160x768xbf16>, vector<768x128xbf16>, vector<160x128xf32> -> vector<160x128xf32>
    %164 = vector.broadcast %117 : vector<160x1xf32> to vector<160x128xf32>
    %165 = arith.addf %163, %164 : vector<160x128xf32>
    %cst_105 = arith.constant 0.000000e+00 : f32
    %166 = vector.broadcast %cst_105 : f32 to vector<160x128xf32>
    %167 = arith.maximumf %165, %166 : vector<160x128xf32>
    %168 = arith.truncf %167 : vector<160x128xf32> to vector<160x128xbf16>
    %c960 = arith.constant 960 : index
    %c0_106 = arith.constant 0 : index
    %169 = vector.load %arg11[%c960, %c0_106] : memref<1440x128xbf16, #tpu.memory_space<vmem>>, vector<160x128xbf16>
    tpu.vector_store %arg11[%c960, %c0_106], %168 {strides = array<i32>} : memref<1440x128xbf16, #tpu.memory_space<vmem>>, vector<160x128xbf16>,
    %c3072_107 = arith.constant 3072 : index
    %c0_108 = arith.constant 0 : index
    %170 = vector.load %arg10[%c3072_107, %c0_108] : memref<3840x128xbf16, #tpu.memory_space<vmem>>, vector<768x128xbf16>
    %cst_109 = arith.constant dense<0.000000e+00> : vector<160x128xf32>
    %171 = tpu.matmul %116, %170, %cst_109 {dimension_numbers = #tpu.dot_dimension_numbers<[1], [0], [0], [1], [0, 0, 1, 1], [], []>} : vector<160x768xbf16>, vector<768x128xbf16>, vector<160x128xf32> -> vector<160x128xf32>
    %172 = vector.broadcast %117 : vector<160x1xf32> to vector<160x128xf32>
    %173 = arith.addf %171, %172 : vector<160x128xf32>
    %cst_110 = arith.constant 0.000000e+00 : f32
    %174 = vector.broadcast %cst_110 : f32 to vector<160x128xf32>
    %175 = arith.maximumf %173, %174 : vector<160x128xf32>
    %176 = arith.truncf %175 : vector<160x128xf32> to vector<160x128xbf16>
    %c1120 = arith.constant 1120 : index
    %c0_111 = arith.constant 0 : index
    %177 = vector.load %arg11[%c1120, %c0_111] : memref<1440x128xbf16, #tpu.memory_space<vmem>>, vector<160x128xbf16>
    tpu.vector_store %arg11[%c1120, %c0_111], %176 {strides = array<i32>} : memref<1440x128xbf16, #tpu.memory_space<vmem>>, vector<160x128xbf16>,
    %c0_112 = arith.constant 0 : index
    %c0_113 = arith.constant 0 : index
    %178 = vector.load %arg6[%c0_112, %c0_113] : memref<40x480xbf16, #tpu.memory_space<vmem>>, vector<40x480xbf16>
    %c0_114 = arith.constant 0 : index
    %c0_115 = arith.constant 0 : index
    %179 = vector.load %arg7[%c0_114, %c0_115] : memref<40x1xf32, #tpu.memory_space<vmem>>, vector<40x1xf32>
    %c0_116 = arith.constant 0 : index
    %c0_117 = arith.constant 0 : index
    %180 = vector.load %arg11[%c0_116, %c0_117] : memref<1440x128xbf16, #tpu.memory_space<vmem>>, vector<480x128xbf16>
    %cst_118 = arith.constant dense<0.000000e+00> : vector<40x128xf32>
    %181 = tpu.matmul %178, %180, %cst_118 {dimension_numbers = #tpu.dot_dimension_numbers<[1], [0], [0], [1], [0, 0, 1, 1], [], []>} : vector<40x480xbf16>, vector<480x128xbf16>, vector<40x128xf32> -> vector<40x128xf32>
    %182 = vector.broadcast %179 : vector<40x1xf32> to vector<40x128xf32>
    %183 = arith.addf %181, %182 : vector<40x128xf32>
    %cst_119 = arith.constant 0.000000e+00 : f32
    %184 = vector.broadcast %cst_119 : f32 to vector<40x128xf32>
    %185 = arith.maximumf %183, %184 : vector<40x128xf32>
    %c320_120 = arith.constant 320 : index
    %c0_121 = arith.constant 0 : index
    %186 = vector.load %arg11[%c320_120, %c0_121] : memref<1440x128xbf16, #tpu.memory_space<vmem>>, vector<480x128xbf16>
    %cst_122 = arith.constant dense<0.000000e+00> : vector<40x128xf32>
    %187 = tpu.matmul %178, %186, %cst_122 {dimension_numbers = #tpu.dot_dimension_numbers<[1], [0], [0], [1], [0, 0, 1, 1], [], []>} : vector<40x480xbf16>, vector<480x128xbf16>, vector<40x128xf32> -> vector<40x128xf32>
    %188 = vector.broadcast %179 : vector<40x1xf32> to vector<40x128xf32>
    %189 = arith.addf %187, %188 : vector<40x128xf32>
    %cst_123 = arith.constant 0.000000e+00 : f32
    %190 = vector.broadcast %cst_123 : f32 to vector<40x128xf32>
    %191 = arith.maximumf %189, %190 : vector<40x128xf32>
    %c640_124 = arith.constant 640 : index
    %c0_125 = arith.constant 0 : index
    %192 = vector.load %arg11[%c640_124, %c0_125] : memref<1440x128xbf16, #tpu.memory_space<vmem>>, vector<480x128xbf16>
    %cst_126 = arith.constant dense<0.000000e+00> : vector<40x128xf32>
    %193 = tpu.matmul %178, %192, %cst_126 {dimension_numbers = #tpu.dot_dimension_numbers<[1], [0], [0], [1], [0, 0, 1, 1], [], []>} : vector<40x480xbf16>, vector<480x128xbf16>, vector<40x128xf32> -> vector<40x128xf32>
    %194 = vector.broadcast %179 : vector<40x1xf32> to vector<40x128xf32>
    %195 = arith.addf %193, %194 : vector<40x128xf32>
    %cst_127 = arith.constant 0.000000e+00 : f32
    %196 = vector.broadcast %cst_127 : f32 to vector<40x128xf32>
    %197 = arith.maximumf %195, %196 : vector<40x128xf32>
    %c960_128 = arith.constant 960 : index
    %c0_129 = arith.constant 0 : index
    %198 = vector.load %arg11[%c960_128, %c0_129] : memref<1440x128xbf16, #tpu.memory_space<vmem>>, vector<480x128xbf16>
    %cst_130 = arith.constant dense<0.000000e+00> : vector<40x128xf32>
    %199 = tpu.matmul %178, %198, %cst_130 {dimension_numbers = #tpu.dot_dimension_numbers<[1], [0], [0], [1], [0, 0, 1, 1], [], []>} : vector<40x480xbf16>, vector<480x128xbf16>, vector<40x128xf32> -> vector<40x128xf32>
    %200 = vector.broadcast %179 : vector<40x1xf32> to vector<40x128xf32>
    %201 = arith.addf %199, %200 : vector<40x128xf32>
    %cst_131 = arith.constant 0.000000e+00 : f32
    %202 = vector.broadcast %cst_131 : f32 to vector<40x128xf32>
    %203 = arith.maximumf %201, %202 : vector<40x128xf32>
    %204 = tpu.concatenate %185, %191, %197, %203 in 0 : vector<40x128xf32>, vector<40x128xf32>, vector<40x128xf32>, vector<40x128xf32> -> vector<160x128xf32>
    %c0_132 = arith.constant 0 : index
    %c0_133 = arith.constant 0 : index
    %205 = vector.load %arg8[%c0_132, %c0_133] : memref<10x160xf32, #tpu.memory_space<vmem>>, vector<10x160xf32>
    %cst_134 = arith.constant dense<0.000000e+00> : vector<10x128xf32>
    %206 = tpu.matmul %205, %204, %cst_134 {dimension_numbers = #tpu.dot_dimension_numbers<[1], [0], [0], [1], [0, 0, 1, 1], [], []>} : vector<10x160xf32>, vector<160x128xf32>, vector<10x128xf32> -> vector<10x128xf32>
    %c0_135 = arith.constant 0 : index
    %c0_136 = arith.constant 0 : index
    %207 = vector.load %arg9[%c0_135, %c0_136] : memref<10x128xf32, #tpu.memory_space<vmem>>, vector<10x128xf32>
    tpu.vector_store %arg9[%c0_135, %c0_136], %206 {strides = array<i32>} : memref<10x128xf32, #tpu.memory_space<vmem>>, vector<10x128xf32>,
    return
  }
  func.func @transform_0(%arg0: i32) -> (i32, i32) {
    %c0_i32 = arith.constant 0 : i32
    %c0_i32_0 = arith.constant 0 : i32
    return %c0_i32, %arg0 : i32, i32
  }
  func.func @transform_1(%arg0: i32) -> (i32, i32) {
    %c0_i32 = arith.constant 0 : i32
    %c0_i32_0 = arith.constant 0 : i32
    %c0_i32_1 = arith.constant 0 : i32
    return %c0_i32, %c0_i32_0 : i32, i32
  }
  func.func @transform_2(%arg0: i32) -> (i32, i32) {
    %c0_i32 = arith.constant 0 : i32
    %c0_i32_0 = arith.constant 0 : i32
    %c0_i32_1 = arith.constant 0 : i32
    return %c0_i32, %c0_i32_0 : i32, i32
  }
  func.func @transform_3(%arg0: i32) -> (i32, i32) {
    %c0_i32 = arith.constant 0 : i32
    %c0_i32_0 = arith.constant 0 : i32
    %c0_i32_1 = arith.constant 0 : i32
    return %c0_i32, %c0_i32_0 : i32, i32
  }
  func.func @transform_4(%arg0: i32) -> (i32, i32) {
    %c0_i32 = arith.constant 0 : i32
    %c0_i32_0 = arith.constant 0 : i32
    %c0_i32_1 = arith.constant 0 : i32
    return %c0_i32, %c0_i32_0 : i32, i32
  }
  func.func @transform_5(%arg0: i32) -> (i32, i32) {
    %c0_i32 = arith.constant 0 : i32
    %c0_i32_0 = arith.constant 0 : i32
    %c0_i32_1 = arith.constant 0 : i32
    return %c0_i32, %c0_i32_0 : i32, i32
  }
  func.func @transform_6(%arg0: i32) -> (i32, i32) {
    %c0_i32 = arith.constant 0 : i32
    %c0_i32_0 = arith.constant 0 : i32
    %c0_i32_1 = arith.constant 0 : i32
    return %c0_i32, %c0_i32_0 : i32, i32
  }
  func.func @transform_7(%arg0: i32) -> (i32, i32) {
    %c0_i32 = arith.constant 0 : i32
    %c0_i32_0 = arith.constant 0 : i32
    %c0_i32_1 = arith.constant 0 : i32
    return %c0_i32, %c0_i32_0 : i32, i32
  }
  func.func @transform_8(%arg0: i32) -> (i32, i32) {
    %c0_i32 = arith.constant 0 : i32
    %c0_i32_0 = arith.constant 0 : i32
    return %c0_i32, %arg0 : i32, i32
  }
}

</mosaic_0001>

<llo_original>
// kernel: mnist_cnn_forward.1
$region0: #{mnist_cnn_forward.1}
  #allocation0 [shape = 'u32[]', space=smem, size = 0x4, offset = 0x4, fixed_abs, tag = 'smem constant byte address 0x4 - core index']
  #allocation1 [shape = 'u32[144,128]{1,0:T(1,128)}', space=vmem, size = 0x12000, scoped, tag = 'internal scratch']
  #allocation2 [shape = 'bf16[3840,128]{1,0:T(8,128)(2,1)}', space=vmem, size = 0xf0000, scoped, tag = 'scratch operand']
  #allocation3 [shape = 'bf16[1440,128]{1,0:T(8,128)(2,1)}', space=vmem, size = 0x5a000, scoped, tag = 'scratch operand']
  %s0 = inlined_call_operand.vmem [shape: bf16[960,128], index: 0, kind: input, shape index: {}]
  %s1 = inlined_call_operand.vmem [shape: bf16[256,96], index: 1, kind: input, shape index: {}]
  %s2 = inlined_call_operand.vmem [shape: f32[256,1], index: 2, kind: input, shape index: {}]
  %s3 = inlined_call_operand.vmem [shape: bf16[160,768], index: 3, kind: input, shape index: {}]
  %s4 = inlined_call_operand.vmem [shape: f32[160,1], index: 4, kind: input, shape index: {}]
  %s5 = inlined_call_operand.vmem [shape: bf16[40,480], index: 5, kind: input, shape index: {}]
  %s6 = inlined_call_operand.vmem [shape: f32[40,1], index: 6, kind: input, shape index: {}]
  %s7 = inlined_call_operand.vmem [shape: f32[10,160], index: 7, kind: input, shape index: {}]
  %s8 = inlined_call_operand.vmem [shape: f32[10,128], index: 8, kind: output, shape index: {}]
  %s9 = sld [smem:[#allocation0]]
  $region42: #{mnist_cnn_forward.1} parent=0
    _
  %s11 = ssub.s32 1, %s9
  %s12 = scalar_select 0, %s11, %s9
  // Predicated region
  $region2: #{mnist_cnn_forward.1} parent=0 // pred_check
    _
  $region3: #{mnist_cnn_forward.1} parent=0 // pred_check_branch
    %14 = sbr.rel (0) target = $region5
  $region4: #{mnist_cnn_forward.1} parent=0 // pred_region
    _
  $region5: #{mnist_cnn_forward.1} parent=0 // pred_fallthru
    _
  // Predicated region
  $region6: #{mnist_cnn_forward.1} parent=0 // pred_check
    _
  $region7: #{mnist_cnn_forward.1} parent=0 // pred_check_branch
    %16 = sbr.rel (0) target = $region9
  $region8: #{mnist_cnn_forward.1} parent=0 // pred_region
    _
  $region9: #{mnist_cnn_forward.1} parent=0 // pred_fallthru
    _
  // Predicated region
  $region10: #{mnist_cnn_forward.1} parent=0 // pred_check
    _
  $region11: #{mnist_cnn_forward.1} parent=0 // pred_check_branch
    %18 = sbr.rel (0) target = $region13
  $region12: #{mnist_cnn_forward.1} parent=0 // pred_region
    _
  $region13: #{mnist_cnn_forward.1} parent=0 // pred_fallthru
    _
  // Predicated region
  $region14: #{mnist_cnn_forward.1} parent=0 // pred_check
    _
  $region15: #{mnist_cnn_forward.1} parent=0 // pred_check_branch
    %20 = sbr.rel (0) target = $region17
  $region16: #{mnist_cnn_forward.1} parent=0 // pred_region
    _
  $region17: #{mnist_cnn_forward.1} parent=0 // pred_fallthru
    _
  // Predicated region
  $region18: #{mnist_cnn_forward.1} parent=0 // pred_check
    _
  $region19: #{mnist_cnn_forward.1} parent=0 // pred_check_branch
    %22 = sbr.rel (0) target = $region21
  $region20: #{mnist_cnn_forward.1} parent=0 // pred_region
    _
  $region21: #{mnist_cnn_forward.1} parent=0 // pred_fallthru
    _
  // Predicated region
  $region22: #{mnist_cnn_forward.1} parent=0 // pred_check
    _
  $region23: #{mnist_cnn_forward.1} parent=0 // pred_check_branch
    %24 = sbr.rel (0) target = $region25
  $region24: #{mnist_cnn_forward.1} parent=0 // pred_region
    _
  $region25: #{mnist_cnn_forward.1} parent=0 // pred_fallthru
    _
  // Predicated region
  $region26: #{mnist_cnn_forward.1} parent=0 // pred_check
    _
  $region27: #{mnist_cnn_forward.1} parent=0 // pred_check_branch
    %26 = sbr.rel (0) target = $region29
  $region28: #{mnist_cnn_forward.1} parent=0 // pred_region
    _
  $region29: #{mnist_cnn_forward.1} parent=0 // pred_fallthru
    _
  // Predicated region
  $region30: #{mnist_cnn_forward.1} parent=0 // pred_check
    _
  $region31: #{mnist_cnn_forward.1} parent=0 // pred_check_branch
    %28 = sbr.rel (0) target = $region33
  $region32: #{mnist_cnn_forward.1} parent=0 // pred_region
    _
  $region33: #{mnist_cnn_forward.1} parent=0 // pred_fallthru
    _
  %v30 = vld [vmem:[%s1] sm:$0xf]
  %v31 = vld [vmem:[%s1 + $0x4] sm:$0xf]
  %v32 = vld [vmem:[%s1 + $0x8] sm:$0xf]
  %v33 = vld [vmem:[%s1 + $0xc] sm:$0xf]
  %v34 = vld [vmem:[%s1 + $0x10] sm:$0xf]
  %v35 = vld [vmem:[%s1 + $0x14] sm:$0xf]
  %v36 = vld [vmem:[%s1 + $0x18] sm:$0xf]
  %v37 = vld [vmem:[%s1 + $0x1c] sm:$0xf]
  %v38 = vld [vmem:[%s1 + $0x20] sm:$0xf]
  %v39 = vld [vmem:[%s1 + $0x24] sm:$0xf]
  %v40 = vld [vmem:[%s1 + $0x28] sm:$0xf]
  %v41 = vld [vmem:[%s1 + $0x2c] sm:$0xf]
  %v42 = vld [vmem:[%s1 + $0x30] sm:$0xf]
  %v43 = vld [vmem:[%s1 + $0x34] sm:$0xf]
  %v44 = vld [vmem:[%s1 + $0x38] sm:$0xf]
  %v45 = vld [vmem:[%s1 + $0x3c] sm:$0xf]
  %v46 = vld [vmem:[%s1 + $0x40] sm:$0xf]
  %v47 = vld [vmem:[%s1 + $0x44] sm:$0xf]
  %v48 = vld [vmem:[%s1 + $0x48] sm:$0xf]
  %v49 = vld [vmem:[%s1 + $0x4c] sm:$0xf]
  %v50 = vld [vmem:[%s1 + $0x50] sm:$0xf]
  %v51 = vld [vmem:[%s1 + $0x54] sm:$0xf]
  %v52 = vld [vmem:[%s1 + $0x58] sm:$0xf]
  %v53 = vld [vmem:[%s1 + $0x5c] sm:$0xf]
  %v54 = vld [vmem:[%s1 + $0x60] sm:$0xf]
  %v55 = vld [vmem:[%s1 + $0x64] sm:$0xf]
  %v56 = vld [vmem:[%s1 + $0x68] sm:$0xf]
  %v57 = vld [vmem:[%s1 + $0x6c] sm:$0xf]
  %v58 = vld [vmem:[%s1 + $0x70] sm:$0xf]
  %v59 = vld [vmem:[%s1 + $0x74] sm:$0xf]
  %v60 = vld [vmem:[%s1 + $0x78] sm:$0xf]
  %v61 = vld [vmem:[%s1 + $0x7c] sm:$0xf]
  %v62 = vld [vmem:[%s2] sm:$0xff]
  %v63 = vld [vmem:[%s2 + $0x8] sm:$0xff]
  %v64 = vld [vmem:[%s2 + $0x10] sm:$0xff]
  %v65 = vld [vmem:[%s2 + $0x18] sm:$0xff]
  %v66 = vld [vmem:[%s2 + $0x20] sm:$0xff]
  %v67 = vld [vmem:[%s2 + $0x28] sm:$0xff]
  %v68 = vld [vmem:[%s2 + $0x30] sm:$0xff]
  %v69 = vld [vmem:[%s2 + $0x38] sm:$0xff]
  %v70 = vld [vmem:[%s2 + $0x40] sm:$0xff]
  %v71 = vld [vmem:[%s2 + $0x48] sm:$0xff]
  %v72 = vld [vmem:[%s2 + $0x50] sm:$0xff]
  %v73 = vld [vmem:[%s2 + $0x58] sm:$0xff]
  %v74 = vld [vmem:[%s2 + $0x60] sm:$0xff]
  %v75 = vld [vmem:[%s2 + $0x68] sm:$0xff]
  %v76 = vld [vmem:[%s2 + $0x70] sm:$0xff]
  %v77 = vld [vmem:[%s2 + $0x78] sm:$0xff]
  %v78 = vld [vmem:[%s2 + $0x80] sm:$0xff]
  %v79 = vld [vmem:[%s2 + $0x88] sm:$0xff]
  %v80 = vld [vmem:[%s2 + $0x90] sm:$0xff]
  %v81 = vld [vmem:[%s2 + $0x98] sm:$0xff]
  %v82 = vld [vmem:[%s2 + $0xa0] sm:$0xff]
  %v83 = vld [vmem:[%s2 + $0xa8] sm:$0xff]
  %v84 = vld [vmem:[%s2 + $0xb0] sm:$0xff]
  %v85 = vld [vmem:[%s2 + $0xb8] sm:$0xff]
  %v86 = vld [vmem:[%s2 + $0xc0] sm:$0xff]
  %v87 = vld [vmem:[%s2 + $0xc8] sm:$0xff]
  %v88 = vld [vmem:[%s2 + $0xd0] sm:$0xff]
  %v89 = vld [vmem:[%s2 + $0xd8] sm:$0xff]
  %v90 = vld [vmem:[%s2 + $0xe0] sm:$0xff]
  %v91 = vld [vmem:[%s2 + $0xe8] sm:$0xff]
  %v92 = vld [vmem:[%s2 + $0xf0] sm:$0xff]
  %v93 = vld [vmem:[%s2 + $0xf8] sm:$0xff]
  %94 = vst [vmem:[#allocation2] sm:$0xf] 0
  %95 = vst [vmem:[#allocation2 + $0x4] sm:$0xf] 0
  %96 = vst [vmem:[#allocation2 + $0x8] sm:$0xf] 0
  %97 = vst [vmem:[#allocation2 + $0xc] sm:$0xf] 0
  %98 = vst [vmem:[#allocation2 + $0x10] sm:$0xf] 0
  %99 = vst [vmem:[#allocation2 + $0x14] sm:$0xf] 0
  %100 = vst [vmem:[#allocation2 + $0x18] sm:$0xf] 0
  %101 = vst [vmem:[#allocation2 + $0x1c] sm:$0xf] 0
  %102 = vst [vmem:[#allocation2 + $0x20] sm:$0xf] 0
  %103 = vst [vmem:[#allocation2 + $0x24] sm:$0xf] 0
  %104 = vst [vmem:[#allocation2 + $0x28] sm:$0xf] 0
  %105 = vst [vmem:[#allocation2 + $0x2c] sm:$0xf] 0
  %106 = vst [vmem:[#allocation2 + $0x30] sm:$0xf] 0
  %107 = vst [vmem:[#allocation2 + $0x34] sm:$0xf] 0
  %108 = vst [vmem:[#allocation2 + $0x38] sm:$0xf] 0
  %109 = vst [vmem:[#allocation2 + $0x3c] sm:$0xf] 0
  %110 = vst [vmem:[#allocation2 + $0x40] sm:$0xf] 0
  %111 = vst [vmem:[#allocation2 + $0x44] sm:$0xf] 0
  %112 = vst [vmem:[#allocation2 + $0x48] sm:$0xf] 0
  %113 = vst [vmem:[#allocation2 + $0x4c] sm:$0xf] 0
  %114 = vst [vmem:[#allocation2 + $0x50] sm:$0xf] 0
  %115 = vst [vmem:[#allocation2 + $0x54] sm:$0xf] 0
  %116 = vst [vmem:[#allocation2 + $0x58] sm:$0xf] 0
  %117 = vst [vmem:[#allocation2 + $0x5c] sm:$0xf] 0
  %118 = vst [vmem:[#allocation2 + $0x60] sm:$0xf] 0
  %119 = vst [vmem:[#allocation2 + $0x64] sm:$0xf] 0
  %120 = vst [vmem:[#allocation2 + $0x68] sm:$0xf] 0
  %121 = vst [vmem:[#allocation2 + $0x6c] sm:$0xf] 0
  %122 = vst [vmem:[#allocation2 + $0x70] sm:$0xf] 0
  %123 = vst [vmem:[#allocation2 + $0x74] sm:$0xf] 0
  %124 = vst [vmem:[#allocation2 + $0x78] sm:$0xf] 0
  %125 = vst [vmem:[#allocation2 + $0x7c] sm:$0xf] 0
  %v126 = vld [vmem:[%s0] sm:$0xf]
  %v127 = vld [vmem:[%s0 + $0x4] sm:$0xf]
  %v128 = vld [vmem:[%s0 + $0x8] sm:$0xf]
  %v129 = vld [vmem:[%s0 + $0xc] sm:$0xf]
  %v130 = vld [vmem:[%s0 + $0x10] sm:$0xf]
  %v131 = vld [vmem:[%s0 + $0x14] sm:$0xf]
  %v132 = vld [vmem:[%s0 + $0x18] sm:$0xf]
  %v133 = vld [vmem:[%s0 + $0x1c] sm:$0xf]
  %v134 = vld [vmem:[%s0 + $0x20] sm:$0xf]
  %v135 = vld [vmem:[%s0 + $0x24] sm:$0xf]
  %v136 = vld [vmem:[%s0 + $0x28] sm:$0xf]
  %v137 = vld [vmem:[%s0 + $0x2c] sm:$0xf]
  %139 = vset.pattern.permute.xlu0 0
  %140 = vperm.xlu0 %139, %v62
  %v141 = vpop.permute.xlu0 %140
  %144 = vset.pattern.permute.xlu0 0
  %145 = vperm.xlu0 %144, %v63
  %v146 = vpop.permute.xlu0 %145
  %149 = vset.pattern.permute.xlu0 0
  %150 = vperm.xlu0 %149, %v64
  %v151 = vpop.permute.xlu0 %150
  %154 = vset.pattern.permute.xlu0 0
  %155 = vperm.xlu0 %154, %v65
  %v156 = vpop.permute.xlu0 %155
  %159 = vset.pattern.permute.xlu0 0
  %160 = vperm.xlu0 %159, %v66
  %v161 = vpop.permute.xlu0 %160
  %164 = vset.pattern.permute.xlu0 0
  %165 = vperm.xlu0 %164, %v67
  %v166 = vpop.permute.xlu0 %165
  %169 = vset.pattern.permute.xlu0 0
  %170 = vperm.xlu0 %169, %v68
  %v171 = vpop.permute.xlu0 %170
  %174 = vset.pattern.permute.xlu0 0
  %175 = vperm.xlu0 %174, %v69
  %v176 = vpop.permute.xlu0 %175
  %179 = vset.pattern.permute.xlu0 0
  %180 = vperm.xlu0 %179, %v70
  %v181 = vpop.permute.xlu0 %180
  %184 = vset.pattern.permute.xlu0 0
  %185 = vperm.xlu0 %184, %v71
  %v186 = vpop.permute.xlu0 %185
  %189 = vset.pattern.permute.xlu0 0
  %190 = vperm.xlu0 %189, %v72
  %v191 = vpop.permute.xlu0 %190
  %194 = vset.pattern.permute.xlu0 0
  %195 = vperm.xlu0 %194, %v73
  %v196 = vpop.permute.xlu0 %195
  %199 = vset.pattern.permute.xlu0 0
  %200 = vperm.xlu0 %199, %v74
  %v201 = vpop.permute.xlu0 %200
  %204 = vset.pattern.permute.xlu0 0
  %205 = vperm.xlu0 %204, %v75
  %v206 = vpop.permute.xlu0 %205
  %209 = vset.pattern.permute.xlu0 0
  %210 = vperm.xlu0 %209, %v76
  %v211 = vpop.permute.xlu0 %210
  %214 = vset.pattern.permute.xlu0 0
  %215 = vperm.xlu0 %214, %v77
  %v216 = vpop.permute.xlu0 %215
  %219 = vset.pattern.permute.xlu0 0
  %220 = vperm.xlu0 %219, %v78
  %v221 = vpop.permute.xlu0 %220
  %224 = vset.pattern.permute.xlu0 0
  %225 = vperm.xlu0 %224, %v79
  %v226 = vpop.permute.xlu0 %225
  %229 = vset.pattern.permute.xlu0 0
  %230 = vperm.xlu0 %229, %v80
  %v231 = vpop.permute.xlu0 %230
  %234 = vset.pattern.permute.xlu0 0
  %235 = vperm.xlu0 %234, %v81
  %v236 = vpop.permute.xlu0 %235
  %239 = vset.pattern.permute.xlu0 0
  %240 = vperm.xlu0 %239, %v82
  %v241 = vpop.permute.xlu0 %240
  %244 = vset.pattern.permute.xlu0 0
  %245 = vperm.xlu0 %244, %v83
  %v246 = vpop.permute.xlu0 %245
  %249 = vset.pattern.permute.xlu0 0
  %250 = vperm.xlu0 %249, %v84
  %v251 = vpop.permute.xlu0 %250
  %254 = vset.pattern.permute.xlu0 0
  %255 = vperm.xlu0 %254, %v85
  %v256 = vpop.permute.xlu0 %255
  %259 = vset.pattern.permute.xlu0 0
  %260 = vperm.xlu0 %259, %v86
  %v261 = vpop.permute.xlu0 %260
  %264 = vset.pattern.permute.xlu0 0
  %265 = vperm.xlu0 %264, %v87
  %v266 = vpop.permute.xlu0 %265
  %269 = vset.pattern.permute.xlu0 0
  %270 = vperm.xlu0 %269, %v88
  %v271 = vpop.permute.xlu0 %270
  %274 = vset.pattern.permute.xlu0 0
  %275 = vperm.xlu0 %274, %v89
  %v276 = vpop.permute.xlu0 %275
  %279 = vset.pattern.permute.xlu0 0
  %280 = vperm.xlu0 %279, %v90
  %v281 = vpop.permute.xlu0 %280
  %284 = vset.pattern.permute.xlu0 0
  %285 = vperm.xlu0 %284, %v91
  %v286 = vpop.permute.xlu0 %285
  %289 = vset.pattern.permute.xlu0 0
  %290 = vperm.xlu0 %289, %v92
  %v291 = vpop.permute.xlu0 %290
  %294 = vset.pattern.permute.xlu0 0
  %295 = vperm.xlu0 %294, %v93
  %v296 = vpop.permute.xlu0 %295
  %v330 = vunpack.c.l.b16 %v30
  %v331 = vunpack.c.l.b16 %v31
  %v332 = vunpack.c.l.b16 %v32
  %v333 = vunpack.c.l.b16 %v33
  %v334 = vunpack.c.l.b16 %v34
  %v335 = vunpack.c.l.b16 %v35
  %v336 = vunpack.c.l.b16 %v36
  %v337 = vunpack.c.l.b16 %v37
  %v338 = vunpack.c.l.b16 %v38
  %v339 = vunpack.c.l.b16 %v39
  %v340 = vunpack.c.l.b16 %v40
  %v341 = vunpack.c.l.b16 %v41
  %v342 = vunpack.c.l.b16 %v42
  %v343 = vunpack.c.l.b16 %v43
  %v344 = vunpack.c.l.b16 %v44
  %v345 = vunpack.c.l.b16 %v45
  %v346 = vunpack.c.l.b16 %v46
  %v347 = vunpack.c.l.b16 %v47
  %v348 = vunpack.c.l.b16 %v48
  %v349 = vunpack.c.l.b16 %v49
  %v350 = vunpack.c.l.b16 %v50
  %v351 = vunpack.c.l.b16 %v51
  %v352 = vunpack.c.l.b16 %v52
  %v353 = vunpack.c.l.b16 %v53
  %v354 = vunpack.c.l.b16 %v54
  %v355 = vunpack.c.l.b16 %v55
  %v356 = vunpack.c.l.b16 %v56
  %v357 = vunpack.c.l.b16 %v57
  %v358 = vunpack.c.l.b16 %v58
  %v359 = vunpack.c.l.b16 %v59
  %v360 = vunpack.c.l.b16 %v60
  %v361 = vunpack.c.l.b16 %v61
  %v362 = vpack.c.b16 %v331, %v330
  %v363 = vpack.c.b16 %v333, %v332
  %v364 = vpack.c.b16 %v335, %v334
  %v365 = vpack.c.b16 %v337, %v336
  %v366 = vpack.c.b16 %v339, %v338
  %v367 = vpack.c.b16 %v341, %v340
  %v368 = vpack.c.b16 %v343, %v342
  %v369 = vpack.c.b16 %v345, %v344
  %v370 = vpack.c.b16 %v347, %v346
  %v371 = vpack.c.b16 %v349, %v348
  %v372 = vpack.c.b16 %v351, %v350
  %v373 = vpack.c.b16 %v353, %v352
  %v374 = vpack.c.b16 %v355, %v354
  %v375 = vpack.c.b16 %v357, %v356
  %v376 = vpack.c.b16 %v359, %v358
  %v377 = vpack.c.b16 %v361, %v360
  %v390 = vunpack.c.l.b16 %v126
  %v391 = vunpack.c.l.b16 %v127
  %v392 = vunpack.c.l.b16 %v128
  %v393 = vunpack.c.l.b16 %v129
  %v394 = vunpack.c.l.b16 %v130
  %v395 = vunpack.c.l.b16 %v131
  %v396 = vunpack.c.l.b16 %v132
  %v397 = vunpack.c.l.b16 %v133
  %v398 = vunpack.c.l.b16 %v134
  %v399 = vunpack.c.l.b16 %v135
  %v400 = vunpack.c.l.b16 %v136
  %v401 = vunpack.c.l.b16 %v137
  %v402 = vpack.c.b16 %v391, %v390
  %v403 = vpack.c.b16 %v393, %v392
  %v404 = vpack.c.b16 %v395, %v394
  %v405 = vpack.c.b16 %v397, %v396
  %v406 = vpack.c.b16 %v399, %v398
  %v407 = vpack.c.b16 %v401, %v400
  %vm414 = vcmask 785408
  %v416 = vsel %vm414, %v362, 0
  %v419 = vsel %vm414, %v363, 0
  %v422 = vsel %vm414, %v364, 0
  %v425 = vsel %vm414, %v365, 0
  %v428 = vsel %vm414, %v366, 0
  %v431 = vsel %vm414, %v367, 0
  %v434 = vsel %vm414, %v368, 0
  %v437 = vsel %vm414, %v369, 0
  %v440 = vsel %vm414, %v370, 0
  %v443 = vsel %vm414, %v371, 0
  %v446 = vsel %vm414, %v372, 0
  %v449 = vsel %vm414, %v373, 0
  %v452 = vsel %vm414, %v374, 0
  %v455 = vsel %vm414, %v375, 0
  %v458 = vsel %vm414, %v376, 0
  %v461 = vsel %vm414, %v377, 0
  %463 = vmatprep.subr.bf16.mxu0 0
  %464 = vmatpush1.bf16.msra.mxu0 0
  %465 = vmatprep.subr.bf16.mxu0 0
  %466 = vmatpush1.bf16.msra.mxu0 0
  %467 = vmatprep.subr.bf16.mxu0 0
  %468 = vmatpush1.bf16.msra.mxu0 %v407
  %469 = vmatprep.subr.bf16.mxu0 0
  %470 = vmatpush1.bf16.msra.mxu0 %v406
  %471 = vmatprep.subr.bf16.mxu0 0
  %472 = vmatpush1.bf16.msra.mxu0 %v405
  %473 = vmatprep.subr.bf16.mxu0 0
  %474 = vmatpush1.bf16.msra.mxu0 %v404
  %475 = vmatprep.subr.bf16.mxu0 0
  %476 = vmatpush1.bf16.msra.mxu0 %v403
  %477 = vmatprep.subr.bf16.mxu0 0
  %478 = vmatpush1.bf16.msra.mxu0 %v402
  %479 = vmatprep.subr.bf16.mxu0 0
  %480 = vmatpush2.bf16.msra.mxu0 0
  %481 = vmatprep.subr.bf16.mxu0 0
  %482 = vmatpush2.bf16.msra.mxu0 0
  %483 = vmatprep.subr.bf16.mxu0 0
  %484 = vmatpush2.bf16.msra.mxu0 0
  %485 = vmatprep.subr.bf16.mxu0 0
  %486 = vmatpush2.bf16.msra.mxu0 0
  %487 = vmatprep.subr.bf16.mxu0 0
  %488 = vmatpush2.bf16.msra.mxu0 0
  %489 = vmatprep.subr.bf16.mxu0 0
  %490 = vmatpush2.bf16.msra.mxu0 0
  %491 = vmatprep.subr.bf16.mxu0 0
  %492 = vmatpush2.bf16.msra.mxu0 0
  %493 = vmatprep.subr.bf16.mxu0 0
  %494 = vmatpush2.bf16.msra.mxu0 0
  %495 = vmatprep.mubr.bf16.mxu0 0
  %496 = vmatmul.mubr.bf16.gmra.mxu0 %v416
  %v497 = vpop.f32.mrf.mxu0
  %v498 = vadd.f32 %v141, %v497
  %v499 = vpop.f32.mrf.mxu0
  %v500 = vpop.f32.mrf.mxu0
  %v501 = vadd.f32 %v146, %v500
  %v502 = vpop.f32.mrf.mxu0
  %503 = vmatprep.mubr.bf16.mxu0 0
  %504 = vmatmul.mubr.bf16.gmra.mxu0 %v419
  %v505 = vpop.f32.mrf.mxu0
  %v506 = vadd.f32 %v151, %v505
  %v507 = vpop.f32.mrf.mxu0
  %v508 = vpop.f32.mrf.mxu0
  %v509 = vadd.f32 %v156, %v508
  %v510 = vpop.f32.mrf.mxu0
  %511 = vmatprep.mubr.bf16.mxu0 0
  %512 = vmatmul.mubr.bf16.gmra.mxu0 %v422
  %v513 = vpop.f32.mrf.mxu0
  %v514 = vadd.f32 %v161, %v513
  %v515 = vpop.f32.mrf.mxu0
  %v516 = vpop.f32.mrf.mxu0
  %v517 = vadd.f32 %v166, %v516
  %v518 = vpop.f32.mrf.mxu0
  %519 = vmatprep.mubr.bf16.mxu0 0
  %520 = vmatmul.mubr.bf16.gmra.mxu0 %v425
  %v521 = vpop.f32.mrf.mxu0
  %v522 = vadd.f32 %v171, %v521
  %v523 = vpop.f32.mrf.mxu0
  %v524 = vpop.f32.mrf.mxu0
  %v525 = vadd.f32 %v176, %v524
  %v526 = vpop.f32.mrf.mxu0
  %527 = vmatprep.mubr.bf16.mxu0 0
  %528 = vmatmul.mubr.bf16.gmra.mxu0 %v428
  %v529 = vpop.f32.mrf.mxu0
  %v530 = vadd.f32 %v181, %v529
  %v531 = vpop.f32.mrf.mxu0
  %v532 = vpop.f32.mrf.mxu0
  %v533 = vadd.f32 %v186, %v532
  %v534 = vpop.f32.mrf.mxu0
  %535 = vmatprep.mubr.bf16.mxu0 0
  %536 = vmatmul.mubr.bf16.gmra.mxu0 %v431
  %v537 = vpop.f32.mrf.mxu0
  %v538 = vadd.f32 %v191, %v537
  %v539 = vpop.f32.mrf.mxu0
  %v540 = vpop.f32.mrf.mxu0
  %v541 = vadd.f32 %v196, %v540
  %v542 = vpop.f32.mrf.mxu0
  %543 = vmatprep.mubr.bf16.mxu0 0
  %544 = vmatmul.mubr.bf16.gmra.mxu0 %v434
  %v545 = vpop.f32.mrf.mxu0
  %v546 = vadd.f32 %v201, %v545
  %v547 = vpop.f32.mrf.mxu0
  %v548 = vpop.f32.mrf.mxu0
  %v549 = vadd.f32 %v206, %v548
  %v550 = vpop.f32.mrf.mxu0
  %551 = vmatprep.mubr.bf16.mxu0 0
  %552 = vmatmul.mubr.bf16.gmra.mxu0 %v437
  %v553 = vpop.f32.mrf.mxu0
  %v554 = vadd.f32 %v211, %v553
  %v555 = vpop.f32.mrf.mxu0
  %v556 = vpop.f32.mrf.mxu0
  %v557 = vadd.f32 %v216, %v556
  %v558 = vpop.f32.mrf.mxu0
  %559 = vmatprep.mubr.bf16.mxu0 0
  %560 = vmatmul.mubr.bf16.gmra.mxu0 %v440
  %v561 = vpop.f32.mrf.mxu0
  %v562 = vadd.f32 %v221, %v561
  %v563 = vpop.f32.mrf.mxu0
  %v564 = vpop.f32.mrf.mxu0
  %v565 = vadd.f32 %v226, %v564
  %v566 = vpop.f32.mrf.mxu0
  %567 = vmatprep.mubr.bf16.mxu0 0
  %568 = vmatmul.mubr.bf16.gmra.mxu0 %v443
  %v569 = vpop.f32.mrf.mxu0
  %v570 = vadd.f32 %v231, %v569
  %v571 = vpop.f32.mrf.mxu0
  %v572 = vpop.f32.mrf.mxu0
  %v573 = vadd.f32 %v236, %v572
  %v574 = vpop.f32.mrf.mxu0
  %575 = vmatprep.mubr.bf16.mxu0 0
  %576 = vmatmul.mubr.bf16.gmra.mxu0 %v446
  %v577 = vpop.f32.mrf.mxu0
  %v578 = vadd.f32 %v241, %v577
  %v579 = vpop.f32.mrf.mxu0
  %v580 = vpop.f32.mrf.mxu0
  %v581 = vadd.f32 %v246, %v580
  %v582 = vpop.f32.mrf.mxu0
  %583 = vmatprep.mubr.bf16.mxu0 0
  %584 = vmatmul.mubr.bf16.gmra.mxu0 %v449
  %v585 = vpop.f32.mrf.mxu0
  %v586 = vadd.f32 %v251, %v585
  %v587 = vpop.f32.mrf.mxu0
  %v588 = vpop.f32.mrf.mxu0
  %v589 = vadd.f32 %v256, %v588
  %v590 = vpop.f32.mrf.mxu0
  %591 = vmatprep.mubr.bf16.mxu0 0
  %592 = vmatmul.mubr.bf16.gmra.mxu0 %v452
  %v593 = vpop.f32.mrf.mxu0
  %v594 = vadd.f32 %v261, %v593
  %v595 = vpop.f32.mrf.mxu0
  %v596 = vpop.f32.mrf.mxu0
  %v597 = vadd.f32 %v266, %v596
  %v598 = vpop.f32.mrf.mxu0
  %599 = vmatprep.mubr.bf16.mxu0 0
  %600 = vmatmul.mubr.bf16.gmra.mxu0 %v455
  %v601 = vpop.f32.mrf.mxu0
  %v602 = vadd.f32 %v271, %v601
  %v603 = vpop.f32.mrf.mxu0
  %v604 = vpop.f32.mrf.mxu0
  %v605 = vadd.f32 %v276, %v604
  %v606 = vpop.f32.mrf.mxu0
  %607 = vmatprep.mubr.bf16.mxu0 0
  %608 = vmatmul.mubr.bf16.gmra.mxu0 %v458
  %v609 = vpop.f32.mrf.mxu0
  %v610 = vadd.f32 %v281, %v609
  %v611 = vpop.f32.mrf.mxu0
  %v612 = vpop.f32.mrf.mxu0
  %v613 = vadd.f32 %v286, %v612
  %v614 = vpop.f32.mrf.mxu0
  %615 = vmatprep.mubr.bf16.mxu0 0
  %616 = vmatmul.mubr.bf16.gmra.mxu0 %v461
  %v617 = vpop.f32.mrf.mxu0
  %v618 = vadd.f32 %v291, %v617
  %v619 = vpop.f32.mrf.mxu0
  %v620 = vpop.f32.mrf.mxu0
  %v621 = vadd.f32 %v296, %v620
  %v622 = vpop.f32.mrf.mxu0
  %623 = vdwg.mxu0
  %v624 = vmax.f32 %v498, 0.0
  %v625 = vmax.f32 %v501, 0.0
  %v626 = vmax.f32 %v506, 0.0
  %v627 = vmax.f32 %v509, 0.0
  %v628 = vmax.f32 %v514, 0.0
  %v629 = vmax.f32 %v517, 0.0
  %v630 = vmax.f32 %v522, 0.0
  %v631 = vmax.f32 %v525, 0.0
  %v632 = vmax.f32 %v530, 0.0
  %v633 = vmax.f32 %v533, 0.0
  %v634 = vmax.f32 %v538, 0.0
  %v635 = vmax.f32 %v541, 0.0
  %v636 = vmax.f32 %v546, 0.0
  %v637 = vmax.f32 %v549, 0.0
  %v638 = vmax.f32 %v554, 0.0
  %v639 = vmax.f32 %v557, 0.0
  %v640 = vmax.f32 %v562, 0.0
  %v641 = vmax.f32 %v565, 0.0
  %v642 = vmax.f32 %v570, 0.0
  %v643 = vmax.f32 %v573, 0.0
  %v644 = vmax.f32 %v578, 0.0
  %v645 = vmax.f32 %v581, 0.0
  %v646 = vmax.f32 %v586, 0.0
  %v647 = vmax.f32 %v589, 0.0
  %v648 = vmax.f32 %v594, 0.0
  %v649 = vmax.f32 %v597, 0.0
  %v650 = vmax.f32 %v602, 0.0
  %v651 = vmax.f32 %v605, 0.0
  %v652 = vmax.f32 %v610, 0.0
  %v653 = vmax.f32 %v613, 0.0
  %v654 = vmax.f32 %v618, 0.0
  %v655 = vmax.f32 %v621, 0.0
  %v656 = vpack.c.bf16 %v625, %v624
  %v657 = vpack.c.bf16 %v627, %v626
  %v658 = vpack.c.bf16 %v629, %v628
  %v659 = vpack.c.bf16 %v631, %v630
  %v660 = vpack.c.bf16 %v633, %v632
  %v661 = vpack.c.bf16 %v635, %v634
  %v662 = vpack.c.bf16 %v637, %v636
  %v663 = vpack.c.bf16 %v639, %v638
  %v664 = vpack.c.bf16 %v641, %v640
  %v665 = vpack.c.bf16 %v643, %v642
  %v666 = vpack.c.bf16 %v645, %v644
  %v667 = vpack.c.bf16 %v647, %v646
  %v668 = vpack.c.bf16 %v649, %v648
  %v669 = vpack.c.bf16 %v651, %v650
  %v670 = vpack.c.bf16 %v653, %v652
  %v671 = vpack.c.bf16 %v655, %v654
  %v688 = vunpack.c.l.b16 %v656
  %v689 = vunpack.c.h.b16 %v656
  %v690 = vunpack.c.l.b16 %v657
  %v691 = vunpack.c.h.b16 %v657
  %v692 = vunpack.c.l.b16 %v658
  %v693 = vunpack.c.h.b16 %v658
  %v694 = vunpack.c.l.b16 %v659
  %v695 = vunpack.c.h.b16 %v659
  %v696 = vunpack.c.l.b16 %v660
  %v697 = vunpack.c.h.b16 %v660
  %v698 = vunpack.c.l.b16 %v661
  %v699 = vunpack.c.h.b16 %v661
  %v700 = vunpack.c.l.b16 %v662
  %v701 = vunpack.c.h.b16 %v662
  %v702 = vunpack.c.l.b16 %v663
  %v703 = vunpack.c.h.b16 %v663
  %v704 = vunpack.c.l.b16 %v664
  %v705 = vunpack.c.h.b16 %v664
  %v706 = vunpack.c.l.b16 %v665
  %v707 = vunpack.c.h.b16 %v665
  %v708 = vunpack.c.l.b16 %v666
  %v709 = vunpack.c.h.b16 %v666
  %v710 = vunpack.c.l.b16 %v667
  %v711 = vunpack.c.h.b16 %v667
  %v712 = vunpack.c.l.b16 %v668
  %v713 = vunpack.c.h.b16 %v668
  %v714 = vunpack.c.l.b16 %v669
  %v715 = vunpack.c.h.b16 %v669
  %v716 = vunpack.c.l.b16 %v670
  %v717 = vunpack.c.h.b16 %v670
  %v718 = vunpack.c.l.b16 %v671
  %v719 = vunpack.c.h.b16 %v671
  %v720 = vpack.c.b16 %v688, %v688
  %v721 = vpack.c.b16 %v689, %v689
  %v722 = vpack.c.b16 %v690, %v690
  %v723 = vpack.c.b16 %v691, %v691
  %v724 = vpack.c.b16 %v692, %v692
  %v725 = vpack.c.b16 %v693, %v693
  %v726 = vpack.c.b16 %v694, %v694
  %v727 = vpack.c.b16 %v695, %v695
  %v728 = vpack.c.b16 %v696, %v696
  %v729 = vpack.c.b16 %v697, %v697
  %v730 = vpack.c.b16 %v698, %v698
  %v731 = vpack.c.b16 %v699, %v699
  %v732 = vpack.c.b16 %v700, %v700
  %v733 = vpack.c.b16 %v701, %v701
  %v734 = vpack.c.b16 %v702, %v702
  %v735 = vpack.c.b16 %v703, %v703
  %v736 = vpack.c.b16 %v704, %v704
  %v737 = vpack.c.b16 %v705, %v705
  %v738 = vpack.c.b16 %v706, %v706
  %v739 = vpack.c.b16 %v707, %v707
  %v740 = vpack.c.b16 %v708, %v708
  %v741 = vpack.c.b16 %v709, %v709
  %v742 = vpack.c.b16 %v710, %v710
  %v743 = vpack.c.b16 %v711, %v711
  %v744 = vpack.c.b16 %v712, %v712
  %v745 = vpack.c.b16 %v713, %v713
  %v746 = vpack.c.b16 %v714, %v714
  %v747 = vpack.c.b16 %v715, %v715
  %v748 = vpack.c.b16 %v716, %v716
  %v749 = vpack.c.b16 %v717, %v717
  %v750 = vpack.c.b16 %v718, %v718
  %v751 = vpack.c.b16 %v719, %v719
  %784 = vst [vmem:[#allocation2 + $0x80] sm:$0xf] %v720
  %785 = vst [vmem:[#allocation2 + $0x84] sm:$0xf] %v721
  %786 = vst [vmem:[#allocation2 + $0x88] sm:$0xf] %v722
  %787 = vst [vmem:[#allocation2 + $0x8c] sm:$0xf] %v723
  %788 = vst [vmem:[#allocation2 + $0x90] sm:$0xf] %v724
  %789 = vst [vmem:[#allocation2 + $0x94] sm:$0xf] %v725
  %790 = vst [vmem:[#allocation2 + $0x98] sm:$0xf] %v726
  %791 = vst [vmem:[#allocation2 + $0x9c] sm:$0xf] %v727
  %792 = vst [vmem:[#allocation2 + $0xa0] sm:$0xf] %v728
  %793 = vst [vmem:[#allocation2 + $0xa4] sm:$0xf] %v729
  %794 = vst [vmem:[#allocation2 + $0xa8] sm:$0xf] %v730
  %795 = vst [vmem:[#allocation2 + $0xac] sm:$0xf] %v731
  %796 = vst [vmem:[#allocation2 + $0xb0] sm:$0xf] %v732
  %797 = vst [vmem:[#allocation2 + $0xb4] sm:$0xf] %v733
  %798 = vst [vmem:[#allocation2 + $0xb8] sm:$0xf] %v734
  %799 = vst [vmem:[#allocation2 + $0xbc] sm:$0xf] %v735
  %800 = vst [vmem:[#allocation2 + $0xc0] sm:$0xf] %v736
  %801 = vst [vmem:[#allocation2 + $0xc4] sm:$0xf] %v737
  %802 = vst [vmem:[#allocation2 + $0xc8] sm:$0xf] %v738
  %803 = vst [vmem:[#allocation2 + $0xcc] sm:$0xf] %v739
  %804 = vst [vmem:[#allocation2 + $0xd0] sm:$0xf] %v740
  %805 = vst [vmem:[#allocation2 + $0xd4] sm:$0xf] %v741
  %806 = vst [vmem:[#allocation2 + $0xd8] sm:$0xf] %v742
  %807 = vst [vmem:[#allocation2 + $0xdc] sm:$0xf] %v743
  %808 = vst [vmem:[#allocation2 + $0xe0] sm:$0xf] %v744
  %809 = vst [vmem:[#allocation2 + $0xe4] sm:$0xf] %v745
  %810 = vst [vmem:[#allocation2 + $0xe8] sm:$0xf] %v746
  %811 = vst [vmem:[#allocation2 + $0xec] sm:$0xf] %v747
  %812 = vst [vmem:[#allocation2 + $0xf0] sm:$0xf] %v748
  %813 = vst [vmem:[#allocation2 + $0xf4] sm:$0xf] %v749
  %814 = vst [vmem:[#allocation2 + $0xf8] sm:$0xf] %v750
  %815 = vst [vmem:[#allocation2 + $0xfc] sm:$0xf] %v751
  %v816 = vld [vmem:[%s0 + $0x20] sm:$0xf]
  %v817 = vld [vmem:[%s0 + $0x24] sm:$0xf]
  %v818 = vld [vmem:[%s0 + $0x28] sm:$0xf]
  %v819 = vld [vmem:[%s0 + $0x2c] sm:$0xf]
  %v820 = vld [vmem:[%s0 + $0x30] sm:$0xf]
  %v821 = vld [vmem:[%s0 + $0x34] sm:$0xf]
  %v822 = vld [vmem:[%s0 + $0x38] sm:$0xf]
  %v823 = vld [vmem:[%s0 + $0x3c] sm:$0xf]
  %v824 = vld [vmem:[%s0 + $0x40] sm:$0xf]
  %v825 = vld [vmem:[%s0 + $0x44] sm:$0xf]
  %v826 = vld [vmem:[%s0 + $0x48] sm:$0xf]
  %v827 = vld [vmem:[%s0 + $0x4c] sm:$0xf]
  %v840 = vunpack.c.l.b16 %v816
  %v841 = vunpack.c.l.b16 %v817
  %v842 = vunpack.c.l.b16 %v818
  %v843 = vunpack.c.l.b16 %v819
  %v844 = vunpack.c.l.b16 %v820
  %v845 = vunpack.c.l.b16 %v821
  %v846 = vunpack.c.l.b16 %v822
  %v847 = vunpack.c.l.b16 %v823
  %v848 = vunpack.c.l.b16 %v824
  %v849 = vunpack.c.l.b16 %v825
  %v850 = vunpack.c.l.b16 %v826
  %v851 = vunpack.c.l.b16 %v827
  %v852 = vpack.c.b16 %v841, %v840
  %v853 = vpack.c.b16 %v843, %v842
  %v854 = vpack.c.b16 %v845, %v844
  %v855 = vpack.c.b16 %v847, %v846
  %v856 = vpack.c.b16 %v849, %v848
  %v857 = vpack.c.b16 %v851, %v850
  %864 = vmatprep.subr.bf16.mxu0 0
  %865 = vmatpush1.bf16.msra.mxu0 0
  %866 = vmatprep.subr.bf16.mxu0 0
  %867 = vmatpush1.bf16.msra.mxu0 0
  %868 = vmatprep.subr.bf16.mxu0 0
  %869 = vmatpush1.bf16.msra.mxu0 %v857
  %870 = vmatprep.subr.bf16.mxu0 0
  %871 = vmatpush1.bf16.msra.mxu0 %v856
  %872 = vmatprep.subr.bf16.mxu0 0
  %873 = vmatpush1.bf16.msra.mxu0 %v855
  %874 = vmatprep.subr.bf16.mxu0 0
  %875 = vmatpush1.bf16.msra.mxu0 %v854
  %876 = vmatprep.subr.bf16.mxu0 0
  %877 = vmatpush1.bf16.msra.mxu0 %v853
  %878 = vmatprep.subr.bf16.mxu0 0
  %879 = vmatpush1.bf16.msra.mxu0 %v852
  %880 = vmatprep.subr.bf16.mxu0 0
  %881 = vmatpush2.bf16.msra.mxu0 0
  %882 = vmatprep.subr.bf16.mxu0 0
  %883 = vmatpush2.bf16.msra.mxu0 0
  %884 = vmatprep.subr.bf16.mxu0 0
  %885 = vmatpush2.bf16.msra.mxu0 0
  %886 = vmatprep.subr.bf16.mxu0 0
  %887 = vmatpush2.bf16.msra.mxu0 0
  %888 = vmatprep.subr.bf16.mxu0 0
  %889 = vmatpush2.bf16.msra.mxu0 0
  %890 = vmatprep.subr.bf16.mxu0 0
  %891 = vmatpush2.bf16.msra.mxu0 0
  %892 = vmatprep.subr.bf16.mxu0 0
  %893 = vmatpush2.bf16.msra.mxu0 0
  %894 = vmatprep.subr.bf16.mxu0 0
  %895 = vmatpush2.bf16.msra.mxu0 0
  %896 = vmatprep.mubr.bf16.mxu0 0
  %897 = vmatmul.mubr.bf16.gmra.mxu0 %v416
  %v898 = vpop.f32.mrf.mxu0
  %v899 = vadd.f32 %v141, %v898
  %v900 = vpop.f32.mrf.mxu0
  %v901 = vpop.f32.mrf.mxu0
  %v902 = vadd.f32 %v146, %v901
  %v903 = vpop.f32.mrf.mxu0
  %904 = vmatprep.mubr.bf16.mxu0 0
  %905 = vmatmul.mubr.bf16.gmra.mxu0 %v419
  %v906 = vpop.f32.mrf.mxu0
  %v907 = vadd.f32 %v151, %v906
  %v908 = vpop.f32.mrf.mxu0
  %v909 = vpop.f32.mrf.mxu0
  %v910 = vadd.f32 %v156, %v909
  %v911 = vpop.f32.mrf.mxu0
  %912 = vmatprep.mubr.bf16.mxu0 0
  %913 = vmatmul.mubr.bf16.gmra.mxu0 %v422
  %v914 = vpop.f32.mrf.mxu0
  %v915 = vadd.f32 %v161, %v914
  %v916 = vpop.f32.mrf.mxu0
  %v917 = vpop.f32.mrf.mxu0
  %v918 = vadd.f32 %v166, %v917
  %v919 = vpop.f32.mrf.mxu0
  %920 = vmatprep.mubr.bf16.mxu0 0
  %921 = vmatmul.mubr.bf16.gmra.mxu0 %v425
  %v922 = vpop.f32.mrf.mxu0
  %v923 = vadd.f32 %v171, %v922
  %v924 = vpop.f32.mrf.mxu0
  %v925 = vpop.f32.mrf.mxu0
  %v926 = vadd.f32 %v176, %v925
  %v927 = vpop.f32.mrf.mxu0
  %928 = vmatprep.mubr.bf16.mxu0 0
  %929 = vmatmul.mubr.bf16.gmra.mxu0 %v428
  %v930 = vpop.f32.mrf.mxu0
  %v931 = vadd.f32 %v181, %v930
  %v932 = vpop.f32.mrf.mxu0
  %v933 = vpop.f32.mrf.mxu0
  %v934 = vadd.f32 %v186, %v933
  %v935 = vpop.f32.mrf.mxu0
  %936 = vmatprep.mubr.bf16.mxu0 0
  %937 = vmatmul.mubr.bf16.gmra.mxu0 %v431
  %v938 = vpop.f32.mrf.mxu0
  %v939 = vadd.f32 %v191, %v938
  %v940 = vpop.f32.mrf.mxu0
  %v941 = vpop.f32.mrf.mxu0
  %v942 = vadd.f32 %v196, %v941
  %v943 = vpop.f32.mrf.mxu0
  %944 = vmatprep.mubr.bf16.mxu0 0
  %945 = vmatmul.mubr.bf16.gmra.mxu0 %v434
  %v946 = vpop.f32.mrf.mxu0
  %v947 = vadd.f32 %v201, %v946
  %v948 = vpop.f32.mrf.mxu0
  %v949 = vpop.f32.mrf.mxu0
  %v950 = vadd.f32 %v206, %v949
  %v951 = vpop.f32.mrf.mxu0
  %952 = vmatprep.mubr.bf16.mxu0 0
  %953 = vmatmul.mubr.bf16.gmra.mxu0 %v437
  %v954 = vpop.f32.mrf.mxu0
  %v955 = vadd.f32 %v211, %v954
  %v956 = vpop.f32.mrf.mxu0
  %v957 = vpop.f32.mrf.mxu0
  %v958 = vadd.f32 %v216, %v957
  %v959 = vpop.f32.mrf.mxu0
  %960 = vmatprep.mubr.bf16.mxu0 0
  %961 = vmatmul.mubr.bf16.gmra.mxu0 %v440
  %v962 = vpop.f32.mrf.mxu0
  %v963 = vadd.f32 %v221, %v962
  %v964 = vpop.f32.mrf.mxu0
  %v965 = vpop.f32.mrf.mxu0
  %v966 = vadd.f32 %v226, %v965
  %v967 = vpop.f32.mrf.mxu0
  %968 = vmatprep.mubr.bf16.mxu0 0
  %969 = vmatmul.mubr.bf16.gmra.mxu0 %v443
  %v970 = vpop.f32.mrf.mxu0
  %v971 = vadd.f32 %v231, %v970
  %v972 = vpop.f32.mrf.mxu0
  %v973 = vpop.f32.mrf.mxu0
  %v974 = vadd.f32 %v236, %v973
  %v975 = vpop.f32.mrf.mxu0
  %976 = vmatprep.mubr.bf16.mxu0 0
  %977 = vmatmul.mubr.bf16.gmra.mxu0 %v446
  %v978 = vpop.f32.mrf.mxu0
  %v979 = vadd.f32 %v241, %v978
  %v980 = vpop.f32.mrf.mxu0
  %v981 = vpop.f32.mrf.mxu0
  %v982 = vadd.f32 %v246, %v981
  %v983 = vpop.f32.mrf.mxu0
  %984 = vmatprep.mubr.bf16.mxu0 0
  %985 = vmatmul.mubr.bf16.gmra.mxu0 %v449
  %v986 = vpop.f32.mrf.mxu0
  %v987 = vadd.f32 %v251, %v986
  %v988 = vpop.f32.mrf.mxu0
  %v989 = vpop.f32.mrf.mxu0
  %v990 = vadd.f32 %v256, %v989
  %v991 = vpop.f32.mrf.mxu0
  %992 = vmatprep.mubr.bf16.mxu0 0
  %993 = vmatmul.mubr.bf16.gmra.mxu0 %v452
  %v994 = vpop.f32.mrf.mxu0
  %v995 = vadd.f32 %v261, %v994
  %v996 = vpop.f32.mrf.mxu0
  %v997 = vpop.f32.mrf.mxu0
  %v998 = vadd.f32 %v266, %v997
  %v999 = vpop.f32.mrf.mxu0
  %1000 = vmatprep.mubr.bf16.mxu0 0
  %1001 = vmatmul.mubr.bf16.gmra.mxu0 %v455
  %v1002 = vpop.f32.mrf.mxu0
  %v1003 = vadd.f32 %v271, %v1002
  %v1004 = vpop.f32.mrf.mxu0
  %v1005 = vpop.f32.mrf.mxu0
  %v1006 = vadd.f32 %v276, %v1005
  %v1007 = vpop.f32.mrf.mxu0
  %1008 = vmatprep.mubr.bf16.mxu0 0
  %1009 = vmatmul.mubr.bf16.gmra.mxu0 %v458
  %v1010 = vpop.f32.mrf.mxu0
  %v1011 = vadd.f32 %v281, %v1010
  %v1012 = vpop.f32.mrf.mxu0
  %v1013 = vpop.f32.mrf.mxu0
  %v1014 = vadd.f32 %v286, %v1013
  %v1015 = vpop.f32.mrf.mxu0
  %1016 = vmatprep.mubr.bf16.mxu0 0
  %1017 = vmatmul.mubr.bf16.gmra.mxu0 %v461
  %v1018 = vpop.f32.mrf.mxu0
  %v1019 = vadd.f32 %v291, %v1018
  %v1020 = vpop.f32.mrf.mxu0
  %v1021 = vpop.f32.mrf.mxu0
  %v1022 = vadd.f32 %v296, %v1021
  %v1023 = vpop.f32.mrf.mxu0
  %1024 = vdwg.mxu0
  %v1025 = vmax.f32 %v899, 0.0
  %v1026 = vmax.f32 %v902, 0.0
  %v1027 = vmax.f32 %v907, 0.0
  %v1028 = vmax.f32 %v910, 0.0
  %v1029 = vmax.f32 %v915, 0.0
  %v1030 = vmax.f32 %v918, 0.0
  %v1031 = vmax.f32 %v923, 0.0
  %v1032 = vmax.f32 %v926, 0.0
  %v1033 = vmax.f32 %v931, 0.0
  %v1034 = vmax.f32 %v934, 0.0
  %v1035 = vmax.f32 %v939, 0.0
  %v1036 = vmax.f32 %v942, 0.0
  %v1037 = vmax.f32 %v947, 0.0
  %v1038 = vmax.f32 %v950, 0.0
  %v1039 = vmax.f32 %v955, 0.0
  %v1040 = vmax.f32 %v958, 0.0
  %v1041 = vmax.f32 %v963, 0.0
  %v1042 = vmax.f32 %v966, 0.0
  %v1043 = vmax.f32 %v971, 0.0
  %v1044 = vmax.f32 %v974, 0.0
  %v1045 = vmax.f32 %v979, 0.0
  %v1046 = vmax.f32 %v982, 0.0
  %v1047 = vmax.f32 %v987, 0.0
  %v1048 = vmax.f32 %v990, 0.0
  %v1049 = vmax.f32 %v995, 0.0
  %v1050 = vmax.f32 %v998, 0.0
  %v1051 = vmax.f32 %v1003, 0.0
  %v1052 = vmax.f32 %v1006, 0.0
  %v1053 = vmax.f32 %v1011, 0.0
  %v1054 = vmax.f32 %v1014, 0.0
  %v1055 = vmax.f32 %v1019, 0.0
  %v1056 = vmax.f32 %v1022, 0.0
  %v1057 = vpack.c.bf16 %v1026, %v1025
  %v1058 = vpack.c.bf16 %v1028, %v1027
  %v1059 = vpack.c.bf16 %v1030, %v1029
  %v1060 = vpack.c.bf16 %v1032, %v1031
  %v1061 = vpack.c.bf16 %v1034, %v1033
  %v1062 = vpack.c.bf16 %v1036, %v1035
  %v1063 = vpack.c.bf16 %v1038, %v1037
  %v1064 = vpack.c.bf16 %v1040, %v1039
  %v1065 = vpack.c.bf16 %v1042, %v1041
  %v1066 = vpack.c.bf16 %v1044, %v1043
  %v1067 = vpack.c.bf16 %v1046, %v1045
  %v1068 = vpack.c.bf16 %v1048, %v1047
  %v1069 = vpack.c.bf16 %v1050, %v1049
  %v1070 = vpack.c.bf16 %v1052, %v1051
  %v1071 = vpack.c.bf16 %v1054, %v1053
  %v1072 = vpack.c.bf16 %v1056, %v1055
  %v1089 = vunpack.c.l.b16 %v1057
  %v1090 = vunpack.c.h.b16 %v1057
  %v1091 = vunpack.c.l.b16 %v1058
  %v1092 = vunpack.c.h.b16 %v1058
  %v1093 = vunpack.c.l.b16 %v1059
  %v1094 = vunpack.c.h.b16 %v1059
  %v1095 = vunpack.c.l.b16 %v1060
  %v1096 = vunpack.c.h.b16 %v1060
  %v1097 = vunpack.c.l.b16 %v1061
  %v1098 = vunpack.c.h.b16 %v1061
  %v1099 = vunpack.c.l.b16 %v1062
  %v1100 = vunpack.c.h.b16 %v1062
  %v1101 = vunpack.c.l.b16 %v1063
  %v1102 = vunpack.c.h.b16 %v1063
  %v1103 = vunpack.c.l.b16 %v1064
  %v1104 = vunpack.c.h.b16 %v1064
  %v1105 = vunpack.c.l.b16 %v1065
  %v1106 = vunpack.c.h.b16 %v1065
  %v1107 = vunpack.c.l.b16 %v1066
  %v1108 = vunpack.c.h.b16 %v1066
  %v1109 = vunpack.c.l.b16 %v1067
  %v1110 = vunpack.c.h.b16 %v1067
  %v1111 = vunpack.c.l.b16 %v1068
  %v1112 = vunpack.c.h.b16 %v1068
  %v1113 = vunpack.c.l.b16 %v1069
  %v1114 = vunpack.c.h.b16 %v1069
  %v1115 = vunpack.c.l.b16 %v1070
  %v1116 = vunpack.c.h.b16 %v1070
  %v1117 = vunpack.c.l.b16 %v1071
  %v1118 = vunpack.c.h.b16 %v1071
  %v1119 = vunpack.c.l.b16 %v1072
  %v1120 = vunpack.c.h.b16 %v1072
  %v1121 = vpack.c.b16 %v1089, %v1089
  %v1122 = vpack.c.b16 %v1090, %v1090
  %v1123 = vpack.c.b16 %v1091, %v1091
  %v1124 = vpack.c.b16 %v1092, %v1092
  %v1125 = vpack.c.b16 %v1093, %v1093
  %v1126 = vpack.c.b16 %v1094, %v1094
  %v1127 = vpack.c.b16 %v1095, %v1095
  %v1128 = vpack.c.b16 %v1096, %v1096
  %v1129 = vpack.c.b16 %v1097, %v1097
  %v1130 = vpack.c.b16 %v1098, %v1098
  %v1131 = vpack.c.b16 %v1099, %v1099
  %v1132 = vpack.c.b16 %v1100, %v1100
  %v1133 = vpack.c.b16 %v1101, %v1101
  %v1134 = vpack.c.b16 %v1102, %v1102
  %v1135 = vpack.c.b16 %v1103, %v1103
  %v1136 = vpack.c.b16 %v1104, %v1104
  %v1137 = vpack.c.b16 %v1105, %v1105
  %v1138 = vpack.c.b16 %v1106, %v1106
  %v1139 = vpack.c.b16 %v1107, %v1107
  %v1140 = vpack.c.b16 %v1108, %v1108
  %v1141 = vpack.c.b16 %v1109, %v1109
  %v1142 = vpack.c.b16 %v1110, %v1110
  %v1143 = vpack.c.b16 %v1111, %v1111
  %v1144 = vpack.c.b16 %v1112, %v1112
  %v1145 = vpack.c.b16 %v1113, %v1113
  %v1146 = vpack.c.b16 %v1114, %v1114
  %v1147 = vpack.c.b16 %v1115, %v1115
  %v1148 = vpack.c.b16 %v1116, %v1116
  %v1149 = vpack.c.b16 %v1117, %v1117
  %v1150 = vpack.c.b16 %v1118, %v1118
  %v1151 = vpack.c.b16 %v1119, %v1119
  %v1152 = vpack.c.b16 %v1120, %v1120
  %1185 = vst [vmem:[#allocation2 + $0x100] sm:$0xf] %v1121
  %1186 = vst [vmem:[#allocation2 + $0x104] sm:$0xf] %v1122
  %1187 = vst [vmem:[#allocation2 + $0x108] sm:$0xf] %v1123
  %1188 = vst [vmem:[#allocation2 + $0x10c] sm:$0xf] %v1124
  %1189 = vst [vmem:[#allocation2 + $0x110] sm:$0xf] %v1125
  %1190 = vst [vmem:[#allocation2 + $0x114] sm:$0xf] %v1126
  %1191 = vst [vmem:[#allocation2 + $0x118] sm:$0xf] %v1127
  %1192 = vst [vmem:[#allocation2 + $0x11c] sm:$0xf] %v1128
  %1193 = vst [vmem:[#allocation2 + $0x120] sm:$0xf] %v1129
  %1194 = vst [vmem:[#allocation2 + $0x124] sm:$0xf] %v1130
  %1195 = vst [vmem:[#allocation2 + $0x128] sm:$0xf] %v1131
  %1196 = vst [vmem:[#allocation2 + $0x12c] sm:$0xf] %v1132
  %1197 = vst [vmem:[#allocation2 + $0x130] sm:$0xf] %v1133
  %1198 = vst [vmem:[#allocation2 + $0x134] sm:$0xf] %v1134
  %1199 = vst [vmem:[#allocation2 + $0x138] sm:$0xf] %v1135
  %1200 = vst [vmem:[#allocation2 + $0x13c] sm:$0xf] %v1136
  %1201 = vst [vmem:[#allocation2 + $0x140] sm:$0xf] %v1137
  %1202 = vst [vmem:[#allocation2 + $0x144] sm:$0xf] %v1138
  %1203 = vst [vmem:[#allocation2 + $0x148] sm:$0xf] %v1139
  %1204 = vst [vmem:[#allocation2 + $0x14c] sm:$0xf] %v1140
  %1205 = vst [vmem:[#allocation2 + $0x150] sm:$0xf] %v1141
  %1206 = vst [vmem:[#allocation2 + $0x154] sm:$0xf] %v1142
  %1207 = vst [vmem:[#allocation2 + $0x158] sm:$0xf] %v1143
  %1208 = vst [vmem:[#allocation2 + $0x15c] sm:$0xf] %v1144
  %1209 = vst [vmem:[#allocation2 + $0x160] sm:$0xf] %v1145
  %1210 = vst [vmem:[#allocation2 + $0x164] sm:$0xf] %v1146
  %1211 = vst [vmem:[#allocation2 + $0x168] sm:$0xf] %v1147
  %1212 = vst [vmem:[#allocation2 + $0x16c] sm:$0xf] %v1148
  %1213 = vst [vmem:[#allocation2 + $0x170] sm:$0xf] %v1149
  %1214 = vst [vmem:[#allocation2 + $0x174] sm:$0xf] %v1150
  %1215 = vst [vmem:[#allocation2 + $0x178] sm:$0xf] %v1151
  %1216 = vst [vmem:[#allocation2 + $0x17c] sm:$0xf] %v1152
  %v1217 = vld [vmem:[%s0 + $0x40] sm:$0xf]
  %v1218 = vld [vmem:[%s0 + $0x44] sm:$0xf]
  %v1219 = vld [vmem:[%s0 + $0x48] sm:$0xf]
  %v1220 = vld [vmem:[%s0 + $0x4c] sm:$0xf]
  %v1221 = vld [vmem:[%s0 + $0x50] sm:$0xf]
  %v1222 = vld [vmem:[%s0 + $0x54] sm:$0xf]
  %v1223 = vld [vmem:[%s0 + $0x58] sm:$0xf]
  %v1224 = vld [vmem:[%s0 + $0x5c] sm:$0xf]
  %v1225 = vld [vmem:[%s0 + $0x60] sm:$0xf]
  %v1226 = vld [vmem:[%s0 + $0x64] sm:$0xf]
  %v1227 = vld [vmem:[%s0 + $0x68] sm:$0xf]
  %v1228 = vld [vmem:[%s0 + $0x6c] sm:$0xf]
  %v1241 = vunpack.c.l.b16 %v1217
  %v1242 = vunpack.c.l.b16 %v1218
  %v1243 = vunpack.c.l.b16 %v1219
  %v1244 = vunpack.c.l.b16 %v1220
  %v1245 = vunpack.c.l.b16 %v1221
  %v1246 = vunpack.c.l.b16 %v1222
  %v1247 = vunpack.c.l.b16 %v1223
  %v1248 = vunpack.c.l.b16 %v1224
  %v1249 = vunpack.c.l.b16 %v1225
  %v1250 = vunpack.c.l.b16 %v1226
  %v1251 = vunpack.c.l.b16 %v1227
  %v1252 = vunpack.c.l.b16 %v1228
  %v1253 = vpack.c.b16 %v1242, %v1241
  %v1254 = vpack.c.b16 %v1244, %v1243
  %v1255 = vpack.c.b16 %v1246, %v1245
  %v1256 = vpack.c.b16 %v1248, %v1247
  %v1257 = vpack.c.b16 %v1250, %v1249
  %v1258 = vpack.c.b16 %v1252, %v1251
  %1265 = vmatprep.subr.bf16.mxu0 0
  %1266 = vmatpush1.bf16.msra.mxu0 0
  %1267 = vmatprep.subr.bf16.mxu0 0
  %1268 = vmatpush1.bf16.msra.mxu0 0
  %1269 = vmatprep.subr.bf16.mxu0 0
  %1270 = vmatpush1.bf16.msra.mxu0 %v1258
  %1271 = vmatprep.subr.bf16.mxu0 0
  %1272 = vmatpush1.bf16.msra.mxu0 %v1257
  %1273 = vmatprep.subr.bf16.mxu0 0
  %1274 = vmatpush1.bf16.msra.mxu0 %v1256
  %1275 = vmatprep.subr.bf16.mxu0 0
  %1276 = vmatpush1.bf16.msra.mxu0 %v1255
  %1277 = vmatprep.subr.bf16.mxu0 0
  %1278 = vmatpush1.bf16.msra.mxu0 %v1254
  %1279 = vmatprep.subr.bf16.mxu0 0
  %1280 = vmatpush1.bf16.msra.mxu0 %v1253
  %1281 = vmatprep.subr.bf16.mxu0 0
  %1282 = vmatpush2.bf16.msra.mxu0 0
  %1283 = vmatprep.subr.bf16.mxu0 0
  %1284 = vmatpush2.bf16.msra.mxu0 0
  %1285 = vmatprep.subr.bf16.mxu0 0
  %1286 = vmatpush2.bf16.msra.mxu0 0
  %1287 = vmatprep.subr.bf16.mxu0 0
  %1288 = vmatpush2.bf16.msra.mxu0 0
  %1289 = vmatprep.subr.bf16.mxu0 0
  %1290 = vmatpush2.bf16.msra.mxu0 0
  %1291 = vmatprep.subr.bf16.mxu0 0
  %1292 = vmatpush2.bf16.msra.mxu0 0
  %1293 = vmatprep.subr.bf16.mxu0 0
  %1294 = vmatpush2.bf16.msra.mxu0 0
  %1295 = vmatprep.subr.bf16.mxu0 0
  %1296 = vmatpush2.bf16.msra.mxu0 0
  %1297 = vmatprep.mubr.bf16.mxu0 0
  %1298 = vmatmul.mubr.bf16.gmra.mxu0 %v416
  %v1299 = vpop.f32.mrf.mxu0
  %v1300 = vadd.f32 %v141, %v1299
  %v1301 = vpop.f32.mrf.mxu0
  %v1302 = vpop.f32.mrf.mxu0
  %v1303 = vadd.f32 %v146, %v1302
  %v1304 = vpop.f32.mrf.mxu0
  %1305 = vmatprep.mubr.bf16.mxu0 0
  %1306 = vmatmul.mubr.bf16.gmra.mxu0 %v419
  %v1307 = vpop.f32.mrf.mxu0
  %v1308 = vadd.f32 %v151, %v1307
  %v1309 = vpop.f32.mrf.mxu0
  %v1310 = vpop.f32.mrf.mxu0
  %v1311 = vadd.f32 %v156, %v1310
  %v1312 = vpop.f32.mrf.mxu0
  %1313 = vmatprep.mubr.bf16.mxu0 0
  %1314 = vmatmul.mubr.bf16.gmra.mxu0 %v422
  %v1315 = vpop.f32.mrf.mxu0
  %v1316 = vadd.f32 %v161, %v1315
  %v1317 = vpop.f32.mrf.mxu0
  %v1318 = vpop.f32.mrf.mxu0
  %v1319 = vadd.f32 %v166, %v1318
  %v1320 = vpop.f32.mrf.mxu0
  %1321 = vmatprep.mubr.bf16.mxu0 0
  %1322 = vmatmul.mubr.bf16.gmra.mxu0 %v425
  %v1323 = vpop.f32.mrf.mxu0
  %v1324 = vadd.f32 %v171, %v1323
  %v1325 = vpop.f32.mrf.mxu0
  %v1326 = vpop.f32.mrf.mxu0
  %v1327 = vadd.f32 %v176, %v1326
  %v1328 = vpop.f32.mrf.mxu0
  %1329 = vmatprep.mubr.bf16.mxu0 0
  %1330 = vmatmul.mubr.bf16.gmra.mxu0 %v428
  %v1331 = vpop.f32.mrf.mxu0
  %v1332 = vadd.f32 %v181, %v1331
  %v1333 = vpop.f32.mrf.mxu0
  %v1334 = vpop.f32.mrf.mxu0
  %v1335 = vadd.f32 %v186, %v1334
  %v1336 = vpop.f32.mrf.mxu0
  %1337 = vmatprep.mubr.bf16.mxu0 0
  %1338 = vmatmul.mubr.bf16.gmra.mxu0 %v431
  %v1339 = vpop.f32.mrf.mxu0
  %v1340 = vadd.f32 %v191, %v1339
  %v1341 = vpop.f32.mrf.mxu0
  %v1342 = vpop.f32.mrf.mxu0
  %v1343 = vadd.f32 %v196, %v1342
  %v1344 = vpop.f32.mrf.mxu0
  %1345 = vmatprep.mubr.bf16.mxu0 0
  %1346 = vmatmul.mubr.bf16.gmra.mxu0 %v434
  %v1347 = vpop.f32.mrf.mxu0
  %v1348 = vadd.f32 %v201, %v1347
  %v1349 = vpop.f32.mrf.mxu0
  %v1350 = vpop.f32.mrf.mxu0
  %v1351 = vadd.f32 %v206, %v1350
  %v1352 = vpop.f32.mrf.mxu0
  %1353 = vmatprep.mubr.bf16.mxu0 0
  %1354 = vmatmul.mubr.bf16.gmra.mxu0 %v437
  %v1355 = vpop.f32.mrf.mxu0
  %v1356 = vadd.f32 %v211, %v1355
  %v1357 = vpop.f32.mrf.mxu0
  %v1358 = vpop.f32.mrf.mxu0
  %v1359 = vadd.f32 %v216, %v1358
  %v1360 = vpop.f32.mrf.mxu0
  %1361 = vmatprep.mubr.bf16.mxu0 0
  %1362 = vmatmul.mubr.bf16.gmra.mxu0 %v440
  %v1363 = vpop.f32.mrf.mxu0
  %v1364 = vadd.f32 %v221, %v1363
  %v1365 = vpop.f32.mrf.mxu0
  %v1366 = vpop.f32.mrf.mxu0
  %v1367 = vadd.f32 %v226, %v1366
  %v1368 = vpop.f32.mrf.mxu0
  %1369 = vmatprep.mubr.bf16.mxu0 0
  %1370 = vmatmul.mubr.bf16.gmra.mxu0 %v443
  %v1371 = vpop.f32.mrf.mxu0
  %v1372 = vadd.f32 %v231, %v1371
  %v1373 = vpop.f32.mrf.mxu0
  %v1374 = vpop.f32.mrf.mxu0
  %v1375 = vadd.f32 %v236, %v1374
  %v1376 = vpop.f32.mrf.mxu0
  %1377 = vmatprep.mubr.bf16.mxu0 0
  %1378 = vmatmul.mubr.bf16.gmra.mxu0 %v446
  %v1379 = vpop.f32.mrf.mxu0
  %v1380 = vadd.f32 %v241, %v1379
  %v1381 = vpop.f32.mrf.mxu0
  %v1382 = vpop.f32.mrf.mxu0
  %v1383 = vadd.f32 %v246, %v1382
  %v1384 = vpop.f32.mrf.mxu0
  %1385 = vmatprep.mubr.bf16.mxu0 0
  %1386 = vmatmul.mubr.bf16.gmra.mxu0 %v449
  %v1387 = vpop.f32.mrf.mxu0
  %v1388 = vadd.f32 %v251, %v1387
  %v1389 = vpop.f32.mrf.mxu0
  %v1390 = vpop.f32.mrf.mxu0
  %v1391 = vadd.f32 %v256, %v1390
  %v1392 = vpop.f32.mrf.mxu0
  %1393 = vmatprep.mubr.bf16.mxu0 0
  %1394 = vmatmul.mubr.bf16.gmra.mxu0 %v452
  %v1395 = vpop.f32.mrf.mxu0
  %v1396 = vadd.f32 %v261, %v1395
  %v1397 = vpop.f32.mrf.mxu0
  %v1398 = vpop.f32.mrf.mxu0
  %v1399 = vadd.f32 %v266, %v1398
  %v1400 = vpop.f32.mrf.mxu0
  %1401 = vmatprep.mubr.bf16.mxu0 0
  %1402 = vmatmul.mubr.bf16.gmra.mxu0 %v455
  %v1403 = vpop.f32.mrf.mxu0
  %v1404 = vadd.f32 %v271, %v1403
  %v1405 = vpop.f32.mrf.mxu0
  %v1406 = vpop.f32.mrf.mxu0
  %v1407 = vadd.f32 %v276, %v1406
  %v1408 = vpop.f32.mrf.mxu0
  %1409 = vmatprep.mubr.bf16.mxu0 0
  %1410 = vmatmul.mubr.bf16.gmra.mxu0 %v458
  %v1411 = vpop.f32.mrf.mxu0
  %v1412 = vadd.f32 %v281, %v1411
  %v1413 = vpop.f32.mrf.mxu0
  %v1414 = vpop.f32.mrf.mxu0
  %v1415 = vadd.f32 %v286, %v1414
  %v1416 = vpop.f32.mrf.mxu0
  %1417 = vmatprep.mubr.bf16.mxu0 0
  %1418 = vmatmul.mubr.bf16.gmra.mxu0 %v461
  %v1419 = vpop.f32.mrf.mxu0
  %v1420 = vadd.f32 %v291, %v1419
  %v1421 = vpop.f32.mrf.mxu0
  %v1422 = vpop.f32.mrf.mxu0
  %v1423 = vadd.f32 %v296, %v1422
  %v1424 = vpop.f32.mrf.mxu0
  %1425 = vdwg.mxu0
  %v1426 = vmax.f32 %v1300, 0.0
  %v1427 = vmax.f32 %v1303, 0.0
  %v1428 = vmax.f32 %v1308, 0.0
  %v1429 = vmax.f32 %v1311, 0.0
  %v1430 = vmax.f32 %v1316, 0.0
  %v1431 = vmax.f32 %v1319, 0.0
  %v1432 = vmax.f32 %v1324, 0.0
  %v1433 = vmax.f32 %v1327, 0.0
  %v1434 = vmax.f32 %v1332, 0.0
  %v1435 = vmax.f32 %v1335, 0.0
  %v1436 = vmax.f32 %v1340, 0.0
  %v1437 = vmax.f32 %v1343, 0.0
  %v1438 = vmax.f32 %v1348, 0.0
  %v1439 = vmax.f32 %v1351, 0.0
  %v1440 = vmax.f32 %v1356, 0.0
  %v1441 = vmax.f32 %v1359, 0.0
  %v1442 = vmax.f32 %v1364, 0.0
  %v1443 = vmax.f32 %v1367, 0.0
  %v1444 = vmax.f32 %v1372, 0.0
  %v1445 = vmax.f32 %v1375, 0.0
  %v1446 = vmax.f32 %v1380, 0.0
  %v1447 = vmax.f32 %v1383, 0.0
  %v1448 = vmax.f32 %v1388, 0.0
  %v1449 = vmax.f32 %v1391, 0.0
  %v1450 = vmax.f32 %v1396, 0.0
  %v1451 = vmax.f32 %v1399, 0.0
  %v1452 = vmax.f32 %v1404, 0.0
  %v1453 = vmax.f32 %v1407, 0.0
  %v1454 = vmax.f32 %v1412, 0.0
  %v1455 = vmax.f32 %v1415, 0.0
  %v1456 = vmax.f32 %v1420, 0.0
  %v1457 = vmax.f32 %v1423, 0.0
  %v1458 = vpack.c.bf16 %v1427, %v1426
  %v1459 = vpack.c.bf16 %v1429, %v1428
  %v1460 = vpack.c.bf16 %v1431, %v1430
  %v1461 = vpack.c.bf16 %v1433, %v1432
  %v1462 = vpack.c.bf16 %v1435, %v1434
  %v1463 = vpack.c.bf16 %v1437, %v1436
  %v1464 = vpack.c.bf16 %v1439, %v1438
  %v1465 = vpack.c.bf16 %v1441, %v1440
  %v1466 = vpack.c.bf16 %v1443, %v1442
  %v1467 = vpack.c.bf16 %v1445, %v1444
  %v1468 = vpack.c.bf16 %v1447, %v1446
  %v1469 = vpack.c.bf16 %v1449, %v1448
  %v1470 = vpack.c.bf16 %v1451, %v1450
  %v1471 = vpack.c.bf16 %v1453, %v1452
  %v1472 = vpack.c.bf16 %v1455, %v1454
  %v1473 = vpack.c.bf16 %v1457, %v1456
  %v1490 = vunpack.c.l.b16 %v1458
  %v1491 = vunpack.c.h.b16 %v1458
  %v1492 = vunpack.c.l.b16 %v1459
  %v1493 = vunpack.c.h.b16 %v1459
  %v1494 = vunpack.c.l.b16 %v1460
  %v1495 = vunpack.c.h.b16 %v1460
  %v1496 = vunpack.c.l.b16 %v1461
  %v1497 = vunpack.c.h.b16 %v1461
  %v1498 = vunpack.c.l.b16 %v1462
  %v1499 = vunpack.c.h.b16 %v1462
  %v1500 = vunpack.c.l.b16 %v1463
  %v1501 = vunpack.c.h.b16 %v1463
  %v1502 = vunpack.c.l.b16 %v1464
  %v1503 = vunpack.c.h.b16 %v1464
  %v1504 = vunpack.c.l.b16 %v1465
  %v1505 = vunpack.c.h.b16 %v1465
  %v1506 = vunpack.c.l.b16 %v1466
  %v1507 = vunpack.c.h.b16 %v1466
  %v1508 = vunpack.c.l.b16 %v1467
  %v1509 = vunpack.c.h.b16 %v1467
  %v1510 = vunpack.c.l.b16 %v1468
  %v1511 = vunpack.c.h.b16 %v1468
  %v1512 = vunpack.c.l.b16 %v1469
  %v1513 = vunpack.c.h.b16 %v1469
  %v1514 = vunpack.c.l.b16 %v1470
  %v1515 = vunpack.c.h.b16 %v1470
  %v1516 = vunpack.c.l.b16 %v1471
  %v1517 = vunpack.c.h.b16 %v1471
  %v1518 = vunpack.c.l.b16 %v1472
  %v1519 = vunpack.c.h.b16 %v1472
  %v1520 = vunpack.c.l.b16 %v1473
  %v1521 = vunpack.c.h.b16 %v1473
  %v1522 = vpack.c.b16 %v1490, %v1490
  %v1523 = vpack.c.b16 %v1491, %v1491
  %v1524 = vpack.c.b16 %v1492, %v1492
  %v1525 = vpack.c.b16 %v1493, %v1493
  %v1526 = vpack.c.b16 %v1494, %v1494
  %v1527 = vpack.c.b16 %v1495, %v1495
  %v1528 = vpack.c.b16 %v1496, %v1496
  %v1529 = vpack.c.b16 %v1497, %v1497
  %v1530 = vpack.c.b16 %v1498, %v1498
  %v1531 = vpack.c.b16 %v1499, %v1499
  %v1532 = vpack.c.b16 %v1500, %v1500
  %v1533 = vpack.c.b16 %v1501, %v1501
  %v1534 = vpack.c.b16 %v1502, %v1502
  %v1535 = vpack.c.b16 %v1503, %v1503
  %v1536 = vpack.c.b16 %v1504, %v1504
  %v1537 = vpack.c.b16 %v1505, %v1505
  %v1538 = vpack.c.b16 %v1506, %v1506
  %v1539 = vpack.c.b16 %v1507, %v1507
  %v1540 = vpack.c.b16 %v1508, %v1508
  %v1541 = vpack.c.b16 %v1509, %v1509
  %v1542 = vpack.c.b16 %v1510, %v1510
  %v1543 = vpack.c.b16 %v1511, %v1511
  %v1544 = vpack.c.b16 %v1512, %v1512
  %v1545 = vpack.c.b16 %v1513, %v1513
  %v1546 = vpack.c.b16 %v1514, %v1514
  %v1547 = vpack.c.b16 %v1515, %v1515
  %v1548 = vpack.c.b16 %v1516, %v1516
  %v1549 = vpack.c.b16 %v1517, %v1517
  %v1550 = vpack.c.b16 %v1518, %v1518
  %v1551 = vpack.c.b16 %v1519, %v1519
  %v1552 = vpack.c.b16 %v1520, %v1520
  %v1553 = vpack.c.b16 %v1521, %v1521
  %1586 = vst [vmem:[#allocation2 + $0x180] sm:$0xf] %v1522
  %1587 = vst [vmem:[#allocation2 + $0x184] sm:$0xf] %v1523
  %1588 = vst [vmem:[#allocation2 + $0x188] sm:$0xf] %v1524
  %1589 = vst [vmem:[#allocation2 + $0x18c] sm:$0xf] %v1525
  %1590 = vst [vmem:[#allocation2 + $0x190] sm:$0xf] %v1526
  %1591 = vst [vmem:[#allocation2 + $0x194] sm:$0xf] %v1527
  %1592 = vst [vmem:[#allocation2 + $0x198] sm:$0xf] %v1528
  %1593 = vst [vmem:[#allocation2 + $0x19c] sm:$0xf] %v1529
  %1594 = vst [vmem:[#allocation2 + $0x1a0] sm:$0xf] %v1530
  %1595 = vst [vmem:[#allocation2 + $0x1a4] sm:$0xf] %v1531
  %1596 = vst [vmem:[#allocation2 + $0x1a8] sm:$0xf] %v1532
  %1597 = vst [vmem:[#allocation2 + $0x1ac] sm:$0xf] %v1533
  %1598 = vst [vmem:[#allocation2 + $0x1b0] sm:$0xf] %v1534
  %1599 = vst [vmem:[#allocation2 + $0x1b4] sm:$0xf] %v1535
  %1600 = vst [vmem:[#allocation2 + $0x1b8] sm:$0xf] %v1536
  %1601 = vst [vmem:[#allocation2 + $0x1bc] sm:$0xf] %v1537
  %1602 = vst [vmem:[#allocation2 + $0x1c0] sm:$0xf] %v1538
  %1603 = vst [vmem:[#allocation2 + $0x1c4] sm:$0xf] %v1539
  %1604 = vst [vmem:[#allocation2 + $0x1c8] sm:$0xf] %v1540
  %1605 = vst [vmem:[#allocation2 + $0x1cc] sm:$0xf] %v1541
  %1606 = vst [vmem:[#allocation2 + $0x1d0] sm:$0xf] %v1542
  %1607 = vst [vmem:[#allocation2 + $0x1d4] sm:$0xf] %v1543
  %1608 = vst [vmem:[#allocation2 + $0x1d8] sm:$0xf] %v1544
  %1609 = vst [vmem:[#allocation2 + $0x1dc] sm:$0xf] %v1545
  %1610 = vst [vmem:[#allocation2 + $0x1e0] sm:$0xf] %v1546
  %1611 = vst [vmem:[#allocation2 + $0x1e4] sm:$0xf] %v1547
  %1612 = vst [vmem:[#allocation2 + $0x1e8] sm:$0xf] %v1548
  %1613 = vst [vmem:[#allocation2 + $0x1ec] sm:$0xf] %v1549
  %1614 = vst [vmem:[#allocation2 + $0x1f0] sm:$0xf] %v1550
  %1615 = vst [vmem:[#allocation2 + $0x1f4] sm:$0xf] %v1551
  %1616 = vst [vmem:[#allocation2 + $0x1f8] sm:$0xf] %v1552
  %1617 = vst [vmem:[#allocation2 + $0x1fc] sm:$0xf] %v1553
  %v1618 = vld [vmem:[%s0 + $0x60] sm:$0xf]
  %v1619 = vld [vmem:[%s0 + $0x64] sm:$0xf]
  %v1620 = vld [vmem:[%s0 + $0x68] sm:$0xf]
  %v1621 = vld [vmem:[%s0 + $0x6c] sm:$0xf]
  %v1622 = vld [vmem:[%s0 + $0x70] sm:$0xf]
  %v1623 = vld [vmem:[%s0 + $0x74] sm:$0xf]
  %v1624 = vld [vmem:[%s0 + $0x78] sm:$0xf]
  %v1625 = vld [vmem:[%s0 + $0x7c] sm:$0xf]
  %v1626 = vld [vmem:[%s0 + $0x80] sm:$0xf]
  %v1627 = vld [vmem:[%s0 + $0x84] sm:$0xf]
  %v1628 = vld [vmem:[%s0 + $0x88] sm:$0xf]
  %v1629 = vld [vmem:[%s0 + $0x8c] sm:$0xf]
  %v1642 = vunpack.c.l.b16 %v1618
  %v1643 = vunpack.c.l.b16 %v1619
  %v1644 = vunpack.c.l.b16 %v1620
  %v1645 = vunpack.c.l.b16 %v1621
  %v1646 = vunpack.c.l.b16 %v1622
  %v1647 = vunpack.c.l.b16 %v1623
  %v1648 = vunpack.c.l.b16 %v1624
  %v1649 = vunpack.c.l.b16 %v1625
  %v1650 = vunpack.c.l.b16 %v1626
  %v1651 = vunpack.c.l.b16 %v1627
  %v1652 = vunpack.c.l.b16 %v1628
  %v1653 = vunpack.c.l.b16 %v1629
  %v1654 = vpack.c.b16 %v1643, %v1642
  %v1655 = vpack.c.b16 %v1645, %v1644
  %v1656 = vpack.c.b16 %v1647, %v1646
  %v1657 = vpack.c.b16 %v1649, %v1648
  %v1658 = vpack.c.b16 %v1651, %v1650
  %v1659 = vpack.c.b16 %v1653, %v1652
  %1666 = vmatprep.subr.bf16.mxu0 0
  %1667 = vmatpush1.bf16.msra.mxu0 0
  %1668 = vmatprep.subr.bf16.mxu0 0
  %1669 = vmatpush1.bf16.msra.mxu0 0
  %1670 = vmatprep.subr.bf16.mxu0 0
  %1671 = vmatpush1.bf16.msra.mxu0 %v1659
  %1672 = vmatprep.subr.bf16.mxu0 0
  %1673 = vmatpush1.bf16.msra.mxu0 %v1658
  %1674 = vmatprep.subr.bf16.mxu0 0
  %1675 = vmatpush1.bf16.msra.mxu0 %v1657
  %1676 = vmatprep.subr.bf16.mxu0 0
  %1677 = vmatpush1.bf16.msra.mxu0 %v1656
  %1678 = vmatprep.subr.bf16.mxu0 0
  %1679 = vmatpush1.bf16.msra.mxu0 %v1655
  %1680 = vmatprep.subr.bf16.mxu0 0
  %1681 = vmatpush1.bf16.msra.mxu0 %v1654
  %1682 = vmatprep.subr.bf16.mxu0 0
  %1683 = vmatpush2.bf16.msra.mxu0 0
  %1684 = vmatprep.subr.bf16.mxu0 0
  %1685 = vmatpush2.bf16.msra.mxu0 0
  %1686 = vmatprep.subr.bf16.mxu0 0
  %1687 = vmatpush2.bf16.msra.mxu0 0
  %1688 = vmatprep.subr.bf16.mxu0 0
  %1689 = vmatpush2.bf16.msra.mxu0 0
  %1690 = vmatprep.subr.bf16.mxu0 0
  %1691 = vmatpush2.bf16.msra.mxu0 0
  %1692 = vmatprep.subr.bf16.mxu0 0
  %1693 = vmatpush2.bf16.msra.mxu0 0
  %1694 = vmatprep.subr.bf16.mxu0 0
  %1695 = vmatpush2.bf16.msra.mxu0 0
  %1696 = vmatprep.subr.bf16.mxu0 0
  %1697 = vmatpush2.bf16.msra.mxu0 0
  %1698 = vmatprep.mubr.bf16.mxu0 0
  %1699 = vmatmul.mubr.bf16.gmra.mxu0 %v416
  %v1700 = vpop.f32.mrf.mxu0
  %v1701 = vadd.f32 %v141, %v1700
  %v1702 = vpop.f32.mrf.mxu0
  %v1703 = vpop.f32.mrf.mxu0
  %v1704 = vadd.f32 %v146, %v1703
  %v1705 = vpop.f32.mrf.mxu0
  %1706 = vmatprep.mubr.bf16.mxu0 0
  %1707 = vmatmul.mubr.bf16.gmra.mxu0 %v419
  %v1708 = vpop.f32.mrf.mxu0
  %v1709 = vadd.f32 %v151, %v1708
  %v1710 = vpop.f32.mrf.mxu0
  %v1711 = vpop.f32.mrf.mxu0
  %v1712 = vadd.f32 %v156, %v1711
  %v1713 = vpop.f32.mrf.mxu0
  %1714 = vmatprep.mubr.bf16.mxu0 0
  %1715 = vmatmul.mubr.bf16.gmra.mxu0 %v422
  %v1716 = vpop.f32.mrf.mxu0
  %v1717 = vadd.f32 %v161, %v1716
  %v1718 = vpop.f32.mrf.mxu0
  %v1719 = vpop.f32.mrf.mxu0
  %v1720 = vadd.f32 %v166, %v1719
  %v1721 = vpop.f32.mrf.mxu0
  %1722 = vmatprep.mubr.bf16.mxu0 0
  %1723 = vmatmul.mubr.bf16.gmra.mxu0 %v425
  %v1724 = vpop.f32.mrf.mxu0
  %v1725 = vadd.f32 %v171, %v1724
  %v1726 = vpop.f32.mrf.mxu0
  %v1727 = vpop.f32.mrf.mxu0
  %v1728 = vadd.f32 %v176, %v1727
  %v1729 = vpop.f32.mrf.mxu0
  %1730 = vmatprep.mubr.bf16.mxu0 0
  %1731 = vmatmul.mubr.bf16.gmra.mxu0 %v428
  %v1732 = vpop.f32.mrf.mxu0
  %v1733 = vadd.f32 %v181, %v1732
  %v1734 = vpop.f32.mrf.mxu0
  %v1735 = vpop.f32.mrf.mxu0
  %v1736 = vadd.f32 %v186, %v1735
  %v1737 = vpop.f32.mrf.mxu0
  %1738 = vmatprep.mubr.bf16.mxu0 0
  %1739 = vmatmul.mubr.bf16.gmra.mxu0 %v431
  %v1740 = vpop.f32.mrf.mxu0
  %v1741 = vadd.f32 %v191, %v1740
  %v1742 = vpop.f32.mrf.mxu0
  %v1743 = vpop.f32.mrf.mxu0
  %v1744 = vadd.f32 %v196, %v1743
  %v1745 = vpop.f32.mrf.mxu0
  %1746 = vmatprep.mubr.bf16.mxu0 0
  %1747 = vmatmul.mubr.bf16.gmra.mxu0 %v434
  %v1748 = vpop.f32.mrf.mxu0
  %v1749 = vadd.f32 %v201, %v1748
  %v1750 = vpop.f32.mrf.mxu0
  %v1751 = vpop.f32.mrf.mxu0
  %v1752 = vadd.f32 %v206, %v1751
  %v1753 = vpop.f32.mrf.mxu0
  %1754 = vmatprep.mubr.bf16.mxu0 0
  %1755 = vmatmul.mubr.bf16.gmra.mxu0 %v437
  %v1756 = vpop.f32.mrf.mxu0
  %v1757 = vadd.f32 %v211, %v1756
  %v1758 = vpop.f32.mrf.mxu0
  %v1759 = vpop.f32.mrf.mxu0
  %v1760 = vadd.f32 %v216, %v1759
  %v1761 = vpop.f32.mrf.mxu0
  %1762 = vmatprep.mubr.bf16.mxu0 0
  %1763 = vmatmul.mubr.bf16.gmra.mxu0 %v440
  %v1764 = vpop.f32.mrf.mxu0
  %v1765 = vadd.f32 %v221, %v1764
  %v1766 = vpop.f32.mrf.mxu0
  %v1767 = vpop.f32.mrf.mxu0
  %v1768 = vadd.f32 %v226, %v1767
  %v1769 = vpop.f32.mrf.mxu0
  %1770 = vmatprep.mubr.bf16.mxu0 0
  %1771 = vmatmul.mubr.bf16.gmra.mxu0 %v443
  %v1772 = vpop.f32.mrf.mxu0
  %v1773 = vadd.f32 %v231, %v1772
  %v1774 = vpop.f32.mrf.mxu0
  %v1775 = vpop.f32.mrf.mxu0
  %v1776 = vadd.f32 %v236, %v1775
  %v1777 = vpop.f32.mrf.mxu0
  %1778 = vmatprep.mubr.bf16.mxu0 0
  %1779 = vmatmul.mubr.bf16.gmra.mxu0 %v446
  %v1780 = vpop.f32.mrf.mxu0
  %v1781 = vadd.f32 %v241, %v1780
  %v1782 = vpop.f32.mrf.mxu0
  %v1783 = vpop.f32.mrf.mxu0
  %v1784 = vadd.f32 %v246, %v1783
  %v1785 = vpop.f32.mrf.mxu0
  %1786 = vmatprep.mubr.bf16.mxu0 0
  %1787 = vmatmul.mubr.bf16.gmra.mxu0 %v449
  %v1788 = vpop.f32.mrf.mxu0
  %v1789 = vadd.f32 %v251, %v1788
  %v1790 = vpop.f32.mrf.mxu0
  %v1791 = vpop.f32.mrf.mxu0
  %v1792 = vadd.f32 %v256, %v1791
  %v1793 = vpop.f32.mrf.mxu0
  %1794 = vmatprep.mubr.bf16.mxu0 0
  %1795 = vmatmul.mubr.bf16.gmra.mxu0 %v452
  %v1796 = vpop.f32.mrf.mxu0
  %v1797 = vadd.f32 %v261, %v1796
  %v1798 = vpop.f32.mrf.mxu0
  %v1799 = vpop.f32.mrf.mxu0
  %v1800 = vadd.f32 %v266, %v1799
  %v1801 = vpop.f32.mrf.mxu0
  %1802 = vmatprep.mubr.bf16.mxu0 0
  %1803 = vmatmul.mubr.bf16.gmra.mxu0 %v455
  %v1804 = vpop.f32.mrf.mxu0
  %v1805 = vadd.f32 %v271, %v1804
  %v1806 = vpop.f32.mrf.mxu0
  %v1807 = vpop.f32.mrf.mxu0
  %v1808 = vadd.f32 %v276, %v1807
  %v1809 = vpop.f32.mrf.mxu0
  %1810 = vmatprep.mubr.bf16.mxu0 0
  %1811 = vmatmul.mubr.bf16.gmra.mxu0 %v458
  %v1812 = vpop.f32.mrf.mxu0
  %v1813 = vadd.f32 %v281, %v1812
  %v1814 = vpop.f32.mrf.mxu0
  %v1815 = vpop.f32.mrf.mxu0
  %v1816 = vadd.f32 %v286, %v1815
  %v1817 = vpop.f32.mrf.mxu0
  %1818 = vmatprep.mubr.bf16.mxu0 0
  %1819 = vmatmul.mubr.bf16.gmra.mxu0 %v461
  %v1820 = vpop.f32.mrf.mxu0
  %v1821 = vadd.f32 %v291, %v1820
  %v1822 = vpop.f32.mrf.mxu0
  %v1823 = vpop.f32.mrf.mxu0
  %v1824 = vadd.f32 %v296, %v1823
  %v1825 = vpop.f32.mrf.mxu0
  %1826 = vdwg.mxu0
  %v1827 = vmax.f32 %v1701, 0.0
  %v1828 = vmax.f32 %v1704, 0.0
  %v1829 = vmax.f32 %v1709, 0.0
  %v1830 = vmax.f32 %v1712, 0.0
  %v1831 = vmax.f32 %v1717, 0.0
  %v1832 = vmax.f32 %v1720, 0.0
  %v1833 = vmax.f32 %v1725, 0.0
  %v1834 = vmax.f32 %v1728, 0.0
  %v1835 = vmax.f32 %v1733, 0.0
  %v1836 = vmax.f32 %v1736, 0.0
  %v1837 = vmax.f32 %v1741, 0.0
  %v1838 = vmax.f32 %v1744, 0.0
  %v1839 = vmax.f32 %v1749, 0.0
  %v1840 = vmax.f32 %v1752, 0.0
  %v1841 = vmax.f32 %v1757, 0.0
  %v1842 = vmax.f32 %v1760, 0.0
  %v1843 = vmax.f32 %v1765, 0.0
  %v1844 = vmax.f32 %v1768, 0.0
  %v1845 = vmax.f32 %v1773, 0.0
  %v1846 = vmax.f32 %v1776, 0.0
  %v1847 = vmax.f32 %v1781, 0.0
  %v1848 = vmax.f32 %v1784, 0.0
  %v1849 = vmax.f32 %v1789, 0.0
  %v1850 = vmax.f32 %v1792, 0.0
  %v1851 = vmax.f32 %v1797, 0.0
  %v1852 = vmax.f32 %v1800, 0.0
  %v1853 = vmax.f32 %v1805, 0.0
  %v1854 = vmax.f32 %v1808, 0.0
  %v1855 = vmax.f32 %v1813, 0.0
  %v1856 = vmax.f32 %v1816, 0.0
  %v1857 = vmax.f32 %v1821, 0.0
  %v1858 = vmax.f32 %v1824, 0.0
  %v1859 = vpack.c.bf16 %v1828, %v1827
  %v1860 = vpack.c.bf16 %v1830, %v1829
  %v1861 = vpack.c.bf16 %v1832, %v1831
  %v1862 = vpack.c.bf16 %v1834, %v1833
  %v1863 = vpack.c.bf16 %v1836, %v1835
  %v1864 = vpack.c.bf16 %v1838, %v1837
  %v1865 = vpack.c.bf16 %v1840, %v1839
  %v1866 = vpack.c.bf16 %v1842, %v1841
  %v1867 = vpack.c.bf16 %v1844, %v1843
  %v1868 = vpack.c.bf16 %v1846, %v1845
  %v1869 = vpack.c.bf16 %v1848, %v1847
  %v1870 = vpack.c.bf16 %v1850, %v1849
  %v1871 = vpack.c.bf16 %v1852, %v1851
  %v1872 = vpack.c.bf16 %v1854, %v1853
  %v1873 = vpack.c.bf16 %v1856, %v1855
  %v1874 = vpack.c.bf16 %v1858, %v1857
  %v1891 = vunpack.c.l.b16 %v1859
  %v1892 = vunpack.c.h.b16 %v1859
  %v1893 = vunpack.c.l.b16 %v1860
  %v1894 = vunpack.c.h.b16 %v1860
  %v1895 = vunpack.c.l.b16 %v1861
  %v1896 = vunpack.c.h.b16 %v1861
  %v1897 = vunpack.c.l.b16 %v1862
  %v1898 = vunpack.c.h.b16 %v1862
  %v1899 = vunpack.c.l.b16 %v1863
  %v1900 = vunpack.c.h.b16 %v1863
  %v1901 = vunpack.c.l.b16 %v1864
  %v1902 = vunpack.c.h.b16 %v1864
  %v1903 = vunpack.c.l.b16 %v1865
  %v1904 = vunpack.c.h.b16 %v1865
  %v1905 = vunpack.c.l.b16 %v1866
  %v1906 = vunpack.c.h.b16 %v1866
  %v1907 = vunpack.c.l.b16 %v1867
  %v1908 = vunpack.c.h.b16 %v1867
  %v1909 = vunpack.c.l.b16 %v1868
  %v1910 = vunpack.c.h.b16 %v1868
  %v1911 = vunpack.c.l.b16 %v1869
  %v1912 = vunpack.c.h.b16 %v1869
  %v1913 = vunpack.c.l.b16 %v1870
  %v1914 = vunpack.c.h.b16 %v1870
  %v1915 = vunpack.c.l.b16 %v1871
  %v1916 = vunpack.c.h.b16 %v1871
  %v1917 = vunpack.c.l.b16 %v1872
  %v1918 = vunpack.c.h.b16 %v1872
  %v1919 = vunpack.c.l.b16 %v1873
  %v1920 = vunpack.c.h.b16 %v1873
  %v1921 = vunpack.c.l.b16 %v1874
  %v1922 = vunpack.c.h.b16 %v1874
  %v1923 = vpack.c.b16 %v1891, %v1891
  %v1924 = vpack.c.b16 %v1892, %v1892
  %v1925 = vpack.c.b16 %v1893, %v1893
  %v1926 = vpack.c.b16 %v1894, %v1894
  %v1927 = vpack.c.b16 %v1895, %v1895
  %v1928 = vpack.c.b16 %v1896, %v1896
  %v1929 = vpack.c.b16 %v1897, %v1897
  %v1930 = vpack.c.b16 %v1898, %v1898
  %v1931 = vpack.c.b16 %v1899, %v1899
  %v1932 = vpack.c.b16 %v1900, %v1900
  %v1933 = vpack.c.b16 %v1901, %v1901
  %v1934 = vpack.c.b16 %v1902, %v1902
  %v1935 = vpack.c.b16 %v1903, %v1903
  %v1936 = vpack.c.b16 %v1904, %v1904
  %v1937 = vpack.c.b16 %v1905, %v1905
  %v1938 = vpack.c.b16 %v1906, %v1906
  %v1939 = vpack.c.b16 %v1907, %v1907
  %v1940 = vpack.c.b16 %v1908, %v1908
  %v1941 = vpack.c.b16 %v1909, %v1909
  %v1942 = vpack.c.b16 %v1910, %v1910
  %v1943 = vpack.c.b16 %v1911, %v1911
  %v1944 = vpack.c.b16 %v1912, %v1912
  %v1945 = vpack.c.b16 %v1913, %v1913
  %v1946 = vpack.c.b16 %v1914, %v1914
  %v1947 = vpack.c.b16 %v1915, %v1915
  %v1948 = vpack.c.b16 %v1916, %v1916
  %v1949 = vpack.c.b16 %v1917, %v1917
  %v1950 = vpack.c.b16 %v1918, %v1918
  %v1951 = vpack.c.b16 %v1919, %v1919
  %v1952 = vpack.c.b16 %v1920, %v1920
  %v1953 = vpack.c.b16 %v1921, %v1921
  %v1954 = vpack.c.b16 %v1922, %v1922
  %1987 = vst [vmem:[#allocation2 + $0x200] sm:$0xf] %v1923
  %1988 = vst [vmem:[#allocation2 + $0x204] sm:$0xf] %v1924
  %1989 = vst [vmem:[#allocation2 + $0x208] sm:$0xf] %v1925
  %1990 = vst [vmem:[#allocation2 + $0x20c] sm:$0xf] %v1926
  %1991 = vst [vmem:[#allocation2 + $0x210] sm:$0xf] %v1927
  %1992 = vst [vmem:[#allocation2 + $0x214] sm:$0xf] %v1928
  %1993 = vst [vmem:[#allocation2 + $0x218] sm:$0xf] %v1929
  %1994 = vst [vmem:[#allocation2 + $0x21c] sm:$0xf] %v1930
  %1995 = vst [vmem:[#allocation2 + $0x220] sm:$0xf] %v1931
  %1996 = vst [vmem:[#allocation2 + $0x224] sm:$0xf] %v1932
  %1997 = vst [vmem:[#allocation2 + $0x228] sm:$0xf] %v1933
  %1998 = vst [vmem:[#allocation2 + $0x22c] sm:$0xf] %v1934
  %1999 = vst [vmem:[#allocation2 + $0x230] sm:$0xf] %v1935
  %2000 = vst [vmem:[#allocation2 + $0x234] sm:$0xf] %v1936
  %2001 = vst [vmem:[#allocation2 + $0x238] sm:$0xf] %v1937
  %2002 = vst [vmem:[#allocation2 + $0x23c] sm:$0xf] %v1938
  %2003 = vst [vmem:[#allocation2 + $0x240] sm:$0xf] %v1939
  %2004 = vst [vmem:[#allocation2 + $0x244] sm:$0xf] %v1940
  %2005 = vst [vmem:[#allocation2 + $0x248] sm:$0xf] %v1941
  %2006 = vst [vmem:[#allocation2 + $0x24c] sm:$0xf] %v1942
  %2007 = vst [vmem:[#allocation2 + $0x250] sm:$0xf] %v1943
  %2008 = vst [vmem:[#allocation2 + $0x254] sm:$0xf] %v1944
  %2009 = vst [vmem:[#allocation2 + $0x258] sm:$0xf] %v1945
  %2010 = vst [vmem:[#allocation2 + $0x25c] sm:$0xf] %v1946
  %2011 = vst [vmem:[#allocation2 + $0x260] sm:$0xf] %v1947
  %2012 = vst [vmem:[#allocation2 + $0x264] sm:$0xf] %v1948
  %2013 = vst [vmem:[#allocation2 + $0x268] sm:$0xf] %v1949
  %2014 = vst [vmem:[#allocation2 + $0x26c] sm:$0xf] %v1950
  %2015 = vst [vmem:[#allocation2 + $0x270] sm:$0xf] %v1951
  %2016 = vst [vmem:[#allocation2 + $0x274] sm:$0xf] %v1952
  %2017 = vst [vmem:[#allocation2 + $0x278] sm:$0xf] %v1953
  %2018 = vst [vmem:[#allocation2 + $0x27c] sm:$0xf] %v1954
  %v2019 = vld [vmem:[%s0 + $0x80] sm:$0xf]
  %v2020 = vld [vmem:[%s0 + $0x84] sm:$0xf]
  %v2021 = vld [vmem:[%s0 + $0x88] sm:$0xf]
  %v2022 = vld [vmem:[%s0 + $0x8c] sm:$0xf]
  %v2023 = vld [vmem:[%s0 + $0x90] sm:$0xf]
  %v2024 = vld [vmem:[%s0 + $0x94] sm:$0xf]
  %v2025 = vld [vmem:[%s0 + $0x98] sm:$0xf]
  %v2026 = vld [vmem:[%s0 + $0x9c] sm:$0xf]
  %v2027 = vld [vmem:[%s0 + $0xa0] sm:$0xf]
  %v2028 = vld [vmem:[%s0 + $0xa4] sm:$0xf]
  %v2029 = vld [vmem:[%s0 + $0xa8] sm:$0xf]
  %v2030 = vld [vmem:[%s0 + $0xac] sm:$0xf]
  %v2043 = vunpack.c.l.b16 %v2019
  %v2044 = vunpack.c.l.b16 %v2020
  %v2045 = vunpack.c.l.b16 %v2021
  %v2046 = vunpack.c.l.b16 %v2022
  %v2047 = vunpack.c.l.b16 %v2023
  %v2048 = vunpack.c.l.b16 %v2024
  %v2049 = vunpack.c.l.b16 %v2025
  %v2050 = vunpack.c.l.b16 %v2026
  %v2051 = vunpack.c.l.b16 %v2027
  %v2052 = vunpack.c.l.b16 %v2028
  %v2053 = vunpack.c.l.b16 %v2029
  %v2054 = vunpack.c.l.b16 %v2030
  %v2055 = vpack.c.b16 %v2044, %v2043
  %v2056 = vpack.c.b16 %v2046, %v2045
  %v2057 = vpack.c.b16 %v2048, %v2047
  %v2058 = vpack.c.b16 %v2050, %v2049
  %v2059 = vpack.c.b16 %v2052, %v2051
  %v2060 = vpack.c.b16 %v2054, %v2053
  %2067 = vmatprep.subr.bf16.mxu0 0
  %2068 = vmatpush1.bf16.msra.mxu0 0
  %2069 = vmatprep.subr.bf16.mxu0 0
  %2070 = vmatpush1.bf16.msra.mxu0 0
  %2071 = vmatprep.subr.bf16.mxu0 0
  %2072 = vmatpush1.bf16.msra.mxu0 %v2060
  %2073 = vmatprep.subr.bf16.mxu0 0
  %2074 = vmatpush1.bf16.msra.mxu0 %v2059
  %2075 = vmatprep.subr.bf16.mxu0 0
  %2076 = vmatpush1.bf16.msra.mxu0 %v2058
  %2077 = vmatprep.subr.bf16.mxu0 0
  %2078 = vmatpush1.bf16.msra.mxu0 %v2057
  %2079 = vmatprep.subr.bf16.mxu0 0
  %2080 = vmatpush1.bf16.msra.mxu0 %v2056
  %2081 = vmatprep.subr.bf16.mxu0 0
  %2082 = vmatpush1.bf16.msra.mxu0 %v2055
  %2083 = vmatprep.subr.bf16.mxu0 0
  %2084 = vmatpush2.bf16.msra.mxu0 0
  %2085 = vmatprep.subr.bf16.mxu0 0
  %2086 = vmatpush2.bf16.msra.mxu0 0
  %2087 = vmatprep.subr.bf16.mxu0 0
  %2088 = vmatpush2.bf16.msra.mxu0 0
  %2089 = vmatprep.subr.bf16.mxu0 0
  %2090 = vmatpush2.bf16.msra.mxu0 0
  %2091 = vmatprep.subr.bf16.mxu0 0
  %2092 = vmatpush2.bf16.msra.mxu0 0
  %2093 = vmatprep.subr.bf16.mxu0 0
  %2094 = vmatpush2.bf16.msra.mxu0 0
  %2095 = vmatprep.subr.bf16.mxu0 0
  %2096 = vmatpush2.bf16.msra.mxu0 0
  %2097 = vmatprep.subr.bf16.mxu0 0
  %2098 = vmatpush2.bf16.msra.mxu0 0
  %2099 = vmatprep.mubr.bf16.mxu0 0
  %2100 = vmatmul.mubr.bf16.gmra.mxu0 %v416
  %v2101 = vpop.f32.mrf.mxu0
  %v2102 = vadd.f32 %v141, %v2101
  %v2103 = vpop.f32.mrf.mxu0
  %v2104 = vpop.f32.mrf.mxu0
  %v2105 = vadd.f32 %v146, %v2104
  %v2106 = vpop.f32.mrf.mxu0
  %2107 = vmatprep.mubr.bf16.mxu0 0
  %2108 = vmatmul.mubr.bf16.gmra.mxu0 %v419
  %v2109 = vpop.f32.mrf.mxu0
  %v2110 = vadd.f32 %v151, %v2109
  %v2111 = vpop.f32.mrf.mxu0
  %v2112 = vpop.f32.mrf.mxu0
  %v2113 = vadd.f32 %v156, %v2112
  %v2114 = vpop.f32.mrf.mxu0
  %2115 = vmatprep.mubr.bf16.mxu0 0
  %2116 = vmatmul.mubr.bf16.gmra.mxu0 %v422
  %v2117 = vpop.f32.mrf.mxu0
  %v2118 = vadd.f32 %v161, %v2117
  %v2119 = vpop.f32.mrf.mxu0
  %v2120 = vpop.f32.mrf.mxu0
  %v2121 = vadd.f32 %v166, %v2120
  %v2122 = vpop.f32.mrf.mxu0
  %2123 = vmatprep.mubr.bf16.mxu0 0
  %2124 = vmatmul.mubr.bf16.gmra.mxu0 %v425
  %v2125 = vpop.f32.mrf.mxu0
  %v2126 = vadd.f32 %v171, %v2125
  %v2127 = vpop.f32.mrf.mxu0
  %v2128 = vpop.f32.mrf.mxu0
  %v2129 = vadd.f32 %v176, %v2128
  %v2130 = vpop.f32.mrf.mxu0
  %2131 = vmatprep.mubr.bf16.mxu0 0
  %2132 = vmatmul.mubr.bf16.gmra.mxu0 %v428
  %v2133 = vpop.f32.mrf.mxu0
  %v2134 = vadd.f32 %v181, %v2133
  %v2135 = vpop.f32.mrf.mxu0
  %v2136 = vpop.f32.mrf.mxu0
  %v2137 = vadd.f32 %v186, %v2136
  %v2138 = vpop.f32.mrf.mxu0
  %2139 = vmatprep.mubr.bf16.mxu0 0
  %2140 = vmatmul.mubr.bf16.gmra.mxu0 %v431
  %v2141 = vpop.f32.mrf.mxu0
  %v2142 = vadd.f32 %v191, %v2141
  %v2143 = vpop.f32.mrf.mxu0
  %v2144 = vpop.f32.mrf.mxu0
  %v2145 = vadd.f32 %v196, %v2144
  %v2146 = vpop.f32.mrf.mxu0
  %2147 = vmatprep.mubr.bf16.mxu0 0
  %2148 = vmatmul.mubr.bf16.gmra.mxu0 %v434
  %v2149 = vpop.f32.mrf.mxu0
  %v2150 = vadd.f32 %v201, %v2149
  %v2151 = vpop.f32.mrf.mxu0
  %v2152 = vpop.f32.mrf.mxu0
  %v2153 = vadd.f32 %v206, %v2152
  %v2154 = vpop.f32.mrf.mxu0
  %2155 = vmatprep.mubr.bf16.mxu0 0
  %2156 = vmatmul.mubr.bf16.gmra.mxu0 %v437
  %v2157 = vpop.f32.mrf.mxu0
  %v2158 = vadd.f32 %v211, %v2157
  %v2159 = vpop.f32.mrf.mxu0
  %v2160 = vpop.f32.mrf.mxu0
  %v2161 = vadd.f32 %v216, %v2160
  %v2162 = vpop.f32.mrf.mxu0
  %2163 = vmatprep.mubr.bf16.mxu0 0
  %2164 = vmatmul.mubr.bf16.gmra.mxu0 %v440
  %v2165 = vpop.f32.mrf.mxu0
  %v2166 = vadd.f32 %v221, %v2165
  %v2167 = vpop.f32.mrf.mxu0
  %v2168 = vpop.f32.mrf.mxu0
  %v2169 = vadd.f32 %v226, %v2168
  %v2170 = vpop.f32.mrf.mxu0
  %2171 = vmatprep.mubr.bf16.mxu0 0
  %2172 = vmatmul.mubr.bf16.gmra.mxu0 %v443
  %v2173 = vpop.f32.mrf.mxu0
  %v2174 = vadd.f32 %v231, %v2173
  %v2175 = vpop.f32.mrf.mxu0
  %v2176 = vpop.f32.mrf.mxu0
  %v2177 = vadd.f32 %v236, %v2176
  %v2178 = vpop.f32.mrf.mxu0
  %2179 = vmatprep.mubr.bf16.mxu0 0
  %2180 = vmatmul.mubr.bf16.gmra.mxu0 %v446
  %v2181 = vpop.f32.mrf.mxu0
  %v2182 = vadd.f32 %v241, %v2181
  %v2183 = vpop.f32.mrf.mxu0
  %v2184 = vpop.f32.mrf.mxu0
  %v2185 = vadd.f32 %v246, %v2184
  %v2186 = vpop.f32.mrf.mxu0
  %2187 = vmatprep.mubr.bf16.mxu0 0
  %2188 = vmatmul.mubr.bf16.gmra.mxu0 %v449
  %v2189 = vpop.f32.mrf.mxu0
  %v2190 = vadd.f32 %v251, %v2189
  %v2191 = vpop.f32.mrf.mxu0
  %v2192 = vpop.f32.mrf.mxu0
  %v2193 = vadd.f32 %v256, %v2192
  %v2194 = vpop.f32.mrf.mxu0
  %2195 = vmatprep.mubr.bf16.mxu0 0
  %2196 = vmatmul.mubr.bf16.gmra.mxu0 %v452
  %v2197 = vpop.f32.mrf.mxu0
  %v2198 = vadd.f32 %v261, %v2197
  %v2199 = vpop.f32.mrf.mxu0
  %v2200 = vpop.f32.mrf.mxu0
  %v2201 = vadd.f32 %v266, %v2200
  %v2202 = vpop.f32.mrf.mxu0
  %2203 = vmatprep.mubr.bf16.mxu0 0
  %2204 = vmatmul.mubr.bf16.gmra.mxu0 %v455
  %v2205 = vpop.f32.mrf.mxu0
  %v2206 = vadd.f32 %v271, %v2205
  %v2207 = vpop.f32.mrf.mxu0
  %v2208 = vpop.f32.mrf.mxu0
  %v2209 = vadd.f32 %v276, %v2208
  %v2210 = vpop.f32.mrf.mxu0
  %2211 = vmatprep.mubr.bf16.mxu0 0
  %2212 = vmatmul.mubr.bf16.gmra.mxu0 %v458
  %v2213 = vpop.f32.mrf.mxu0
  %v2214 = vadd.f32 %v281, %v2213
  %v2215 = vpop.f32.mrf.mxu0
  %v2216 = vpop.f32.mrf.mxu0
  %v2217 = vadd.f32 %v286, %v2216
  %v2218 = vpop.f32.mrf.mxu0
  %2219 = vmatprep.mubr.bf16.mxu0 0
  %2220 = vmatmul.mubr.bf16.gmra.mxu0 %v461
  %v2221 = vpop.f32.mrf.mxu0
  %v2222 = vadd.f32 %v291, %v2221
  %v2223 = vpop.f32.mrf.mxu0
  %v2224 = vpop.f32.mrf.mxu0
  %v2225 = vadd.f32 %v296, %v2224
  %v2226 = vpop.f32.mrf.mxu0
  %2227 = vdwg.mxu0
  %v2228 = vmax.f32 %v2102, 0.0
  %v2229 = vmax.f32 %v2105, 0.0
  %v2230 = vmax.f32 %v2110, 0.0
  %v2231 = vmax.f32 %v2113, 0.0
  %v2232 = vmax.f32 %v2118, 0.0
  %v2233 = vmax.f32 %v2121, 0.0
  %v2234 = vmax.f32 %v2126, 0.0
  %v2235 = vmax.f32 %v2129, 0.0
  %v2236 = vmax.f32 %v2134, 0.0
  %v2237 = vmax.f32 %v2137, 0.0
  %v2238 = vmax.f32 %v2142, 0.0
  %v2239 = vmax.f32 %v2145, 0.0
  %v2240 = vmax.f32 %v2150, 0.0
  %v2241 = vmax.f32 %v2153, 0.0
  %v2242 = vmax.f32 %v2158, 0.0
  %v2243 = vmax.f32 %v2161, 0.0
  %v2244 = vmax.f32 %v2166, 0.0
  %v2245 = vmax.f32 %v2169, 0.0
  %v2246 = vmax.f32 %v2174, 0.0
  %v2247 = vmax.f32 %v2177, 0.0
  %v2248 = vmax.f32 %v2182, 0.0
  %v2249 = vmax.f32 %v2185, 0.0
  %v2250 = vmax.f32 %v2190, 0.0
  %v2251 = vmax.f32 %v2193, 0.0
  %v2252 = vmax.f32 %v2198, 0.0
  %v2253 = vmax.f32 %v2201, 0.0
  %v2254 = vmax.f32 %v2206, 0.0
  %v2255 = vmax.f32 %v2209, 0.0
  %v2256 = vmax.f32 %v2214, 0.0
  %v2257 = vmax.f32 %v2217, 0.0
  %v2258 = vmax.f32 %v2222, 0.0
  %v2259 = vmax.f32 %v2225, 0.0
  %v2260 = vpack.c.bf16 %v2229, %v2228
  %v2261 = vpack.c.bf16 %v2231, %v2230
  %v2262 = vpack.c.bf16 %v2233, %v2232
  %v2263 = vpack.c.bf16 %v2235, %v2234
  %v2264 = vpack.c.bf16 %v2237, %v2236
  %v2265 = vpack.c.bf16 %v2239, %v2238
  %v2266 = vpack.c.bf16 %v2241, %v2240
  %v2267 = vpack.c.bf16 %v2243, %v2242
  %v2268 = vpack.c.bf16 %v2245, %v2244
  %v2269 = vpack.c.bf16 %v2247, %v2246
  %v2270 = vpack.c.bf16 %v2249, %v2248
  %v2271 = vpack.c.bf16 %v2251, %v2250
  %v2272 = vpack.c.bf16 %v2253, %v2252
  %v2273 = vpack.c.bf16 %v2255, %v2254
  %v2274 = vpack.c.bf16 %v2257, %v2256
  %v2275 = vpack.c.bf16 %v2259, %v2258
  %v2292 = vunpack.c.l.b16 %v2260
  %v2293 = vunpack.c.h.b16 %v2260
  %v2294 = vunpack.c.l.b16 %v2261
  %v2295 = vunpack.c.h.b16 %v2261
  %v2296 = vunpack.c.l.b16 %v2262
  %v2297 = vunpack.c.h.b16 %v2262
  %v2298 = vunpack.c.l.b16 %v2263
  %v2299 = vunpack.c.h.b16 %v2263
  %v2300 = vunpack.c.l.b16 %v2264
  %v2301 = vunpack.c.h.b16 %v2264
  %v2302 = vunpack.c.l.b16 %v2265
  %v2303 = vunpack.c.h.b16 %v2265
  %v2304 = vunpack.c.l.b16 %v2266
  %v2305 = vunpack.c.h.b16 %v2266
  %v2306 = vunpack.c.l.b16 %v2267
  %v2307 = vunpack.c.h.b16 %v2267
  %v2308 = vunpack.c.l.b16 %v2268
  %v2309 = vunpack.c.h.b16 %v2268
  %v2310 = vunpack.c.l.b16 %v2269
  %v2311 = vunpack.c.h.b16 %v2269
  %v2312 = vunpack.c.l.b16 %v2270
  %v2313 = vunpack.c.h.b16 %v2270
  %v2314 = vunpack.c.l.b16 %v2271
  %v2315 = vunpack.c.h.b16 %v2271
  %v2316 = vunpack.c.l.b16 %v2272
  %v2317 = vunpack.c.h.b16 %v2272
  %v2318 = vunpack.c.l.b16 %v2273
  %v2319 = vunpack.c.h.b16 %v2273
  %v2320 = vunpack.c.l.b16 %v2274
  %v2321 = vunpack.c.h.b16 %v2274
  %v2322 = vunpack.c.l.b16 %v2275
  %v2323 = vunpack.c.h.b16 %v2275
  %v2324 = vpack.c.b16 %v2292, %v2292
  %v2325 = vpack.c.b16 %v2293, %v2293
  %v2326 = vpack.c.b16 %v2294, %v2294
  %v2327 = vpack.c.b16 %v2295, %v2295
  %v2328 = vpack.c.b16 %v2296, %v2296
  %v2329 = vpack.c.b16 %v2297, %v2297
  %v2330 = vpack.c.b16 %v2298, %v2298
  %v2331 = vpack.c.b16 %v2299, %v2299
  %v2332 = vpack.c.b16 %v2300, %v2300
  %v2333 = vpack.c.b16 %v2301, %v2301
  %v2334 = vpack.c.b16 %v2302, %v2302
  %v2335 = vpack.c.b16 %v2303, %v2303
  %v2336 = vpack.c.b16 %v2304, %v2304
  %v2337 = vpack.c.b16 %v2305, %v2305
  %v2338 = vpack.c.b16 %v2306, %v2306
  %v2339 = vpack.c.b16 %v2307, %v2307
  %v2340 = vpack.c.b16 %v2308, %v2308
  %v2341 = vpack.c.b16 %v2309, %v2309
  %v2342 = vpack.c.b16 %v2310, %v2310
  %v2343 = vpack.c.b16 %v2311, %v2311
  %v2344 = vpack.c.b16 %v2312, %v2312
  %v2345 = vpack.c.b16 %v2313, %v2313
  %v2346 = vpack.c.b16 %v2314, %v2314
  %v2347 = vpack.c.b16 %v2315, %v2315
  %v2348 = vpack.c.b16 %v2316, %v2316
  %v2349 = vpack.c.b16 %v2317, %v2317
  %v2350 = vpack.c.b16 %v2318, %v2318
  %v2351 = vpack.c.b16 %v2319, %v2319
  %v2352 = vpack.c.b16 %v2320, %v2320
  %v2353 = vpack.c.b16 %v2321, %v2321
  %v2354 = vpack.c.b16 %v2322, %v2322
  %v2355 = vpack.c.b16 %v2323, %v2323
  %2388 = vst [vmem:[#allocation2 + $0x280] sm:$0xf] %v2324
  %2389 = vst [vmem:[#allocation2 + $0x284] sm:$0xf] %v2325
  %2390 = vst [vmem:[#allocation2 + $0x288] sm:$0xf] %v2326
  %2391 = vst [vmem:[#allocation2 + $0x28c] sm:$0xf] %v2327
  %2392 = vst [vmem:[#allocation2 + $0x290] sm:$0xf] %v2328
  %2393 = vst [vmem:[#allocation2 + $0x294] sm:$0xf] %v2329
  %2394 = vst [vmem:[#allocation2 + $0x298] sm:$0xf] %v2330
  %2395 = vst [vmem:[#allocation2 + $0x29c] sm:$0xf] %v2331
  %2396 = vst [vmem:[#allocation2 + $0x2a0] sm:$0xf] %v2332
  %2397 = vst [vmem:[#allocation2 + $0x2a4] sm:$0xf] %v2333
  %2398 = vst [vmem:[#allocation2 + $0x2a8] sm:$0xf] %v2334
  %2399 = vst [vmem:[#allocation2 + $0x2ac] sm:$0xf] %v2335
  %2400 = vst [vmem:[#allocation2 + $0x2b0] sm:$0xf] %v2336
  %2401 = vst [vmem:[#allocation2 + $0x2b4] sm:$0xf] %v2337
  %2402 = vst [vmem:[#allocation2 + $0x2b8] sm:$0xf] %v2338
  %2403 = vst [vmem:[#allocation2 + $0x2bc] sm:$0xf] %v2339
  %2404 = vst [vmem:[#allocation2 + $0x2c0] sm:$0xf] %v2340
  %2405 = vst [vmem:[#allocation2 + $0x2c4] sm:$0xf] %v2341
  %2406 = vst [vmem:[#allocation2 + $0x2c8] sm:$0xf] %v2342
  %2407 = vst [vmem:[#allocation2 + $0x2cc] sm:$0xf] %v2343
  %2408 = vst [vmem:[#allocation2 + $0x2d0] sm:$0xf] %v2344
  %2409 = vst [vmem:[#allocation2 + $0x2d4] sm:$0xf] %v2345
  %2410 = vst [vmem:[#allocation2 + $0x2d8] sm:$0xf] %v2346
  %2411 = vst [vmem:[#allocation2 + $0x2dc] sm:$0xf] %v2347
  %2412 = vst [vmem:[#allocation2 + $0x2e0] sm:$0xf] %v2348
  %2413 = vst [vmem:[#allocation2 + $0x2e4] sm:$0xf] %v2349
  %2414 = vst [vmem:[#allocation2 + $0x2e8] sm:$0xf] %v2350
  %2415 = vst [vmem:[#allocation2 + $0x2ec] sm:$0xf] %v2351
  %2416 = vst [vmem:[#allocation2 + $0x2f0] sm:$0xf] %v2352
  %2417 = vst [vmem:[#allocation2 + $0x2f4] sm:$0xf] %v2353
  %2418 = vst [vmem:[#allocation2 + $0x2f8] sm:$0xf] %v2354
  %2419 = vst [vmem:[#allocation2 + $0x2fc] sm:$0xf] %v2355
  %v2420 = vld [vmem:[%s0 + $0xa0] sm:$0xf]
  %v2421 = vld [vmem:[%s0 + $0xa4] sm:$0xf]
  %v2422 = vld [vmem:[%s0 + $0xa8] sm:$0xf]
  %v2423 = vld [vmem:[%s0 + $0xac] sm:$0xf]
  %v2424 = vld [vmem:[%s0 + $0xb0] sm:$0xf]
  %v2425 = vld [vmem:[%s0 + $0xb4] sm:$0xf]
  %v2426 = vld [vmem:[%s0 + $0xb8] sm:$0xf]
  %v2427 = vld [vmem:[%s0 + $0xbc] sm:$0xf]
  %v2428 = vld [vmem:[%s0 + $0xc0] sm:$0xf]
  %v2429 = vld [vmem:[%s0 + $0xc4] sm:$0xf]
  %v2430 = vld [vmem:[%s0 + $0xc8] sm:$0xf]
  %v2431 = vld [vmem:[%s0 + $0xcc] sm:$0xf]
  %v2444 = vunpack.c.l.b16 %v2420
  %v2445 = vunpack.c.l.b16 %v2421
  %v2446 = vunpack.c.l.b16 %v2422
  %v2447 = vunpack.c.l.b16 %v2423
  %v2448 = vunpack.c.l.b16 %v2424
  %v2449 = vunpack.c.l.b16 %v2425
  %v2450 = vunpack.c.l.b16 %v2426
  %v2451 = vunpack.c.l.b16 %v2427
  %v2452 = vunpack.c.l.b16 %v2428
  %v2453 = vunpack.c.l.b16 %v2429
  %v2454 = vunpack.c.l.b16 %v2430
  %v2455 = vunpack.c.l.b16 %v2431
  %v2456 = vpack.c.b16 %v2445, %v2444
  %v2457 = vpack.c.b16 %v2447, %v2446
  %v2458 = vpack.c.b16 %v2449, %v2448
  %v2459 = vpack.c.b16 %v2451, %v2450
  %v2460 = vpack.c.b16 %v2453, %v2452
  %v2461 = vpack.c.b16 %v2455, %v2454
  %2468 = vmatprep.subr.bf16.mxu0 0
  %2469 = vmatpush1.bf16.msra.mxu0 0
  %2470 = vmatprep.subr.bf16.mxu0 0
  %2471 = vmatpush1.bf16.msra.mxu0 0
  %2472 = vmatprep.subr.bf16.mxu0 0
  %2473 = vmatpush1.bf16.msra.mxu0 %v2461
  %2474 = vmatprep.subr.bf16.mxu0 0
  %2475 = vmatpush1.bf16.msra.mxu0 %v2460
  %2476 = vmatprep.subr.bf16.mxu0 0
  %2477 = vmatpush1.bf16.msra.mxu0 %v2459
  %2478 = vmatprep.subr.bf16.mxu0 0
  %2479 = vmatpush1.bf16.msra.mxu0 %v2458
  %2480 = vmatprep.subr.bf16.mxu0 0
  %2481 = vmatpush1.bf16.msra.mxu0 %v2457
  %2482 = vmatprep.subr.bf16.mxu0 0
  %2483 = vmatpush1.bf16.msra.mxu0 %v2456
  %2484 = vmatprep.subr.bf16.mxu0 0
  %2485 = vmatpush2.bf16.msra.mxu0 0
  %2486 = vmatprep.subr.bf16.mxu0 0
  %2487 = vmatpush2.bf16.msra.mxu0 0
  %2488 = vmatprep.subr.bf16.mxu0 0
  %2489 = vmatpush2.bf16.msra.mxu0 0
  %2490 = vmatprep.subr.bf16.mxu0 0
  %2491 = vmatpush2.bf16.msra.mxu0 0
  %2492 = vmatprep.subr.bf16.mxu0 0
  %2493 = vmatpush2.bf16.msra.mxu0 0
  %2494 = vmatprep.subr.bf16.mxu0 0
  %2495 = vmatpush2.bf16.msra.mxu0 0
  %2496 = vmatprep.subr.bf16.mxu0 0
  %2497 = vmatpush2.bf16.msra.mxu0 0
  %2498 = vmatprep.subr.bf16.mxu0 0
  %2499 = vmatpush2.bf16.msra.mxu0 0
  %2500 = vmatprep.mubr.bf16.mxu0 0
  %2501 = vmatmul.mubr.bf16.gmra.mxu0 %v416
  %v2502 = vpop.f32.mrf.mxu0
  %v2503 = vadd.f32 %v141, %v2502
  %v2504 = vpop.f32.mrf.mxu0
  %v2505 = vpop.f32.mrf.mxu0
  %v2506 = vadd.f32 %v146, %v2505
  %v2507 = vpop.f32.mrf.mxu0
  %2508 = vmatprep.mubr.bf16.mxu0 0
  %2509 = vmatmul.mubr.bf16.gmra.mxu0 %v419
  %v2510 = vpop.f32.mrf.mxu0
  %v2511 = vadd.f32 %v151, %v2510
  %v2512 = vpop.f32.mrf.mxu0
  %v2513 = vpop.f32.mrf.mxu0
  %v2514 = vadd.f32 %v156, %v2513
  %v2515 = vpop.f32.mrf.mxu0
  %2516 = vmatprep.mubr.bf16.mxu0 0
  %2517 = vmatmul.mubr.bf16.gmra.mxu0 %v422
  %v2518 = vpop.f32.mrf.mxu0
  %v2519 = vadd.f32 %v161, %v2518
  %v2520 = vpop.f32.mrf.mxu0
  %v2521 = vpop.f32.mrf.mxu0
  %v2522 = vadd.f32 %v166, %v2521
  %v2523 = vpop.f32.mrf.mxu0
  %2524 = vmatprep.mubr.bf16.mxu0 0
  %2525 = vmatmul.mubr.bf16.gmra.mxu0 %v425
  %v2526 = vpop.f32.mrf.mxu0
  %v2527 = vadd.f32 %v171, %v2526
  %v2528 = vpop.f32.mrf.mxu0
  %v2529 = vpop.f32.mrf.mxu0
  %v2530 = vadd.f32 %v176, %v2529
  %v2531 = vpop.f32.mrf.mxu0
  %2532 = vmatprep.mubr.bf16.mxu0 0
  %2533 = vmatmul.mubr.bf16.gmra.mxu0 %v428
  %v2534 = vpop.f32.mrf.mxu0
  %v2535 = vadd.f32 %v181, %v2534
  %v2536 = vpop.f32.mrf.mxu0
  %v2537 = vpop.f32.mrf.mxu0
  %v2538 = vadd.f32 %v186, %v2537
  %v2539 = vpop.f32.mrf.mxu0
  %2540 = vmatprep.mubr.bf16.mxu0 0
  %2541 = vmatmul.mubr.bf16.gmra.mxu0 %v431
  %v2542 = vpop.f32.mrf.mxu0
  %v2543 = vadd.f32 %v191, %v2542
  %v2544 = vpop.f32.mrf.mxu0
  %v2545 = vpop.f32.mrf.mxu0
  %v2546 = vadd.f32 %v196, %v2545
  %v2547 = vpop.f32.mrf.mxu0
  %2548 = vmatprep.mubr.bf16.mxu0 0
  %2549 = vmatmul.mubr.bf16.gmra.mxu0 %v434
  %v2550 = vpop.f32.mrf.mxu0
  %v2551 = vadd.f32 %v201, %v2550
  %v2552 = vpop.f32.mrf.mxu0
  %v2553 = vpop.f32.mrf.mxu0
  %v2554 = vadd.f32 %v206, %v2553
  %v2555 = vpop.f32.mrf.mxu0
  %2556 = vmatprep.mubr.bf16.mxu0 0
  %2557 = vmatmul.mubr.bf16.gmra.mxu0 %v437
  %v2558 = vpop.f32.mrf.mxu0
  %v2559 = vadd.f32 %v211, %v2558
  %v2560 = vpop.f32.mrf.mxu0
  %v2561 = vpop.f32.mrf.mxu0
  %v2562 = vadd.f32 %v216, %v2561
  %v2563 = vpop.f32.mrf.mxu0
  %2564 = vmatprep.mubr.bf16.mxu0 0
  %2565 = vmatmul.mubr.bf16.gmra.mxu0 %v440
  %v2566 = vpop.f32.mrf.mxu0
  %v2567 = vadd.f32 %v221, %v2566
  %v2568 = vpop.f32.mrf.mxu0
  %v2569 = vpop.f32.mrf.mxu0
  %v2570 = vadd.f32 %v226, %v2569
  %v2571 = vpop.f32.mrf.mxu0
  %2572 = vmatprep.mubr.bf16.mxu0 0
  %2573 = vmatmul.mubr.bf16.gmra.mxu0 %v443
  %v2574 = vpop.f32.mrf.mxu0
  %v2575 = vadd.f32 %v231, %v2574
  %v2576 = vpop.f32.mrf.mxu0
  %v2577 = vpop.f32.mrf.mxu0
  %v2578 = vadd.f32 %v236, %v2577
  %v2579 = vpop.f32.mrf.mxu0
  %2580 = vmatprep.mubr.bf16.mxu0 0
  %2581 = vmatmul.mubr.bf16.gmra.mxu0 %v446
  %v2582 = vpop.f32.mrf.mxu0
  %v2583 = vadd.f32 %v241, %v2582
  %v2584 = vpop.f32.mrf.mxu0
  %v2585 = vpop.f32.mrf.mxu0
  %v2586 = vadd.f32 %v246, %v2585
  %v2587 = vpop.f32.mrf.mxu0
  %2588 = vmatprep.mubr.bf16.mxu0 0
  %2589 = vmatmul.mubr.bf16.gmra.mxu0 %v449
  %v2590 = vpop.f32.mrf.mxu0
  %v2591 = vadd.f32 %v251, %v2590
  %v2592 = vpop.f32.mrf.mxu0
  %v2593 = vpop.f32.mrf.mxu0
  %v2594 = vadd.f32 %v256, %v2593
  %v2595 = vpop.f32.mrf.mxu0
  %2596 = vmatprep.mubr.bf16.mxu0 0
  %2597 = vmatmul.mubr.bf16.gmra.mxu0 %v452
  %v2598 = vpop.f32.mrf.mxu0
  %v2599 = vadd.f32 %v261, %v2598
  %v2600 = vpop.f32.mrf.mxu0
  %v2601 = vpop.f32.mrf.mxu0
  %v2602 = vadd.f32 %v266, %v2601
  %v2603 = vpop.f32.mrf.mxu0
  %2604 = vmatprep.mubr.bf16.mxu0 0
  %2605 = vmatmul.mubr.bf16.gmra.mxu0 %v455
  %v2606 = vpop.f32.mrf.mxu0
  %v2607 = vadd.f32 %v271, %v2606
  %v2608 = vpop.f32.mrf.mxu0
  %v2609 = vpop.f32.mrf.mxu0
  %v2610 = vadd.f32 %v276, %v2609
  %v2611 = vpop.f32.mrf.mxu0
  %2612 = vmatprep.mubr.bf16.mxu0 0
  %2613 = vmatmul.mubr.bf16.gmra.mxu0 %v458
  %v2614 = vpop.f32.mrf.mxu0
  %v2615 = vadd.f32 %v281, %v2614
  %v2616 = vpop.f32.mrf.mxu0
  %v2617 = vpop.f32.mrf.mxu0
  %v2618 = vadd.f32 %v286, %v2617
  %v2619 = vpop.f32.mrf.mxu0
  %2620 = vmatprep.mubr.bf16.mxu0 0
  %2621 = vmatmul.mubr.bf16.gmra.mxu0 %v461
  %v2622 = vpop.f32.mrf.mxu0
  %v2623 = vadd.f32 %v291, %v2622
  %v2624 = vpop.f32.mrf.mxu0
  %v2625 = vpop.f32.mrf.mxu0
  %v2626 = vadd.f32 %v296, %v2625
  %v2627 = vpop.f32.mrf.mxu0
  %2628 = vdwg.mxu0
  %v2629 = vmax.f32 %v2503, 0.0
  %v2630 = vmax.f32 %v2506, 0.0
  %v2631 = vmax.f32 %v2511, 0.0
  %v2632 = vmax.f32 %v2514, 0.0
  %v2633 = vmax.f32 %v2519, 0.0
  %v2634 = vmax.f32 %v2522, 0.0
  %v2635 = vmax.f32 %v2527, 0.0
  %v2636 = vmax.f32 %v2530, 0.0
  %v2637 = vmax.f32 %v2535, 0.0
  %v2638 = vmax.f32 %v2538, 0.0
  %v2639 = vmax.f32 %v2543, 0.0
  %v2640 = vmax.f32 %v2546, 0.0
  %v2641 = vmax.f32 %v2551, 0.0
  %v2642 = vmax.f32 %v2554, 0.0
  %v2643 = vmax.f32 %v2559, 0.0
  %v2644 = vmax.f32 %v2562, 0.0
  %v2645 = vmax.f32 %v2567, 0.0
  %v2646 = vmax.f32 %v2570, 0.0
  %v2647 = vmax.f32 %v2575, 0.0
  %v2648 = vmax.f32 %v2578, 0.0
  %v2649 = vmax.f32 %v2583, 0.0
  %v2650 = vmax.f32 %v2586, 0.0
  %v2651 = vmax.f32 %v2591, 0.0
  %v2652 = vmax.f32 %v2594, 0.0
  %v2653 = vmax.f32 %v2599, 0.0
  %v2654 = vmax.f32 %v2602, 0.0
  %v2655 = vmax.f32 %v2607, 0.0
  %v2656 = vmax.f32 %v2610, 0.0
  %v2657 = vmax.f32 %v2615, 0.0
  %v2658 = vmax.f32 %v2618, 0.0
  %v2659 = vmax.f32 %v2623, 0.0
  %v2660 = vmax.f32 %v2626, 0.0
  %v2661 = vpack.c.bf16 %v2630, %v2629
  %v2662 = vpack.c.bf16 %v2632, %v2631
  %v2663 = vpack.c.bf16 %v2634, %v2633
  %v2664 = vpack.c.bf16 %v2636, %v2635
  %v2665 = vpack.c.bf16 %v2638, %v2637
  %v2666 = vpack.c.bf16 %v2640, %v2639
  %v2667 = vpack.c.bf16 %v2642, %v2641
  %v2668 = vpack.c.bf16 %v2644, %v2643
  %v2669 = vpack.c.bf16 %v2646, %v2645
  %v2670 = vpack.c.bf16 %v2648, %v2647
  %v2671 = vpack.c.bf16 %v2650, %v2649
  %v2672 = vpack.c.bf16 %v2652, %v2651
  %v2673 = vpack.c.bf16 %v2654, %v2653
  %v2674 = vpack.c.bf16 %v2656, %v2655
  %v2675 = vpack.c.bf16 %v2658, %v2657
  %v2676 = vpack.c.bf16 %v2660, %v2659
  %v2693 = vunpack.c.l.b16 %v2661
  %v2694 = vunpack.c.h.b16 %v2661
  %v2695 = vunpack.c.l.b16 %v2662
  %v2696 = vunpack.c.h.b16 %v2662
  %v2697 = vunpack.c.l.b16 %v2663
  %v2698 = vunpack.c.h.b16 %v2663
  %v2699 = vunpack.c.l.b16 %v2664
  %v2700 = vunpack.c.h.b16 %v2664
  %v2701 = vunpack.c.l.b16 %v2665
  %v2702 = vunpack.c.h.b16 %v2665
  %v2703 = vunpack.c.l.b16 %v2666
  %v2704 = vunpack.c.h.b16 %v2666
  %v2705 = vunpack.c.l.b16 %v2667
  %v2706 = vunpack.c.h.b16 %v2667
  %v2707 = vunpack.c.l.b16 %v2668
  %v2708 = vunpack.c.h.b16 %v2668
  %v2709 = vunpack.c.l.b16 %v2669
  %v2710 = vunpack.c.h.b16 %v2669
  %v2711 = vunpack.c.l.b16 %v2670
  %v2712 = vunpack.c.h.b16 %v2670
  %v2713 = vunpack.c.l.b16 %v2671
  %v2714 = vunpack.c.h.b16 %v2671
  %v2715 = vunpack.c.l.b16 %v2672
  %v2716 = vunpack.c.h.b16 %v2672
  %v2717 = vunpack.c.l.b16 %v2673
  %v2718 = vunpack.c.h.b16 %v2673
  %v2719 = vunpack.c.l.b16 %v2674
  %v2720 = vunpack.c.h.b16 %v2674
  %v2721 = vunpack.c.l.b16 %v2675
  %v2722 = vunpack.c.h.b16 %v2675
  %v2723 = vunpack.c.l.b16 %v2676
  %v2724 = vunpack.c.h.b16 %v2676
  %v2725 = vpack.c.b16 %v2693, %v2693
  %v2726 = vpack.c.b16 %v2694, %v2694
  %v2727 = vpack.c.b16 %v2695, %v2695
  %v2728 = vpack.c.b16 %v2696, %v2696
  %v2729 = vpack.c.b16 %v2697, %v2697
  %v2730 = vpack.c.b16 %v2698, %v2698
  %v2731 = vpack.c.b16 %v2699, %v2699
  %v2732 = vpack.c.b16 %v2700, %v2700
  %v2733 = vpack.c.b16 %v2701, %v2701
  %v2734 = vpack.c.b16 %v2702, %v2702
  %v2735 = vpack.c.b16 %v2703, %v2703
  %v2736 = vpack.c.b16 %v2704, %v2704
  %v2737 = vpack.c.b16 %v2705, %v2705
  %v2738 = vpack.c.b16 %v2706, %v2706
  %v2739 = vpack.c.b16 %v2707, %v2707
  %v2740 = vpack.c.b16 %v2708, %v2708
  %v2741 = vpack.c.b16 %v2709, %v2709
  %v2742 = vpack.c.b16 %v2710, %v2710
  %v2743 = vpack.c.b16 %v2711, %v2711
  %v2744 = vpack.c.b16 %v2712, %v2712
  %v2745 = vpack.c.b16 %v2713, %v2713
  %v2746 = vpack.c.b16 %v2714, %v2714
  %v2747 = vpack.c.b16 %v2715, %v2715
  %v2748 = vpack.c.b16 %v2716, %v2716
  %v2749 = vpack.c.b16 %v2717, %v2717
  %v2750 = vpack.c.b16 %v2718, %v2718
  %v2751 = vpack.c.b16 %v2719, %v2719
  %v2752 = vpack.c.b16 %v2720, %v2720
  %v2753 = vpack.c.b16 %v2721, %v2721
  %v2754 = vpack.c.b16 %v2722, %v2722
  %v2755 = vpack.c.b16 %v2723, %v2723
  %v2756 = vpack.c.b16 %v2724, %v2724
  %2789 = vst [vmem:[#allocation2 + $0x300] sm:$0xf] %v2725
  %2790 = vst [vmem:[#allocation2 + $0x304] sm:$0xf] %v2726
  %2791 = vst [vmem:[#allocation2 + $0x308] sm:$0xf] %v2727
  %2792 = vst [vmem:[#allocation2 + $0x30c] sm:$0xf] %v2728
  %2793 = vst [vmem:[#allocation2 + $0x310] sm:$0xf] %v2729
  %2794 = vst [vmem:[#allocation2 + $0x314] sm:$0xf] %v2730
  %2795 = vst [vmem:[#allocation2 + $0x318] sm:$0xf] %v2731
  %2796 = vst [vmem:[#allocation2 + $0x31c] sm:$0xf] %v2732
  %2797 = vst [vmem:[#allocation2 + $0x320] sm:$0xf] %v2733
  %2798 = vst [vmem:[#allocation2 + $0x324] sm:$0xf] %v2734
  %2799 = vst [vmem:[#allocation2 + $0x328] sm:$0xf] %v2735
  %2800 = vst [vmem:[#allocation2 + $0x32c] sm:$0xf] %v2736
  %2801 = vst [vmem:[#allocation2 + $0x330] sm:$0xf] %v2737
  %2802 = vst [vmem:[#allocation2 + $0x334] sm:$0xf] %v2738
  %2803 = vst [vmem:[#allocation2 + $0x338] sm:$0xf] %v2739
  %2804 = vst [vmem:[#allocation2 + $0x33c] sm:$0xf] %v2740
  %2805 = vst [vmem:[#allocation2 + $0x340] sm:$0xf] %v2741
  %2806 = vst [vmem:[#allocation2 + $0x344] sm:$0xf] %v2742
  %2807 = vst [vmem:[#allocation2 + $0x348] sm:$0xf] %v2743
  %2808 = vst [vmem:[#allocation2 + $0x34c] sm:$0xf] %v2744
  %2809 = vst [vmem:[#allocation2 + $0x350] sm:$0xf] %v2745
  %2810 = vst [vmem:[#allocation2 + $0x354] sm:$0xf] %v2746
  %2811 = vst [vmem:[#allocation2 + $0x358] sm:$0xf] %v2747
  %2812 = vst [vmem:[#allocation2 + $0x35c] sm:$0xf] %v2748
  %2813 = vst [vmem:[#allocation2 + $0x360] sm:$0xf] %v2749
  %2814 = vst [vmem:[#allocation2 + $0x364] sm:$0xf] %v2750
  %2815 = vst [vmem:[#allocation2 + $0x368] sm:$0xf] %v2751
  %2816 = vst [vmem:[#allocation2 + $0x36c] sm:$0xf] %v2752
  %2817 = vst [vmem:[#allocation2 + $0x370] sm:$0xf] %v2753
  %2818 = vst [vmem:[#allocation2 + $0x374] sm:$0xf] %v2754
  %2819 = vst [vmem:[#allocation2 + $0x378] sm:$0xf] %v2755
  %2820 = vst [vmem:[#allocation2 + $0x37c] sm:$0xf] %v2756
  %v2821 = vld [vmem:[%s0 + $0xc0] sm:$0xf]
  %v2822 = vld [vmem:[%s0 + $0xc4] sm:$0xf]
  %v2823 = vld [vmem:[%s0 + $0xc8] sm:$0xf]
  %v2824 = vld [vmem:[%s0 + $0xcc] sm:$0xf]
  %v2825 = vld [vmem:[%s0 + $0xd0] sm:$0xf]
  %v2826 = vld [vmem:[%s0 + $0xd4] sm:$0xf]
  %v2827 = vld [vmem:[%s0 + $0xd8] sm:$0xf]
  %v2828 = vld [vmem:[%s0 + $0xdc] sm:$0xf]
  %v2829 = vld [vmem:[%s0 + $0xe0] sm:$0xf]
  %v2830 = vld [vmem:[%s0 + $0xe4] sm:$0xf]
  %v2831 = vld [vmem:[%s0 + $0xe8] sm:$0xf]
  %v2832 = vld [vmem:[%s0 + $0xec] sm:$0xf]
  %v2845 = vunpack.c.l.b16 %v2821
  %v2846 = vunpack.c.l.b16 %v2822
  %v2847 = vunpack.c.l.b16 %v2823
  %v2848 = vunpack.c.l.b16 %v2824
  %v2849 = vunpack.c.l.b16 %v2825
  %v2850 = vunpack.c.l.b16 %v2826
  %v2851 = vunpack.c.l.b16 %v2827
  %v2852 = vunpack.c.l.b16 %v2828
  %v2853 = vunpack.c.l.b16 %v2829
  %v2854 = vunpack.c.l.b16 %v2830
  %v2855 = vunpack.c.l.b16 %v2831
  %v2856 = vunpack.c.l.b16 %v2832
  %v2857 = vpack.c.b16 %v2846, %v2845
  %v2858 = vpack.c.b16 %v2848, %v2847
  %v2859 = vpack.c.b16 %v2850, %v2849
  %v2860 = vpack.c.b16 %v2852, %v2851
  %v2861 = vpack.c.b16 %v2854, %v2853
  %v2862 = vpack.c.b16 %v2856, %v2855
  %2869 = vmatprep.subr.bf16.mxu0 0
  %2870 = vmatpush1.bf16.msra.mxu0 0
  %2871 = vmatprep.subr.bf16.mxu0 0
  %2872 = vmatpush1.bf16.msra.mxu0 0
  %2873 = vmatprep.subr.bf16.mxu0 0
  %2874 = vmatpush1.bf16.msra.mxu0 %v2862
  %2875 = vmatprep.subr.bf16.mxu0 0
  %2876 = vmatpush1.bf16.msra.mxu0 %v2861
  %2877 = vmatprep.subr.bf16.mxu0 0
  %2878 = vmatpush1.bf16.msra.mxu0 %v2860
  %2879 = vmatprep.subr.bf16.mxu0 0
  %2880 = vmatpush1.bf16.msra.mxu0 %v2859
  %2881 = vmatprep.subr.bf16.mxu0 0
  %2882 = vmatpush1.bf16.msra.mxu0 %v2858
  %2883 = vmatprep.subr.bf16.mxu0 0
  %2884 = vmatpush1.bf16.msra.mxu0 %v2857
  %2885 = vmatprep.subr.bf16.mxu0 0
  %2886 = vmatpush2.bf16.msra.mxu0 0
  %2887 = vmatprep.subr.bf16.mxu0 0
  %2888 = vmatpush2.bf16.msra.mxu0 0
  %2889 = vmatprep.subr.bf16.mxu0 0
  %2890 = vmatpush2.bf16.msra.mxu0 0
  %2891 = vmatprep.subr.bf16.mxu0 0
  %2892 = vmatpush2.bf16.msra.mxu0 0
  %2893 = vmatprep.subr.bf16.mxu0 0
  %2894 = vmatpush2.bf16.msra.mxu0 0
  %2895 = vmatprep.subr.bf16.mxu0 0
  %2896 = vmatpush2.bf16.msra.mxu0 0
  %2897 = vmatprep.subr.bf16.mxu0 0
  %2898 = vmatpush2.bf16.msra.mxu0 0
  %2899 = vmatprep.subr.bf16.mxu0 0
  %2900 = vmatpush2.bf16.msra.mxu0 0
  %2901 = vmatprep.mubr.bf16.mxu0 0
  %2902 = vmatmul.mubr.bf16.gmra.mxu0 %v416
  %v2903 = vpop.f32.mrf.mxu0
  %v2904 = vadd.f32 %v141, %v2903
  %v2905 = vpop.f32.mrf.mxu0
  %v2906 = vpop.f32.mrf.mxu0
  %v2907 = vadd.f32 %v146, %v2906
  %v2908 = vpop.f32.mrf.mxu0
  %2909 = vmatprep.mubr.bf16.mxu0 0
  %2910 = vmatmul.mubr.bf16.gmra.mxu0 %v419
  %v2911 = vpop.f32.mrf.mxu0
  %v2912 = vadd.f32 %v151, %v2911
  %v2913 = vpop.f32.mrf.mxu0
  %v2914 = vpop.f32.mrf.mxu0
  %v2915 = vadd.f32 %v156, %v2914
  %v2916 = vpop.f32.mrf.mxu0
  %2917 = vmatprep.mubr.bf16.mxu0 0
  %2918 = vmatmul.mubr.bf16.gmra.mxu0 %v422
  %v2919 = vpop.f32.mrf.mxu0
  %v2920 = vadd.f32 %v161, %v2919
  %v2921 = vpop.f32.mrf.mxu0
  %v2922 = vpop.f32.mrf.mxu0
  %v2923 = vadd.f32 %v166, %v2922
  %v2924 = vpop.f32.mrf.mxu0
  %2925 = vmatprep.mubr.bf16.mxu0 0
  %2926 = vmatmul.mubr.bf16.gmra.mxu0 %v425
  %v2927 = vpop.f32.mrf.mxu0
  %v2928 = vadd.f32 %v171, %v2927
  %v2929 = vpop.f32.mrf.mxu0
  %v2930 = vpop.f32.mrf.mxu0
  %v2931 = vadd.f32 %v176, %v2930
  %v2932 = vpop.f32.mrf.mxu0
  %2933 = vmatprep.mubr.bf16.mxu0 0
  %2934 = vmatmul.mubr.bf16.gmra.mxu0 %v428
  %v2935 = vpop.f32.mrf.mxu0
  %v2936 = vadd.f32 %v181, %v2935
  %v2937 = vpop.f32.mrf.mxu0
  %v2938 = vpop.f32.mrf.mxu0
  %v2939 = vadd.f32 %v186, %v2938
  %v2940 = vpop.f32.mrf.mxu0
  %2941 = vmatprep.mubr.bf16.mxu0 0
  %2942 = vmatmul.mubr.bf16.gmra.mxu0 %v431
  %v2943 = vpop.f32.mrf.mxu0
  %v2944 = vadd.f32 %v191, %v2943
  %v2945 = vpop.f32.mrf.mxu0
  %v2946 = vpop.f32.mrf.mxu0
  %v2947 = vadd.f32 %v196, %v2946
  %v2948 = vpop.f32.mrf.mxu0
  %2949 = vmatprep.mubr.bf16.mxu0 0
  %2950 = vmatmul.mubr.bf16.gmra.mxu0 %v434
  %v2951 = vpop.f32.mrf.mxu0
  %v2952 = vadd.f32 %v201, %v2951
  %v2953 = vpop.f32.mrf.mxu0
  %v2954 = vpop.f32.mrf.mxu0
  %v2955 = vadd.f32 %v206, %v2954
  %v2956 = vpop.f32.mrf.mxu0
  %2957 = vmatprep.mubr.bf16.mxu0 0
  %2958 = vmatmul.mubr.bf16.gmra.mxu0 %v437
  %v2959 = vpop.f32.mrf.mxu0
  %v2960 = vadd.f32 %v211, %v2959
  %v2961 = vpop.f32.mrf.mxu0
  %v2962 = vpop.f32.mrf.mxu0
  %v2963 = vadd.f32 %v216, %v2962
  %v2964 = vpop.f32.mrf.mxu0
  %2965 = vmatprep.mubr.bf16.mxu0 0
  %2966 = vmatmul.mubr.bf16.gmra.mxu0 %v440
  %v2967 = vpop.f32.mrf.mxu0
  %v2968 = vadd.f32 %v221, %v2967
  %v2969 = vpop.f32.mrf.mxu0
  %v2970 = vpop.f32.mrf.mxu0
  %v2971 = vadd.f32 %v226, %v2970
  %v2972 = vpop.f32.mrf.mxu0
  %2973 = vmatprep.mubr.bf16.mxu0 0
  %2974 = vmatmul.mubr.bf16.gmra.mxu0 %v443
  %v2975 = vpop.f32.mrf.mxu0
  %v2976 = vadd.f32 %v231, %v2975
  %v2977 = vpop.f32.mrf.mxu0
  %v2978 = vpop.f32.mrf.mxu0
  %v2979 = vadd.f32 %v236, %v2978
  %v2980 = vpop.f32.mrf.mxu0
  %2981 = vmatprep.mubr.bf16.mxu0 0
  %2982 = vmatmul.mubr.bf16.gmra.mxu0 %v446
  %v2983 = vpop.f32.mrf.mxu0
  %v2984 = vadd.f32 %v241, %v2983
  %v2985 = vpop.f32.mrf.mxu0
  %v2986 = vpop.f32.mrf.mxu0
  %v2987 = vadd.f32 %v246, %v2986
  %v2988 = vpop.f32.mrf.mxu0
  %2989 = vmatprep.mubr.bf16.mxu0 0
  %2990 = vmatmul.mubr.bf16.gmra.mxu0 %v449
  %v2991 = vpop.f32.mrf.mxu0
  %v2992 = vadd.f32 %v251, %v2991
  %v2993 = vpop.f32.mrf.mxu0
  %v2994 = vpop.f32.mrf.mxu0
  %v2995 = vadd.f32 %v256, %v2994
  %v2996 = vpop.f32.mrf.mxu0
  %2997 = vmatprep.mubr.bf16.mxu0 0
  %2998 = vmatmul.mubr.bf16.gmra.mxu0 %v452
  %v2999 = vpop.f32.mrf.mxu0
  %v3000 = vadd.f32 %v261, %v2999
  %v3001 = vpop.f32.mrf.mxu0
  %v3002 = vpop.f32.mrf.mxu0
  %v3003 = vadd.f32 %v266, %v3002
  %v3004 = vpop.f32.mrf.mxu0
  %3005 = vmatprep.mubr.bf16.mxu0 0
  %3006 = vmatmul.mubr.bf16.gmra.mxu0 %v455
  %v3007 = vpop.f32.mrf.mxu0
  %v3008 = vadd.f32 %v271, %v3007
  %v3009 = vpop.f32.mrf.mxu0
  %v3010 = vpop.f32.mrf.mxu0
  %v3011 = vadd.f32 %v276, %v3010
  %v3012 = vpop.f32.mrf.mxu0
  %3013 = vmatprep.mubr.bf16.mxu0 0
  %3014 = vmatmul.mubr.bf16.gmra.mxu0 %v458
  %v3015 = vpop.f32.mrf.mxu0
  %v3016 = vadd.f32 %v281, %v3015
  %v3017 = vpop.f32.mrf.mxu0
  %v3018 = vpop.f32.mrf.mxu0
  %v3019 = vadd.f32 %v286, %v3018
  %v3020 = vpop.f32.mrf.mxu0
  %3021 = vmatprep.mubr.bf16.mxu0 0
  %3022 = vmatmul.mubr.bf16.gmra.mxu0 %v461
  %v3023 = vpop.f32.mrf.mxu0
  %v3024 = vadd.f32 %v291, %v3023
  %v3025 = vpop.f32.mrf.mxu0
  %v3026 = vpop.f32.mrf.mxu0
  %v3027 = vadd.f32 %v296, %v3026
  %v3028 = vpop.f32.mrf.mxu0
  %3029 = vdwg.mxu0
  %v3030 = vmax.f32 %v2904, 0.0
  %v3031 = vmax.f32 %v2907, 0.0
  %v3032 = vmax.f32 %v2912, 0.0
  %v3033 = vmax.f32 %v2915, 0.0
  %v3034 = vmax.f32 %v2920, 0.0
  %v3035 = vmax.f32 %v2923, 0.0
  %v3036 = vmax.f32 %v2928, 0.0
  %v3037 = vmax.f32 %v2931, 0.0
  %v3038 = vmax.f32 %v2936, 0.0
  %v3039 = vmax.f32 %v2939, 0.0
  %v3040 = vmax.f32 %v2944, 0.0
  %v3041 = vmax.f32 %v2947, 0.0
  %v3042 = vmax.f32 %v2952, 0.0
  %v3043 = vmax.f32 %v2955, 0.0
  %v3044 = vmax.f32 %v2960, 0.0
  %v3045 = vmax.f32 %v2963, 0.0
  %v3046 = vmax.f32 %v2968, 0.0
  %v3047 = vmax.f32 %v2971, 0.0
  %v3048 = vmax.f32 %v2976, 0.0
  %v3049 = vmax.f32 %v2979, 0.0
  %v3050 = vmax.f32 %v2984, 0.0
  %v3051 = vmax.f32 %v2987, 0.0
  %v3052 = vmax.f32 %v2992, 0.0
  %v3053 = vmax.f32 %v2995, 0.0
  %v3054 = vmax.f32 %v3000, 0.0
  %v3055 = vmax.f32 %v3003, 0.0
  %v3056 = vmax.f32 %v3008, 0.0
  %v3057 = vmax.f32 %v3011, 0.0
  %v3058 = vmax.f32 %v3016, 0.0
  %v3059 = vmax.f32 %v3019, 0.0
  %v3060 = vmax.f32 %v3024, 0.0
  %v3061 = vmax.f32 %v3027, 0.0
  %v3062 = vpack.c.bf16 %v3031, %v3030
  %v3063 = vpack.c.bf16 %v3033, %v3032
  %v3064 = vpack.c.bf16 %v3035, %v3034
  %v3065 = vpack.c.bf16 %v3037, %v3036
  %v3066 = vpack.c.bf16 %v3039, %v3038
  %v3067 = vpack.c.bf16 %v3041, %v3040
  %v3068 = vpack.c.bf16 %v3043, %v3042
  %v3069 = vpack.c.bf16 %v3045, %v3044
  %v3070 = vpack.c.bf16 %v3047, %v3046
  %v3071 = vpack.c.bf16 %v3049, %v3048
  %v3072 = vpack.c.bf16 %v3051, %v3050
  %v3073 = vpack.c.bf16 %v3053, %v3052
  %v3074 = vpack.c.bf16 %v3055, %v3054
  %v3075 = vpack.c.bf16 %v3057, %v3056
  %v3076 = vpack.c.bf16 %v3059, %v3058
  %v3077 = vpack.c.bf16 %v3061, %v3060
  %v3094 = vunpack.c.l.b16 %v3062
  %v3095 = vunpack.c.h.b16 %v3062
  %v3096 = vunpack.c.l.b16 %v3063
  %v3097 = vunpack.c.h.b16 %v3063
  %v3098 = vunpack.c.l.b16 %v3064
  %v3099 = vunpack.c.h.b16 %v3064
  %v3100 = vunpack.c.l.b16 %v3065
  %v3101 = vunpack.c.h.b16 %v3065
  %v3102 = vunpack.c.l.b16 %v3066
  %v3103 = vunpack.c.h.b16 %v3066
  %v3104 = vunpack.c.l.b16 %v3067
  %v3105 = vunpack.c.h.b16 %v3067
  %v3106 = vunpack.c.l.b16 %v3068
  %v3107 = vunpack.c.h.b16 %v3068
  %v3108 = vunpack.c.l.b16 %v3069
  %v3109 = vunpack.c.h.b16 %v3069
  %v3110 = vunpack.c.l.b16 %v3070
  %v3111 = vunpack.c.h.b16 %v3070
  %v3112 = vunpack.c.l.b16 %v3071
  %v3113 = vunpack.c.h.b16 %v3071
  %v3114 = vunpack.c.l.b16 %v3072
  %v3115 = vunpack.c.h.b16 %v3072
  %v3116 = vunpack.c.l.b16 %v3073
  %v3117 = vunpack.c.h.b16 %v3073
  %v3118 = vunpack.c.l.b16 %v3074
  %v3119 = vunpack.c.h.b16 %v3074
  %v3120 = vunpack.c.l.b16 %v3075
  %v3121 = vunpack.c.h.b16 %v3075
  %v3122 = vunpack.c.l.b16 %v3076
  %v3123 = vunpack.c.h.b16 %v3076
  %v3124 = vunpack.c.l.b16 %v3077
  %v3125 = vunpack.c.h.b16 %v3077
  %v3126 = vpack.c.b16 %v3094, %v3094
  %v3127 = vpack.c.b16 %v3095, %v3095
  %v3128 = vpack.c.b16 %v3096, %v3096
  %v3129 = vpack.c.b16 %v3097, %v3097
  %v3130 = vpack.c.b16 %v3098, %v3098
  %v3131 = vpack.c.b16 %v3099, %v3099
  %v3132 = vpack.c.b16 %v3100, %v3100
  %v3133 = vpack.c.b16 %v3101, %v3101
  %v3134 = vpack.c.b16 %v3102, %v3102
  %v3135 = vpack.c.b16 %v3103, %v3103
  %v3136 = vpack.c.b16 %v3104, %v3104
  %v3137 = vpack.c.b16 %v3105, %v3105
  %v3138 = vpack.c.b16 %v3106, %v3106
  %v3139 = vpack.c.b16 %v3107, %v3107
  %v3140 = vpack.c.b16 %v3108, %v3108
  %v3141 = vpack.c.b16 %v3109, %v3109
  %v3142 = vpack.c.b16 %v3110, %v3110
  %v3143 = vpack.c.b16 %v3111, %v3111
  %v3144 = vpack.c.b16 %v3112, %v3112
  %v3145 = vpack.c.b16 %v3113, %v3113
  %v3146 = vpack.c.b16 %v3114, %v3114
  %v3147 = vpack.c.b16 %v3115, %v3115
  %v3148 = vpack.c.b16 %v3116, %v3116
  %v3149 = vpack.c.b16 %v3117, %v3117
  %v3150 = vpack.c.b16 %v3118, %v3118
  %v3151 = vpack.c.b16 %v3119, %v3119
  %v3152 = vpack.c.b16 %v3120, %v3120
  %v3153 = vpack.c.b16 %v3121, %v3121
  %v3154 = vpack.c.b16 %v3122, %v3122
  %v3155 = vpack.c.b16 %v3123, %v3123
  %v3156 = vpack.c.b16 %v3124, %v3124
  %v3157 = vpack.c.b16 %v3125, %v3125
  %3190 = vst [vmem:[#allocation2 + $0x380] sm:$0xf] %v3126
  %3191 = vst [vmem:[#allocation2 + $0x384] sm:$0xf] %v3127
  %3192 = vst [vmem:[#allocation2 + $0x388] sm:$0xf] %v3128
  %3193 = vst [vmem:[#allocation2 + $0x38c] sm:$0xf] %v3129
  %3194 = vst [vmem:[#allocation2 + $0x390] sm:$0xf] %v3130
  %3195 = vst [vmem:[#allocation2 + $0x394] sm:$0xf] %v3131
  %3196 = vst [vmem:[#allocation2 + $0x398] sm:$0xf] %v3132
  %3197 = vst [vmem:[#allocation2 + $0x39c] sm:$0xf] %v3133
  %3198 = vst [vmem:[#allocation2 + $0x3a0] sm:$0xf] %v3134
  %3199 = vst [vmem:[#allocation2 + $0x3a4] sm:$0xf] %v3135
  %3200 = vst [vmem:[#allocation2 + $0x3a8] sm:$0xf] %v3136
  %3201 = vst [vmem:[#allocation2 + $0x3ac] sm:$0xf] %v3137
  %3202 = vst [vmem:[#allocation2 + $0x3b0] sm:$0xf] %v3138
  %3203 = vst [vmem:[#allocation2 + $0x3b4] sm:$0xf] %v3139
  %3204 = vst [vmem:[#allocation2 + $0x3b8] sm:$0xf] %v3140
  %3205 = vst [vmem:[#allocation2 + $0x3bc] sm:$0xf] %v3141
  %3206 = vst [vmem:[#allocation2 + $0x3c0] sm:$0xf] %v3142
  %3207 = vst [vmem:[#allocation2 + $0x3c4] sm:$0xf] %v3143
  %3208 = vst [vmem:[#allocation2 + $0x3c8] sm:$0xf] %v3144
  %3209 = vst [vmem:[#allocation2 + $0x3cc] sm:$0xf] %v3145
  %3210 = vst [vmem:[#allocation2 + $0x3d0] sm:$0xf] %v3146
  %3211 = vst [vmem:[#allocation2 + $0x3d4] sm:$0xf] %v3147
  %3212 = vst [vmem:[#allocation2 + $0x3d8] sm:$0xf] %v3148
  %3213 = vst [vmem:[#allocation2 + $0x3dc] sm:$0xf] %v3149
  %3214 = vst [vmem:[#allocation2 + $0x3e0] sm:$0xf] %v3150
  %3215 = vst [vmem:[#allocation2 + $0x3e4] sm:$0xf] %v3151
  %3216 = vst [vmem:[#allocation2 + $0x3e8] sm:$0xf] %v3152
  %3217 = vst [vmem:[#allocation2 + $0x3ec] sm:$0xf] %v3153
  %3218 = vst [vmem:[#allocation2 + $0x3f0] sm:$0xf] %v3154
  %3219 = vst [vmem:[#allocation2 + $0x3f4] sm:$0xf] %v3155
  %3220 = vst [vmem:[#allocation2 + $0x3f8] sm:$0xf] %v3156
  %3221 = vst [vmem:[#allocation2 + $0x3fc] sm:$0xf] %v3157
  %v3222 = vld [vmem:[%s0 + $0xe0] sm:$0xf]
  %v3223 = vld [vmem:[%s0 + $0xe4] sm:$0xf]
  %v3224 = vld [vmem:[%s0 + $0xe8] sm:$0xf]
  %v3225 = vld [vmem:[%s0 + $0xec] sm:$0xf]
  %v3226 = vld [vmem:[%s0 + $0xf0] sm:$0xf]
  %v3227 = vld [vmem:[%s0 + $0xf4] sm:$0xf]
  %v3228 = vld [vmem:[%s0 + $0xf8] sm:$0xf]
  %v3229 = vld [vmem:[%s0 + $0xfc] sm:$0xf]
  %v3230 = vld [vmem:[%s0 + $0x100] sm:$0xf]
  %v3231 = vld [vmem:[%s0 + $0x104] sm:$0xf]
  %v3232 = vld [vmem:[%s0 + $0x108] sm:$0xf]
  %v3233 = vld [vmem:[%s0 + $0x10c] sm:$0xf]
  %v3246 = vunpack.c.l.b16 %v3222
  %v3247 = vunpack.c.l.b16 %v3223
  %v3248 = vunpack.c.l.b16 %v3224
  %v3249 = vunpack.c.l.b16 %v3225
  %v3250 = vunpack.c.l.b16 %v3226
  %v3251 = vunpack.c.l.b16 %v3227
  %v3252 = vunpack.c.l.b16 %v3228
  %v3253 = vunpack.c.l.b16 %v3229
  %v3254 = vunpack.c.l.b16 %v3230
  %v3255 = vunpack.c.l.b16 %v3231
  %v3256 = vunpack.c.l.b16 %v3232
  %v3257 = vunpack.c.l.b16 %v3233
  %v3258 = vpack.c.b16 %v3247, %v3246
  %v3259 = vpack.c.b16 %v3249, %v3248
  %v3260 = vpack.c.b16 %v3251, %v3250
  %v3261 = vpack.c.b16 %v3253, %v3252
  %v3262 = vpack.c.b16 %v3255, %v3254
  %v3263 = vpack.c.b16 %v3257, %v3256
  %3270 = vmatprep.subr.bf16.mxu0 0
  %3271 = vmatpush1.bf16.msra.mxu0 0
  %3272 = vmatprep.subr.bf16.mxu0 0
  %3273 = vmatpush1.bf16.msra.mxu0 0
  %3274 = vmatprep.subr.bf16.mxu0 0
  %3275 = vmatpush1.bf16.msra.mxu0 %v3263
  %3276 = vmatprep.subr.bf16.mxu0 0
  %3277 = vmatpush1.bf16.msra.mxu0 %v3262
  %3278 = vmatprep.subr.bf16.mxu0 0
  %3279 = vmatpush1.bf16.msra.mxu0 %v3261
  %3280 = vmatprep.subr.bf16.mxu0 0
  %3281 = vmatpush1.bf16.msra.mxu0 %v3260
  %3282 = vmatprep.subr.bf16.mxu0 0
  %3283 = vmatpush1.bf16.msra.mxu0 %v3259
  %3284 = vmatprep.subr.bf16.mxu0 0
  %3285 = vmatpush1.bf16.msra.mxu0 %v3258
  %3286 = vmatprep.subr.bf16.mxu0 0
  %3287 = vmatpush2.bf16.msra.mxu0 0
  %3288 = vmatprep.subr.bf16.mxu0 0
  %3289 = vmatpush2.bf16.msra.mxu0 0
  %3290 = vmatprep.subr.bf16.mxu0 0
  %3291 = vmatpush2.bf16.msra.mxu0 0
  %3292 = vmatprep.subr.bf16.mxu0 0
  %3293 = vmatpush2.bf16.msra.mxu0 0
  %3294 = vmatprep.subr.bf16.mxu0 0
  %3295 = vmatpush2.bf16.msra.mxu0 0
  %3296 = vmatprep.subr.bf16.mxu0 0
  %3297 = vmatpush2.bf16.msra.mxu0 0
  %3298 = vmatprep.subr.bf16.mxu0 0
  %3299 = vmatpush2.bf16.msra.mxu0 0
  %3300 = vmatprep.subr.bf16.mxu0 0
  %3301 = vmatpush2.bf16.msra.mxu0 0
  %3302 = vmatprep.mubr.bf16.mxu0 0
  %3303 = vmatmul.mubr.bf16.gmra.mxu0 %v416
  %v3304 = vpop.f32.mrf.mxu0
  %v3305 = vadd.f32 %v141, %v3304
  %v3306 = vpop.f32.mrf.mxu0
  %v3307 = vpop.f32.mrf.mxu0
  %v3308 = vadd.f32 %v146, %v3307
  %v3309 = vpop.f32.mrf.mxu0
  %3310 = vmatprep.mubr.bf16.mxu0 0
  %3311 = vmatmul.mubr.bf16.gmra.mxu0 %v419
  %v3312 = vpop.f32.mrf.mxu0
  %v3313 = vadd.f32 %v151, %v3312
  %v3314 = vpop.f32.mrf.mxu0
  %v3315 = vpop.f32.mrf.mxu0
  %v3316 = vadd.f32 %v156, %v3315
  %v3317 = vpop.f32.mrf.mxu0
  %3318 = vmatprep.mubr.bf16.mxu0 0
  %3319 = vmatmul.mubr.bf16.gmra.mxu0 %v422
  %v3320 = vpop.f32.mrf.mxu0
  %v3321 = vadd.f32 %v161, %v3320
  %v3322 = vpop.f32.mrf.mxu0
  %v3323 = vpop.f32.mrf.mxu0
  %v3324 = vadd.f32 %v166, %v3323
  %v3325 = vpop.f32.mrf.mxu0
  %3326 = vmatprep.mubr.bf16.mxu0 0
  %3327 = vmatmul.mubr.bf16.gmra.mxu0 %v425
  %v3328 = vpop.f32.mrf.mxu0
  %v3329 = vadd.f32 %v171, %v3328
  %v3330 = vpop.f32.mrf.mxu0
  %v3331 = vpop.f32.mrf.mxu0
  %v3332 = vadd.f32 %v176, %v3331
  %v3333 = vpop.f32.mrf.mxu0
  %3334 = vmatprep.mubr.bf16.mxu0 0
  %3335 = vmatmul.mubr.bf16.gmra.mxu0 %v428
  %v3336 = vpop.f32.mrf.mxu0
  %v3337 = vadd.f32 %v181, %v3336
  %v3338 = vpop.f32.mrf.mxu0
  %v3339 = vpop.f32.mrf.mxu0
  %v3340 = vadd.f32 %v186, %v3339
  %v3341 = vpop.f32.mrf.mxu0
  %3342 = vmatprep.mubr.bf16.mxu0 0
  %3343 = vmatmul.mubr.bf16.gmra.mxu0 %v431
  %v3344 = vpop.f32.mrf.mxu0
  %v3345 = vadd.f32 %v191, %v3344
  %v3346 = vpop.f32.mrf.mxu0
  %v3347 = vpop.f32.mrf.mxu0
  %v3348 = vadd.f32 %v196, %v3347
  %v3349 = vpop.f32.mrf.mxu0
  %3350 = vmatprep.mubr.bf16.mxu0 0
  %3351 = vmatmul.mubr.bf16.gmra.mxu0 %v434
  %v3352 = vpop.f32.mrf.mxu0
  %v3353 = vadd.f32 %v201, %v3352
  %v3354 = vpop.f32.mrf.mxu0
  %v3355 = vpop.f32.mrf.mxu0
  %v3356 = vadd.f32 %v206, %v3355
  %v3357 = vpop.f32.mrf.mxu0
  %3358 = vmatprep.mubr.bf16.mxu0 0
  %3359 = vmatmul.mubr.bf16.gmra.mxu0 %v437
  %v3360 = vpop.f32.mrf.mxu0
  %v3361 = vadd.f32 %v211, %v3360
  %v3362 = vpop.f32.mrf.mxu0
  %v3363 = vpop.f32.mrf.mxu0
  %v3364 = vadd.f32 %v216, %v3363
  %v3365 = vpop.f32.mrf.mxu0
  %3366 = vmatprep.mubr.bf16.mxu0 0
  %3367 = vmatmul.mubr.bf16.gmra.mxu0 %v440
  %v3368 = vpop.f32.mrf.mxu0
  %v3369 = vadd.f32 %v221, %v3368
  %v3370 = vpop.f32.mrf.mxu0
  %v3371 = vpop.f32.mrf.mxu0
  %v3372 = vadd.f32 %v226, %v3371
  %v3373 = vpop.f32.mrf.mxu0
  %3374 = vmatprep.mubr.bf16.mxu0 0
  %3375 = vmatmul.mubr.bf16.gmra.mxu0 %v443
  %v3376 = vpop.f32.mrf.mxu0
  %v3377 = vadd.f32 %v231, %v3376
  %v3378 = vpop.f32.mrf.mxu0
  %v3379 = vpop.f32.mrf.mxu0
  %v3380 = vadd.f32 %v236, %v3379
  %v3381 = vpop.f32.mrf.mxu0
  %3382 = vmatprep.mubr.bf16.mxu0 0
  %3383 = vmatmul.mubr.bf16.gmra.mxu0 %v446
  %v3384 = vpop.f32.mrf.mxu0
  %v3385 = vadd.f32 %v241, %v3384
  %v3386 = vpop.f32.mrf.mxu0
  %v3387 = vpop.f32.mrf.mxu0
  %v3388 = vadd.f32 %v246, %v3387
  %v3389 = vpop.f32.mrf.mxu0
  %3390 = vmatprep.mubr.bf16.mxu0 0
  %3391 = vmatmul.mubr.bf16.gmra.mxu0 %v449
  %v3392 = vpop.f32.mrf.mxu0
  %v3393 = vadd.f32 %v251, %v3392
  %v3394 = vpop.f32.mrf.mxu0
  %v3395 = vpop.f32.mrf.mxu0
  %v3396 = vadd.f32 %v256, %v3395
  %v3397 = vpop.f32.mrf.mxu0
  %3398 = vmatprep.mubr.bf16.mxu0 0
  %3399 = vmatmul.mubr.bf16.gmra.mxu0 %v452
  %v3400 = vpop.f32.mrf.mxu0
  %v3401 = vadd.f32 %v261, %v3400
  %v3402 = vpop.f32.mrf.mxu0
  %v3403 = vpop.f32.mrf.mxu0
  %v3404 = vadd.f32 %v266, %v3403
  %v3405 = vpop.f32.mrf.mxu0
  %3406 = vmatprep.mubr.bf16.mxu0 0
  %3407 = vmatmul.mubr.bf16.gmra.mxu0 %v455
  %v3408 = vpop.f32.mrf.mxu0
  %v3409 = vadd.f32 %v271, %v3408
  %v3410 = vpop.f32.mrf.mxu0
  %v3411 = vpop.f32.mrf.mxu0
  %v3412 = vadd.f32 %v276, %v3411
  %v3413 = vpop.f32.mrf.mxu0
  %3414 = vmatprep.mubr.bf16.mxu0 0
  %3415 = vmatmul.mubr.bf16.gmra.mxu0 %v458
  %v3416 = vpop.f32.mrf.mxu0
  %v3417 = vadd.f32 %v281, %v3416
  %v3418 = vpop.f32.mrf.mxu0
  %v3419 = vpop.f32.mrf.mxu0
  %v3420 = vadd.f32 %v286, %v3419
  %v3421 = vpop.f32.mrf.mxu0
  %3422 = vmatprep.mubr.bf16.mxu0 0
  %3423 = vmatmul.mubr.bf16.gmra.mxu0 %v461
  %v3424 = vpop.f32.mrf.mxu0
  %v3425 = vadd.f32 %v291, %v3424
  %v3426 = vpop.f32.mrf.mxu0
  %v3427 = vpop.f32.mrf.mxu0
  %v3428 = vadd.f32 %v296, %v3427
  %v3429 = vpop.f32.mrf.mxu0
  %3430 = vdwg.mxu0
  %v3431 = vmax.f32 %v3305, 0.0
  %v3432 = vmax.f32 %v3308, 0.0
  %v3433 = vmax.f32 %v3313, 0.0
  %v3434 = vmax.f32 %v3316, 0.0
  %v3435 = vmax.f32 %v3321, 0.0
  %v3436 = vmax.f32 %v3324, 0.0
  %v3437 = vmax.f32 %v3329, 0.0
  %v3438 = vmax.f32 %v3332, 0.0
  %v3439 = vmax.f32 %v3337, 0.0
  %v3440 = vmax.f32 %v3340, 0.0
  %v3441 = vmax.f32 %v3345, 0.0
  %v3442 = vmax.f32 %v3348, 0.0
  %v3443 = vmax.f32 %v3353, 0.0
  %v3444 = vmax.f32 %v3356, 0.0
  %v3445 = vmax.f32 %v3361, 0.0
  %v3446 = vmax.f32 %v3364, 0.0
  %v3447 = vmax.f32 %v3369, 0.0
  %v3448 = vmax.f32 %v3372, 0.0
  %v3449 = vmax.f32 %v3377, 0.0
  %v3450 = vmax.f32 %v3380, 0.0
  %v3451 = vmax.f32 %v3385, 0.0
  %v3452 = vmax.f32 %v3388, 0.0
  %v3453 = vmax.f32 %v3393, 0.0
  %v3454 = vmax.f32 %v3396, 0.0
  %v3455 = vmax.f32 %v3401, 0.0
  %v3456 = vmax.f32 %v3404, 0.0
  %v3457 = vmax.f32 %v3409, 0.0
  %v3458 = vmax.f32 %v3412, 0.0
  %v3459 = vmax.f32 %v3417, 0.0
  %v3460 = vmax.f32 %v3420, 0.0
  %v3461 = vmax.f32 %v3425, 0.0
  %v3462 = vmax.f32 %v3428, 0.0
  %v3463 = vpack.c.bf16 %v3432, %v3431
  %v3464 = vpack.c.bf16 %v3434, %v3433
  %v3465 = vpack.c.bf16 %v3436, %v3435
  %v3466 = vpack.c.bf16 %v3438, %v3437
  %v3467 = vpack.c.bf16 %v3440, %v3439
  %v3468 = vpack.c.bf16 %v3442, %v3441
  %v3469 = vpack.c.bf16 %v3444, %v3443
  %v3470 = vpack.c.bf16 %v3446, %v3445
  %v3471 = vpack.c.bf16 %v3448, %v3447
  %v3472 = vpack.c.bf16 %v3450, %v3449
  %v3473 = vpack.c.bf16 %v3452, %v3451
  %v3474 = vpack.c.bf16 %v3454, %v3453
  %v3475 = vpack.c.bf16 %v3456, %v3455
  %v3476 = vpack.c.bf16 %v3458, %v3457
  %v3477 = vpack.c.bf16 %v3460, %v3459
  %v3478 = vpack.c.bf16 %v3462, %v3461
  %v3495 = vunpack.c.l.b16 %v3463
  %v3496 = vunpack.c.h.b16 %v3463
  %v3497 = vunpack.c.l.b16 %v3464
  %v3498 = vunpack.c.h.b16 %v3464
  %v3499 = vunpack.c.l.b16 %v3465
  %v3500 = vunpack.c.h.b16 %v3465
  %v3501 = vunpack.c.l.b16 %v3466
  %v3502 = vunpack.c.h.b16 %v3466
  %v3503 = vunpack.c.l.b16 %v3467
  %v3504 = vunpack.c.h.b16 %v3467
  %v3505 = vunpack.c.l.b16 %v3468
  %v3506 = vunpack.c.h.b16 %v3468
  %v3507 = vunpack.c.l.b16 %v3469
  %v3508 = vunpack.c.h.b16 %v3469
  %v3509 = vunpack.c.l.b16 %v3470
  %v3510 = vunpack.c.h.b16 %v3470
  %v3511 = vunpack.c.l.b16 %v3471
  %v3512 = vunpack.c.h.b16 %v3471
  %v3513 = vunpack.c.l.b16 %v3472
  %v3514 = vunpack.c.h.b16 %v3472
  %v3515 = vunpack.c.l.b16 %v3473
  %v3516 = vunpack.c.h.b16 %v3473
  %v3517 = vunpack.c.l.b16 %v3474
  %v3518 = vunpack.c.h.b16 %v3474
  %v3519 = vunpack.c.l.b16 %v3475
  %v3520 = vunpack.c.h.b16 %v3475
  %v3521 = vunpack.c.l.b16 %v3476
  %v3522 = vunpack.c.h.b16 %v3476
  %v3523 = vunpack.c.l.b16 %v3477
  %v3524 = vunpack.c.h.b16 %v3477
  %v3525 = vunpack.c.l.b16 %v3478
  %v3526 = vunpack.c.h.b16 %v3478
  %v3527 = vpack.c.b16 %v3495, %v3495
  %v3528 = vpack.c.b16 %v3496, %v3496
  %v3529 = vpack.c.b16 %v3497, %v3497
  %v3530 = vpack.c.b16 %v3498, %v3498
  %v3531 = vpack.c.b16 %v3499, %v3499
  %v3532 = vpack.c.b16 %v3500, %v3500
  %v3533 = vpack.c.b16 %v3501, %v3501
  %v3534 = vpack.c.b16 %v3502, %v3502
  %v3535 = vpack.c.b16 %v3503, %v3503
  %v3536 = vpack.c.b16 %v3504, %v3504
  %v3537 = vpack.c.b16 %v3505, %v3505
  %v3538 = vpack.c.b16 %v3506, %v3506
  %v3539 = vpack.c.b16 %v3507, %v3507
  %v3540 = vpack.c.b16 %v3508, %v3508
  %v3541 = vpack.c.b16 %v3509, %v3509
  %v3542 = vpack.c.b16 %v3510, %v3510
  %v3543 = vpack.c.b16 %v3511, %v3511
  %v3544 = vpack.c.b16 %v3512, %v3512
  %v3545 = vpack.c.b16 %v3513, %v3513
  %v3546 = vpack.c.b16 %v3514, %v3514
  %v3547 = vpack.c.b16 %v3515, %v3515
  %v3548 = vpack.c.b16 %v3516, %v3516
  %v3549 = vpack.c.b16 %v3517, %v3517
  %v3550 = vpack.c.b16 %v3518, %v3518
  %v3551 = vpack.c.b16 %v3519, %v3519
  %v3552 = vpack.c.b16 %v3520, %v3520
  %v3553 = vpack.c.b16 %v3521, %v3521
  %v3554 = vpack.c.b16 %v3522, %v3522
  %v3555 = vpack.c.b16 %v3523, %v3523
  %v3556 = vpack.c.b16 %v3524, %v3524
  %v3557 = vpack.c.b16 %v3525, %v3525
  %v3558 = vpack.c.b16 %v3526, %v3526
  %3591 = vst [vmem:[#allocation2 + $0x400] sm:$0xf] %v3527
  %3592 = vst [vmem:[#allocation2 + $0x404] sm:$0xf] %v3528
  %3593 = vst [vmem:[#allocation2 + $0x408] sm:$0xf] %v3529
  %3594 = vst [vmem:[#allocation2 + $0x40c] sm:$0xf] %v3530
  %3595 = vst [vmem:[#allocation2 + $0x410] sm:$0xf] %v3531
  %3596 = vst [vmem:[#allocation2 + $0x414] sm:$0xf] %v3532
  %3597 = vst [vmem:[#allocation2 + $0x418] sm:$0xf] %v3533
  %3598 = vst [vmem:[#allocation2 + $0x41c] sm:$0xf] %v3534
  %3599 = vst [vmem:[#allocation2 + $0x420] sm:$0xf] %v3535
  %3600 = vst [vmem:[#allocation2 + $0x424] sm:$0xf] %v3536
  %3601 = vst [vmem:[#allocation2 + $0x428] sm:$0xf] %v3537
  %3602 = vst [vmem:[#allocation2 + $0x42c] sm:$0xf] %v3538
  %3603 = vst [vmem:[#allocation2 + $0x430] sm:$0xf] %v3539
  %3604 = vst [vmem:[#allocation2 + $0x434] sm:$0xf] %v3540
  %3605 = vst [vmem:[#allocation2 + $0x438] sm:$0xf] %v3541
  %3606 = vst [vmem:[#allocation2 + $0x43c] sm:$0xf] %v3542
  %3607 = vst [vmem:[#allocation2 + $0x440] sm:$0xf] %v3543
  %3608 = vst [vmem:[#allocation2 + $0x444] sm:$0xf] %v3544
  %3609 = vst [vmem:[#allocation2 + $0x448] sm:$0xf] %v3545
  %3610 = vst [vmem:[#allocation2 + $0x44c] sm:$0xf] %v3546
  %3611 = vst [vmem:[#allocation2 + $0x450] sm:$0xf] %v3547
  %3612 = vst [vmem:[#allocation2 + $0x454] sm:$0xf] %v3548
  %3613 = vst [vmem:[#allocation2 + $0x458] sm:$0xf] %v3549
  %3614 = vst [vmem:[#allocation2 + $0x45c] sm:$0xf] %v3550
  %3615 = vst [vmem:[#allocation2 + $0x460] sm:$0xf] %v3551
  %3616 = vst [vmem:[#allocation2 + $0x464] sm:$0xf] %v3552
  %3617 = vst [vmem:[#allocation2 + $0x468] sm:$0xf] %v3553
  %3618 = vst [vmem:[#allocation2 + $0x46c] sm:$0xf] %v3554
  %3619 = vst [vmem:[#allocation2 + $0x470] sm:$0xf] %v3555
  %3620 = vst [vmem:[#allocation2 + $0x474] sm:$0xf] %v3556
  %3621 = vst [vmem:[#allocation2 + $0x478] sm:$0xf] %v3557
  %3622 = vst [vmem:[#allocation2 + $0x47c] sm:$0xf] %v3558
  %v3623 = vld [vmem:[%s0 + $0x100] sm:$0xf]
  %v3624 = vld [vmem:[%s0 + $0x104] sm:$0xf]
  %v3625 = vld [vmem:[%s0 + $0x108] sm:$0xf]
  %v3626 = vld [vmem:[%s0 + $0x10c] sm:$0xf]
  %v3627 = vld [vmem:[%s0 + $0x110] sm:$0xf]
  %v3628 = vld [vmem:[%s0 + $0x114] sm:$0xf]
  %v3629 = vld [vmem:[%s0 + $0x118] sm:$0xf]
  %v3630 = vld [vmem:[%s0 + $0x11c] sm:$0xf]
  %v3631 = vld [vmem:[%s0 + $0x120] sm:$0xf]
  %v3632 = vld [vmem:[%s0 + $0x124] sm:$0xf]
  %v3633 = vld [vmem:[%s0 + $0x128] sm:$0xf]
  %v3634 = vld [vmem:[%s0 + $0x12c] sm:$0xf]
  %v3647 = vunpack.c.l.b16 %v3623
  %v3648 = vunpack.c.l.b16 %v3624
  %v3649 = vunpack.c.l.b16 %v3625
  %v3650 = vunpack.c.l.b16 %v3626
  %v3651 = vunpack.c.l.b16 %v3627
  %v3652 = vunpack.c.l.b16 %v3628
  %v3653 = vunpack.c.l.b16 %v3629
  %v3654 = vunpack.c.l.b16 %v3630
  %v3655 = vunpack.c.l.b16 %v3631
  %v3656 = vunpack.c.l.b16 %v3632
  %v3657 = vunpack.c.l.b16 %v3633
  %v3658 = vunpack.c.l.b16 %v3634
  %v3659 = vpack.c.b16 %v3648, %v3647
  %v3660 = vpack.c.b16 %v3650, %v3649
  %v3661 = vpack.c.b16 %v3652, %v3651
  %v3662 = vpack.c.b16 %v3654, %v3653
  %v3663 = vpack.c.b16 %v3656, %v3655
  %v3664 = vpack.c.b16 %v3658, %v3657
  %3671 = vmatprep.subr.bf16.mxu0 0
  %3672 = vmatpush1.bf16.msra.mxu0 0
  %3673 = vmatprep.subr.bf16.mxu0 0
  %3674 = vmatpush1.bf16.msra.mxu0 0
  %3675 = vmatprep.subr.bf16.mxu0 0
  %3676 = vmatpush1.bf16.msra.mxu0 %v3664
  %3677 = vmatprep.subr.bf16.mxu0 0
  %3678 = vmatpush1.bf16.msra.mxu0 %v3663
  %3679 = vmatprep.subr.bf16.mxu0 0
  %3680 = vmatpush1.bf16.msra.mxu0 %v3662
  %3681 = vmatprep.subr.bf16.mxu0 0
  %3682 = vmatpush1.bf16.msra.mxu0 %v3661
  %3683 = vmatprep.subr.bf16.mxu0 0
  %3684 = vmatpush1.bf16.msra.mxu0 %v3660
  %3685 = vmatprep.subr.bf16.mxu0 0
  %3686 = vmatpush1.bf16.msra.mxu0 %v3659
  %3687 = vmatprep.subr.bf16.mxu0 0
  %3688 = vmatpush2.bf16.msra.mxu0 0
  %3689 = vmatprep.subr.bf16.mxu0 0
  %3690 = vmatpush2.bf16.msra.mxu0 0
  %3691 = vmatprep.subr.bf16.mxu0 0
  %3692 = vmatpush2.bf16.msra.mxu0 0
  %3693 = vmatprep.subr.bf16.mxu0 0
  %3694 = vmatpush2.bf16.msra.mxu0 0
  %3695 = vmatprep.subr.bf16.mxu0 0
  %3696 = vmatpush2.bf16.msra.mxu0 0
  %3697 = vmatprep.subr.bf16.mxu0 0
  %3698 = vmatpush2.bf16.msra.mxu0 0
  %3699 = vmatprep.subr.bf16.mxu0 0
  %3700 = vmatpush2.bf16.msra.mxu0 0
  %3701 = vmatprep.subr.bf16.mxu0 0
  %3702 = vmatpush2.bf16.msra.mxu0 0
  %3703 = vmatprep.mubr.bf16.mxu0 0
  %3704 = vmatmul.mubr.bf16.gmra.mxu0 %v416
  %v3705 = vpop.f32.mrf.mxu0
  %v3706 = vadd.f32 %v141, %v3705
  %v3707 = vpop.f32.mrf.mxu0
  %v3708 = vpop.f32.mrf.mxu0
  %v3709 = vadd.f32 %v146, %v3708
  %v3710 = vpop.f32.mrf.mxu0
  %3711 = vmatprep.mubr.bf16.mxu0 0
  %3712 = vmatmul.mubr.bf16.gmra.mxu0 %v419
  %v3713 = vpop.f32.mrf.mxu0
  %v3714 = vadd.f32 %v151, %v3713
  %v3715 = vpop.f32.mrf.mxu0
  %v3716 = vpop.f32.mrf.mxu0
  %v3717 = vadd.f32 %v156, %v3716
  %v3718 = vpop.f32.mrf.mxu0
  %3719 = vmatprep.mubr.bf16.mxu0 0
  %3720 = vmatmul.mubr.bf16.gmra.mxu0 %v422
  %v3721 = vpop.f32.mrf.mxu0
  %v3722 = vadd.f32 %v161, %v3721
  %v3723 = vpop.f32.mrf.mxu0
  %v3724 = vpop.f32.mrf.mxu0
  %v3725 = vadd.f32 %v166, %v3724
  %v3726 = vpop.f32.mrf.mxu0
  %3727 = vmatprep.mubr.bf16.mxu0 0
  %3728 = vmatmul.mubr.bf16.gmra.mxu0 %v425
  %v3729 = vpop.f32.mrf.mxu0
  %v3730 = vadd.f32 %v171, %v3729
  %v3731 = vpop.f32.mrf.mxu0
  %v3732 = vpop.f32.mrf.mxu0
  %v3733 = vadd.f32 %v176, %v3732
  %v3734 = vpop.f32.mrf.mxu0
  %3735 = vmatprep.mubr.bf16.mxu0 0
  %3736 = vmatmul.mubr.bf16.gmra.mxu0 %v428
  %v3737 = vpop.f32.mrf.mxu0
  %v3738 = vadd.f32 %v181, %v3737
  %v3739 = vpop.f32.mrf.mxu0
  %v3740 = vpop.f32.mrf.mxu0
  %v3741 = vadd.f32 %v186, %v3740
  %v3742 = vpop.f32.mrf.mxu0
  %3743 = vmatprep.mubr.bf16.mxu0 0
  %3744 = vmatmul.mubr.bf16.gmra.mxu0 %v431
  %v3745 = vpop.f32.mrf.mxu0
  %v3746 = vadd.f32 %v191, %v3745
  %v3747 = vpop.f32.mrf.mxu0
  %v3748 = vpop.f32.mrf.mxu0
  %v3749 = vadd.f32 %v196, %v3748
  %v3750 = vpop.f32.mrf.mxu0
  %3751 = vmatprep.mubr.bf16.mxu0 0
  %3752 = vmatmul.mubr.bf16.gmra.mxu0 %v434
  %v3753 = vpop.f32.mrf.mxu0
  %v3754 = vadd.f32 %v201, %v3753
  %v3755 = vpop.f32.mrf.mxu0
  %v3756 = vpop.f32.mrf.mxu0
  %v3757 = vadd.f32 %v206, %v3756
  %v3758 = vpop.f32.mrf.mxu0
  %3759 = vmatprep.mubr.bf16.mxu0 0
  %3760 = vmatmul.mubr.bf16.gmra.mxu0 %v437
  %v3761 = vpop.f32.mrf.mxu0
  %v3762 = vadd.f32 %v211, %v3761
  %v3763 = vpop.f32.mrf.mxu0
  %v3764 = vpop.f32.mrf.mxu0
  %v3765 = vadd.f32 %v216, %v3764
  %v3766 = vpop.f32.mrf.mxu0
  %3767 = vmatprep.mubr.bf16.mxu0 0
  %3768 = vmatmul.mubr.bf16.gmra.mxu0 %v440
  %v3769 = vpop.f32.mrf.mxu0
  %v3770 = vadd.f32 %v221, %v3769
  %v3771 = vpop.f32.mrf.mxu0
  %v3772 = vpop.f32.mrf.mxu0
  %v3773 = vadd.f32 %v226, %v3772
  %v3774 = vpop.f32.mrf.mxu0
  %3775 = vmatprep.mubr.bf16.mxu0 0
  %3776 = vmatmul.mubr.bf16.gmra.mxu0 %v443
  %v3777 = vpop.f32.mrf.mxu0
  %v3778 = vadd.f32 %v231, %v3777
  %v3779 = vpop.f32.mrf.mxu0
  %v3780 = vpop.f32.mrf.mxu0
  %v3781 = vadd.f32 %v236, %v3780
  %v3782 = vpop.f32.mrf.mxu0
  %3783 = vmatprep.mubr.bf16.mxu0 0
  %3784 = vmatmul.mubr.bf16.gmra.mxu0 %v446
  %v3785 = vpop.f32.mrf.mxu0
  %v3786 = vadd.f32 %v241, %v3785
  %v3787 = vpop.f32.mrf.mxu0
  %v3788 = vpop.f32.mrf.mxu0
  %v3789 = vadd.f32 %v246, %v3788
  %v3790 = vpop.f32.mrf.mxu0
  %3791 = vmatprep.mubr.bf16.mxu0 0
  %3792 = vmatmul.mubr.bf16.gmra.mxu0 %v449
  %v3793 = vpop.f32.mrf.mxu0
  %v3794 = vadd.f32 %v251, %v3793
  %v3795 = vpop.f32.mrf.mxu0
  %v3796 = vpop.f32.mrf.mxu0
  %v3797 = vadd.f32 %v256, %v3796
  %v3798 = vpop.f32.mrf.mxu0
  %3799 = vmatprep.mubr.bf16.mxu0 0
  %3800 = vmatmul.mubr.bf16.gmra.mxu0 %v452
  %v3801 = vpop.f32.mrf.mxu0
  %v3802 = vadd.f32 %v261, %v3801
  %v3803 = vpop.f32.mrf.mxu0
  %v3804 = vpop.f32.mrf.mxu0
  %v3805 = vadd.f32 %v266, %v3804
  %v3806 = vpop.f32.mrf.mxu0
  %3807 = vmatprep.mubr.bf16.mxu0 0
  %3808 = vmatmul.mubr.bf16.gmra.mxu0 %v455
  %v3809 = vpop.f32.mrf.mxu0
  %v3810 = vadd.f32 %v271, %v3809
  %v3811 = vpop.f32.mrf.mxu0
  %v3812 = vpop.f32.mrf.mxu0
  %v3813 = vadd.f32 %v276, %v3812
  %v3814 = vpop.f32.mrf.mxu0
  %3815 = vmatprep.mubr.bf16.mxu0 0
  %3816 = vmatmul.mubr.bf16.gmra.mxu0 %v458
  %v3817 = vpop.f32.mrf.mxu0
  %v3818 = vadd.f32 %v281, %v3817
  %v3819 = vpop.f32.mrf.mxu0
  %v3820 = vpop.f32.mrf.mxu0
  %v3821 = vadd.f32 %v286, %v3820
  %v3822 = vpop.f32.mrf.mxu0
  %3823 = vmatprep.mubr.bf16.mxu0 0
  %3824 = vmatmul.mubr.bf16.gmra.mxu0 %v461
  %v3825 = vpop.f32.mrf.mxu0
  %v3826 = vadd.f32 %v291, %v3825
  %v3827 = vpop.f32.mrf.mxu0
  %v3828 = vpop.f32.mrf.mxu0
  %v3829 = vadd.f32 %v296, %v3828
  %v3830 = vpop.f32.mrf.mxu0
  %3831 = vdwg.mxu0
  %v3832 = vmax.f32 %v3706, 0.0
  %v3833 = vmax.f32 %v3709, 0.0
  %v3834 = vmax.f32 %v3714, 0.0
  %v3835 = vmax.f32 %v3717, 0.0
  %v3836 = vmax.f32 %v3722, 0.0
  %v3837 = vmax.f32 %v3725, 0.0
  %v3838 = vmax.f32 %v3730, 0.0
  %v3839 = vmax.f32 %v3733, 0.0
  %v3840 = vmax.f32 %v3738, 0.0
  %v3841 = vmax.f32 %v3741, 0.0
  %v3842 = vmax.f32 %v3746, 0.0
  %v3843 = vmax.f32 %v3749, 0.0
  %v3844 = vmax.f32 %v3754, 0.0
  %v3845 = vmax.f32 %v3757, 0.0
  %v3846 = vmax.f32 %v3762, 0.0
  %v3847 = vmax.f32 %v3765, 0.0
  %v3848 = vmax.f32 %v3770, 0.0
  %v3849 = vmax.f32 %v3773, 0.0
  %v3850 = vmax.f32 %v3778, 0.0
  %v3851 = vmax.f32 %v3781, 0.0
  %v3852 = vmax.f32 %v3786, 0.0
  %v3853 = vmax.f32 %v3789, 0.0
  %v3854 = vmax.f32 %v3794, 0.0
  %v3855 = vmax.f32 %v3797, 0.0
  %v3856 = vmax.f32 %v3802, 0.0
  %v3857 = vmax.f32 %v3805, 0.0
  %v3858 = vmax.f32 %v3810, 0.0
  %v3859 = vmax.f32 %v3813, 0.0
  %v3860 = vmax.f32 %v3818, 0.0
  %v3861 = vmax.f32 %v3821, 0.0
  %v3862 = vmax.f32 %v3826, 0.0
  %v3863 = vmax.f32 %v3829, 0.0
  %v3864 = vpack.c.bf16 %v3833, %v3832
  %v3865 = vpack.c.bf16 %v3835, %v3834
  %v3866 = vpack.c.bf16 %v3837, %v3836
  %v3867 = vpack.c.bf16 %v3839, %v3838
  %v3868 = vpack.c.bf16 %v3841, %v3840
  %v3869 = vpack.c.bf16 %v3843, %v3842
  %v3870 = vpack.c.bf16 %v3845, %v3844
  %v3871 = vpack.c.bf16 %v3847, %v3846
  %v3872 = vpack.c.bf16 %v3849, %v3848
  %v3873 = vpack.c.bf16 %v3851, %v3850
  %v3874 = vpack.c.bf16 %v3853, %v3852
  %v3875 = vpack.c.bf16 %v3855, %v3854
  %v3876 = vpack.c.bf16 %v3857, %v3856
  %v3877 = vpack.c.bf16 %v3859, %v3858
  %v3878 = vpack.c.bf16 %v3861, %v3860
  %v3879 = vpack.c.bf16 %v3863, %v3862
  %v3896 = vunpack.c.l.b16 %v3864
  %v3897 = vunpack.c.h.b16 %v3864
  %v3898 = vunpack.c.l.b16 %v3865
  %v3899 = vunpack.c.h.b16 %v3865
  %v3900 = vunpack.c.l.b16 %v3866
  %v3901 = vunpack.c.h.b16 %v3866
  %v3902 = vunpack.c.l.b16 %v3867
  %v3903 = vunpack.c.h.b16 %v3867
  %v3904 = vunpack.c.l.b16 %v3868
  %v3905 = vunpack.c.h.b16 %v3868
  %v3906 = vunpack.c.l.b16 %v3869
  %v3907 = vunpack.c.h.b16 %v3869
  %v3908 = vunpack.c.l.b16 %v3870
  %v3909 = vunpack.c.h.b16 %v3870
  %v3910 = vunpack.c.l.b16 %v3871
  %v3911 = vunpack.c.h.b16 %v3871
  %v3912 = vunpack.c.l.b16 %v3872
  %v3913 = vunpack.c.h.b16 %v3872
  %v3914 = vunpack.c.l.b16 %v3873
  %v3915 = vunpack.c.h.b16 %v3873
  %v3916 = vunpack.c.l.b16 %v3874
  %v3917 = vunpack.c.h.b16 %v3874
  %v3918 = vunpack.c.l.b16 %v3875
  %v3919 = vunpack.c.h.b16 %v3875
  %v3920 = vunpack.c.l.b16 %v3876
  %v3921 = vunpack.c.h.b16 %v3876
  %v3922 = vunpack.c.l.b16 %v3877
  %v3923 = vunpack.c.h.b16 %v3877
  %v3924 = vunpack.c.l.b16 %v3878
  %v3925 = vunpack.c.h.b16 %v3878
  %v3926 = vunpack.c.l.b16 %v3879
  %v3927 = vunpack.c.h.b16 %v3879
  %v3928 = vpack.c.b16 %v3896, %v3896
  %v3929 = vpack.c.b16 %v3897, %v3897
  %v3930 = vpack.c.b16 %v3898, %v3898
  %v3931 = vpack.c.b16 %v3899, %v3899
  %v3932 = vpack.c.b16 %v3900, %v3900
  %v3933 = vpack.c.b16 %v3901, %v3901
  %v3934 = vpack.c.b16 %v3902, %v3902
  %v3935 = vpack.c.b16 %v3903, %v3903
  %v3936 = vpack.c.b16 %v3904, %v3904
  %v3937 = vpack.c.b16 %v3905, %v3905
  %v3938 = vpack.c.b16 %v3906, %v3906
  %v3939 = vpack.c.b16 %v3907, %v3907
  %v3940 = vpack.c.b16 %v3908, %v3908
  %v3941 = vpack.c.b16 %v3909, %v3909
  %v3942 = vpack.c.b16 %v3910, %v3910
  %v3943 = vpack.c.b16 %v3911, %v3911
  %v3944 = vpack.c.b16 %v3912, %v3912
  %v3945 = vpack.c.b16 %v3913, %v3913
  %v3946 = vpack.c.b16 %v3914, %v3914
  %v3947 = vpack.c.b16 %v3915, %v3915
  %v3948 = vpack.c.b16 %v3916, %v3916
  %v3949 = vpack.c.b16 %v3917, %v3917
  %v3950 = vpack.c.b16 %v3918, %v3918
  %v3951 = vpack.c.b16 %v3919, %v3919
  %v3952 = vpack.c.b16 %v3920, %v3920
  %v3953 = vpack.c.b16 %v3921, %v3921
  %v3954 = vpack.c.b16 %v3922, %v3922
  %v3955 = vpack.c.b16 %v3923, %v3923
  %v3956 = vpack.c.b16 %v3924, %v3924
  %v3957 = vpack.c.b16 %v3925, %v3925
  %v3958 = vpack.c.b16 %v3926, %v3926
  %v3959 = vpack.c.b16 %v3927, %v3927
  %3992 = vst [vmem:[#allocation2 + $0x480] sm:$0xf] %v3928
  %3993 = vst [vmem:[#allocation2 + $0x484] sm:$0xf] %v3929
  %3994 = vst [vmem:[#allocation2 + $0x488] sm:$0xf] %v3930
  %3995 = vst [vmem:[#allocation2 + $0x48c] sm:$0xf] %v3931
  %3996 = vst [vmem:[#allocation2 + $0x490] sm:$0xf] %v3932
  %3997 = vst [vmem:[#allocation2 + $0x494] sm:$0xf] %v3933
  %3998 = vst [vmem:[#allocation2 + $0x498] sm:$0xf] %v3934
  %3999 = vst [vmem:[#allocation2 + $0x49c] sm:$0xf] %v3935
  %4000 = vst [vmem:[#allocation2 + $0x4a0] sm:$0xf] %v3936
  %4001 = vst [vmem:[#allocation2 + $0x4a4] sm:$0xf] %v3937
  %4002 = vst [vmem:[#allocation2 + $0x4a8] sm:$0xf] %v3938
  %4003 = vst [vmem:[#allocation2 + $0x4ac] sm:$0xf] %v3939
  %4004 = vst [vmem:[#allocation2 + $0x4b0] sm:$0xf] %v3940
  %4005 = vst [vmem:[#allocation2 + $0x4b4] sm:$0xf] %v3941
  %4006 = vst [vmem:[#allocation2 + $0x4b8] sm:$0xf] %v3942
  %4007 = vst [vmem:[#allocation2 + $0x4bc] sm:$0xf] %v3943
  %4008 = vst [vmem:[#allocation2 + $0x4c0] sm:$0xf] %v3944
  %4009 = vst [vmem:[#allocation2 + $0x4c4] sm:$0xf] %v3945
  %4010 = vst [vmem:[#allocation2 + $0x4c8] sm:$0xf] %v3946
  %4011 = vst [vmem:[#allocation2 + $0x4cc] sm:$0xf] %v3947
  %4012 = vst [vmem:[#allocation2 + $0x4d0] sm:$0xf] %v3948
  %4013 = vst [vmem:[#allocation2 + $0x4d4] sm:$0xf] %v3949
  %4014 = vst [vmem:[#allocation2 + $0x4d8] sm:$0xf] %v3950
  %4015 = vst [vmem:[#allocation2 + $0x4dc] sm:$0xf] %v3951
  %4016 = vst [vmem:[#allocation2 + $0x4e0] sm:$0xf] %v3952
  %4017 = vst [vmem:[#allocation2 + $0x4e4] sm:$0xf] %v3953
  %4018 = vst [vmem:[#allocation2 + $0x4e8] sm:$0xf] %v3954
  %4019 = vst [vmem:[#allocation2 + $0x4ec] sm:$0xf] %v3955
  %4020 = vst [vmem:[#allocation2 + $0x4f0] sm:$0xf] %v3956
  %4021 = vst [vmem:[#allocation2 + $0x4f4] sm:$0xf] %v3957
  %4022 = vst [vmem:[#allocation2 + $0x4f8] sm:$0xf] %v3958
  %4023 = vst [vmem:[#allocation2 + $0x4fc] sm:$0xf] %v3959
  %v4024 = vld [vmem:[%s0 + $0x120] sm:$0xf]
  %v4025 = vld [vmem:[%s0 + $0x124] sm:$0xf]
  %v4026 = vld [vmem:[%s0 + $0x128] sm:$0xf]
  %v4027 = vld [vmem:[%s0 + $0x12c] sm:$0xf]
  %v4028 = vld [vmem:[%s0 + $0x130] sm:$0xf]
  %v4029 = vld [vmem:[%s0 + $0x134] sm:$0xf]
  %v4030 = vld [vmem:[%s0 + $0x138] sm:$0xf]
  %v4031 = vld [vmem:[%s0 + $0x13c] sm:$0xf]
  %v4032 = vld [vmem:[%s0 + $0x140] sm:$0xf]
  %v4033 = vld [vmem:[%s0 + $0x144] sm:$0xf]
  %v4034 = vld [vmem:[%s0 + $0x148] sm:$0xf]
  %v4035 = vld [vmem:[%s0 + $0x14c] sm:$0xf]
  %v4048 = vunpack.c.l.b16 %v4024
  %v4049 = vunpack.c.l.b16 %v4025
  %v4050 = vunpack.c.l.b16 %v4026
  %v4051 = vunpack.c.l.b16 %v4027
  %v4052 = vunpack.c.l.b16 %v4028
  %v4053 = vunpack.c.l.b16 %v4029
  %v4054 = vunpack.c.l.b16 %v4030
  %v4055 = vunpack.c.l.b16 %v4031
  %v4056 = vunpack.c.l.b16 %v4032
  %v4057 = vunpack.c.l.b16 %v4033
  %v4058 = vunpack.c.l.b16 %v4034
  %v4059 = vunpack.c.l.b16 %v4035
  %v4060 = vpack.c.b16 %v4049, %v4048
  %v4061 = vpack.c.b16 %v4051, %v4050
  %v4062 = vpack.c.b16 %v4053, %v4052
  %v4063 = vpack.c.b16 %v4055, %v4054
  %v4064 = vpack.c.b16 %v4057, %v4056
  %v4065 = vpack.c.b16 %v4059, %v4058
  %4072 = vmatprep.subr.bf16.mxu0 0
  %4073 = vmatpush1.bf16.msra.mxu0 0
  %4074 = vmatprep.subr.bf16.mxu0 0
  %4075 = vmatpush1.bf16.msra.mxu0 0
  %4076 = vmatprep.subr.bf16.mxu0 0
  %4077 = vmatpush1.bf16.msra.mxu0 %v4065
  %4078 = vmatprep.subr.bf16.mxu0 0
  %4079 = vmatpush1.bf16.msra.mxu0 %v4064
  %4080 = vmatprep.subr.bf16.mxu0 0
  %4081 = vmatpush1.bf16.msra.mxu0 %v4063
  %4082 = vmatprep.subr.bf16.mxu0 0
  %4083 = vmatpush1.bf16.msra.mxu0 %v4062
  %4084 = vmatprep.subr.bf16.mxu0 0
  %4085 = vmatpush1.bf16.msra.mxu0 %v4061
  %4086 = vmatprep.subr.bf16.mxu0 0
  %4087 = vmatpush1.bf16.msra.mxu0 %v4060
  %4088 = vmatprep.subr.bf16.mxu0 0
  %4089 = vmatpush2.bf16.msra.mxu0 0
  %4090 = vmatprep.subr.bf16.mxu0 0
  %4091 = vmatpush2.bf16.msra.mxu0 0
  %4092 = vmatprep.subr.bf16.mxu0 0
  %4093 = vmatpush2.bf16.msra.mxu0 0
  %4094 = vmatprep.subr.bf16.mxu0 0
  %4095 = vmatpush2.bf16.msra.mxu0 0
  %4096 = vmatprep.subr.bf16.mxu0 0
  %4097 = vmatpush2.bf16.msra.mxu0 0
  %4098 = vmatprep.subr.bf16.mxu0 0
  %4099 = vmatpush2.bf16.msra.mxu0 0
  %4100 = vmatprep.subr.bf16.mxu0 0
  %4101 = vmatpush2.bf16.msra.mxu0 0
  %4102 = vmatprep.subr.bf16.mxu0 0
  %4103 = vmatpush2.bf16.msra.mxu0 0
  %4104 = vmatprep.mubr.bf16.mxu0 0
  %4105 = vmatmul.mubr.bf16.gmra.mxu0 %v416
  %v4106 = vpop.f32.mrf.mxu0
  %v4107 = vadd.f32 %v141, %v4106
  %v4108 = vpop.f32.mrf.mxu0
  %v4109 = vpop.f32.mrf.mxu0
  %v4110 = vadd.f32 %v146, %v4109
  %v4111 = vpop.f32.mrf.mxu0
  %4112 = vmatprep.mubr.bf16.mxu0 0
  %4113 = vmatmul.mubr.bf16.gmra.mxu0 %v419
  %v4114 = vpop.f32.mrf.mxu0
  %v4115 = vadd.f32 %v151, %v4114
  %v4116 = vpop.f32.mrf.mxu0
  %v4117 = vpop.f32.mrf.mxu0
  %v4118 = vadd.f32 %v156, %v4117
  %v4119 = vpop.f32.mrf.mxu0
  %4120 = vmatprep.mubr.bf16.mxu0 0
  %4121 = vmatmul.mubr.bf16.gmra.mxu0 %v422
  %v4122 = vpop.f32.mrf.mxu0
  %v4123 = vadd.f32 %v161, %v4122
  %v4124 = vpop.f32.mrf.mxu0
  %v4125 = vpop.f32.mrf.mxu0
  %v4126 = vadd.f32 %v166, %v4125
  %v4127 = vpop.f32.mrf.mxu0
  %4128 = vmatprep.mubr.bf16.mxu0 0
  %4129 = vmatmul.mubr.bf16.gmra.mxu0 %v425
  %v4130 = vpop.f32.mrf.mxu0
  %v4131 = vadd.f32 %v171, %v4130
  %v4132 = vpop.f32.mrf.mxu0
  %v4133 = vpop.f32.mrf.mxu0
  %v4134 = vadd.f32 %v176, %v4133
  %v4135 = vpop.f32.mrf.mxu0
  %4136 = vmatprep.mubr.bf16.mxu0 0
  %4137 = vmatmul.mubr.bf16.gmra.mxu0 %v428
  %v4138 = vpop.f32.mrf.mxu0
  %v4139 = vadd.f32 %v181, %v4138
  %v4140 = vpop.f32.mrf.mxu0
  %v4141 = vpop.f32.mrf.mxu0
  %v4142 = vadd.f32 %v186, %v4141
  %v4143 = vpop.f32.mrf.mxu0
  %4144 = vmatprep.mubr.bf16.mxu0 0
  %4145 = vmatmul.mubr.bf16.gmra.mxu0 %v431
  %v4146 = vpop.f32.mrf.mxu0
  %v4147 = vadd.f32 %v191, %v4146
  %v4148 = vpop.f32.mrf.mxu0
  %v4149 = vpop.f32.mrf.mxu0
  %v4150 = vadd.f32 %v196, %v4149
  %v4151 = vpop.f32.mrf.mxu0
  %4152 = vmatprep.mubr.bf16.mxu0 0
  %4153 = vmatmul.mubr.bf16.gmra.mxu0 %v434
  %v4154 = vpop.f32.mrf.mxu0
  %v4155 = vadd.f32 %v201, %v4154
  %v4156 = vpop.f32.mrf.mxu0
  %v4157 = vpop.f32.mrf.mxu0
  %v4158 = vadd.f32 %v206, %v4157
  %v4159 = vpop.f32.mrf.mxu0
  %4160 = vmatprep.mubr.bf16.mxu0 0
  %4161 = vmatmul.mubr.bf16.gmra.mxu0 %v437
  %v4162 = vpop.f32.mrf.mxu0
  %v4163 = vadd.f32 %v211, %v4162
  %v4164 = vpop.f32.mrf.mxu0
  %v4165 = vpop.f32.mrf.mxu0
  %v4166 = vadd.f32 %v216, %v4165
  %v4167 = vpop.f32.mrf.mxu0
  %4168 = vmatprep.mubr.bf16.mxu0 0
  %4169 = vmatmul.mubr.bf16.gmra.mxu0 %v440
  %v4170 = vpop.f32.mrf.mxu0
  %v4171 = vadd.f32 %v221, %v4170
  %v4172 = vpop.f32.mrf.mxu0
  %v4173 = vpop.f32.mrf.mxu0
  %v4174 = vadd.f32 %v226, %v4173
  %v4175 = vpop.f32.mrf.mxu0
  %4176 = vmatprep.mubr.bf16.mxu0 0
  %4177 = vmatmul.mubr.bf16.gmra.mxu0 %v443
  %v4178 = vpop.f32.mrf.mxu0
  %v4179 = vadd.f32 %v231, %v4178
  %v4180 = vpop.f32.mrf.mxu0
  %v4181 = vpop.f32.mrf.mxu0
  %v4182 = vadd.f32 %v236, %v4181
  %v4183 = vpop.f32.mrf.mxu0
  %4184 = vmatprep.mubr.bf16.mxu0 0
  %4185 = vmatmul.mubr.bf16.gmra.mxu0 %v446
  %v4186 = vpop.f32.mrf.mxu0
  %v4187 = vadd.f32 %v241, %v4186
  %v4188 = vpop.f32.mrf.mxu0
  %v4189 = vpop.f32.mrf.mxu0
  %v4190 = vadd.f32 %v246, %v4189
  %v4191 = vpop.f32.mrf.mxu0
  %4192 = vmatprep.mubr.bf16.mxu0 0
  %4193 = vmatmul.mubr.bf16.gmra.mxu0 %v449
  %v4194 = vpop.f32.mrf.mxu0
  %v4195 = vadd.f32 %v251, %v4194
  %v4196 = vpop.f32.mrf.mxu0
  %v4197 = vpop.f32.mrf.mxu0
  %v4198 = vadd.f32 %v256, %v4197
  %v4199 = vpop.f32.mrf.mxu0
  %4200 = vmatprep.mubr.bf16.mxu0 0
  %4201 = vmatmul.mubr.bf16.gmra.mxu0 %v452
  %v4202 = vpop.f32.mrf.mxu0
  %v4203 = vadd.f32 %v261, %v4202
  %v4204 = vpop.f32.mrf.mxu0
  %v4205 = vpop.f32.mrf.mxu0
  %v4206 = vadd.f32 %v266, %v4205
  %v4207 = vpop.f32.mrf.mxu0
  %4208 = vmatprep.mubr.bf16.mxu0 0
  %4209 = vmatmul.mubr.bf16.gmra.mxu0 %v455
  %v4210 = vpop.f32.mrf.mxu0
  %v4211 = vadd.f32 %v271, %v4210
  %v4212 = vpop.f32.mrf.mxu0
  %v4213 = vpop.f32.mrf.mxu0
  %v4214 = vadd.f32 %v276, %v4213
  %v4215 = vpop.f32.mrf.mxu0
  %4216 = vmatprep.mubr.bf16.mxu0 0
  %4217 = vmatmul.mubr.bf16.gmra.mxu0 %v458
  %v4218 = vpop.f32.mrf.mxu0
  %v4219 = vadd.f32 %v281, %v4218
  %v4220 = vpop.f32.mrf.mxu0
  %v4221 = vpop.f32.mrf.mxu0
  %v4222 = vadd.f32 %v286, %v4221
  %v4223 = vpop.f32.mrf.mxu0
  %4224 = vmatprep.mubr.bf16.mxu0 0
  %4225 = vmatmul.mubr.bf16.gmra.mxu0 %v461
  %v4226 = vpop.f32.mrf.mxu0
  %v4227 = vadd.f32 %v291, %v4226
  %v4228 = vpop.f32.mrf.mxu0
  %v4229 = vpop.f32.mrf.mxu0
  %v4230 = vadd.f32 %v296, %v4229
  %v4231 = vpop.f32.mrf.mxu0
  %4232 = vdwg.mxu0
  %v4233 = vmax.f32 %v4107, 0.0
  %v4234 = vmax.f32 %v4110, 0.0
  %v4235 = vmax.f32 %v4115, 0.0
  %v4236 = vmax.f32 %v4118, 0.0
  %v4237 = vmax.f32 %v4123, 0.0
  %v4238 = vmax.f32 %v4126, 0.0
  %v4239 = vmax.f32 %v4131, 0.0
  %v4240 = vmax.f32 %v4134, 0.0
  %v4241 = vmax.f32 %v4139, 0.0
  %v4242 = vmax.f32 %v4142, 0.0
  %v4243 = vmax.f32 %v4147, 0.0
  %v4244 = vmax.f32 %v4150, 0.0
  %v4245 = vmax.f32 %v4155, 0.0
  %v4246 = vmax.f32 %v4158, 0.0
  %v4247 = vmax.f32 %v4163, 0.0
  %v4248 = vmax.f32 %v4166, 0.0
  %v4249 = vmax.f32 %v4171, 0.0
  %v4250 = vmax.f32 %v4174, 0.0
  %v4251 = vmax.f32 %v4179, 0.0
  %v4252 = vmax.f32 %v4182, 0.0
  %v4253 = vmax.f32 %v4187, 0.0
  %v4254 = vmax.f32 %v4190, 0.0
  %v4255 = vmax.f32 %v4195, 0.0
  %v4256 = vmax.f32 %v4198, 0.0
  %v4257 = vmax.f32 %v4203, 0.0
  %v4258 = vmax.f32 %v4206, 0.0
  %v4259 = vmax.f32 %v4211, 0.0
  %v4260 = vmax.f32 %v4214, 0.0
  %v4261 = vmax.f32 %v4219, 0.0
  %v4262 = vmax.f32 %v4222, 0.0
  %v4263 = vmax.f32 %v4227, 0.0
  %v4264 = vmax.f32 %v4230, 0.0
  %v4265 = vpack.c.bf16 %v4234, %v4233
  %v4266 = vpack.c.bf16 %v4236, %v4235
  %v4267 = vpack.c.bf16 %v4238, %v4237
  %v4268 = vpack.c.bf16 %v4240, %v4239
  %v4269 = vpack.c.bf16 %v4242, %v4241
  %v4270 = vpack.c.bf16 %v4244, %v4243
  %v4271 = vpack.c.bf16 %v4246, %v4245
  %v4272 = vpack.c.bf16 %v4248, %v4247
  %v4273 = vpack.c.bf16 %v4250, %v4249
  %v4274 = vpack.c.bf16 %v4252, %v4251
  %v4275 = vpack.c.bf16 %v4254, %v4253
  %v4276 = vpack.c.bf16 %v4256, %v4255
  %v4277 = vpack.c.bf16 %v4258, %v4257
  %v4278 = vpack.c.bf16 %v4260, %v4259
  %v4279 = vpack.c.bf16 %v4262, %v4261
  %v4280 = vpack.c.bf16 %v4264, %v4263
  %v4297 = vunpack.c.l.b16 %v4265
  %v4298 = vunpack.c.h.b16 %v4265
  %v4299 = vunpack.c.l.b16 %v4266
  %v4300 = vunpack.c.h.b16 %v4266
  %v4301 = vunpack.c.l.b16 %v4267
  %v4302 = vunpack.c.h.b16 %v4267
  %v4303 = vunpack.c.l.b16 %v4268
  %v4304 = vunpack.c.h.b16 %v4268
  %v4305 = vunpack.c.l.b16 %v4269
  %v4306 = vunpack.c.h.b16 %v4269
  %v4307 = vunpack.c.l.b16 %v4270
  %v4308 = vunpack.c.h.b16 %v4270
  %v4309 = vunpack.c.l.b16 %v4271
  %v4310 = vunpack.c.h.b16 %v4271
  %v4311 = vunpack.c.l.b16 %v4272
  %v4312 = vunpack.c.h.b16 %v4272
  %v4313 = vunpack.c.l.b16 %v4273
  %v4314 = vunpack.c.h.b16 %v4273
  %v4315 = vunpack.c.l.b16 %v4274
  %v4316 = vunpack.c.h.b16 %v4274
  %v4317 = vunpack.c.l.b16 %v4275
  %v4318 = vunpack.c.h.b16 %v4275
  %v4319 = vunpack.c.l.b16 %v4276
  %v4320 = vunpack.c.h.b16 %v4276
  %v4321 = vunpack.c.l.b16 %v4277
  %v4322 = vunpack.c.h.b16 %v4277
  %v4323 = vunpack.c.l.b16 %v4278
  %v4324 = vunpack.c.h.b16 %v4278
  %v4325 = vunpack.c.l.b16 %v4279
  %v4326 = vunpack.c.h.b16 %v4279
  %v4327 = vunpack.c.l.b16 %v4280
  %v4328 = vunpack.c.h.b16 %v4280
  %v4329 = vpack.c.b16 %v4297, %v4297
  %v4330 = vpack.c.b16 %v4298, %v4298
  %v4331 = vpack.c.b16 %v4299, %v4299
  %v4332 = vpack.c.b16 %v4300, %v4300
  %v4333 = vpack.c.b16 %v4301, %v4301
  %v4334 = vpack.c.b16 %v4302, %v4302
  %v4335 = vpack.c.b16 %v4303, %v4303
  %v4336 = vpack.c.b16 %v4304, %v4304
  %v4337 = vpack.c.b16 %v4305, %v4305
  %v4338 = vpack.c.b16 %v4306, %v4306
  %v4339 = vpack.c.b16 %v4307, %v4307
  %v4340 = vpack.c.b16 %v4308, %v4308
  %v4341 = vpack.c.b16 %v4309, %v4309
  %v4342 = vpack.c.b16 %v4310, %v4310
  %v4343 = vpack.c.b16 %v4311, %v4311
  %v4344 = vpack.c.b16 %v4312, %v4312
  %v4345 = vpack.c.b16 %v4313, %v4313
  %v4346 = vpack.c.b16 %v4314, %v4314
  %v4347 = vpack.c.b16 %v4315, %v4315
  %v4348 = vpack.c.b16 %v4316, %v4316
  %v4349 = vpack.c.b16 %v4317, %v4317
  %v4350 = vpack.c.b16 %v4318, %v4318
  %v4351 = vpack.c.b16 %v4319, %v4319
  %v4352 = vpack.c.b16 %v4320, %v4320
  %v4353 = vpack.c.b16 %v4321, %v4321
  %v4354 = vpack.c.b16 %v4322, %v4322
  %v4355 = vpack.c.b16 %v4323, %v4323
  %v4356 = vpack.c.b16 %v4324, %v4324
  %v4357 = vpack.c.b16 %v4325, %v4325
  %v4358 = vpack.c.b16 %v4326, %v4326
  %v4359 = vpack.c.b16 %v4327, %v4327
  %v4360 = vpack.c.b16 %v4328, %v4328
  %4393 = vst [vmem:[#allocation2 + $0x500] sm:$0xf] %v4329
  %4394 = vst [vmem:[#allocation2 + $0x504] sm:$0xf] %v4330
  %4395 = vst [vmem:[#allocation2 + $0x508] sm:$0xf] %v4331
  %4396 = vst [vmem:[#allocation2 + $0x50c] sm:$0xf] %v4332
  %4397 = vst [vmem:[#allocation2 + $0x510] sm:$0xf] %v4333
  %4398 = vst [vmem:[#allocation2 + $0x514] sm:$0xf] %v4334
  %4399 = vst [vmem:[#allocation2 + $0x518] sm:$0xf] %v4335
  %4400 = vst [vmem:[#allocation2 + $0x51c] sm:$0xf] %v4336
  %4401 = vst [vmem:[#allocation2 + $0x520] sm:$0xf] %v4337
  %4402 = vst [vmem:[#allocation2 + $0x524] sm:$0xf] %v4338
  %4403 = vst [vmem:[#allocation2 + $0x528] sm:$0xf] %v4339
  %4404 = vst [vmem:[#allocation2 + $0x52c] sm:$0xf] %v4340
  %4405 = vst [vmem:[#allocation2 + $0x530] sm:$0xf] %v4341
  %4406 = vst [vmem:[#allocation2 + $0x534] sm:$0xf] %v4342
  %4407 = vst [vmem:[#allocation2 + $0x538] sm:$0xf] %v4343
  %4408 = vst [vmem:[#allocation2 + $0x53c] sm:$0xf] %v4344
  %4409 = vst [vmem:[#allocation2 + $0x540] sm:$0xf] %v4345
  %4410 = vst [vmem:[#allocation2 + $0x544] sm:$0xf] %v4346
  %4411 = vst [vmem:[#allocation2 + $0x548] sm:$0xf] %v4347
  %4412 = vst [vmem:[#allocation2 + $0x54c] sm:$0xf] %v4348
  %4413 = vst [vmem:[#allocation2 + $0x550] sm:$0xf] %v4349
  %4414 = vst [vmem:[#allocation2 + $0x554] sm:$0xf] %v4350
  %4415 = vst [vmem:[#allocation2 + $0x558] sm:$0xf] %v4351
  %4416 = vst [vmem:[#allocation2 + $0x55c] sm:$0xf] %v4352
  %4417 = vst [vmem:[#allocation2 + $0x560] sm:$0xf] %v4353
  %4418 = vst [vmem:[#allocation2 + $0x564] sm:$0xf] %v4354
  %4419 = vst [vmem:[#allocation2 + $0x568] sm:$0xf] %v4355
  %4420 = vst [vmem:[#allocation2 + $0x56c] sm:$0xf] %v4356
  %4421 = vst [vmem:[#allocation2 + $0x570] sm:$0xf] %v4357
  %4422 = vst [vmem:[#allocation2 + $0x574] sm:$0xf] %v4358
  %4423 = vst [vmem:[#allocation2 + $0x578] sm:$0xf] %v4359
  %4424 = vst [vmem:[#allocation2 + $0x57c] sm:$0xf] %v4360
  %v4425 = vld [vmem:[%s0 + $0x140] sm:$0xf]
  %v4426 = vld [vmem:[%s0 + $0x144] sm:$0xf]
  %v4427 = vld [vmem:[%s0 + $0x148] sm:$0xf]
  %v4428 = vld [vmem:[%s0 + $0x14c] sm:$0xf]
  %v4429 = vld [vmem:[%s0 + $0x150] sm:$0xf]
  %v4430 = vld [vmem:[%s0 + $0x154] sm:$0xf]
  %v4431 = vld [vmem:[%s0 + $0x158] sm:$0xf]
  %v4432 = vld [vmem:[%s0 + $0x15c] sm:$0xf]
  %v4433 = vld [vmem:[%s0 + $0x160] sm:$0xf]
  %v4434 = vld [vmem:[%s0 + $0x164] sm:$0xf]
  %v4435 = vld [vmem:[%s0 + $0x168] sm:$0xf]
  %v4436 = vld [vmem:[%s0 + $0x16c] sm:$0xf]
  %v4449 = vunpack.c.l.b16 %v4425
  %v4450 = vunpack.c.l.b16 %v4426
  %v4451 = vunpack.c.l.b16 %v4427
  %v4452 = vunpack.c.l.b16 %v4428
  %v4453 = vunpack.c.l.b16 %v4429
  %v4454 = vunpack.c.l.b16 %v4430
  %v4455 = vunpack.c.l.b16 %v4431
  %v4456 = vunpack.c.l.b16 %v4432
  %v4457 = vunpack.c.l.b16 %v4433
  %v4458 = vunpack.c.l.b16 %v4434
  %v4459 = vunpack.c.l.b16 %v4435
  %v4460 = vunpack.c.l.b16 %v4436
  %v4461 = vpack.c.b16 %v4450, %v4449
  %v4462 = vpack.c.b16 %v4452, %v4451
  %v4463 = vpack.c.b16 %v4454, %v4453
  %v4464 = vpack.c.b16 %v4456, %v4455
  %v4465 = vpack.c.b16 %v4458, %v4457
  %v4466 = vpack.c.b16 %v4460, %v4459
  %4473 = vmatprep.subr.bf16.mxu0 0
  %4474 = vmatpush1.bf16.msra.mxu0 0
  %4475 = vmatprep.subr.bf16.mxu0 0
  %4476 = vmatpush1.bf16.msra.mxu0 0
  %4477 = vmatprep.subr.bf16.mxu0 0
  %4478 = vmatpush1.bf16.msra.mxu0 %v4466
  %4479 = vmatprep.subr.bf16.mxu0 0
  %4480 = vmatpush1.bf16.msra.mxu0 %v4465
  %4481 = vmatprep.subr.bf16.mxu0 0
  %4482 = vmatpush1.bf16.msra.mxu0 %v4464
  %4483 = vmatprep.subr.bf16.mxu0 0
  %4484 = vmatpush1.bf16.msra.mxu0 %v4463
  %4485 = vmatprep.subr.bf16.mxu0 0
  %4486 = vmatpush1.bf16.msra.mxu0 %v4462
  %4487 = vmatprep.subr.bf16.mxu0 0
  %4488 = vmatpush1.bf16.msra.mxu0 %v4461
  %4489 = vmatprep.subr.bf16.mxu0 0
  %4490 = vmatpush2.bf16.msra.mxu0 0
  %4491 = vmatprep.subr.bf16.mxu0 0
  %4492 = vmatpush2.bf16.msra.mxu0 0
  %4493 = vmatprep.subr.bf16.mxu0 0
  %4494 = vmatpush2.bf16.msra.mxu0 0
  %4495 = vmatprep.subr.bf16.mxu0 0
  %4496 = vmatpush2.bf16.msra.mxu0 0
  %4497 = vmatprep.subr.bf16.mxu0 0
  %4498 = vmatpush2.bf16.msra.mxu0 0
  %4499 = vmatprep.subr.bf16.mxu0 0
  %4500 = vmatpush2.bf16.msra.mxu0 0
  %4501 = vmatprep.subr.bf16.mxu0 0
  %4502 = vmatpush2.bf16.msra.mxu0 0
  %4503 = vmatprep.subr.bf16.mxu0 0
  %4504 = vmatpush2.bf16.msra.mxu0 0
  %4505 = vmatprep.mubr.bf16.mxu0 0
  %4506 = vmatmul.mubr.bf16.gmra.mxu0 %v416
  %v4507 = vpop.f32.mrf.mxu0
  %v4508 = vadd.f32 %v141, %v4507
  %v4509 = vpop.f32.mrf.mxu0
  %v4510 = vpop.f32.mrf.mxu0
  %v4511 = vadd.f32 %v146, %v4510
  %v4512 = vpop.f32.mrf.mxu0
  %4513 = vmatprep.mubr.bf16.mxu0 0
  %4514 = vmatmul.mubr.bf16.gmra.mxu0 %v419
  %v4515 = vpop.f32.mrf.mxu0
  %v4516 = vadd.f32 %v151, %v4515
  %v4517 = vpop.f32.mrf.mxu0
  %v4518 = vpop.f32.mrf.mxu0
  %v4519 = vadd.f32 %v156, %v4518
  %v4520 = vpop.f32.mrf.mxu0
  %4521 = vmatprep.mubr.bf16.mxu0 0
  %4522 = vmatmul.mubr.bf16.gmra.mxu0 %v422
  %v4523 = vpop.f32.mrf.mxu0
  %v4524 = vadd.f32 %v161, %v4523
  %v4525 = vpop.f32.mrf.mxu0
  %v4526 = vpop.f32.mrf.mxu0
  %v4527 = vadd.f32 %v166, %v4526
  %v4528 = vpop.f32.mrf.mxu0
  %4529 = vmatprep.mubr.bf16.mxu0 0
  %4530 = vmatmul.mubr.bf16.gmra.mxu0 %v425
  %v4531 = vpop.f32.mrf.mxu0
  %v4532 = vadd.f32 %v171, %v4531
  %v4533 = vpop.f32.mrf.mxu0
  %v4534 = vpop.f32.mrf.mxu0
  %v4535 = vadd.f32 %v176, %v4534
  %v4536 = vpop.f32.mrf.mxu0
  %4537 = vmatprep.mubr.bf16.mxu0 0
  %4538 = vmatmul.mubr.bf16.gmra.mxu0 %v428
  %v4539 = vpop.f32.mrf.mxu0
  %v4540 = vadd.f32 %v181, %v4539
  %v4541 = vpop.f32.mrf.mxu0
  %v4542 = vpop.f32.mrf.mxu0
  %v4543 = vadd.f32 %v186, %v4542
  %v4544 = vpop.f32.mrf.mxu0
  %4545 = vmatprep.mubr.bf16.mxu0 0
  %4546 = vmatmul.mubr.bf16.gmra.mxu0 %v431
  %v4547 = vpop.f32.mrf.mxu0
  %v4548 = vadd.f32 %v191, %v4547
  %v4549 = vpop.f32.mrf.mxu0
  %v4550 = vpop.f32.mrf.mxu0
  %v4551 = vadd.f32 %v196, %v4550
  %v4552 = vpop.f32.mrf.mxu0
  %4553 = vmatprep.mubr.bf16.mxu0 0
  %4554 = vmatmul.mubr.bf16.gmra.mxu0 %v434
  %v4555 = vpop.f32.mrf.mxu0
  %v4556 = vadd.f32 %v201, %v4555
  %v4557 = vpop.f32.mrf.mxu0
  %v4558 = vpop.f32.mrf.mxu0
  %v4559 = vadd.f32 %v206, %v4558
  %v4560 = vpop.f32.mrf.mxu0
  %4561 = vmatprep.mubr.bf16.mxu0 0
  %4562 = vmatmul.mubr.bf16.gmra.mxu0 %v437
  %v4563 = vpop.f32.mrf.mxu0
  %v4564 = vadd.f32 %v211, %v4563
  %v4565 = vpop.f32.mrf.mxu0
  %v4566 = vpop.f32.mrf.mxu0
  %v4567 = vadd.f32 %v216, %v4566
  %v4568 = vpop.f32.mrf.mxu0
  %4569 = vmatprep.mubr.bf16.mxu0 0
  %4570 = vmatmul.mubr.bf16.gmra.mxu0 %v440
  %v4571 = vpop.f32.mrf.mxu0
  %v4572 = vadd.f32 %v221, %v4571
  %v4573 = vpop.f32.mrf.mxu0
  %v4574 = vpop.f32.mrf.mxu0
  %v4575 = vadd.f32 %v226, %v4574
  %v4576 = vpop.f32.mrf.mxu0
  %4577 = vmatprep.mubr.bf16.mxu0 0
  %4578 = vmatmul.mubr.bf16.gmra.mxu0 %v443
  %v4579 = vpop.f32.mrf.mxu0
  %v4580 = vadd.f32 %v231, %v4579
  %v4581 = vpop.f32.mrf.mxu0
  %v4582 = vpop.f32.mrf.mxu0
  %v4583 = vadd.f32 %v236, %v4582
  %v4584 = vpop.f32.mrf.mxu0
  %4585 = vmatprep.mubr.bf16.mxu0 0
  %4586 = vmatmul.mubr.bf16.gmra.mxu0 %v446
  %v4587 = vpop.f32.mrf.mxu0
  %v4588 = vadd.f32 %v241, %v4587
  %v4589 = vpop.f32.mrf.mxu0
  %v4590 = vpop.f32.mrf.mxu0
  %v4591 = vadd.f32 %v246, %v4590
  %v4592 = vpop.f32.mrf.mxu0
  %4593 = vmatprep.mubr.bf16.mxu0 0
  %4594 = vmatmul.mubr.bf16.gmra.mxu0 %v449
  %v4595 = vpop.f32.mrf.mxu0
  %v4596 = vadd.f32 %v251, %v4595
  %v4597 = vpop.f32.mrf.mxu0
  %v4598 = vpop.f32.mrf.mxu0
  %v4599 = vadd.f32 %v256, %v4598
  %v4600 = vpop.f32.mrf.mxu0
  %4601 = vmatprep.mubr.bf16.mxu0 0
  %4602 = vmatmul.mubr.bf16.gmra.mxu0 %v452
  %v4603 = vpop.f32.mrf.mxu0
  %v4604 = vadd.f32 %v261, %v4603
  %v4605 = vpop.f32.mrf.mxu0
  %v4606 = vpop.f32.mrf.mxu0
  %v4607 = vadd.f32 %v266, %v4606
  %v4608 = vpop.f32.mrf.mxu0
  %4609 = vmatprep.mubr.bf16.mxu0 0
  %4610 = vmatmul.mubr.bf16.gmra.mxu0 %v455
  %v4611 = vpop.f32.mrf.mxu0
  %v4612 = vadd.f32 %v271, %v4611
  %v4613 = vpop.f32.mrf.mxu0
  %v4614 = vpop.f32.mrf.mxu0
  %v4615 = vadd.f32 %v276, %v4614
  %v4616 = vpop.f32.mrf.mxu0
  %4617 = vmatprep.mubr.bf16.mxu0 0
  %4618 = vmatmul.mubr.bf16.gmra.mxu0 %v458
  %v4619 = vpop.f32.mrf.mxu0
  %v4620 = vadd.f32 %v281, %v4619
  %v4621 = vpop.f32.mrf.mxu0
  %v4622 = vpop.f32.mrf.mxu0
  %v4623 = vadd.f32 %v286, %v4622
  %v4624 = vpop.f32.mrf.mxu0
  %4625 = vmatprep.mubr.bf16.mxu0 0
  %4626 = vmatmul.mubr.bf16.gmra.mxu0 %v461
  %v4627 = vpop.f32.mrf.mxu0
  %v4628 = vadd.f32 %v291, %v4627
  %v4629 = vpop.f32.mrf.mxu0
  %v4630 = vpop.f32.mrf.mxu0
  %v4631 = vadd.f32 %v296, %v4630
  %v4632 = vpop.f32.mrf.mxu0
  %4633 = vdwg.mxu0
  %v4634 = vmax.f32 %v4508, 0.0
  %v4635 = vmax.f32 %v4511, 0.0
  %v4636 = vmax.f32 %v4516, 0.0
  %v4637 = vmax.f32 %v4519, 0.0
  %v4638 = vmax.f32 %v4524, 0.0
  %v4639 = vmax.f32 %v4527, 0.0
  %v4640 = vmax.f32 %v4532, 0.0
  %v4641 = vmax.f32 %v4535, 0.0
  %v4642 = vmax.f32 %v4540, 0.0
  %v4643 = vmax.f32 %v4543, 0.0
  %v4644 = vmax.f32 %v4548, 0.0
  %v4645 = vmax.f32 %v4551, 0.0
  %v4646 = vmax.f32 %v4556, 0.0
  %v4647 = vmax.f32 %v4559, 0.0
  %v4648 = vmax.f32 %v4564, 0.0
  %v4649 = vmax.f32 %v4567, 0.0
  %v4650 = vmax.f32 %v4572, 0.0
  %v4651 = vmax.f32 %v4575, 0.0
  %v4652 = vmax.f32 %v4580, 0.0
  %v4653 = vmax.f32 %v4583, 0.0
  %v4654 = vmax.f32 %v4588, 0.0
  %v4655 = vmax.f32 %v4591, 0.0
  %v4656 = vmax.f32 %v4596, 0.0
  %v4657 = vmax.f32 %v4599, 0.0
  %v4658 = vmax.f32 %v4604, 0.0
  %v4659 = vmax.f32 %v4607, 0.0
  %v4660 = vmax.f32 %v4612, 0.0
  %v4661 = vmax.f32 %v4615, 0.0
  %v4662 = vmax.f32 %v4620, 0.0
  %v4663 = vmax.f32 %v4623, 0.0
  %v4664 = vmax.f32 %v4628, 0.0
  %v4665 = vmax.f32 %v4631, 0.0
  %v4666 = vpack.c.bf16 %v4635, %v4634
  %v4667 = vpack.c.bf16 %v4637, %v4636
  %v4668 = vpack.c.bf16 %v4639, %v4638
  %v4669 = vpack.c.bf16 %v4641, %v4640
  %v4670 = vpack.c.bf16 %v4643, %v4642
  %v4671 = vpack.c.bf16 %v4645, %v4644
  %v4672 = vpack.c.bf16 %v4647, %v4646
  %v4673 = vpack.c.bf16 %v4649, %v4648
  %v4674 = vpack.c.bf16 %v4651, %v4650
  %v4675 = vpack.c.bf16 %v4653, %v4652
  %v4676 = vpack.c.bf16 %v4655, %v4654
  %v4677 = vpack.c.bf16 %v4657, %v4656
  %v4678 = vpack.c.bf16 %v4659, %v4658
  %v4679 = vpack.c.bf16 %v4661, %v4660
  %v4680 = vpack.c.bf16 %v4663, %v4662
  %v4681 = vpack.c.bf16 %v4665, %v4664
  %v4698 = vunpack.c.l.b16 %v4666
  %v4699 = vunpack.c.h.b16 %v4666
  %v4700 = vunpack.c.l.b16 %v4667
  %v4701 = vunpack.c.h.b16 %v4667
  %v4702 = vunpack.c.l.b16 %v4668
  %v4703 = vunpack.c.h.b16 %v4668
  %v4704 = vunpack.c.l.b16 %v4669
  %v4705 = vunpack.c.h.b16 %v4669
  %v4706 = vunpack.c.l.b16 %v4670
  %v4707 = vunpack.c.h.b16 %v4670
  %v4708 = vunpack.c.l.b16 %v4671
  %v4709 = vunpack.c.h.b16 %v4671
  %v4710 = vunpack.c.l.b16 %v4672
  %v4711 = vunpack.c.h.b16 %v4672
  %v4712 = vunpack.c.l.b16 %v4673
  %v4713 = vunpack.c.h.b16 %v4673
  %v4714 = vunpack.c.l.b16 %v4674
  %v4715 = vunpack.c.h.b16 %v4674
  %v4716 = vunpack.c.l.b16 %v4675
  %v4717 = vunpack.c.h.b16 %v4675
  %v4718 = vunpack.c.l.b16 %v4676
  %v4719 = vunpack.c.h.b16 %v4676
  %v4720 = vunpack.c.l.b16 %v4677
  %v4721 = vunpack.c.h.b16 %v4677
  %v4722 = vunpack.c.l.b16 %v4678
  %v4723 = vunpack.c.h.b16 %v4678
  %v4724 = vunpack.c.l.b16 %v4679
  %v4725 = vunpack.c.h.b16 %v4679
  %v4726 = vunpack.c.l.b16 %v4680
  %v4727 = vunpack.c.h.b16 %v4680
  %v4728 = vunpack.c.l.b16 %v4681
  %v4729 = vunpack.c.h.b16 %v4681
  %v4730 = vpack.c.b16 %v4698, %v4698
  %v4731 = vpack.c.b16 %v4699, %v4699
  %v4732 = vpack.c.b16 %v4700, %v4700
  %v4733 = vpack.c.b16 %v4701, %v4701
  %v4734 = vpack.c.b16 %v4702, %v4702
  %v4735 = vpack.c.b16 %v4703, %v4703
  %v4736 = vpack.c.b16 %v4704, %v4704
  %v4737 = vpack.c.b16 %v4705, %v4705
  %v4738 = vpack.c.b16 %v4706, %v4706
  %v4739 = vpack.c.b16 %v4707, %v4707
  %v4740 = vpack.c.b16 %v4708, %v4708
  %v4741 = vpack.c.b16 %v4709, %v4709
  %v4742 = vpack.c.b16 %v4710, %v4710
  %v4743 = vpack.c.b16 %v4711, %v4711
  %v4744 = vpack.c.b16 %v4712, %v4712
  %v4745 = vpack.c.b16 %v4713, %v4713
  %v4746 = vpack.c.b16 %v4714, %v4714
  %v4747 = vpack.c.b16 %v4715, %v4715
  %v4748 = vpack.c.b16 %v4716, %v4716
  %v4749 = vpack.c.b16 %v4717, %v4717
  %v4750 = vpack.c.b16 %v4718, %v4718
  %v4751 = vpack.c.b16 %v4719, %v4719
  %v4752 = vpack.c.b16 %v4720, %v4720
  %v4753 = vpack.c.b16 %v4721, %v4721
  %v4754 = vpack.c.b16 %v4722, %v4722
  %v4755 = vpack.c.b16 %v4723, %v4723
  %v4756 = vpack.c.b16 %v4724, %v4724
  %v4757 = vpack.c.b16 %v4725, %v4725
  %v4758 = vpack.c.b16 %v4726, %v4726
  %v4759 = vpack.c.b16 %v4727, %v4727
  %v4760 = vpack.c.b16 %v4728, %v4728
  %v4761 = vpack.c.b16 %v4729, %v4729
  %4794 = vst [vmem:[#allocation2 + $0x580] sm:$0xf] %v4730
  %4795 = vst [vmem:[#allocation2 + $0x584] sm:$0xf] %v4731
  %4796 = vst [vmem:[#allocation2 + $0x588] sm:$0xf] %v4732
  %4797 = vst [vmem:[#allocation2 + $0x58c] sm:$0xf] %v4733
  %4798 = vst [vmem:[#allocation2 + $0x590] sm:$0xf] %v4734
  %4799 = vst [vmem:[#allocation2 + $0x594] sm:$0xf] %v4735
  %4800 = vst [vmem:[#allocation2 + $0x598] sm:$0xf] %v4736
  %4801 = vst [vmem:[#allocation2 + $0x59c] sm:$0xf] %v4737
  %4802 = vst [vmem:[#allocation2 + $0x5a0] sm:$0xf] %v4738
  %4803 = vst [vmem:[#allocation2 + $0x5a4] sm:$0xf] %v4739
  %4804 = vst [vmem:[#allocation2 + $0x5a8] sm:$0xf] %v4740
  %4805 = vst [vmem:[#allocation2 + $0x5ac] sm:$0xf] %v4741
  %4806 = vst [vmem:[#allocation2 + $0x5b0] sm:$0xf] %v4742
  %4807 = vst [vmem:[#allocation2 + $0x5b4] sm:$0xf] %v4743
  %4808 = vst [vmem:[#allocation2 + $0x5b8] sm:$0xf] %v4744
  %4809 = vst [vmem:[#allocation2 + $0x5bc] sm:$0xf] %v4745
  %4810 = vst [vmem:[#allocation2 + $0x5c0] sm:$0xf] %v4746
  %4811 = vst [vmem:[#allocation2 + $0x5c4] sm:$0xf] %v4747
  %4812 = vst [vmem:[#allocation2 + $0x5c8] sm:$0xf] %v4748
  %4813 = vst [vmem:[#allocation2 + $0x5cc] sm:$0xf] %v4749
  %4814 = vst [vmem:[#allocation2 + $0x5d0] sm:$0xf] %v4750
  %4815 = vst [vmem:[#allocation2 + $0x5d4] sm:$0xf] %v4751
  %4816 = vst [vmem:[#allocation2 + $0x5d8] sm:$0xf] %v4752
  %4817 = vst [vmem:[#allocation2 + $0x5dc] sm:$0xf] %v4753
  %4818 = vst [vmem:[#allocation2 + $0x5e0] sm:$0xf] %v4754
  %4819 = vst [vmem:[#allocation2 + $0x5e4] sm:$0xf] %v4755
  %4820 = vst [vmem:[#allocation2 + $0x5e8] sm:$0xf] %v4756
  %4821 = vst [vmem:[#allocation2 + $0x5ec] sm:$0xf] %v4757
  %4822 = vst [vmem:[#allocation2 + $0x5f0] sm:$0xf] %v4758
  %4823 = vst [vmem:[#allocation2 + $0x5f4] sm:$0xf] %v4759
  %4824 = vst [vmem:[#allocation2 + $0x5f8] sm:$0xf] %v4760
  %4825 = vst [vmem:[#allocation2 + $0x5fc] sm:$0xf] %v4761
  %v4826 = vld [vmem:[%s0 + $0x160] sm:$0xf]
  %v4827 = vld [vmem:[%s0 + $0x164] sm:$0xf]
  %v4828 = vld [vmem:[%s0 + $0x168] sm:$0xf]
  %v4829 = vld [vmem:[%s0 + $0x16c] sm:$0xf]
  %v4830 = vld [vmem:[%s0 + $0x170] sm:$0xf]
  %v4831 = vld [vmem:[%s0 + $0x174] sm:$0xf]
  %v4832 = vld [vmem:[%s0 + $0x178] sm:$0xf]
  %v4833 = vld [vmem:[%s0 + $0x17c] sm:$0xf]
  %v4834 = vld [vmem:[%s0 + $0x180] sm:$0xf]
  %v4835 = vld [vmem:[%s0 + $0x184] sm:$0xf]
  %v4836 = vld [vmem:[%s0 + $0x188] sm:$0xf]
  %v4837 = vld [vmem:[%s0 + $0x18c] sm:$0xf]
  %v4850 = vunpack.c.l.b16 %v4826
  %v4851 = vunpack.c.l.b16 %v4827
  %v4852 = vunpack.c.l.b16 %v4828
  %v4853 = vunpack.c.l.b16 %v4829
  %v4854 = vunpack.c.l.b16 %v4830
  %v4855 = vunpack.c.l.b16 %v4831
  %v4856 = vunpack.c.l.b16 %v4832
  %v4857 = vunpack.c.l.b16 %v4833
  %v4858 = vunpack.c.l.b16 %v4834
  %v4859 = vunpack.c.l.b16 %v4835
  %v4860 = vunpack.c.l.b16 %v4836
  %v4861 = vunpack.c.l.b16 %v4837
  %v4862 = vpack.c.b16 %v4851, %v4850
  %v4863 = vpack.c.b16 %v4853, %v4852
  %v4864 = vpack.c.b16 %v4855, %v4854
  %v4865 = vpack.c.b16 %v4857, %v4856
  %v4866 = vpack.c.b16 %v4859, %v4858
  %v4867 = vpack.c.b16 %v4861, %v4860
  %4874 = vmatprep.subr.bf16.mxu0 0
  %4875 = vmatpush1.bf16.msra.mxu0 0
  %4876 = vmatprep.subr.bf16.mxu0 0
  %4877 = vmatpush1.bf16.msra.mxu0 0
  %4878 = vmatprep.subr.bf16.mxu0 0
  %4879 = vmatpush1.bf16.msra.mxu0 %v4867
  %4880 = vmatprep.subr.bf16.mxu0 0
  %4881 = vmatpush1.bf16.msra.mxu0 %v4866
  %4882 = vmatprep.subr.bf16.mxu0 0
  %4883 = vmatpush1.bf16.msra.mxu0 %v4865
  %4884 = vmatprep.subr.bf16.mxu0 0
  %4885 = vmatpush1.bf16.msra.mxu0 %v4864
  %4886 = vmatprep.subr.bf16.mxu0 0
  %4887 = vmatpush1.bf16.msra.mxu0 %v4863
  %4888 = vmatprep.subr.bf16.mxu0 0
  %4889 = vmatpush1.bf16.msra.mxu0 %v4862
  %4890 = vmatprep.subr.bf16.mxu0 0
  %4891 = vmatpush2.bf16.msra.mxu0 0
  %4892 = vmatprep.subr.bf16.mxu0 0
  %4893 = vmatpush2.bf16.msra.mxu0 0
  %4894 = vmatprep.subr.bf16.mxu0 0
  %4895 = vmatpush2.bf16.msra.mxu0 0
  %4896 = vmatprep.subr.bf16.mxu0 0
  %4897 = vmatpush2.bf16.msra.mxu0 0
  %4898 = vmatprep.subr.bf16.mxu0 0
  %4899 = vmatpush2.bf16.msra.mxu0 0
  %4900 = vmatprep.subr.bf16.mxu0 0
  %4901 = vmatpush2.bf16.msra.mxu0 0
  %4902 = vmatprep.subr.bf16.mxu0 0
  %4903 = vmatpush2.bf16.msra.mxu0 0
  %4904 = vmatprep.subr.bf16.mxu0 0
  %4905 = vmatpush2.bf16.msra.mxu0 0
  %4906 = vmatprep.mubr.bf16.mxu0 0
  %4907 = vmatmul.mubr.bf16.gmra.mxu0 %v416
  %v4908 = vpop.f32.mrf.mxu0
  %v4909 = vadd.f32 %v141, %v4908
  %v4910 = vpop.f32.mrf.mxu0
  %v4911 = vpop.f32.mrf.mxu0
  %v4912 = vadd.f32 %v146, %v4911
  %v4913 = vpop.f32.mrf.mxu0
  %4914 = vmatprep.mubr.bf16.mxu0 0
  %4915 = vmatmul.mubr.bf16.gmra.mxu0 %v419
  %v4916 = vpop.f32.mrf.mxu0
  %v4917 = vadd.f32 %v151, %v4916
  %v4918 = vpop.f32.mrf.mxu0
  %v4919 = vpop.f32.mrf.mxu0
  %v4920 = vadd.f32 %v156, %v4919
  %v4921 = vpop.f32.mrf.mxu0
  %4922 = vmatprep.mubr.bf16.mxu0 0
  %4923 = vmatmul.mubr.bf16.gmra.mxu0 %v422
  %v4924 = vpop.f32.mrf.mxu0
  %v4925 = vadd.f32 %v161, %v4924
  %v4926 = vpop.f32.mrf.mxu0
  %v4927 = vpop.f32.mrf.mxu0
  %v4928 = vadd.f32 %v166, %v4927
  %v4929 = vpop.f32.mrf.mxu0
  %4930 = vmatprep.mubr.bf16.mxu0 0
  %4931 = vmatmul.mubr.bf16.gmra.mxu0 %v425
  %v4932 = vpop.f32.mrf.mxu0
  %v4933 = vadd.f32 %v171, %v4932
  %v4934 = vpop.f32.mrf.mxu0
  %v4935 = vpop.f32.mrf.mxu0
  %v4936 = vadd.f32 %v176, %v4935
  %v4937 = vpop.f32.mrf.mxu0
  %4938 = vmatprep.mubr.bf16.mxu0 0
  %4939 = vmatmul.mubr.bf16.gmra.mxu0 %v428
  %v4940 = vpop.f32.mrf.mxu0
  %v4941 = vadd.f32 %v181, %v4940
  %v4942 = vpop.f32.mrf.mxu0
  %v4943 = vpop.f32.mrf.mxu0
  %v4944 = vadd.f32 %v186, %v4943
  %v4945 = vpop.f32.mrf.mxu0
  %4946 = vmatprep.mubr.bf16.mxu0 0
  %4947 = vmatmul.mubr.bf16.gmra.mxu0 %v431
  %v4948 = vpop.f32.mrf.mxu0
  %v4949 = vadd.f32 %v191, %v4948
  %v4950 = vpop.f32.mrf.mxu0
  %v4951 = vpop.f32.mrf.mxu0
  %v4952 = vadd.f32 %v196, %v4951
  %v4953 = vpop.f32.mrf.mxu0
  %4954 = vmatprep.mubr.bf16.mxu0 0
  %4955 = vmatmul.mubr.bf16.gmra.mxu0 %v434
  %v4956 = vpop.f32.mrf.mxu0
  %v4957 = vadd.f32 %v201, %v4956
  %v4958 = vpop.f32.mrf.mxu0
  %v4959 = vpop.f32.mrf.mxu0
  %v4960 = vadd.f32 %v206, %v4959
  %v4961 = vpop.f32.mrf.mxu0
  %4962 = vmatprep.mubr.bf16.mxu0 0
  %4963 = vmatmul.mubr.bf16.gmra.mxu0 %v437
  %v4964 = vpop.f32.mrf.mxu0
  %v4965 = vadd.f32 %v211, %v4964
  %v4966 = vpop.f32.mrf.mxu0
  %v4967 = vpop.f32.mrf.mxu0
  %v4968 = vadd.f32 %v216, %v4967
  %v4969 = vpop.f32.mrf.mxu0
  %4970 = vmatprep.mubr.bf16.mxu0 0
  %4971 = vmatmul.mubr.bf16.gmra.mxu0 %v440
  %v4972 = vpop.f32.mrf.mxu0
  %v4973 = vadd.f32 %v221, %v4972
  %v4974 = vpop.f32.mrf.mxu0
  %v4975 = vpop.f32.mrf.mxu0
  %v4976 = vadd.f32 %v226, %v4975
  %v4977 = vpop.f32.mrf.mxu0
  %4978 = vmatprep.mubr.bf16.mxu0 0
  %4979 = vmatmul.mubr.bf16.gmra.mxu0 %v443
  %v4980 = vpop.f32.mrf.mxu0
  %v4981 = vadd.f32 %v231, %v4980
  %v4982 = vpop.f32.mrf.mxu0
  %v4983 = vpop.f32.mrf.mxu0
  %v4984 = vadd.f32 %v236, %v4983
  %v4985 = vpop.f32.mrf.mxu0
  %4986 = vmatprep.mubr.bf16.mxu0 0
  %4987 = vmatmul.mubr.bf16.gmra.mxu0 %v446
  %v4988 = vpop.f32.mrf.mxu0
  %v4989 = vadd.f32 %v241, %v4988
  %v4990 = vpop.f32.mrf.mxu0
  %v4991 = vpop.f32.mrf.mxu0
  %v4992 = vadd.f32 %v246, %v4991
  %v4993 = vpop.f32.mrf.mxu0
  %4994 = vmatprep.mubr.bf16.mxu0 0
  %4995 = vmatmul.mubr.bf16.gmra.mxu0 %v449
  %v4996 = vpop.f32.mrf.mxu0
  %v4997 = vadd.f32 %v251, %v4996
  %v4998 = vpop.f32.mrf.mxu0
  %v4999 = vpop.f32.mrf.mxu0
  %v5000 = vadd.f32 %v256, %v4999
  %v5001 = vpop.f32.mrf.mxu0
  %5002 = vmatprep.mubr.bf16.mxu0 0
  %5003 = vmatmul.mubr.bf16.gmra.mxu0 %v452
  %v5004 = vpop.f32.mrf.mxu0
  %v5005 = vadd.f32 %v261, %v5004
  %v5006 = vpop.f32.mrf.mxu0
  %v5007 = vpop.f32.mrf.mxu0
  %v5008 = vadd.f32 %v266, %v5007
  %v5009 = vpop.f32.mrf.mxu0
  %5010 = vmatprep.mubr.bf16.mxu0 0
  %5011 = vmatmul.mubr.bf16.gmra.mxu0 %v455
  %v5012 = vpop.f32.mrf.mxu0
  %v5013 = vadd.f32 %v271, %v5012
  %v5014 = vpop.f32.mrf.mxu0
  %v5015 = vpop.f32.mrf.mxu0
  %v5016 = vadd.f32 %v276, %v5015
  %v5017 = vpop.f32.mrf.mxu0
  %5018 = vmatprep.mubr.bf16.mxu0 0
  %5019 = vmatmul.mubr.bf16.gmra.mxu0 %v458
  %v5020 = vpop.f32.mrf.mxu0
  %v5021 = vadd.f32 %v281, %v5020
  %v5022 = vpop.f32.mrf.mxu0
  %v5023 = vpop.f32.mrf.mxu0
  %v5024 = vadd.f32 %v286, %v5023
  %v5025 = vpop.f32.mrf.mxu0
  %5026 = vmatprep.mubr.bf16.mxu0 0
  %5027 = vmatmul.mubr.bf16.gmra.mxu0 %v461
  %v5028 = vpop.f32.mrf.mxu0
  %v5029 = vadd.f32 %v291, %v5028
  %v5030 = vpop.f32.mrf.mxu0
  %v5031 = vpop.f32.mrf.mxu0
  %v5032 = vadd.f32 %v296, %v5031
  %v5033 = vpop.f32.mrf.mxu0
  %5034 = vdwg.mxu0
  %v5035 = vmax.f32 %v4909, 0.0
  %v5036 = vmax.f32 %v4912, 0.0
  %v5037 = vmax.f32 %v4917, 0.0
  %v5038 = vmax.f32 %v4920, 0.0
  %v5039 = vmax.f32 %v4925, 0.0
  %v5040 = vmax.f32 %v4928, 0.0
  %v5041 = vmax.f32 %v4933, 0.0
  %v5042 = vmax.f32 %v4936, 0.0
  %v5043 = vmax.f32 %v4941, 0.0
  %v5044 = vmax.f32 %v4944, 0.0
  %v5045 = vmax.f32 %v4949, 0.0
  %v5046 = vmax.f32 %v4952, 0.0
  %v5047 = vmax.f32 %v4957, 0.0
  %v5048 = vmax.f32 %v4960, 0.0
  %v5049 = vmax.f32 %v4965, 0.0
  %v5050 = vmax.f32 %v4968, 0.0
  %v5051 = vmax.f32 %v4973, 0.0
  %v5052 = vmax.f32 %v4976, 0.0
  %v5053 = vmax.f32 %v4981, 0.0
  %v5054 = vmax.f32 %v4984, 0.0
  %v5055 = vmax.f32 %v4989, 0.0
  %v5056 = vmax.f32 %v4992, 0.0
  %v5057 = vmax.f32 %v4997, 0.0
  %v5058 = vmax.f32 %v5000, 0.0
  %v5059 = vmax.f32 %v5005, 0.0
  %v5060 = vmax.f32 %v5008, 0.0
  %v5061 = vmax.f32 %v5013, 0.0
  %v5062 = vmax.f32 %v5016, 0.0
  %v5063 = vmax.f32 %v5021, 0.0
  %v5064 = vmax.f32 %v5024, 0.0
  %v5065 = vmax.f32 %v5029, 0.0
  %v5066 = vmax.f32 %v5032, 0.0
  %v5067 = vpack.c.bf16 %v5036, %v5035
  %v5068 = vpack.c.bf16 %v5038, %v5037
  %v5069 = vpack.c.bf16 %v5040, %v5039
  %v5070 = vpack.c.bf16 %v5042, %v5041
  %v5071 = vpack.c.bf16 %v5044, %v5043
  %v5072 = vpack.c.bf16 %v5046, %v5045
  %v5073 = vpack.c.bf16 %v5048, %v5047
  %v5074 = vpack.c.bf16 %v5050, %v5049
  %v5075 = vpack.c.bf16 %v5052, %v5051
  %v5076 = vpack.c.bf16 %v5054, %v5053
  %v5077 = vpack.c.bf16 %v5056, %v5055
  %v5078 = vpack.c.bf16 %v5058, %v5057
  %v5079 = vpack.c.bf16 %v5060, %v5059
  %v5080 = vpack.c.bf16 %v5062, %v5061
  %v5081 = vpack.c.bf16 %v5064, %v5063
  %v5082 = vpack.c.bf16 %v5066, %v5065
  %v5099 = vunpack.c.l.b16 %v5067
  %v5100 = vunpack.c.h.b16 %v5067
  %v5101 = vunpack.c.l.b16 %v5068
  %v5102 = vunpack.c.h.b16 %v5068
  %v5103 = vunpack.c.l.b16 %v5069
  %v5104 = vunpack.c.h.b16 %v5069
  %v5105 = vunpack.c.l.b16 %v5070
  %v5106 = vunpack.c.h.b16 %v5070
  %v5107 = vunpack.c.l.b16 %v5071
  %v5108 = vunpack.c.h.b16 %v5071
  %v5109 = vunpack.c.l.b16 %v5072
  %v5110 = vunpack.c.h.b16 %v5072
  %v5111 = vunpack.c.l.b16 %v5073
  %v5112 = vunpack.c.h.b16 %v5073
  %v5113 = vunpack.c.l.b16 %v5074
  %v5114 = vunpack.c.h.b16 %v5074
  %v5115 = vunpack.c.l.b16 %v5075
  %v5116 = vunpack.c.h.b16 %v5075
  %v5117 = vunpack.c.l.b16 %v5076
  %v5118 = vunpack.c.h.b16 %v5076
  %v5119 = vunpack.c.l.b16 %v5077
  %v5120 = vunpack.c.h.b16 %v5077
  %v5121 = vunpack.c.l.b16 %v5078
  %v5122 = vunpack.c.h.b16 %v5078
  %v5123 = vunpack.c.l.b16 %v5079
  %v5124 = vunpack.c.h.b16 %v5079
  %v5125 = vunpack.c.l.b16 %v5080
  %v5126 = vunpack.c.h.b16 %v5080
  %v5127 = vunpack.c.l.b16 %v5081
  %v5128 = vunpack.c.h.b16 %v5081
  %v5129 = vunpack.c.l.b16 %v5082
  %v5130 = vunpack.c.h.b16 %v5082
  %v5131 = vpack.c.b16 %v5099, %v5099
  %v5132 = vpack.c.b16 %v5100, %v5100
  %v5133 = vpack.c.b16 %v5101, %v5101
  %v5134 = vpack.c.b16 %v5102, %v5102
  %v5135 = vpack.c.b16 %v5103, %v5103
  %v5136 = vpack.c.b16 %v5104, %v5104
  %v5137 = vpack.c.b16 %v5105, %v5105
  %v5138 = vpack.c.b16 %v5106, %v5106
  %v5139 = vpack.c.b16 %v5107, %v5107
  %v5140 = vpack.c.b16 %v5108, %v5108
  %v5141 = vpack.c.b16 %v5109, %v5109
  %v5142 = vpack.c.b16 %v5110, %v5110
  %v5143 = vpack.c.b16 %v5111, %v5111
  %v5144 = vpack.c.b16 %v5112, %v5112
  %v5145 = vpack.c.b16 %v5113, %v5113
  %v5146 = vpack.c.b16 %v5114, %v5114
  %v5147 = vpack.c.b16 %v5115, %v5115
  %v5148 = vpack.c.b16 %v5116, %v5116
  %v5149 = vpack.c.b16 %v5117, %v5117
  %v5150 = vpack.c.b16 %v5118, %v5118
  %v5151 = vpack.c.b16 %v5119, %v5119
  %v5152 = vpack.c.b16 %v5120, %v5120
  %v5153 = vpack.c.b16 %v5121, %v5121
  %v5154 = vpack.c.b16 %v5122, %v5122
  %v5155 = vpack.c.b16 %v5123, %v5123
  %v5156 = vpack.c.b16 %v5124, %v5124
  %v5157 = vpack.c.b16 %v5125, %v5125
  %v5158 = vpack.c.b16 %v5126, %v5126
  %v5159 = vpack.c.b16 %v5127, %v5127
  %v5160 = vpack.c.b16 %v5128, %v5128
  %v5161 = vpack.c.b16 %v5129, %v5129
  %v5162 = vpack.c.b16 %v5130, %v5130
  %5195 = vst [vmem:[#allocation2 + $0x600] sm:$0xf] %v5131
  %5196 = vst [vmem:[#allocation2 + $0x604] sm:$0xf] %v5132
  %5197 = vst [vmem:[#allocation2 + $0x608] sm:$0xf] %v5133
  %5198 = vst [vmem:[#allocation2 + $0x60c] sm:$0xf] %v5134
  %5199 = vst [vmem:[#allocation2 + $0x610] sm:$0xf] %v5135
  %5200 = vst [vmem:[#allocation2 + $0x614] sm:$0xf] %v5136
  %5201 = vst [vmem:[#allocation2 + $0x618] sm:$0xf] %v5137
  %5202 = vst [vmem:[#allocation2 + $0x61c] sm:$0xf] %v5138
  %5203 = vst [vmem:[#allocation2 + $0x620] sm:$0xf] %v5139
  %5204 = vst [vmem:[#allocation2 + $0x624] sm:$0xf] %v5140
  %5205 = vst [vmem:[#allocation2 + $0x628] sm:$0xf] %v5141
  %5206 = vst [vmem:[#allocation2 + $0x62c] sm:$0xf] %v5142
  %5207 = vst [vmem:[#allocation2 + $0x630] sm:$0xf] %v5143
  %5208 = vst [vmem:[#allocation2 + $0x634] sm:$0xf] %v5144
  %5209 = vst [vmem:[#allocation2 + $0x638] sm:$0xf] %v5145
  %5210 = vst [vmem:[#allocation2 + $0x63c] sm:$0xf] %v5146
  %5211 = vst [vmem:[#allocation2 + $0x640] sm:$0xf] %v5147
  %5212 = vst [vmem:[#allocation2 + $0x644] sm:$0xf] %v5148
  %5213 = vst [vmem:[#allocation2 + $0x648] sm:$0xf] %v5149
  %5214 = vst [vmem:[#allocation2 + $0x64c] sm:$0xf] %v5150
  %5215 = vst [vmem:[#allocation2 + $0x650] sm:$0xf] %v5151
  %5216 = vst [vmem:[#allocation2 + $0x654] sm:$0xf] %v5152
  %5217 = vst [vmem:[#allocation2 + $0x658] sm:$0xf] %v5153
  %5218 = vst [vmem:[#allocation2 + $0x65c] sm:$0xf] %v5154
  %5219 = vst [vmem:[#allocation2 + $0x660] sm:$0xf] %v5155
  %5220 = vst [vmem:[#allocation2 + $0x664] sm:$0xf] %v5156
  %5221 = vst [vmem:[#allocation2 + $0x668] sm:$0xf] %v5157
  %5222 = vst [vmem:[#allocation2 + $0x66c] sm:$0xf] %v5158
  %5223 = vst [vmem:[#allocation2 + $0x670] sm:$0xf] %v5159
  %5224 = vst [vmem:[#allocation2 + $0x674] sm:$0xf] %v5160
  %5225 = vst [vmem:[#allocation2 + $0x678] sm:$0xf] %v5161
  %5226 = vst [vmem:[#allocation2 + $0x67c] sm:$0xf] %v5162
  %v5227 = vld [vmem:[%s0 + $0x180] sm:$0xf]
  %v5228 = vld [vmem:[%s0 + $0x184] sm:$0xf]
  %v5229 = vld [vmem:[%s0 + $0x188] sm:$0xf]
  %v5230 = vld [vmem:[%s0 + $0x18c] sm:$0xf]
  %v5231 = vld [vmem:[%s0 + $0x190] sm:$0xf]
  %v5232 = vld [vmem:[%s0 + $0x194] sm:$0xf]
  %v5233 = vld [vmem:[%s0 + $0x198] sm:$0xf]
  %v5234 = vld [vmem:[%s0 + $0x19c] sm:$0xf]
  %v5235 = vld [vmem:[%s0 + $0x1a0] sm:$0xf]
  %v5236 = vld [vmem:[%s0 + $0x1a4] sm:$0xf]
  %v5237 = vld [vmem:[%s0 + $0x1a8] sm:$0xf]
  %v5238 = vld [vmem:[%s0 + $0x1ac] sm:$0xf]
  %v5251 = vunpack.c.l.b16 %v5227
  %v5252 = vunpack.c.l.b16 %v5228
  %v5253 = vunpack.c.l.b16 %v5229
  %v5254 = vunpack.c.l.b16 %v5230
  %v5255 = vunpack.c.l.b16 %v5231
  %v5256 = vunpack.c.l.b16 %v5232
  %v5257 = vunpack.c.l.b16 %v5233
  %v5258 = vunpack.c.l.b16 %v5234
  %v5259 = vunpack.c.l.b16 %v5235
  %v5260 = vunpack.c.l.b16 %v5236
  %v5261 = vunpack.c.l.b16 %v5237
  %v5262 = vunpack.c.l.b16 %v5238
  %v5263 = vpack.c.b16 %v5252, %v5251
  %v5264 = vpack.c.b16 %v5254, %v5253
  %v5265 = vpack.c.b16 %v5256, %v5255
  %v5266 = vpack.c.b16 %v5258, %v5257
  %v5267 = vpack.c.b16 %v5260, %v5259
  %v5268 = vpack.c.b16 %v5262, %v5261
  %5275 = vmatprep.subr.bf16.mxu0 0
  %5276 = vmatpush1.bf16.msra.mxu0 0
  %5277 = vmatprep.subr.bf16.mxu0 0
  %5278 = vmatpush1.bf16.msra.mxu0 0
  %5279 = vmatprep.subr.bf16.mxu0 0
  %5280 = vmatpush1.bf16.msra.mxu0 %v5268
  %5281 = vmatprep.subr.bf16.mxu0 0
  %5282 = vmatpush1.bf16.msra.mxu0 %v5267
  %5283 = vmatprep.subr.bf16.mxu0 0
  %5284 = vmatpush1.bf16.msra.mxu0 %v5266
  %5285 = vmatprep.subr.bf16.mxu0 0
  %5286 = vmatpush1.bf16.msra.mxu0 %v5265
  %5287 = vmatprep.subr.bf16.mxu0 0
  %5288 = vmatpush1.bf16.msra.mxu0 %v5264
  %5289 = vmatprep.subr.bf16.mxu0 0
  %5290 = vmatpush1.bf16.msra.mxu0 %v5263
  %5291 = vmatprep.subr.bf16.mxu0 0
  %5292 = vmatpush2.bf16.msra.mxu0 0
  %5293 = vmatprep.subr.bf16.mxu0 0
  %5294 = vmatpush2.bf16.msra.mxu0 0
  %5295 = vmatprep.subr.bf16.mxu0 0
  %5296 = vmatpush2.bf16.msra.mxu0 0
  %5297 = vmatprep.subr.bf16.mxu0 0
  %5298 = vmatpush2.bf16.msra.mxu0 0
  %5299 = vmatprep.subr.bf16.mxu0 0
  %5300 = vmatpush2.bf16.msra.mxu0 0
  %5301 = vmatprep.subr.bf16.mxu0 0
  %5302 = vmatpush2.bf16.msra.mxu0 0
  %5303 = vmatprep.subr.bf16.mxu0 0
  %5304 = vmatpush2.bf16.msra.mxu0 0
  %5305 = vmatprep.subr.bf16.mxu0 0
  %5306 = vmatpush2.bf16.msra.mxu0 0
  %5307 = vmatprep.mubr.bf16.mxu0 0
  %5308 = vmatmul.mubr.bf16.gmra.mxu0 %v416
  %v5309 = vpop.f32.mrf.mxu0
  %v5310 = vadd.f32 %v141, %v5309
  %v5311 = vpop.f32.mrf.mxu0
  %v5312 = vpop.f32.mrf.mxu0
  %v5313 = vadd.f32 %v146, %v5312
  %v5314 = vpop.f32.mrf.mxu0
  %5315 = vmatprep.mubr.bf16.mxu0 0
  %5316 = vmatmul.mubr.bf16.gmra.mxu0 %v419
  %v5317 = vpop.f32.mrf.mxu0
  %v5318 = vadd.f32 %v151, %v5317
  %v5319 = vpop.f32.mrf.mxu0
  %v5320 = vpop.f32.mrf.mxu0
  %v5321 = vadd.f32 %v156, %v5320
  %v5322 = vpop.f32.mrf.mxu0
  %5323 = vmatprep.mubr.bf16.mxu0 0
  %5324 = vmatmul.mubr.bf16.gmra.mxu0 %v422
  %v5325 = vpop.f32.mrf.mxu0
  %v5326 = vadd.f32 %v161, %v5325
  %v5327 = vpop.f32.mrf.mxu0
  %v5328 = vpop.f32.mrf.mxu0
  %v5329 = vadd.f32 %v166, %v5328
  %v5330 = vpop.f32.mrf.mxu0
  %5331 = vmatprep.mubr.bf16.mxu0 0
  %5332 = vmatmul.mubr.bf16.gmra.mxu0 %v425
  %v5333 = vpop.f32.mrf.mxu0
  %v5334 = vadd.f32 %v171, %v5333
  %v5335 = vpop.f32.mrf.mxu0
  %v5336 = vpop.f32.mrf.mxu0
  %v5337 = vadd.f32 %v176, %v5336
  %v5338 = vpop.f32.mrf.mxu0
  %5339 = vmatprep.mubr.bf16.mxu0 0
  %5340 = vmatmul.mubr.bf16.gmra.mxu0 %v428
  %v5341 = vpop.f32.mrf.mxu0
  %v5342 = vadd.f32 %v181, %v5341
  %v5343 = vpop.f32.mrf.mxu0
  %v5344 = vpop.f32.mrf.mxu0
  %v5345 = vadd.f32 %v186, %v5344
  %v5346 = vpop.f32.mrf.mxu0
  %5347 = vmatprep.mubr.bf16.mxu0 0
  %5348 = vmatmul.mubr.bf16.gmra.mxu0 %v431
  %v5349 = vpop.f32.mrf.mxu0
  %v5350 = vadd.f32 %v191, %v5349
  %v5351 = vpop.f32.mrf.mxu0
  %v5352 = vpop.f32.mrf.mxu0
  %v5353 = vadd.f32 %v196, %v5352
  %v5354 = vpop.f32.mrf.mxu0
  %5355 = vmatprep.mubr.bf16.mxu0 0
  %5356 = vmatmul.mubr.bf16.gmra.mxu0 %v434
  %v5357 = vpop.f32.mrf.mxu0
  %v5358 = vadd.f32 %v201, %v5357
  %v5359 = vpop.f32.mrf.mxu0
  %v5360 = vpop.f32.mrf.mxu0
  %v5361 = vadd.f32 %v206, %v5360
  %v5362 = vpop.f32.mrf.mxu0
  %5363 = vmatprep.mubr.bf16.mxu0 0
  %5364 = vmatmul.mubr.bf16.gmra.mxu0 %v437
  %v5365 = vpop.f32.mrf.mxu0
  %v5366 = vadd.f32 %v211, %v5365
  %v5367 = vpop.f32.mrf.mxu0
  %v5368 = vpop.f32.mrf.mxu0
  %v5369 = vadd.f32 %v216, %v5368
  %v5370 = vpop.f32.mrf.mxu0
  %5371 = vmatprep.mubr.bf16.mxu0 0
  %5372 = vmatmul.mubr.bf16.gmra.mxu0 %v440
  %v5373 = vpop.f32.mrf.mxu0
  %v5374 = vadd.f32 %v221, %v5373
  %v5375 = vpop.f32.mrf.mxu0
  %v5376 = vpop.f32.mrf.mxu0
  %v5377 = vadd.f32 %v226, %v5376
  %v5378 = vpop.f32.mrf.mxu0
  %5379 = vmatprep.mubr.bf16.mxu0 0
  %5380 = vmatmul.mubr.bf16.gmra.mxu0 %v443
  %v5381 = vpop.f32.mrf.mxu0
  %v5382 = vadd.f32 %v231, %v5381
  %v5383 = vpop.f32.mrf.mxu0
  %v5384 = vpop.f32.mrf.mxu0
  %v5385 = vadd.f32 %v236, %v5384
  %v5386 = vpop.f32.mrf.mxu0
  %5387 = vmatprep.mubr.bf16.mxu0 0
  %5388 = vmatmul.mubr.bf16.gmra.mxu0 %v446
  %v5389 = vpop.f32.mrf.mxu0
  %v5390 = vadd.f32 %v241, %v5389
  %v5391 = vpop.f32.mrf.mxu0
  %v5392 = vpop.f32.mrf.mxu0
  %v5393 = vadd.f32 %v246, %v5392
  %v5394 = vpop.f32.mrf.mxu0
  %5395 = vmatprep.mubr.bf16.mxu0 0
  %5396 = vmatmul.mubr.bf16.gmra.mxu0 %v449
  %v5397 = vpop.f32.mrf.mxu0
  %v5398 = vadd.f32 %v251, %v5397
  %v5399 = vpop.f32.mrf.mxu0
  %v5400 = vpop.f32.mrf.mxu0
  %v5401 = vadd.f32 %v256, %v5400
  %v5402 = vpop.f32.mrf.mxu0
  %5403 = vmatprep.mubr.bf16.mxu0 0
  %5404 = vmatmul.mubr.bf16.gmra.mxu0 %v452
  %v5405 = vpop.f32.mrf.mxu0
  %v5406 = vadd.f32 %v261, %v5405
  %v5407 = vpop.f32.mrf.mxu0
  %v5408 = vpop.f32.mrf.mxu0
  %v5409 = vadd.f32 %v266, %v5408
  %v5410 = vpop.f32.mrf.mxu0
  %5411 = vmatprep.mubr.bf16.mxu0 0
  %5412 = vmatmul.mubr.bf16.gmra.mxu0 %v455
  %v5413 = vpop.f32.mrf.mxu0
  %v5414 = vadd.f32 %v271, %v5413
  %v5415 = vpop.f32.mrf.mxu0
  %v5416 = vpop.f32.mrf.mxu0
  %v5417 = vadd.f32 %v276, %v5416
  %v5418 = vpop.f32.mrf.mxu0
  %5419 = vmatprep.mubr.bf16.mxu0 0
  %5420 = vmatmul.mubr.bf16.gmra.mxu0 %v458
  %v5421 = vpop.f32.mrf.mxu0
  %v5422 = vadd.f32 %v281, %v5421
  %v5423 = vpop.f32.mrf.mxu0
  %v5424 = vpop.f32.mrf.mxu0
  %v5425 = vadd.f32 %v286, %v5424
  %v5426 = vpop.f32.mrf.mxu0
  %5427 = vmatprep.mubr.bf16.mxu0 0
  %5428 = vmatmul.mubr.bf16.gmra.mxu0 %v461
  %v5429 = vpop.f32.mrf.mxu0
  %v5430 = vadd.f32 %v291, %v5429
  %v5431 = vpop.f32.mrf.mxu0
  %v5432 = vpop.f32.mrf.mxu0
  %v5433 = vadd.f32 %v296, %v5432
  %v5434 = vpop.f32.mrf.mxu0
  %5435 = vdwg.mxu0
  %v5436 = vmax.f32 %v5310, 0.0
  %v5437 = vmax.f32 %v5313, 0.0
  %v5438 = vmax.f32 %v5318, 0.0
  %v5439 = vmax.f32 %v5321, 0.0
  %v5440 = vmax.f32 %v5326, 0.0
  %v5441 = vmax.f32 %v5329, 0.0
  %v5442 = vmax.f32 %v5334, 0.0
  %v5443 = vmax.f32 %v5337, 0.0
  %v5444 = vmax.f32 %v5342, 0.0
  %v5445 = vmax.f32 %v5345, 0.0
  %v5446 = vmax.f32 %v5350, 0.0
  %v5447 = vmax.f32 %v5353, 0.0
  %v5448 = vmax.f32 %v5358, 0.0
  %v5449 = vmax.f32 %v5361, 0.0
  %v5450 = vmax.f32 %v5366, 0.0
  %v5451 = vmax.f32 %v5369, 0.0
  %v5452 = vmax.f32 %v5374, 0.0
  %v5453 = vmax.f32 %v5377, 0.0
  %v5454 = vmax.f32 %v5382, 0.0
  %v5455 = vmax.f32 %v5385, 0.0
  %v5456 = vmax.f32 %v5390, 0.0
  %v5457 = vmax.f32 %v5393, 0.0
  %v5458 = vmax.f32 %v5398, 0.0
  %v5459 = vmax.f32 %v5401, 0.0
  %v5460 = vmax.f32 %v5406, 0.0
  %v5461 = vmax.f32 %v5409, 0.0
  %v5462 = vmax.f32 %v5414, 0.0
  %v5463 = vmax.f32 %v5417, 0.0
  %v5464 = vmax.f32 %v5422, 0.0
  %v5465 = vmax.f32 %v5425, 0.0
  %v5466 = vmax.f32 %v5430, 0.0
  %v5467 = vmax.f32 %v5433, 0.0
  %v5468 = vpack.c.bf16 %v5437, %v5436
  %v5469 = vpack.c.bf16 %v5439, %v5438
  %v5470 = vpack.c.bf16 %v5441, %v5440
  %v5471 = vpack.c.bf16 %v5443, %v5442
  %v5472 = vpack.c.bf16 %v5445, %v5444
  %v5473 = vpack.c.bf16 %v5447, %v5446
  %v5474 = vpack.c.bf16 %v5449, %v5448
  %v5475 = vpack.c.bf16 %v5451, %v5450
  %v5476 = vpack.c.bf16 %v5453, %v5452
  %v5477 = vpack.c.bf16 %v5455, %v5454
  %v5478 = vpack.c.bf16 %v5457, %v5456
  %v5479 = vpack.c.bf16 %v5459, %v5458
  %v5480 = vpack.c.bf16 %v5461, %v5460
  %v5481 = vpack.c.bf16 %v5463, %v5462
  %v5482 = vpack.c.bf16 %v5465, %v5464
  %v5483 = vpack.c.bf16 %v5467, %v5466
  %v5500 = vunpack.c.l.b16 %v5468
  %v5501 = vunpack.c.h.b16 %v5468
  %v5502 = vunpack.c.l.b16 %v5469
  %v5503 = vunpack.c.h.b16 %v5469
  %v5504 = vunpack.c.l.b16 %v5470
  %v5505 = vunpack.c.h.b16 %v5470
  %v5506 = vunpack.c.l.b16 %v5471
  %v5507 = vunpack.c.h.b16 %v5471
  %v5508 = vunpack.c.l.b16 %v5472
  %v5509 = vunpack.c.h.b16 %v5472
  %v5510 = vunpack.c.l.b16 %v5473
  %v5511 = vunpack.c.h.b16 %v5473
  %v5512 = vunpack.c.l.b16 %v5474
  %v5513 = vunpack.c.h.b16 %v5474
  %v5514 = vunpack.c.l.b16 %v5475
  %v5515 = vunpack.c.h.b16 %v5475
  %v5516 = vunpack.c.l.b16 %v5476
  %v5517 = vunpack.c.h.b16 %v5476
  %v5518 = vunpack.c.l.b16 %v5477
  %v5519 = vunpack.c.h.b16 %v5477
  %v5520 = vunpack.c.l.b16 %v5478
  %v5521 = vunpack.c.h.b16 %v5478
  %v5522 = vunpack.c.l.b16 %v5479
  %v5523 = vunpack.c.h.b16 %v5479
  %v5524 = vunpack.c.l.b16 %v5480
  %v5525 = vunpack.c.h.b16 %v5480
  %v5526 = vunpack.c.l.b16 %v5481
  %v5527 = vunpack.c.h.b16 %v5481
  %v5528 = vunpack.c.l.b16 %v5482
  %v5529 = vunpack.c.h.b16 %v5482
  %v5530 = vunpack.c.l.b16 %v5483
  %v5531 = vunpack.c.h.b16 %v5483
  %v5532 = vpack.c.b16 %v5500, %v5500
  %v5533 = vpack.c.b16 %v5501, %v5501
  %v5534 = vpack.c.b16 %v5502, %v5502
  %v5535 = vpack.c.b16 %v5503, %v5503
  %v5536 = vpack.c.b16 %v5504, %v5504
  %v5537 = vpack.c.b16 %v5505, %v5505
  %v5538 = vpack.c.b16 %v5506, %v5506
  %v5539 = vpack.c.b16 %v5507, %v5507
  %v5540 = vpack.c.b16 %v5508, %v5508
  %v5541 = vpack.c.b16 %v5509, %v5509
  %v5542 = vpack.c.b16 %v5510, %v5510
  %v5543 = vpack.c.b16 %v5511, %v5511
  %v5544 = vpack.c.b16 %v5512, %v5512
  %v5545 = vpack.c.b16 %v5513, %v5513
  %v5546 = vpack.c.b16 %v5514, %v5514
  %v5547 = vpack.c.b16 %v5515, %v5515
  %v5548 = vpack.c.b16 %v5516, %v5516
  %v5549 = vpack.c.b16 %v5517, %v5517
  %v5550 = vpack.c.b16 %v5518, %v5518
  %v5551 = vpack.c.b16 %v5519, %v5519
  %v5552 = vpack.c.b16 %v5520, %v5520
  %v5553 = vpack.c.b16 %v5521, %v5521
  %v5554 = vpack.c.b16 %v5522, %v5522
  %v5555 = vpack.c.b16 %v5523, %v5523
  %v5556 = vpack.c.b16 %v5524, %v5524
  %v5557 = vpack.c.b16 %v5525, %v5525
  %v5558 = vpack.c.b16 %v5526, %v5526
  %v5559 = vpack.c.b16 %v5527, %v5527
  %v5560 = vpack.c.b16 %v5528, %v5528
  %v5561 = vpack.c.b16 %v5529, %v5529
  %v5562 = vpack.c.b16 %v5530, %v5530
  %v5563 = vpack.c.b16 %v5531, %v5531
  %5596 = vst [vmem:[#allocation2 + $0x680] sm:$0xf] %v5532
  %5597 = vst [vmem:[#allocation2 + $0x684] sm:$0xf] %v5533
  %5598 = vst [vmem:[#allocation2 + $0x688] sm:$0xf] %v5534
  %5599 = vst [vmem:[#allocation2 + $0x68c] sm:$0xf] %v5535
  %5600 = vst [vmem:[#allocation2 + $0x690] sm:$0xf] %v5536
  %5601 = vst [vmem:[#allocation2 + $0x694] sm:$0xf] %v5537
  %5602 = vst [vmem:[#allocation2 + $0x698] sm:$0xf] %v5538
  %5603 = vst [vmem:[#allocation2 + $0x69c] sm:$0xf] %v5539
  %5604 = vst [vmem:[#allocation2 + $0x6a0] sm:$0xf] %v5540
  %5605 = vst [vmem:[#allocation2 + $0x6a4] sm:$0xf] %v5541
  %5606 = vst [vmem:[#allocation2 + $0x6a8] sm:$0xf] %v5542
  %5607 = vst [vmem:[#allocation2 + $0x6ac] sm:$0xf] %v5543
  %5608 = vst [vmem:[#allocation2 + $0x6b0] sm:$0xf] %v5544
  %5609 = vst [vmem:[#allocation2 + $0x6b4] sm:$0xf] %v5545
  %5610 = vst [vmem:[#allocation2 + $0x6b8] sm:$0xf] %v5546
  %5611 = vst [vmem:[#allocation2 + $0x6bc] sm:$0xf] %v5547
  %5612 = vst [vmem:[#allocation2 + $0x6c0] sm:$0xf] %v5548
  %5613 = vst [vmem:[#allocation2 + $0x6c4] sm:$0xf] %v5549
  %5614 = vst [vmem:[#allocation2 + $0x6c8] sm:$0xf] %v5550
  %5615 = vst [vmem:[#allocation2 + $0x6cc] sm:$0xf] %v5551
  %5616 = vst [vmem:[#allocation2 + $0x6d0] sm:$0xf] %v5552
  %5617 = vst [vmem:[#allocation2 + $0x6d4] sm:$0xf] %v5553
  %5618 = vst [vmem:[#allocation2 + $0x6d8] sm:$0xf] %v5554
  %5619 = vst [vmem:[#allocation2 + $0x6dc] sm:$0xf] %v5555
  %5620 = vst [vmem:[#allocation2 + $0x6e0] sm:$0xf] %v5556
  %5621 = vst [vmem:[#allocation2 + $0x6e4] sm:$0xf] %v5557
  %5622 = vst [vmem:[#allocation2 + $0x6e8] sm:$0xf] %v5558
  %5623 = vst [vmem:[#allocation2 + $0x6ec] sm:$0xf] %v5559
  %5624 = vst [vmem:[#allocation2 + $0x6f0] sm:$0xf] %v5560
  %5625 = vst [vmem:[#allocation2 + $0x6f4] sm:$0xf] %v5561
  %5626 = vst [vmem:[#allocation2 + $0x6f8] sm:$0xf] %v5562
  %5627 = vst [vmem:[#allocation2 + $0x6fc] sm:$0xf] %v5563
  %v5628 = vld [vmem:[%s0 + $0x1a0] sm:$0xf]
  %v5629 = vld [vmem:[%s0 + $0x1a4] sm:$0xf]
  %v5630 = vld [vmem:[%s0 + $0x1a8] sm:$0xf]
  %v5631 = vld [vmem:[%s0 + $0x1ac] sm:$0xf]
  %v5632 = vld [vmem:[%s0 + $0x1b0] sm:$0xf]
  %v5633 = vld [vmem:[%s0 + $0x1b4] sm:$0xf]
  %v5634 = vld [vmem:[%s0 + $0x1b8] sm:$0xf]
  %v5635 = vld [vmem:[%s0 + $0x1bc] sm:$0xf]
  %v5636 = vld [vmem:[%s0 + $0x1c0] sm:$0xf]
  %v5637 = vld [vmem:[%s0 + $0x1c4] sm:$0xf]
  %v5638 = vld [vmem:[%s0 + $0x1c8] sm:$0xf]
  %v5639 = vld [vmem:[%s0 + $0x1cc] sm:$0xf]
  %v5652 = vunpack.c.l.b16 %v5628
  %v5653 = vunpack.c.l.b16 %v5629
  %v5654 = vunpack.c.l.b16 %v5630
  %v5655 = vunpack.c.l.b16 %v5631
  %v5656 = vunpack.c.l.b16 %v5632
  %v5657 = vunpack.c.l.b16 %v5633
  %v5658 = vunpack.c.l.b16 %v5634
  %v5659 = vunpack.c.l.b16 %v5635
  %v5660 = vunpack.c.l.b16 %v5636
  %v5661 = vunpack.c.l.b16 %v5637
  %v5662 = vunpack.c.l.b16 %v5638
  %v5663 = vunpack.c.l.b16 %v5639
  %v5664 = vpack.c.b16 %v5653, %v5652
  %v5665 = vpack.c.b16 %v5655, %v5654
  %v5666 = vpack.c.b16 %v5657, %v5656
  %v5667 = vpack.c.b16 %v5659, %v5658
  %v5668 = vpack.c.b16 %v5661, %v5660
  %v5669 = vpack.c.b16 %v5663, %v5662
  %5676 = vmatprep.subr.bf16.mxu0 0
  %5677 = vmatpush1.bf16.msra.mxu0 0
  %5678 = vmatprep.subr.bf16.mxu0 0
  %5679 = vmatpush1.bf16.msra.mxu0 0
  %5680 = vmatprep.subr.bf16.mxu0 0
  %5681 = vmatpush1.bf16.msra.mxu0 %v5669
  %5682 = vmatprep.subr.bf16.mxu0 0
  %5683 = vmatpush1.bf16.msra.mxu0 %v5668
  %5684 = vmatprep.subr.bf16.mxu0 0
  %5685 = vmatpush1.bf16.msra.mxu0 %v5667
  %5686 = vmatprep.subr.bf16.mxu0 0
  %5687 = vmatpush1.bf16.msra.mxu0 %v5666
  %5688 = vmatprep.subr.bf16.mxu0 0
  %5689 = vmatpush1.bf16.msra.mxu0 %v5665
  %5690 = vmatprep.subr.bf16.mxu0 0
  %5691 = vmatpush1.bf16.msra.mxu0 %v5664
  %5692 = vmatprep.subr.bf16.mxu0 0
  %5693 = vmatpush2.bf16.msra.mxu0 0
  %5694 = vmatprep.subr.bf16.mxu0 0
  %5695 = vmatpush2.bf16.msra.mxu0 0
  %5696 = vmatprep.subr.bf16.mxu0 0
  %5697 = vmatpush2.bf16.msra.mxu0 0
  %5698 = vmatprep.subr.bf16.mxu0 0
  %5699 = vmatpush2.bf16.msra.mxu0 0
  %5700 = vmatprep.subr.bf16.mxu0 0
  %5701 = vmatpush2.bf16.msra.mxu0 0
  %5702 = vmatprep.subr.bf16.mxu0 0
  %5703 = vmatpush2.bf16.msra.mxu0 0
  %5704 = vmatprep.subr.bf16.mxu0 0
  %5705 = vmatpush2.bf16.msra.mxu0 0
  %5706 = vmatprep.subr.bf16.mxu0 0
  %5707 = vmatpush2.bf16.msra.mxu0 0
  %5708 = vmatprep.mubr.bf16.mxu0 0
  %5709 = vmatmul.mubr.bf16.gmra.mxu0 %v416
  %v5710 = vpop.f32.mrf.mxu0
  %v5711 = vadd.f32 %v141, %v5710
  %v5712 = vpop.f32.mrf.mxu0
  %v5713 = vpop.f32.mrf.mxu0
  %v5714 = vadd.f32 %v146, %v5713
  %v5715 = vpop.f32.mrf.mxu0
  %5716 = vmatprep.mubr.bf16.mxu0 0
  %5717 = vmatmul.mubr.bf16.gmra.mxu0 %v419
  %v5718 = vpop.f32.mrf.mxu0
  %v5719 = vadd.f32 %v151, %v5718
  %v5720 = vpop.f32.mrf.mxu0
  %v5721 = vpop.f32.mrf.mxu0
  %v5722 = vadd.f32 %v156, %v5721
  %v5723 = vpop.f32.mrf.mxu0
  %5724 = vmatprep.mubr.bf16.mxu0 0
  %5725 = vmatmul.mubr.bf16.gmra.mxu0 %v422
  %v5726 = vpop.f32.mrf.mxu0
  %v5727 = vadd.f32 %v161, %v5726
  %v5728 = vpop.f32.mrf.mxu0
  %v5729 = vpop.f32.mrf.mxu0
  %v5730 = vadd.f32 %v166, %v5729
  %v5731 = vpop.f32.mrf.mxu0
  %5732 = vmatprep.mubr.bf16.mxu0 0
  %5733 = vmatmul.mubr.bf16.gmra.mxu0 %v425
  %v5734 = vpop.f32.mrf.mxu0
  %v5735 = vadd.f32 %v171, %v5734
  %v5736 = vpop.f32.mrf.mxu0
  %v5737 = vpop.f32.mrf.mxu0
  %v5738 = vadd.f32 %v176, %v5737
  %v5739 = vpop.f32.mrf.mxu0
  %5740 = vmatprep.mubr.bf16.mxu0 0
  %5741 = vmatmul.mubr.bf16.gmra.mxu0 %v428
  %v5742 = vpop.f32.mrf.mxu0
  %v5743 = vadd.f32 %v181, %v5742
  %v5744 = vpop.f32.mrf.mxu0
  %v5745 = vpop.f32.mrf.mxu0
  %v5746 = vadd.f32 %v186, %v5745
  %v5747 = vpop.f32.mrf.mxu0
  %5748 = vmatprep.mubr.bf16.mxu0 0
  %5749 = vmatmul.mubr.bf16.gmra.mxu0 %v431
  %v5750 = vpop.f32.mrf.mxu0
  %v5751 = vadd.f32 %v191, %v5750
  %v5752 = vpop.f32.mrf.mxu0
  %v5753 = vpop.f32.mrf.mxu0
  %v5754 = vadd.f32 %v196, %v5753
  %v5755 = vpop.f32.mrf.mxu0
  %5756 = vmatprep.mubr.bf16.mxu0 0
  %5757 = vmatmul.mubr.bf16.gmra.mxu0 %v434
  %v5758 = vpop.f32.mrf.mxu0
  %v5759 = vadd.f32 %v201, %v5758
  %v5760 = vpop.f32.mrf.mxu0
  %v5761 = vpop.f32.mrf.mxu0
  %v5762 = vadd.f32 %v206, %v5761
  %v5763 = vpop.f32.mrf.mxu0
  %5764 = vmatprep.mubr.bf16.mxu0 0
  %5765 = vmatmul.mubr.bf16.gmra.mxu0 %v437
  %v5766 = vpop.f32.mrf.mxu0
  %v5767 = vadd.f32 %v211, %v5766
  %v5768 = vpop.f32.mrf.mxu0
  %v5769 = vpop.f32.mrf.mxu0
  %v5770 = vadd.f32 %v216, %v5769
  %v5771 = vpop.f32.mrf.mxu0
  %5772 = vmatprep.mubr.bf16.mxu0 0
  %5773 = vmatmul.mubr.bf16.gmra.mxu0 %v440
  %v5774 = vpop.f32.mrf.mxu0
  %v5775 = vadd.f32 %v221, %v5774
  %v5776 = vpop.f32.mrf.mxu0
  %v5777 = vpop.f32.mrf.mxu0
  %v5778 = vadd.f32 %v226, %v5777
  %v5779 = vpop.f32.mrf.mxu0
  %5780 = vmatprep.mubr.bf16.mxu0 0
  %5781 = vmatmul.mubr.bf16.gmra.mxu0 %v443
  %v5782 = vpop.f32.mrf.mxu0
  %v5783 = vadd.f32 %v231, %v5782
  %v5784 = vpop.f32.mrf.mxu0
  %v5785 = vpop.f32.mrf.mxu0
  %v5786 = vadd.f32 %v236, %v5785
  %v5787 = vpop.f32.mrf.mxu0
  %5788 = vmatprep.mubr.bf16.mxu0 0
  %5789 = vmatmul.mubr.bf16.gmra.mxu0 %v446
  %v5790 = vpop.f32.mrf.mxu0
  %v5791 = vadd.f32 %v241, %v5790
  %v5792 = vpop.f32.mrf.mxu0
  %v5793 = vpop.f32.mrf.mxu0
  %v5794 = vadd.f32 %v246, %v5793
  %v5795 = vpop.f32.mrf.mxu0
  %5796 = vmatprep.mubr.bf16.mxu0 0
  %5797 = vmatmul.mubr.bf16.gmra.mxu0 %v449
  %v5798 = vpop.f32.mrf.mxu0
  %v5799 = vadd.f32 %v251, %v5798
  %v5800 = vpop.f32.mrf.mxu0
  %v5801 = vpop.f32.mrf.mxu0
  %v5802 = vadd.f32 %v256, %v5801
  %v5803 = vpop.f32.mrf.mxu0
  %5804 = vmatprep.mubr.bf16.mxu0 0
  %5805 = vmatmul.mubr.bf16.gmra.mxu0 %v452
  %v5806 = vpop.f32.mrf.mxu0
  %v5807 = vadd.f32 %v261, %v5806
  %v5808 = vpop.f32.mrf.mxu0
  %v5809 = vpop.f32.mrf.mxu0
  %v5810 = vadd.f32 %v266, %v5809
  %v5811 = vpop.f32.mrf.mxu0
  %5812 = vmatprep.mubr.bf16.mxu0 0
  %5813 = vmatmul.mubr.bf16.gmra.mxu0 %v455
  %v5814 = vpop.f32.mrf.mxu0
  %v5815 = vadd.f32 %v271, %v5814
  %v5816 = vpop.f32.mrf.mxu0
  %v5817 = vpop.f32.mrf.mxu0
  %v5818 = vadd.f32 %v276, %v5817
  %v5819 = vpop.f32.mrf.mxu0
  %5820 = vmatprep.mubr.bf16.mxu0 0
  %5821 = vmatmul.mubr.bf16.gmra.mxu0 %v458
  %v5822 = vpop.f32.mrf.mxu0
  %v5823 = vadd.f32 %v281, %v5822
  %v5824 = vpop.f32.mrf.mxu0
  %v5825 = vpop.f32.mrf.mxu0
  %v5826 = vadd.f32 %v286, %v5825
  %v5827 = vpop.f32.mrf.mxu0
  %5828 = vmatprep.mubr.bf16.mxu0 0
  %5829 = vmatmul.mubr.bf16.gmra.mxu0 %v461
  %v5830 = vpop.f32.mrf.mxu0
  %v5831 = vadd.f32 %v291, %v5830
  %v5832 = vpop.f32.mrf.mxu0
  %v5833 = vpop.f32.mrf.mxu0
  %v5834 = vadd.f32 %v296, %v5833
  %v5835 = vpop.f32.mrf.mxu0
  %5836 = vdwg.mxu0
  %v5837 = vmax.f32 %v5711, 0.0
  %v5838 = vmax.f32 %v5714, 0.0
  %v5839 = vmax.f32 %v5719, 0.0
  %v5840 = vmax.f32 %v5722, 0.0
  %v5841 = vmax.f32 %v5727, 0.0
  %v5842 = vmax.f32 %v5730, 0.0
  %v5843 = vmax.f32 %v5735, 0.0
  %v5844 = vmax.f32 %v5738, 0.0
  %v5845 = vmax.f32 %v5743, 0.0
  %v5846 = vmax.f32 %v5746, 0.0
  %v5847 = vmax.f32 %v5751, 0.0
  %v5848 = vmax.f32 %v5754, 0.0
  %v5849 = vmax.f32 %v5759, 0.0
  %v5850 = vmax.f32 %v5762, 0.0
  %v5851 = vmax.f32 %v5767, 0.0
  %v5852 = vmax.f32 %v5770, 0.0
  %v5853 = vmax.f32 %v5775, 0.0
  %v5854 = vmax.f32 %v5778, 0.0
  %v5855 = vmax.f32 %v5783, 0.0
  %v5856 = vmax.f32 %v5786, 0.0
  %v5857 = vmax.f32 %v5791, 0.0
  %v5858 = vmax.f32 %v5794, 0.0
  %v5859 = vmax.f32 %v5799, 0.0
  %v5860 = vmax.f32 %v5802, 0.0
  %v5861 = vmax.f32 %v5807, 0.0
  %v5862 = vmax.f32 %v5810, 0.0
  %v5863 = vmax.f32 %v5815, 0.0
  %v5864 = vmax.f32 %v5818, 0.0
  %v5865 = vmax.f32 %v5823, 0.0
  %v5866 = vmax.f32 %v5826, 0.0
  %v5867 = vmax.f32 %v5831, 0.0
  %v5868 = vmax.f32 %v5834, 0.0
  %v5869 = vpack.c.bf16 %v5838, %v5837
  %v5870 = vpack.c.bf16 %v5840, %v5839
  %v5871 = vpack.c.bf16 %v5842, %v5841
  %v5872 = vpack.c.bf16 %v5844, %v5843
  %v5873 = vpack.c.bf16 %v5846, %v5845
  %v5874 = vpack.c.bf16 %v5848, %v5847
  %v5875 = vpack.c.bf16 %v5850, %v5849
  %v5876 = vpack.c.bf16 %v5852, %v5851
  %v5877 = vpack.c.bf16 %v5854, %v5853
  %v5878 = vpack.c.bf16 %v5856, %v5855
  %v5879 = vpack.c.bf16 %v5858, %v5857
  %v5880 = vpack.c.bf16 %v5860, %v5859
  %v5881 = vpack.c.bf16 %v5862, %v5861
  %v5882 = vpack.c.bf16 %v5864, %v5863
  %v5883 = vpack.c.bf16 %v5866, %v5865
  %v5884 = vpack.c.bf16 %v5868, %v5867
  %v5901 = vunpack.c.l.b16 %v5869
  %v5902 = vunpack.c.h.b16 %v5869
  %v5903 = vunpack.c.l.b16 %v5870
  %v5904 = vunpack.c.h.b16 %v5870
  %v5905 = vunpack.c.l.b16 %v5871
  %v5906 = vunpack.c.h.b16 %v5871
  %v5907 = vunpack.c.l.b16 %v5872
  %v5908 = vunpack.c.h.b16 %v5872
  %v5909 = vunpack.c.l.b16 %v5873
  %v5910 = vunpack.c.h.b16 %v5873
  %v5911 = vunpack.c.l.b16 %v5874
  %v5912 = vunpack.c.h.b16 %v5874
  %v5913 = vunpack.c.l.b16 %v5875
  %v5914 = vunpack.c.h.b16 %v5875
  %v5915 = vunpack.c.l.b16 %v5876
  %v5916 = vunpack.c.h.b16 %v5876
  %v5917 = vunpack.c.l.b16 %v5877
  %v5918 = vunpack.c.h.b16 %v5877
  %v5919 = vunpack.c.l.b16 %v5878
  %v5920 = vunpack.c.h.b16 %v5878
  %v5921 = vunpack.c.l.b16 %v5879
  %v5922 = vunpack.c.h.b16 %v5879
  %v5923 = vunpack.c.l.b16 %v5880
  %v5924 = vunpack.c.h.b16 %v5880
  %v5925 = vunpack.c.l.b16 %v5881
  %v5926 = vunpack.c.h.b16 %v5881
  %v5927 = vunpack.c.l.b16 %v5882
  %v5928 = vunpack.c.h.b16 %v5882
  %v5929 = vunpack.c.l.b16 %v5883
  %v5930 = vunpack.c.h.b16 %v5883
  %v5931 = vunpack.c.l.b16 %v5884
  %v5932 = vunpack.c.h.b16 %v5884
  %v5933 = vpack.c.b16 %v5901, %v5901
  %v5934 = vpack.c.b16 %v5902, %v5902
  %v5935 = vpack.c.b16 %v5903, %v5903
  %v5936 = vpack.c.b16 %v5904, %v5904
  %v5937 = vpack.c.b16 %v5905, %v5905
  %v5938 = vpack.c.b16 %v5906, %v5906
  %v5939 = vpack.c.b16 %v5907, %v5907
  %v5940 = vpack.c.b16 %v5908, %v5908
  %v5941 = vpack.c.b16 %v5909, %v5909
  %v5942 = vpack.c.b16 %v5910, %v5910
  %v5943 = vpack.c.b16 %v5911, %v5911
  %v5944 = vpack.c.b16 %v5912, %v5912
  %v5945 = vpack.c.b16 %v5913, %v5913
  %v5946 = vpack.c.b16 %v5914, %v5914
  %v5947 = vpack.c.b16 %v5915, %v5915
  %v5948 = vpack.c.b16 %v5916, %v5916
  %v5949 = vpack.c.b16 %v5917, %v5917
  %v5950 = vpack.c.b16 %v5918, %v5918
  %v5951 = vpack.c.b16 %v5919, %v5919
  %v5952 = vpack.c.b16 %v5920, %v5920
  %v5953 = vpack.c.b16 %v5921, %v5921
  %v5954 = vpack.c.b16 %v5922, %v5922
  %v5955 = vpack.c.b16 %v5923, %v5923
  %v5956 = vpack.c.b16 %v5924, %v5924
  %v5957 = vpack.c.b16 %v5925, %v5925
  %v5958 = vpack.c.b16 %v5926, %v5926
  %v5959 = vpack.c.b16 %v5927, %v5927
  %v5960 = vpack.c.b16 %v5928, %v5928
  %v5961 = vpack.c.b16 %v5929, %v5929
  %v5962 = vpack.c.b16 %v5930, %v5930
  %v5963 = vpack.c.b16 %v5931, %v5931
  %v5964 = vpack.c.b16 %v5932, %v5932
  %5997 = vst [vmem:[#allocation2 + $0x700] sm:$0xf] %v5933
  %5998 = vst [vmem:[#allocation2 + $0x704] sm:$0xf] %v5934
  %5999 = vst [vmem:[#allocation2 + $0x708] sm:$0xf] %v5935
  %6000 = vst [vmem:[#allocation2 + $0x70c] sm:$0xf] %v5936
  %6001 = vst [vmem:[#allocation2 + $0x710] sm:$0xf] %v5937
  %6002 = vst [vmem:[#allocation2 + $0x714] sm:$0xf] %v5938
  %6003 = vst [vmem:[#allocation2 + $0x718] sm:$0xf] %v5939
  %6004 = vst [vmem:[#allocation2 + $0x71c] sm:$0xf] %v5940
  %6005 = vst [vmem:[#allocation2 + $0x720] sm:$0xf] %v5941
  %6006 = vst [vmem:[#allocation2 + $0x724] sm:$0xf] %v5942
  %6007 = vst [vmem:[#allocation2 + $0x728] sm:$0xf] %v5943
  %6008 = vst [vmem:[#allocation2 + $0x72c] sm:$0xf] %v5944
  %6009 = vst [vmem:[#allocation2 + $0x730] sm:$0xf] %v5945
  %6010 = vst [vmem:[#allocation2 + $0x734] sm:$0xf] %v5946
  %6011 = vst [vmem:[#allocation2 + $0x738] sm:$0xf] %v5947
  %6012 = vst [vmem:[#allocation2 + $0x73c] sm:$0xf] %v5948
  %6013 = vst [vmem:[#allocation2 + $0x740] sm:$0xf] %v5949
  %6014 = vst [vmem:[#allocation2 + $0x744] sm:$0xf] %v5950
  %6015 = vst [vmem:[#allocation2 + $0x748] sm:$0xf] %v5951
  %6016 = vst [vmem:[#allocation2 + $0x74c] sm:$0xf] %v5952
  %6017 = vst [vmem:[#allocation2 + $0x750] sm:$0xf] %v5953
  %6018 = vst [vmem:[#allocation2 + $0x754] sm:$0xf] %v5954
  %6019 = vst [vmem:[#allocation2 + $0x758] sm:$0xf] %v5955
  %6020 = vst [vmem:[#allocation2 + $0x75c] sm:$0xf] %v5956
  %6021 = vst [vmem:[#allocation2 + $0x760] sm:$0xf] %v5957
  %6022 = vst [vmem:[#allocation2 + $0x764] sm:$0xf] %v5958
  %6023 = vst [vmem:[#allocation2 + $0x768] sm:$0xf] %v5959
  %6024 = vst [vmem:[#allocation2 + $0x76c] sm:$0xf] %v5960
  %6025 = vst [vmem:[#allocation2 + $0x770] sm:$0xf] %v5961
  %6026 = vst [vmem:[#allocation2 + $0x774] sm:$0xf] %v5962
  %6027 = vst [vmem:[#allocation2 + $0x778] sm:$0xf] %v5963
  %6028 = vst [vmem:[#allocation2 + $0x77c] sm:$0xf] %v5964
  %v6029 = vld [vmem:[%s3] sm:$0xff]
  %v6030 = vld [vmem:[%s3 + $0x8] sm:$0xff]
  %v6031 = vld [vmem:[%s3 + $0x10] sm:$0xff]
  %v6032 = vld [vmem:[%s3 + $0x18] sm:$0xff]
  %v6033 = vld [vmem:[%s3 + $0x20] sm:$0xff]
  %v6034 = vld [vmem:[%s3 + $0x28] sm:$0xff]
  %v6035 = vld [vmem:[%s3 + $0x30] sm:$0xff]
  %v6036 = vld [vmem:[%s3 + $0x38] sm:$0xff]
  %v6037 = vld [vmem:[%s3 + $0x40] sm:$0xff]
  %v6038 = vld [vmem:[%s3 + $0x48] sm:$0xff]
  %v6039 = vld [vmem:[%s3 + $0x50] sm:$0xff]
  %v6040 = vld [vmem:[%s3 + $0x58] sm:$0xff]
  %v6041 = vld [vmem:[%s3 + $0x60] sm:$0xff]
  %v6042 = vld [vmem:[%s3 + $0x68] sm:$0xff]
  %v6043 = vld [vmem:[%s3 + $0x70] sm:$0xff]
  %v6044 = vld [vmem:[%s3 + $0x78] sm:$0xff]
  %v6045 = vld [vmem:[%s3 + $0x80] sm:$0xff]
  %v6046 = vld [vmem:[%s3 + $0x88] sm:$0xff]
  %v6047 = vld [vmem:[%s3 + $0x90] sm:$0xff]
  %v6048 = vld [vmem:[%s3 + $0x98] sm:$0xff]
  %v6049 = vld [vmem:[%s3 + $0xa0] sm:$0xff]
  %v6050 = vld [vmem:[%s3 + $0xa8] sm:$0xff]
  %v6051 = vld [vmem:[%s3 + $0xb0] sm:$0xff]
  %v6052 = vld [vmem:[%s3 + $0xb8] sm:$0xff]
  %v6053 = vld [vmem:[%s3 + $0xc0] sm:$0xff]
  %v6054 = vld [vmem:[%s3 + $0xc8] sm:$0xff]
  %v6055 = vld [vmem:[%s3 + $0xd0] sm:$0xff]
  %v6056 = vld [vmem:[%s3 + $0xd8] sm:$0xff]
  %v6057 = vld [vmem:[%s3 + $0xe0] sm:$0xff]
  %v6058 = vld [vmem:[%s3 + $0xe8] sm:$0xff]
  %v6059 = vld [vmem:[%s3 + $0xf0] sm:$0xff]
  %v6060 = vld [vmem:[%s3 + $0xf8] sm:$0xff]
  %v6061 = vld [vmem:[%s3 + $0x100] sm:$0xff]
  %v6062 = vld [vmem:[%s3 + $0x108] sm:$0xff]
  %v6063 = vld [vmem:[%s3 + $0x110] sm:$0xff]
  %v6064 = vld [vmem:[%s3 + $0x118] sm:$0xff]
  %v6065 = vld [vmem:[%s3 + $0x120] sm:$0xff]
  %v6066 = vld [vmem:[%s3 + $0x128] sm:$0xff]
  %v6067 = vld [vmem:[%s3 + $0x130] sm:$0xff]
  %v6068 = vld [vmem:[%s3 + $0x138] sm:$0xff]
  %v6069 = vld [vmem:[%s3 + $0x140] sm:$0xff]
  %v6070 = vld [vmem:[%s3 + $0x148] sm:$0xff]
  %v6071 = vld [vmem:[%s3 + $0x150] sm:$0xff]
  %v6072 = vld [vmem:[%s3 + $0x158] sm:$0xff]
  %v6073 = vld [vmem:[%s3 + $0x160] sm:$0xff]
  %v6074 = vld [vmem:[%s3 + $0x168] sm:$0xff]
  %v6075 = vld [vmem:[%s3 + $0x170] sm:$0xff]
  %v6076 = vld [vmem:[%s3 + $0x178] sm:$0xff]
  %v6077 = vld [vmem:[%s3 + $0x180] sm:$0xff]
  %v6078 = vld [vmem:[%s3 + $0x188] sm:$0xff]
  %v6079 = vld [vmem:[%s3 + $0x190] sm:$0xff]
  %v6080 = vld [vmem:[%s3 + $0x198] sm:$0xff]
  %v6081 = vld [vmem:[%s3 + $0x1a0] sm:$0xff]
  %v6082 = vld [vmem:[%s3 + $0x1a8] sm:$0xff]
  %v6083 = vld [vmem:[%s3 + $0x1b0] sm:$0xff]
  %v6084 = vld [vmem:[%s3 + $0x1b8] sm:$0xff]
  %v6085 = vld [vmem:[%s3 + $0x1c0] sm:$0xff]
  %v6086 = vld [vmem:[%s3 + $0x1c8] sm:$0xff]
  %v6087 = vld [vmem:[%s3 + $0x1d0] sm:$0xff]
  %v6088 = vld [vmem:[%s3 + $0x1d8] sm:$0xff]
  %v6089 = vld [vmem:[%s4] sm:$0xff]
  %v6090 = vld [vmem:[%s4 + $0x8] sm:$0xff]
  %v6091 = vld [vmem:[%s4 + $0x10] sm:$0xff]
  %v6092 = vld [vmem:[%s4 + $0x18] sm:$0xff]
  %v6093 = vld [vmem:[%s4 + $0x20] sm:$0xff]
  %v6094 = vld [vmem:[%s4 + $0x28] sm:$0xff]
  %v6095 = vld [vmem:[%s4 + $0x30] sm:$0xff]
  %v6096 = vld [vmem:[%s4 + $0x38] sm:$0xff]
  %v6097 = vld [vmem:[%s4 + $0x40] sm:$0xff]
  %v6098 = vld [vmem:[%s4 + $0x48] sm:$0xff]
  %v6099 = vld [vmem:[%s4 + $0x50] sm:$0xff]
  %v6100 = vld [vmem:[%s4 + $0x58] sm:$0xff]
  %v6101 = vld [vmem:[%s4 + $0x60] sm:$0xff]
  %v6102 = vld [vmem:[%s4 + $0x68] sm:$0xff]
  %v6103 = vld [vmem:[%s4 + $0x70] sm:$0xff]
  %v6104 = vld [vmem:[%s4 + $0x78] sm:$0xff]
  %v6105 = vld [vmem:[%s4 + $0x80] sm:$0xff]
  %v6106 = vld [vmem:[%s4 + $0x88] sm:$0xff]
  %v6107 = vld [vmem:[%s4 + $0x90] sm:$0xff]
  %v6108 = vld [vmem:[%s4 + $0x98] sm:$0xff]
  %6109 = vst [vmem:[#allocation3] sm:$0xf] 0
  %6110 = vst [vmem:[#allocation3 + $0x4] sm:$0xf] 0
  %6111 = vst [vmem:[#allocation3 + $0x8] sm:$0xf] 0
  %6112 = vst [vmem:[#allocation3 + $0xc] sm:$0xf] 0
  %6113 = vst [vmem:[#allocation3 + $0x10] sm:$0xf] 0
  %6114 = vst [vmem:[#allocation3 + $0x14] sm:$0xf] 0
  %6115 = vst [vmem:[#allocation3 + $0x18] sm:$0xf] 0
  %6116 = vst [vmem:[#allocation3 + $0x1c] sm:$0xf] 0
  %6117 = vst [vmem:[#allocation3 + $0x20] sm:$0xf] 0
  %6118 = vst [vmem:[#allocation3 + $0x24] sm:$0xf] 0
  %6119 = vst [vmem:[#allocation3 + $0x28] sm:$0xf] 0
  %6120 = vst [vmem:[#allocation3 + $0x2c] sm:$0xf] 0
  %6121 = vst [vmem:[#allocation3 + $0x30] sm:$0xf] 0
  %6122 = vst [vmem:[#allocation3 + $0x34] sm:$0xf] 0
  %6123 = vst [vmem:[#allocation3 + $0x38] sm:$0xf] 0
  %6124 = vst [vmem:[#allocation3 + $0x3c] sm:$0xf] 0
  %6125 = vst [vmem:[#allocation3 + $0x40] sm:$0xf] 0
  %6126 = vst [vmem:[#allocation3 + $0x44] sm:$0xf] 0
  %6127 = vst [vmem:[#allocation3 + $0x48] sm:$0xf] 0
  %6128 = vst [vmem:[#allocation3 + $0x4c] sm:$0xf] 0
  %6129 = vst [vmem:[#allocation3 + $0x280] sm:$0xf] 0
  %6130 = vst [vmem:[#allocation3 + $0x284] sm:$0xf] 0
  %6131 = vst [vmem:[#allocation3 + $0x288] sm:$0xf] 0
  %6132 = vst [vmem:[#allocation3 + $0x28c] sm:$0xf] 0
  %6133 = vst [vmem:[#allocation3 + $0x290] sm:$0xf] 0
  %6134 = vst [vmem:[#allocation3 + $0x294] sm:$0xf] 0
  %6135 = vst [vmem:[#allocation3 + $0x298] sm:$0xf] 0
  %6136 = vst [vmem:[#allocation3 + $0x29c] sm:$0xf] 0
  %6137 = vst [vmem:[#allocation3 + $0x2a0] sm:$0xf] 0
  %6138 = vst [vmem:[#allocation3 + $0x2a4] sm:$0xf] 0
  %6139 = vst [vmem:[#allocation3 + $0x2a8] sm:$0xf] 0
  %6140 = vst [vmem:[#allocation3 + $0x2ac] sm:$0xf] 0
  %6141 = vst [vmem:[#allocation3 + $0x2b0] sm:$0xf] 0
  %6142 = vst [vmem:[#allocation3 + $0x2b4] sm:$0xf] 0
  %6143 = vst [vmem:[#allocation3 + $0x2b8] sm:$0xf] 0
  %6144 = vst [vmem:[#allocation3 + $0x2bc] sm:$0xf] 0
  %6145 = vst [vmem:[#allocation3 + $0x2c0] sm:$0xf] 0
  %6146 = vst [vmem:[#allocation3 + $0x2c4] sm:$0xf] 0
  %6147 = vst [vmem:[#allocation3 + $0x2c8] sm:$0xf] 0
  %6148 = vst [vmem:[#allocation3 + $0x2cc] sm:$0xf] 0
  %v6149 = vld [vmem:[#allocation2] sm:$0xf]
  %v6150 = vld [vmem:[#allocation2 + $0x4] sm:$0xf]
  %v6151 = vld [vmem:[#allocation2 + $0x8] sm:$0xf]
  %v6152 = vld [vmem:[#allocation2 + $0xc] sm:$0xf]
  %v6153 = vld [vmem:[#allocation2 + $0x10] sm:$0xf]
  %v6154 = vld [vmem:[#allocation2 + $0x14] sm:$0xf]
  %v6155 = vld [vmem:[#allocation2 + $0x18] sm:$0xf]
  %v6156 = vld [vmem:[#allocation2 + $0x1c] sm:$0xf]
  %v6157 = vld [vmem:[#allocation2 + $0x20] sm:$0xf]
  %v6158 = vld [vmem:[#allocation2 + $0x24] sm:$0xf]
  %v6159 = vld [vmem:[#allocation2 + $0x28] sm:$0xf]
  %v6160 = vld [vmem:[#allocation2 + $0x2c] sm:$0xf]
  %v6161 = vld [vmem:[#allocation2 + $0x30] sm:$0xf]
  %v6162 = vld [vmem:[#allocation2 + $0x34] sm:$0xf]
  %v6163 = vld [vmem:[#allocation2 + $0x38] sm:$0xf]
  %v6164 = vld [vmem:[#allocation2 + $0x3c] sm:$0xf]
  %v6165 = vld [vmem:[#allocation2 + $0x40] sm:$0xf]
  %v6166 = vld [vmem:[#allocation2 + $0x44] sm:$0xf]
  %v6167 = vld [vmem:[#allocation2 + $0x48] sm:$0xf]
  %v6168 = vld [vmem:[#allocation2 + $0x4c] sm:$0xf]
  %v6169 = vld [vmem:[#allocation2 + $0x50] sm:$0xf]
  %v6170 = vld [vmem:[#allocation2 + $0x54] sm:$0xf]
  %v6171 = vld [vmem:[#allocation2 + $0x58] sm:$0xf]
  %v6172 = vld [vmem:[#allocation2 + $0x5c] sm:$0xf]
  %v6173 = vld [vmem:[#allocation2 + $0x60] sm:$0xf]
  %v6174 = vld [vmem:[#allocation2 + $0x64] sm:$0xf]
  %v6175 = vld [vmem:[#allocation2 + $0x68] sm:$0xf]
  %v6176 = vld [vmem:[#allocation2 + $0x6c] sm:$0xf]
  %v6177 = vld [vmem:[#allocation2 + $0x70] sm:$0xf]
  %v6178 = vld [vmem:[#allocation2 + $0x74] sm:$0xf]
  %v6179 = vld [vmem:[#allocation2 + $0x78] sm:$0xf]
  %v6180 = vld [vmem:[#allocation2 + $0x7c] sm:$0xf]
  %v6181 = vld [vmem:[#allocation2 + $0x80] sm:$0xf]
  %v6182 = vld [vmem:[#allocation2 + $0x84] sm:$0xf]
  %v6183 = vld [vmem:[#allocation2 + $0x88] sm:$0xf]
  %v6184 = vld [vmem:[#allocation2 + $0x8c] sm:$0xf]
  %v6185 = vld [vmem:[#allocation2 + $0x90] sm:$0xf]
  %v6186 = vld [vmem:[#allocation2 + $0x94] sm:$0xf]
  %v6187 = vld [vmem:[#allocation2 + $0x98] sm:$0xf]
  %v6188 = vld [vmem:[#allocation2 + $0x9c] sm:$0xf]
  %v6189 = vld [vmem:[#allocation2 + $0xa0] sm:$0xf]
  %v6190 = vld [vmem:[#allocation2 + $0xa4] sm:$0xf]
  %v6191 = vld [vmem:[#allocation2 + $0xa8] sm:$0xf]
  %v6192 = vld [vmem:[#allocation2 + $0xac] sm:$0xf]
  %v6193 = vld [vmem:[#allocation2 + $0xb0] sm:$0xf]
  %v6194 = vld [vmem:[#allocation2 + $0xb4] sm:$0xf]
  %v6195 = vld [vmem:[#allocation2 + $0xb8] sm:$0xf]
  %v6196 = vld [vmem:[#allocation2 + $0xbc] sm:$0xf]
  %v6197 = vld [vmem:[#allocation2 + $0xc0] sm:$0xf]
  %v6198 = vld [vmem:[#allocation2 + $0xc4] sm:$0xf]
  %v6199 = vld [vmem:[#allocation2 + $0xc8] sm:$0xf]
  %v6200 = vld [vmem:[#allocation2 + $0xcc] sm:$0xf]
  %v6201 = vld [vmem:[#allocation2 + $0xd0] sm:$0xf]
  %v6202 = vld [vmem:[#allocation2 + $0xd4] sm:$0xf]
  %v6203 = vld [vmem:[#allocation2 + $0xd8] sm:$0xf]
  %v6204 = vld [vmem:[#allocation2 + $0xdc] sm:$0xf]
  %v6205 = vld [vmem:[#allocation2 + $0xe0] sm:$0xf]
  %v6206 = vld [vmem:[#allocation2 + $0xe4] sm:$0xf]
  %v6207 = vld [vmem:[#allocation2 + $0xe8] sm:$0xf]
  %v6208 = vld [vmem:[#allocation2 + $0xec] sm:$0xf]
  %v6209 = vld [vmem:[#allocation2 + $0xf0] sm:$0xf]
  %v6210 = vld [vmem:[#allocation2 + $0xf4] sm:$0xf]
  %v6211 = vld [vmem:[#allocation2 + $0xf8] sm:$0xf]
  %v6212 = vld [vmem:[#allocation2 + $0xfc] sm:$0xf]
  %v6213 = vld [vmem:[#allocation2 + $0x100] sm:$0xf]
  %v6214 = vld [vmem:[#allocation2 + $0x104] sm:$0xf]
  %v6215 = vld [vmem:[#allocation2 + $0x108] sm:$0xf]
  %v6216 = vld [vmem:[#allocation2 + $0x10c] sm:$0xf]
  %v6217 = vld [vmem:[#allocation2 + $0x110] sm:$0xf]
  %v6218 = vld [vmem:[#allocation2 + $0x114] sm:$0xf]
  %v6219 = vld [vmem:[#allocation2 + $0x118] sm:$0xf]
  %v6220 = vld [vmem:[#allocation2 + $0x11c] sm:$0xf]
  %v6221 = vld [vmem:[#allocation2 + $0x120] sm:$0xf]
  %v6222 = vld [vmem:[#allocation2 + $0x124] sm:$0xf]
  %v6223 = vld [vmem:[#allocation2 + $0x128] sm:$0xf]
  %v6224 = vld [vmem:[#allocation2 + $0x12c] sm:$0xf]
  %v6225 = vld [vmem:[#allocation2 + $0x130] sm:$0xf]
  %v6226 = vld [vmem:[#allocation2 + $0x134] sm:$0xf]
  %v6227 = vld [vmem:[#allocation2 + $0x138] sm:$0xf]
  %v6228 = vld [vmem:[#allocation2 + $0x13c] sm:$0xf]
  %v6229 = vld [vmem:[#allocation2 + $0x140] sm:$0xf]
  %v6230 = vld [vmem:[#allocation2 + $0x144] sm:$0xf]
  %v6231 = vld [vmem:[#allocation2 + $0x148] sm:$0xf]
  %v6232 = vld [vmem:[#allocation2 + $0x14c] sm:$0xf]
  %v6233 = vld [vmem:[#allocation2 + $0x150] sm:$0xf]
  %v6234 = vld [vmem:[#allocation2 + $0x154] sm:$0xf]
  %v6235 = vld [vmem:[#allocation2 + $0x158] sm:$0xf]
  %v6236 = vld [vmem:[#allocation2 + $0x15c] sm:$0xf]
  %v6237 = vld [vmem:[#allocation2 + $0x160] sm:$0xf]
  %v6238 = vld [vmem:[#allocation2 + $0x164] sm:$0xf]
  %v6239 = vld [vmem:[#allocation2 + $0x168] sm:$0xf]
  %v6240 = vld [vmem:[#allocation2 + $0x16c] sm:$0xf]
  %v6241 = vld [vmem:[#allocation2 + $0x170] sm:$0xf]
  %v6242 = vld [vmem:[#allocation2 + $0x174] sm:$0xf]
  %v6243 = vld [vmem:[#allocation2 + $0x178] sm:$0xf]
  %v6244 = vld [vmem:[#allocation2 + $0x17c] sm:$0xf]
  %6246 = vset.pattern.permute.xlu0 0
  %6247 = vperm.xlu0 %6246, %v6089
  %v6248 = vpop.permute.xlu0 %6247
  %6251 = vset.pattern.permute.xlu0 0
  %6252 = vperm.xlu0 %6251, %v6090
  %v6253 = vpop.permute.xlu0 %6252
  %6256 = vset.pattern.permute.xlu0 0
  %6257 = vperm.xlu0 %6256, %v6091
  %v6258 = vpop.permute.xlu0 %6257
  %6261 = vset.pattern.permute.xlu0 0
  %6262 = vperm.xlu0 %6261, %v6092
  %v6263 = vpop.permute.xlu0 %6262
  %6266 = vset.pattern.permute.xlu0 0
  %6267 = vperm.xlu0 %6266, %v6093
  %v6268 = vpop.permute.xlu0 %6267
  %6271 = vset.pattern.permute.xlu0 0
  %6272 = vperm.xlu0 %6271, %v6094
  %v6273 = vpop.permute.xlu0 %6272
  %6276 = vset.pattern.permute.xlu0 0
  %6277 = vperm.xlu0 %6276, %v6095
  %v6278 = vpop.permute.xlu0 %6277
  %6281 = vset.pattern.permute.xlu0 0
  %6282 = vperm.xlu0 %6281, %v6096
  %v6283 = vpop.permute.xlu0 %6282
  %6286 = vset.pattern.permute.xlu0 0
  %6287 = vperm.xlu0 %6286, %v6097
  %v6288 = vpop.permute.xlu0 %6287
  %6291 = vset.pattern.permute.xlu0 0
  %6292 = vperm.xlu0 %6291, %v6098
  %v6293 = vpop.permute.xlu0 %6292
  %6296 = vset.pattern.permute.xlu0 0
  %6297 = vperm.xlu0 %6296, %v6099
  %v6298 = vpop.permute.xlu0 %6297
  %6301 = vset.pattern.permute.xlu0 0
  %6302 = vperm.xlu0 %6301, %v6100
  %v6303 = vpop.permute.xlu0 %6302
  %6306 = vset.pattern.permute.xlu0 0
  %6307 = vperm.xlu0 %6306, %v6101
  %v6308 = vpop.permute.xlu0 %6307
  %6311 = vset.pattern.permute.xlu0 0
  %6312 = vperm.xlu0 %6311, %v6102
  %v6313 = vpop.permute.xlu0 %6312
  %6316 = vset.pattern.permute.xlu0 0
  %6317 = vperm.xlu0 %6316, %v6103
  %v6318 = vpop.permute.xlu0 %6317
  %6321 = vset.pattern.permute.xlu0 0
  %6322 = vperm.xlu0 %6321, %v6104
  %v6323 = vpop.permute.xlu0 %6322
  %6326 = vset.pattern.permute.xlu0 0
  %6327 = vperm.xlu0 %6326, %v6105
  %v6328 = vpop.permute.xlu0 %6327
  %6331 = vset.pattern.permute.xlu0 0
  %6332 = vperm.xlu0 %6331, %v6106
  %v6333 = vpop.permute.xlu0 %6332
  %6336 = vset.pattern.permute.xlu0 0
  %6337 = vperm.xlu0 %6336, %v6107
  %v6338 = vpop.permute.xlu0 %6337
  %6341 = vset.pattern.permute.xlu0 0
  %6342 = vperm.xlu0 %6341, %v6108
  %v6343 = vpop.permute.xlu0 %6342
  %v6405 = vunpack.c.l.b16 %v6029
  %v6406 = vunpack.c.h.b16 %v6029
  %v6407 = vunpack.c.l.b16 %v6030
  %v6408 = vunpack.c.h.b16 %v6030
  %v6409 = vunpack.c.l.b16 %v6031
  %v6410 = vunpack.c.h.b16 %v6031
  %v6411 = vunpack.c.l.b16 %v6032
  %v6412 = vunpack.c.h.b16 %v6032
  %v6413 = vunpack.c.l.b16 %v6033
  %v6414 = vunpack.c.h.b16 %v6033
  %v6415 = vunpack.c.l.b16 %v6034
  %v6416 = vunpack.c.h.b16 %v6034
  %v6417 = vunpack.c.l.b16 %v6035
  %v6418 = vunpack.c.h.b16 %v6035
  %v6419 = vunpack.c.l.b16 %v6036
  %v6420 = vunpack.c.h.b16 %v6036
  %v6421 = vunpack.c.l.b16 %v6037
  %v6422 = vunpack.c.h.b16 %v6037
  %v6423 = vunpack.c.l.b16 %v6038
  %v6424 = vunpack.c.h.b16 %v6038
  %v6425 = vunpack.c.l.b16 %v6039
  %v6426 = vunpack.c.h.b16 %v6039
  %v6427 = vunpack.c.l.b16 %v6040
  %v6428 = vunpack.c.h.b16 %v6040
  %v6429 = vunpack.c.l.b16 %v6041
  %v6430 = vunpack.c.h.b16 %v6041
  %v6431 = vunpack.c.l.b16 %v6042
  %v6432 = vunpack.c.h.b16 %v6042
  %v6433 = vunpack.c.l.b16 %v6043
  %v6434 = vunpack.c.h.b16 %v6043
  %v6435 = vunpack.c.l.b16 %v6044
  %v6436 = vunpack.c.h.b16 %v6044
  %v6437 = vunpack.c.l.b16 %v6045
  %v6438 = vunpack.c.h.b16 %v6045
  %v6439 = vunpack.c.l.b16 %v6046
  %v6440 = vunpack.c.h.b16 %v6046
  %v6441 = vunpack.c.l.b16 %v6047
  %v6442 = vunpack.c.h.b16 %v6047
  %v6443 = vunpack.c.l.b16 %v6048
  %v6444 = vunpack.c.h.b16 %v6048
  %v6445 = vunpack.c.l.b16 %v6049
  %v6446 = vunpack.c.h.b16 %v6049
  %v6447 = vunpack.c.l.b16 %v6050
  %v6448 = vunpack.c.h.b16 %v6050
  %v6449 = vunpack.c.l.b16 %v6051
  %v6450 = vunpack.c.h.b16 %v6051
  %v6451 = vunpack.c.l.b16 %v6052
  %v6452 = vunpack.c.h.b16 %v6052
  %v6453 = vunpack.c.l.b16 %v6053
  %v6454 = vunpack.c.h.b16 %v6053
  %v6455 = vunpack.c.l.b16 %v6054
  %v6456 = vunpack.c.h.b16 %v6054
  %v6457 = vunpack.c.l.b16 %v6055
  %v6458 = vunpack.c.h.b16 %v6055
  %v6459 = vunpack.c.l.b16 %v6056
  %v6460 = vunpack.c.h.b16 %v6056
  %v6461 = vunpack.c.l.b16 %v6057
  %v6462 = vunpack.c.h.b16 %v6057
  %v6463 = vunpack.c.l.b16 %v6058
  %v6464 = vunpack.c.h.b16 %v6058
  %v6465 = vunpack.c.l.b16 %v6059
  %v6466 = vunpack.c.h.b16 %v6059
  %v6467 = vunpack.c.l.b16 %v6060
  %v6468 = vunpack.c.h.b16 %v6060
  %v6469 = vunpack.c.l.b16 %v6061
  %v6470 = vunpack.c.h.b16 %v6061
  %v6471 = vunpack.c.l.b16 %v6062
  %v6472 = vunpack.c.h.b16 %v6062
  %v6473 = vunpack.c.l.b16 %v6063
  %v6474 = vunpack.c.h.b16 %v6063
  %v6475 = vunpack.c.l.b16 %v6064
  %v6476 = vunpack.c.h.b16 %v6064
  %v6477 = vunpack.c.l.b16 %v6065
  %v6478 = vunpack.c.h.b16 %v6065
  %v6479 = vunpack.c.l.b16 %v6066
  %v6480 = vunpack.c.h.b16 %v6066
  %v6481 = vunpack.c.l.b16 %v6067
  %v6482 = vunpack.c.h.b16 %v6067
  %v6483 = vunpack.c.l.b16 %v6068
  %v6484 = vunpack.c.h.b16 %v6068
  %v6485 = vunpack.c.l.b16 %v6069
  %v6486 = vunpack.c.h.b16 %v6069
  %v6487 = vunpack.c.l.b16 %v6070
  %v6488 = vunpack.c.h.b16 %v6070
  %v6489 = vunpack.c.l.b16 %v6071
  %v6490 = vunpack.c.h.b16 %v6071
  %v6491 = vunpack.c.l.b16 %v6072
  %v6492 = vunpack.c.h.b16 %v6072
  %v6493 = vunpack.c.l.b16 %v6073
  %v6494 = vunpack.c.h.b16 %v6073
  %v6495 = vunpack.c.l.b16 %v6074
  %v6496 = vunpack.c.h.b16 %v6074
  %v6497 = vunpack.c.l.b16 %v6075
  %v6498 = vunpack.c.h.b16 %v6075
  %v6499 = vunpack.c.l.b16 %v6076
  %v6500 = vunpack.c.h.b16 %v6076
  %v6501 = vunpack.c.l.b16 %v6077
  %v6502 = vunpack.c.h.b16 %v6077
  %v6503 = vunpack.c.l.b16 %v6078
  %v6504 = vunpack.c.h.b16 %v6078
  %v6505 = vunpack.c.l.b16 %v6079
  %v6506 = vunpack.c.h.b16 %v6079
  %v6507 = vunpack.c.l.b16 %v6080
  %v6508 = vunpack.c.h.b16 %v6080
  %v6509 = vunpack.c.l.b16 %v6081
  %v6510 = vunpack.c.h.b16 %v6081
  %v6511 = vunpack.c.l.b16 %v6082
  %v6512 = vunpack.c.h.b16 %v6082
  %v6513 = vunpack.c.l.b16 %v6083
  %v6514 = vunpack.c.h.b16 %v6083
  %v6515 = vunpack.c.l.b16 %v6084
  %v6516 = vunpack.c.h.b16 %v6084
  %v6517 = vunpack.c.l.b16 %v6085
  %v6518 = vunpack.c.h.b16 %v6085
  %v6519 = vunpack.c.l.b16 %v6086
  %v6520 = vunpack.c.h.b16 %v6086
  %v6521 = vunpack.c.l.b16 %v6087
  %v6522 = vunpack.c.h.b16 %v6087
  %v6523 = vunpack.c.l.b16 %v6088
  %v6524 = vunpack.c.h.b16 %v6088
  %v6525 = vpack.c.b16 %v6411, %v6405
  %v6526 = vpack.c.b16 %v6412, %v6406
  %v6527 = vpack.c.b16 %v6413, %v6407
  %v6528 = vpack.c.b16 %v6414, %v6408
  %v6529 = vpack.c.b16 %v6415, %v6409
  %v6530 = vpack.c.b16 %v6416, %v6410
  %v6531 = vpack.c.b16 %v6423, %v6417
  %v6532 = vpack.c.b16 %v6424, %v6418
  %v6533 = vpack.c.b16 %v6425, %v6419
  %v6534 = vpack.c.b16 %v6426, %v6420
  %v6535 = vpack.c.b16 %v6427, %v6421
  %v6536 = vpack.c.b16 %v6428, %v6422
  %v6537 = vpack.c.b16 %v6435, %v6429
  %v6538 = vpack.c.b16 %v6436, %v6430
  %v6539 = vpack.c.b16 %v6437, %v6431
  %v6540 = vpack.c.b16 %v6438, %v6432
  %v6541 = vpack.c.b16 %v6439, %v6433
  %v6542 = vpack.c.b16 %v6440, %v6434
  %v6543 = vpack.c.b16 %v6447, %v6441
  %v6544 = vpack.c.b16 %v6448, %v6442
  %v6545 = vpack.c.b16 %v6449, %v6443
  %v6546 = vpack.c.b16 %v6450, %v6444
  %v6547 = vpack.c.b16 %v6451, %v6445
  %v6548 = vpack.c.b16 %v6452, %v6446
  %v6549 = vpack.c.b16 %v6459, %v6453
  %v6550 = vpack.c.b16 %v6460, %v6454
  %v6551 = vpack.c.b16 %v6461, %v6455
  %v6552 = vpack.c.b16 %v6462, %v6456
  %v6553 = vpack.c.b16 %v6463, %v6457
  %v6554 = vpack.c.b16 %v6464, %v6458
  %v6555 = vpack.c.b16 %v6471, %v6465
  %v6556 = vpack.c.b16 %v6472, %v6466
  %v6557 = vpack.c.b16 %v6473, %v6467
  %v6558 = vpack.c.b16 %v6474, %v6468
  %v6559 = vpack.c.b16 %v6475, %v6469
  %v6560 = vpack.c.b16 %v6476, %v6470
  %v6561 = vpack.c.b16 %v6483, %v6477
  %v6562 = vpack.c.b16 %v6484, %v6478
  %v6563 = vpack.c.b16 %v6485, %v6479
  %v6564 = vpack.c.b16 %v6486, %v6480
  %v6565 = vpack.c.b16 %v6487, %v6481
  %v6566 = vpack.c.b16 %v6488, %v6482
  %v6567 = vpack.c.b16 %v6495, %v6489
  %v6568 = vpack.c.b16 %v6496, %v6490
  %v6569 = vpack.c.b16 %v6497, %v6491
  %v6570 = vpack.c.b16 %v6498, %v6492
  %v6571 = vpack.c.b16 %v6499, %v6493
  %v6572 = vpack.c.b16 %v6500, %v6494
  %v6573 = vpack.c.b16 %v6507, %v6501
  %v6574 = vpack.c.b16 %v6508, %v6502
  %v6575 = vpack.c.b16 %v6509, %v6503
  %v6576 = vpack.c.b16 %v6510, %v6504
  %v6577 = vpack.c.b16 %v6511, %v6505
  %v6578 = vpack.c.b16 %v6512, %v6506
  %v6579 = vpack.c.b16 %v6519, %v6513
  %v6580 = vpack.c.b16 %v6520, %v6514
  %v6581 = vpack.c.b16 %v6521, %v6515
  %v6582 = vpack.c.b16 %v6522, %v6516
  %v6583 = vpack.c.b16 %v6523, %v6517
  %v6584 = vpack.c.b16 %v6524, %v6518
  %v6741 = vunpack.c.l.b16 %v6149
  %v6742 = vunpack.c.l.b16 %v6150
  %v6743 = vunpack.c.l.b16 %v6151
  %v6744 = vunpack.c.l.b16 %v6152
  %v6745 = vunpack.c.l.b16 %v6153
  %v6746 = vunpack.c.l.b16 %v6154
  %v6747 = vunpack.c.l.b16 %v6155
  %v6748 = vunpack.c.l.b16 %v6156
  %v6749 = vunpack.c.l.b16 %v6157
  %v6750 = vunpack.c.l.b16 %v6158
  %v6751 = vunpack.c.l.b16 %v6159
  %v6752 = vunpack.c.l.b16 %v6160
  %v6753 = vunpack.c.l.b16 %v6161
  %v6754 = vunpack.c.l.b16 %v6162
  %v6755 = vunpack.c.l.b16 %v6163
  %v6756 = vunpack.c.l.b16 %v6164
  %v6757 = vunpack.c.l.b16 %v6165
  %v6758 = vunpack.c.l.b16 %v6166
  %v6759 = vunpack.c.l.b16 %v6167
  %v6760 = vunpack.c.l.b16 %v6168
  %v6761 = vunpack.c.l.b16 %v6169
  %v6762 = vunpack.c.l.b16 %v6170
  %v6763 = vunpack.c.l.b16 %v6171
  %v6764 = vunpack.c.l.b16 %v6172
  %v6765 = vunpack.c.l.b16 %v6173
  %v6766 = vunpack.c.l.b16 %v6174
  %v6767 = vunpack.c.l.b16 %v6175
  %v6768 = vunpack.c.l.b16 %v6176
  %v6769 = vunpack.c.l.b16 %v6177
  %v6770 = vunpack.c.l.b16 %v6178
  %v6771 = vunpack.c.l.b16 %v6179
  %v6772 = vunpack.c.l.b16 %v6180
  %v6773 = vunpack.c.l.b16 %v6181
  %v6774 = vunpack.c.l.b16 %v6182
  %v6775 = vunpack.c.l.b16 %v6183
  %v6776 = vunpack.c.l.b16 %v6184
  %v6777 = vunpack.c.l.b16 %v6185
  %v6778 = vunpack.c.l.b16 %v6186
  %v6779 = vunpack.c.l.b16 %v6187
  %v6780 = vunpack.c.l.b16 %v6188
  %v6781 = vunpack.c.l.b16 %v6189
  %v6782 = vunpack.c.l.b16 %v6190
  %v6783 = vunpack.c.l.b16 %v6191
  %v6784 = vunpack.c.l.b16 %v6192
  %v6785 = vunpack.c.l.b16 %v6193
  %v6786 = vunpack.c.l.b16 %v6194
  %v6787 = vunpack.c.l.b16 %v6195
  %v6788 = vunpack.c.l.b16 %v6196
  %v6789 = vunpack.c.l.b16 %v6197
  %v6790 = vunpack.c.l.b16 %v6198
  %v6791 = vunpack.c.l.b16 %v6199
  %v6792 = vunpack.c.l.b16 %v6200
  %v6793 = vunpack.c.l.b16 %v6201
  %v6794 = vunpack.c.l.b16 %v6202
  %v6795 = vunpack.c.l.b16 %v6203
  %v6796 = vunpack.c.l.b16 %v6204
  %v6797 = vunpack.c.l.b16 %v6205
  %v6798 = vunpack.c.l.b16 %v6206
  %v6799 = vunpack.c.l.b16 %v6207
  %v6800 = vunpack.c.l.b16 %v6208
  %v6801 = vunpack.c.l.b16 %v6209
  %v6802 = vunpack.c.l.b16 %v6210
  %v6803 = vunpack.c.l.b16 %v6211
  %v6804 = vunpack.c.l.b16 %v6212
  %v6805 = vunpack.c.l.b16 %v6213
  %v6806 = vunpack.c.l.b16 %v6214
  %v6807 = vunpack.c.l.b16 %v6215
  %v6808 = vunpack.c.l.b16 %v6216
  %v6809 = vunpack.c.l.b16 %v6217
  %v6810 = vunpack.c.l.b16 %v6218
  %v6811 = vunpack.c.l.b16 %v6219
  %v6812 = vunpack.c.l.b16 %v6220
  %v6813 = vunpack.c.l.b16 %v6221
  %v6814 = vunpack.c.l.b16 %v6222
  %v6815 = vunpack.c.l.b16 %v6223
  %v6816 = vunpack.c.l.b16 %v6224
  %v6817 = vunpack.c.l.b16 %v6225
  %v6818 = vunpack.c.l.b16 %v6226
  %v6819 = vunpack.c.l.b16 %v6227
  %v6820 = vunpack.c.l.b16 %v6228
  %v6821 = vunpack.c.l.b16 %v6229
  %v6822 = vunpack.c.l.b16 %v6230
  %v6823 = vunpack.c.l.b16 %v6231
  %v6824 = vunpack.c.l.b16 %v6232
  %v6825 = vunpack.c.l.b16 %v6233
  %v6826 = vunpack.c.l.b16 %v6234
  %v6827 = vunpack.c.l.b16 %v6235
  %v6828 = vunpack.c.l.b16 %v6236
  %v6829 = vunpack.c.l.b16 %v6237
  %v6830 = vunpack.c.l.b16 %v6238
  %v6831 = vunpack.c.l.b16 %v6239
  %v6832 = vunpack.c.l.b16 %v6240
  %v6833 = vunpack.c.l.b16 %v6241
  %v6834 = vunpack.c.l.b16 %v6242
  %v6835 = vunpack.c.l.b16 %v6243
  %v6836 = vunpack.c.l.b16 %v6244
  %v6837 = vpack.c.b16 %v6742, %v6741
  %v6838 = vpack.c.b16 %v6744, %v6743
  %v6839 = vpack.c.b16 %v6746, %v6745
  %v6840 = vpack.c.b16 %v6748, %v6747
  %v6841 = vpack.c.b16 %v6750, %v6749
  %v6842 = vpack.c.b16 %v6752, %v6751
  %v6843 = vpack.c.b16 %v6754, %v6753
  %v6844 = vpack.c.b16 %v6756, %v6755
  %v6845 = vpack.c.b16 %v6758, %v6757
  %v6846 = vpack.c.b16 %v6760, %v6759
  %v6847 = vpack.c.b16 %v6762, %v6761
  %v6848 = vpack.c.b16 %v6764, %v6763
  %v6849 = vpack.c.b16 %v6766, %v6765
  %v6850 = vpack.c.b16 %v6768, %v6767
  %v6851 = vpack.c.b16 %v6770, %v6769
  %v6852 = vpack.c.b16 %v6772, %v6771
  %v6853 = vpack.c.b16 %v6774, %v6773
  %v6854 = vpack.c.b16 %v6776, %v6775
  %v6855 = vpack.c.b16 %v6778, %v6777
  %v6856 = vpack.c.b16 %v6780, %v6779
  %v6857 = vpack.c.b16 %v6782, %v6781
  %v6858 = vpack.c.b16 %v6784, %v6783
  %v6859 = vpack.c.b16 %v6786, %v6785
  %v6860 = vpack.c.b16 %v6788, %v6787
  %v6861 = vpack.c.b16 %v6790, %v6789
  %v6862 = vpack.c.b16 %v6792, %v6791
  %v6863 = vpack.c.b16 %v6794, %v6793
  %v6864 = vpack.c.b16 %v6796, %v6795
  %v6865 = vpack.c.b16 %v6798, %v6797
  %v6866 = vpack.c.b16 %v6800, %v6799
  %v6867 = vpack.c.b16 %v6802, %v6801
  %v6868 = vpack.c.b16 %v6804, %v6803
  %v6869 = vpack.c.b16 %v6806, %v6805
  %v6870 = vpack.c.b16 %v6808, %v6807
  %v6871 = vpack.c.b16 %v6810, %v6809
  %v6872 = vpack.c.b16 %v6812, %v6811
  %v6873 = vpack.c.b16 %v6814, %v6813
  %v6874 = vpack.c.b16 %v6816, %v6815
  %v6875 = vpack.c.b16 %v6818, %v6817
  %v6876 = vpack.c.b16 %v6820, %v6819
  %v6877 = vpack.c.b16 %v6822, %v6821
  %v6878 = vpack.c.b16 %v6824, %v6823
  %v6879 = vpack.c.b16 %v6826, %v6825
  %v6880 = vpack.c.b16 %v6828, %v6827
  %v6881 = vpack.c.b16 %v6830, %v6829
  %v6882 = vpack.c.b16 %v6832, %v6831
  %v6883 = vpack.c.b16 %v6834, %v6833
  %v6884 = vpack.c.b16 %v6836, %v6835
  %6933 = vmatprep.subr.bf16.mxu0 0
  %6934 = vmatpush1.bf16.msra.mxu0 %v6844
  %6935 = vmatprep.subr.bf16.mxu0 0
  %6936 = vmatpush1.bf16.msra.mxu0 %v6843
  %6937 = vmatprep.subr.bf16.mxu0 0
  %6938 = vmatpush1.bf16.msra.mxu0 %v6842
  %6939 = vmatprep.subr.bf16.mxu0 0
  %6940 = vmatpush1.bf16.msra.mxu0 %v6841
  %6941 = vmatprep.subr.bf16.mxu0 0
  %6942 = vmatpush1.bf16.msra.mxu0 %v6840
  %6943 = vmatprep.subr.bf16.mxu0 0
  %6944 = vmatpush1.bf16.msra.mxu0 %v6839
  %6945 = vmatprep.subr.bf16.mxu0 0
  %6946 = vmatpush1.bf16.msra.mxu0 %v6838
  %6947 = vmatprep.subr.bf16.mxu0 0
  %6948 = vmatpush1.bf16.msra.mxu0 %v6837
  %6949 = vmatprep.subr.bf16.mxu0 0
  %6950 = vmatpush2.bf16.msra.mxu0 %v6852
  %6951 = vmatprep.subr.bf16.mxu0 0
  %6952 = vmatpush2.bf16.msra.mxu0 %v6851
  %6953 = vmatprep.subr.bf16.mxu0 0
  %6954 = vmatpush2.bf16.msra.mxu0 %v6850
  %6955 = vmatprep.subr.bf16.mxu0 0
  %6956 = vmatpush2.bf16.msra.mxu0 %v6849
  %6957 = vmatprep.subr.bf16.mxu0 0
  %6958 = vmatpush2.bf16.msra.mxu0 %v6848
  %6959 = vmatprep.subr.bf16.mxu0 0
  %6960 = vmatpush2.bf16.msra.mxu0 %v6847
  %6961 = vmatprep.subr.bf16.mxu0 0
  %6962 = vmatpush2.bf16.msra.mxu0 %v6846
  %6963 = vmatprep.subr.bf16.mxu0 0
  %6964 = vmatpush2.bf16.msra.mxu0 %v6845
  %6965 = vmatprep.mubr.bf16.mxu0 %v6526
  %6966 = vmatmul.mubr.bf16.gmra.mxu0 %v6525
  %v6967 = vpop.f32.mrf.mxu0
  %v6968 = vadd.f32 %v6248, %v6967
  %v6969 = vpop.f32.mrf.mxu0
  %v6970 = vpop.f32.mrf.mxu0
  %v6971 = vadd.f32 %v6253, %v6970
  %v6972 = vpop.f32.mrf.mxu0
  %6973 = vmatprep.mubr.bf16.mxu0 %v6532
  %6974 = vmatmul.mubr.bf16.gmra.mxu0 %v6531
  %v6975 = vpop.f32.mrf.mxu0
  %v6976 = vadd.f32 %v6258, %v6975
  %v6977 = vpop.f32.mrf.mxu0
  %v6978 = vpop.f32.mrf.mxu0
  %v6979 = vadd.f32 %v6263, %v6978
  %v6980 = vpop.f32.mrf.mxu0
  %6981 = vmatprep.mubr.bf16.mxu0 %v6538
  %6982 = vmatmul.mubr.bf16.gmra.mxu0 %v6537
  %v6983 = vpop.f32.mrf.mxu0
  %v6984 = vadd.f32 %v6268, %v6983
  %v6985 = vpop.f32.mrf.mxu0
  %v6986 = vpop.f32.mrf.mxu0
  %v6987 = vadd.f32 %v6273, %v6986
  %v6988 = vpop.f32.mrf.mxu0
  %6989 = vmatprep.mubr.bf16.mxu0 %v6544
  %6990 = vmatmul.mubr.bf16.gmra.mxu0 %v6543
  %v6991 = vpop.f32.mrf.mxu0
  %v6992 = vadd.f32 %v6278, %v6991
  %v6993 = vpop.f32.mrf.mxu0
  %v6994 = vpop.f32.mrf.mxu0
  %v6995 = vadd.f32 %v6283, %v6994
  %v6996 = vpop.f32.mrf.mxu0
  %6997 = vmatprep.mubr.bf16.mxu0 %v6550
  %6998 = vmatmul.mubr.bf16.gmra.mxu0 %v6549
  %v6999 = vpop.f32.mrf.mxu0
  %v7000 = vadd.f32 %v6288, %v6999
  %v7001 = vpop.f32.mrf.mxu0
  %v7002 = vpop.f32.mrf.mxu0
  %v7003 = vadd.f32 %v6293, %v7002
  %v7004 = vpop.f32.mrf.mxu0
  %7005 = vmatprep.mubr.bf16.mxu0 %v6556
  %7006 = vmatmul.mubr.bf16.gmra.mxu0 %v6555
  %v7007 = vpop.f32.mrf.mxu0
  %v7008 = vadd.f32 %v6298, %v7007
  %v7009 = vpop.f32.mrf.mxu0
  %v7010 = vpop.f32.mrf.mxu0
  %v7011 = vadd.f32 %v6303, %v7010
  %v7012 = vpop.f32.mrf.mxu0
  %7013 = vmatprep.mubr.bf16.mxu0 %v6562
  %7014 = vmatmul.mubr.bf16.gmra.mxu0 %v6561
  %v7015 = vpop.f32.mrf.mxu0
  %v7016 = vadd.f32 %v6308, %v7015
  %v7017 = vpop.f32.mrf.mxu0
  %v7018 = vpop.f32.mrf.mxu0
  %v7019 = vadd.f32 %v6313, %v7018
  %v7020 = vpop.f32.mrf.mxu0
  %7021 = vmatprep.mubr.bf16.mxu0 %v6568
  %7022 = vmatmul.mubr.bf16.gmra.mxu0 %v6567
  %v7023 = vpop.f32.mrf.mxu0
  %v7024 = vadd.f32 %v6318, %v7023
  %v7025 = vpop.f32.mrf.mxu0
  %v7026 = vpop.f32.mrf.mxu0
  %v7027 = vadd.f32 %v6323, %v7026
  %v7028 = vpop.f32.mrf.mxu0
  %7029 = vmatprep.mubr.bf16.mxu0 %v6574
  %7030 = vmatmul.mubr.bf16.gmra.mxu0 %v6573
  %v7031 = vpop.f32.mrf.mxu0
  %v7032 = vadd.f32 %v6328, %v7031
  %v7033 = vpop.f32.mrf.mxu0
  %v7034 = vpop.f32.mrf.mxu0
  %v7035 = vadd.f32 %v6333, %v7034
  %v7036 = vpop.f32.mrf.mxu0
  %7037 = vmatprep.mubr.bf16.mxu0 %v6580
  %7038 = vmatmul.mubr.bf16.gmra.mxu0 %v6579
  %v7039 = vpop.f32.mrf.mxu0
  %v7040 = vadd.f32 %v6338, %v7039
  %v7041 = vpop.f32.mrf.mxu0
  %v7042 = vpop.f32.mrf.mxu0
  %v7043 = vadd.f32 %v6343, %v7042
  %v7044 = vpop.f32.mrf.mxu0
  %7045 = vdwg.mxu0
  %7046 = vmatprep.subr.bf16.mxu0 0
  %7047 = vmatpush1.bf16.msra.mxu0 %v6860
  %7048 = vmatprep.subr.bf16.mxu0 0
  %7049 = vmatpush1.bf16.msra.mxu0 %v6859
  %7050 = vmatprep.subr.bf16.mxu0 0
  %7051 = vmatpush1.bf16.msra.mxu0 %v6858
  %7052 = vmatprep.subr.bf16.mxu0 0
  %7053 = vmatpush1.bf16.msra.mxu0 %v6857
  %7054 = vmatprep.subr.bf16.mxu0 0
  %7055 = vmatpush1.bf16.msra.mxu0 %v6856
  %7056 = vmatprep.subr.bf16.mxu0 0
  %7057 = vmatpush1.bf16.msra.mxu0 %v6855
  %7058 = vmatprep.subr.bf16.mxu0 0
  %7059 = vmatpush1.bf16.msra.mxu0 %v6854
  %7060 = vmatprep.subr.bf16.mxu0 0
  %7061 = vmatpush1.bf16.msra.mxu0 %v6853
  %7062 = vmatprep.subr.bf16.mxu0 0
  %7063 = vmatpush2.bf16.msra.mxu0 %v6868
  %7064 = vmatprep.subr.bf16.mxu0 0
  %7065 = vmatpush2.bf16.msra.mxu0 %v6867
  %7066 = vmatprep.subr.bf16.mxu0 0
  %7067 = vmatpush2.bf16.msra.mxu0 %v6866
  %7068 = vmatprep.subr.bf16.mxu0 0
  %7069 = vmatpush2.bf16.msra.mxu0 %v6865
  %7070 = vmatprep.subr.bf16.mxu0 0
  %7071 = vmatpush2.bf16.msra.mxu0 %v6864
  %7072 = vmatprep.subr.bf16.mxu0 0
  %7073 = vmatpush2.bf16.msra.mxu0 %v6863
  %7074 = vmatprep.subr.bf16.mxu0 0
  %7075 = vmatpush2.bf16.msra.mxu0 %v6862
  %7076 = vmatprep.subr.bf16.mxu0 0
  %7077 = vmatpush2.bf16.msra.mxu0 %v6861
  %7078 = vmatprep.mubr.bf16.mxu0 %v6528
  %7079 = vmatmul.mubr.bf16.gmra.mxu0 %v6527
  %v7080 = vpop.f32.mrf.mxu0
  %v7081 = vadd.f32 %v6968, %v7080
  %v7082 = vpop.f32.mrf.mxu0
  %v7083 = vpop.f32.mrf.mxu0
  %v7084 = vadd.f32 %v6971, %v7083
  %v7085 = vpop.f32.mrf.mxu0
  %7086 = vmatprep.mubr.bf16.mxu0 %v6534
  %7087 = vmatmul.mubr.bf16.gmra.mxu0 %v6533
  %v7088 = vpop.f32.mrf.mxu0
  %v7089 = vadd.f32 %v6976, %v7088
  %v7090 = vpop.f32.mrf.mxu0
  %v7091 = vpop.f32.mrf.mxu0
  %v7092 = vadd.f32 %v6979, %v7091
  %v7093 = vpop.f32.mrf.mxu0
  %7094 = vmatprep.mubr.bf16.mxu0 %v6540
  %7095 = vmatmul.mubr.bf16.gmra.mxu0 %v6539
  %v7096 = vpop.f32.mrf.mxu0
  %v7097 = vadd.f32 %v6984, %v7096
  %v7098 = vpop.f32.mrf.mxu0
  %v7099 = vpop.f32.mrf.mxu0
  %v7100 = vadd.f32 %v6987, %v7099
  %v7101 = vpop.f32.mrf.mxu0
  %7102 = vmatprep.mubr.bf16.mxu0 %v6546
  %7103 = vmatmul.mubr.bf16.gmra.mxu0 %v6545
  %v7104 = vpop.f32.mrf.mxu0
  %v7105 = vadd.f32 %v6992, %v7104
  %v7106 = vpop.f32.mrf.mxu0
  %v7107 = vpop.f32.mrf.mxu0
  %v7108 = vadd.f32 %v6995, %v7107
  %v7109 = vpop.f32.mrf.mxu0
  %7110 = vmatprep.mubr.bf16.mxu0 %v6552
  %7111 = vmatmul.mubr.bf16.gmra.mxu0 %v6551
  %v7112 = vpop.f32.mrf.mxu0
  %v7113 = vadd.f32 %v7000, %v7112
  %v7114 = vpop.f32.mrf.mxu0
  %v7115 = vpop.f32.mrf.mxu0
  %v7116 = vadd.f32 %v7003, %v7115
  %v7117 = vpop.f32.mrf.mxu0
  %7118 = vmatprep.mubr.bf16.mxu0 %v6558
  %7119 = vmatmul.mubr.bf16.gmra.mxu0 %v6557
  %v7120 = vpop.f32.mrf.mxu0
  %v7121 = vadd.f32 %v7008, %v7120
  %v7122 = vpop.f32.mrf.mxu0
  %v7123 = vpop.f32.mrf.mxu0
  %v7124 = vadd.f32 %v7011, %v7123
  %v7125 = vpop.f32.mrf.mxu0
  %7126 = vmatprep.mubr.bf16.mxu0 %v6564
  %7127 = vmatmul.mubr.bf16.gmra.mxu0 %v6563
  %v7128 = vpop.f32.mrf.mxu0
  %v7129 = vadd.f32 %v7016, %v7128
  %v7130 = vpop.f32.mrf.mxu0
  %v7131 = vpop.f32.mrf.mxu0
  %v7132 = vadd.f32 %v7019, %v7131
  %v7133 = vpop.f32.mrf.mxu0
  %7134 = vmatprep.mubr.bf16.mxu0 %v6570
  %7135 = vmatmul.mubr.bf16.gmra.mxu0 %v6569
  %v7136 = vpop.f32.mrf.mxu0
  %v7137 = vadd.f32 %v7024, %v7136
  %v7138 = vpop.f32.mrf.mxu0
  %v7139 = vpop.f32.mrf.mxu0
  %v7140 = vadd.f32 %v7027, %v7139
  %v7141 = vpop.f32.mrf.mxu0
  %7142 = vmatprep.mubr.bf16.mxu0 %v6576
  %7143 = vmatmul.mubr.bf16.gmra.mxu0 %v6575
  %v7144 = vpop.f32.mrf.mxu0
  %v7145 = vadd.f32 %v7032, %v7144
  %v7146 = vpop.f32.mrf.mxu0
  %v7147 = vpop.f32.mrf.mxu0
  %v7148 = vadd.f32 %v7035, %v7147
  %v7149 = vpop.f32.mrf.mxu0
  %7150 = vmatprep.mubr.bf16.mxu0 %v6582
  %7151 = vmatmul.mubr.bf16.gmra.mxu0 %v6581
  %v7152 = vpop.f32.mrf.mxu0
  %v7153 = vadd.f32 %v7040, %v7152
  %v7154 = vpop.f32.mrf.mxu0
  %v7155 = vpop.f32.mrf.mxu0
  %v7156 = vadd.f32 %v7043, %v7155
  %v7157 = vpop.f32.mrf.mxu0
  %7158 = vdwg.mxu0
  %7159 = vmatprep.subr.bf16.mxu0 0
  %7160 = vmatpush1.bf16.msra.mxu0 %v6876
  %7161 = vmatprep.subr.bf16.mxu0 0
  %7162 = vmatpush1.bf16.msra.mxu0 %v6875
  %7163 = vmatprep.subr.bf16.mxu0 0
  %7164 = vmatpush1.bf16.msra.mxu0 %v6874
  %7165 = vmatprep.subr.bf16.mxu0 0
  %7166 = vmatpush1.bf16.msra.mxu0 %v6873
  %7167 = vmatprep.subr.bf16.mxu0 0
  %7168 = vmatpush1.bf16.msra.mxu0 %v6872
  %7169 = vmatprep.subr.bf16.mxu0 0
  %7170 = vmatpush1.bf16.msra.mxu0 %v6871
  %7171 = vmatprep.subr.bf16.mxu0 0
  %7172 = vmatpush1.bf16.msra.mxu0 %v6870
  %7173 = vmatprep.subr.bf16.mxu0 0
  %7174 = vmatpush1.bf16.msra.mxu0 %v6869
  %7175 = vmatprep.subr.bf16.mxu0 0
  %7176 = vmatpush2.bf16.msra.mxu0 %v6884
  %7177 = vmatprep.subr.bf16.mxu0 0
  %7178 = vmatpush2.bf16.msra.mxu0 %v6883
  %7179 = vmatprep.subr.bf16.mxu0 0
  %7180 = vmatpush2.bf16.msra.mxu0 %v6882
  %7181 = vmatprep.subr.bf16.mxu0 0
  %7182 = vmatpush2.bf16.msra.mxu0 %v6881
  %7183 = vmatprep.subr.bf16.mxu0 0
  %7184 = vmatpush2.bf16.msra.mxu0 %v6880
  %7185 = vmatprep.subr.bf16.mxu0 0
  %7186 = vmatpush2.bf16.msra.mxu0 %v6879
  %7187 = vmatprep.subr.bf16.mxu0 0
  %7188 = vmatpush2.bf16.msra.mxu0 %v6878
  %7189 = vmatprep.subr.bf16.mxu0 0
  %7190 = vmatpush2.bf16.msra.mxu0 %v6877
  %7191 = vmatprep.mubr.bf16.mxu0 %v6530
  %7192 = vmatmul.mubr.bf16.gmra.mxu0 %v6529
  %v7193 = vpop.f32.mrf.mxu0
  %v7194 = vadd.f32 %v7081, %v7193
  %v7195 = vpop.f32.mrf.mxu0
  %v7196 = vpop.f32.mrf.mxu0
  %v7197 = vadd.f32 %v7084, %v7196
  %v7198 = vpop.f32.mrf.mxu0
  %7199 = vmatprep.mubr.bf16.mxu0 %v6536
  %7200 = vmatmul.mubr.bf16.gmra.mxu0 %v6535
  %v7201 = vpop.f32.mrf.mxu0
  %v7202 = vadd.f32 %v7089, %v7201
  %v7203 = vpop.f32.mrf.mxu0
  %v7204 = vpop.f32.mrf.mxu0
  %v7205 = vadd.f32 %v7092, %v7204
  %v7206 = vpop.f32.mrf.mxu0
  %7207 = vmatprep.mubr.bf16.mxu0 %v6542
  %7208 = vmatmul.mubr.bf16.gmra.mxu0 %v6541
  %v7209 = vpop.f32.mrf.mxu0
  %v7210 = vadd.f32 %v7097, %v7209
  %v7211 = vpop.f32.mrf.mxu0
  %v7212 = vpop.f32.mrf.mxu0
  %v7213 = vadd.f32 %v7100, %v7212
  %v7214 = vpop.f32.mrf.mxu0
  %7215 = vmatprep.mubr.bf16.mxu0 %v6548
  %7216 = vmatmul.mubr.bf16.gmra.mxu0 %v6547
  %v7217 = vpop.f32.mrf.mxu0
  %v7218 = vadd.f32 %v7105, %v7217
  %v7219 = vpop.f32.mrf.mxu0
  %v7220 = vpop.f32.mrf.mxu0
  %v7221 = vadd.f32 %v7108, %v7220
  %v7222 = vpop.f32.mrf.mxu0
  %7223 = vmatprep.mubr.bf16.mxu0 %v6554
  %7224 = vmatmul.mubr.bf16.gmra.mxu0 %v6553
  %v7225 = vpop.f32.mrf.mxu0
  %v7226 = vadd.f32 %v7113, %v7225
  %v7227 = vpop.f32.mrf.mxu0
  %v7228 = vpop.f32.mrf.mxu0
  %v7229 = vadd.f32 %v7116, %v7228
  %v7230 = vpop.f32.mrf.mxu0
  %7231 = vmatprep.mubr.bf16.mxu0 %v6560
  %7232 = vmatmul.mubr.bf16.gmra.mxu0 %v6559
  %v7233 = vpop.f32.mrf.mxu0
  %v7234 = vadd.f32 %v7121, %v7233
  %v7235 = vpop.f32.mrf.mxu0
  %v7236 = vpop.f32.mrf.mxu0
  %v7237 = vadd.f32 %v7124, %v7236
  %v7238 = vpop.f32.mrf.mxu0
  %7239 = vmatprep.mubr.bf16.mxu0 %v6566
  %7240 = vmatmul.mubr.bf16.gmra.mxu0 %v6565
  %v7241 = vpop.f32.mrf.mxu0
  %v7242 = vadd.f32 %v7129, %v7241
  %v7243 = vpop.f32.mrf.mxu0
  %v7244 = vpop.f32.mrf.mxu0
  %v7245 = vadd.f32 %v7132, %v7244
  %v7246 = vpop.f32.mrf.mxu0
  %7247 = vmatprep.mubr.bf16.mxu0 %v6572
  %7248 = vmatmul.mubr.bf16.gmra.mxu0 %v6571
  %v7249 = vpop.f32.mrf.mxu0
  %v7250 = vadd.f32 %v7137, %v7249
  %v7251 = vpop.f32.mrf.mxu0
  %v7252 = vpop.f32.mrf.mxu0
  %v7253 = vadd.f32 %v7140, %v7252
  %v7254 = vpop.f32.mrf.mxu0
  %7255 = vmatprep.mubr.bf16.mxu0 %v6578
  %7256 = vmatmul.mubr.bf16.gmra.mxu0 %v6577
  %v7257 = vpop.f32.mrf.mxu0
  %v7258 = vadd.f32 %v7145, %v7257
  %v7259 = vpop.f32.mrf.mxu0
  %v7260 = vpop.f32.mrf.mxu0
  %v7261 = vadd.f32 %v7148, %v7260
  %v7262 = vpop.f32.mrf.mxu0
  %7263 = vmatprep.mubr.bf16.mxu0 %v6584
  %7264 = vmatmul.mubr.bf16.gmra.mxu0 %v6583
  %v7265 = vpop.f32.mrf.mxu0
  %v7266 = vadd.f32 %v7153, %v7265
  %v7267 = vpop.f32.mrf.mxu0
  %v7268 = vpop.f32.mrf.mxu0
  %v7269 = vadd.f32 %v7156, %v7268
  %v7270 = vpop.f32.mrf.mxu0
  %7271 = vdwg.mxu0
  %v7272 = vmax.f32 %v7194, 0.0
  %v7273 = vmax.f32 %v7197, 0.0
  %v7274 = vmax.f32 %v7202, 0.0
  %v7275 = vmax.f32 %v7205, 0.0
  %v7276 = vmax.f32 %v7210, 0.0
  %v7277 = vmax.f32 %v7213, 0.0
  %v7278 = vmax.f32 %v7218, 0.0
  %v7279 = vmax.f32 %v7221, 0.0
  %v7280 = vmax.f32 %v7226, 0.0
  %v7281 = vmax.f32 %v7229, 0.0
  %v7282 = vmax.f32 %v7234, 0.0
  %v7283 = vmax.f32 %v7237, 0.0
  %v7284 = vmax.f32 %v7242, 0.0
  %v7285 = vmax.f32 %v7245, 0.0
  %v7286 = vmax.f32 %v7250, 0.0
  %v7287 = vmax.f32 %v7253, 0.0
  %v7288 = vmax.f32 %v7258, 0.0
  %v7289 = vmax.f32 %v7261, 0.0
  %v7290 = vmax.f32 %v7266, 0.0
  %v7291 = vmax.f32 %v7269, 0.0
  %v7292 = vpack.c.bf16 %v7273, %v7272
  %v7293 = vpack.c.bf16 %v7275, %v7274
  %v7294 = vpack.c.bf16 %v7277, %v7276
  %v7295 = vpack.c.bf16 %v7279, %v7278
  %v7296 = vpack.c.bf16 %v7281, %v7280
  %v7297 = vpack.c.bf16 %v7283, %v7282
  %v7298 = vpack.c.bf16 %v7285, %v7284
  %v7299 = vpack.c.bf16 %v7287, %v7286
  %v7300 = vpack.c.bf16 %v7289, %v7288
  %v7301 = vpack.c.bf16 %v7291, %v7290
  %v7312 = vunpack.c.l.b16 %v7292
  %v7313 = vunpack.c.h.b16 %v7292
  %v7314 = vunpack.c.l.b16 %v7293
  %v7315 = vunpack.c.h.b16 %v7293
  %v7316 = vunpack.c.l.b16 %v7294
  %v7317 = vunpack.c.h.b16 %v7294
  %v7318 = vunpack.c.l.b16 %v7295
  %v7319 = vunpack.c.h.b16 %v7295
  %v7320 = vunpack.c.l.b16 %v7296
  %v7321 = vunpack.c.h.b16 %v7296
  %v7322 = vunpack.c.l.b16 %v7297
  %v7323 = vunpack.c.h.b16 %v7297
  %v7324 = vunpack.c.l.b16 %v7298
  %v7325 = vunpack.c.h.b16 %v7298
  %v7326 = vunpack.c.l.b16 %v7299
  %v7327 = vunpack.c.h.b16 %v7299
  %v7328 = vunpack.c.l.b16 %v7300
  %v7329 = vunpack.c.h.b16 %v7300
  %v7330 = vunpack.c.l.b16 %v7301
  %v7331 = vunpack.c.h.b16 %v7301
  %v7332 = vpack.c.b16 %v7312, %v7312
  %v7333 = vpack.c.b16 %v7313, %v7313
  %v7334 = vpack.c.b16 %v7314, %v7314
  %v7335 = vpack.c.b16 %v7315, %v7315
  %v7336 = vpack.c.b16 %v7316, %v7316
  %v7337 = vpack.c.b16 %v7317, %v7317
  %v7338 = vpack.c.b16 %v7318, %v7318
  %v7339 = vpack.c.b16 %v7319, %v7319
  %v7340 = vpack.c.b16 %v7320, %v7320
  %v7341 = vpack.c.b16 %v7321, %v7321
  %v7342 = vpack.c.b16 %v7322, %v7322
  %v7343 = vpack.c.b16 %v7323, %v7323
  %v7344 = vpack.c.b16 %v7324, %v7324
  %v7345 = vpack.c.b16 %v7325, %v7325
  %v7346 = vpack.c.b16 %v7326, %v7326
  %v7347 = vpack.c.b16 %v7327, %v7327
  %v7348 = vpack.c.b16 %v7328, %v7328
  %v7349 = vpack.c.b16 %v7329, %v7329
  %v7350 = vpack.c.b16 %v7330, %v7330
  %v7351 = vpack.c.b16 %v7331, %v7331
  %7372 = vst [vmem:[#allocation3 + $0x50] sm:$0xf] %v7332
  %7373 = vst [vmem:[#allocation3 + $0x54] sm:$0xf] %v7333
  %7374 = vst [vmem:[#allocation3 + $0x58] sm:$0xf] %v7334
  %7375 = vst [vmem:[#allocation3 + $0x5c] sm:$0xf] %v7335
  %7376 = vst [vmem:[#allocation3 + $0x60] sm:$0xf] %v7336
  %7377 = vst [vmem:[#allocation3 + $0x64] sm:$0xf] %v7337
  %7378 = vst [vmem:[#allocation3 + $0x68] sm:$0xf] %v7338
  %7379 = vst [vmem:[#allocation3 + $0x6c] sm:$0xf] %v7339
  %7380 = vst [vmem:[#allocation3 + $0x70] sm:$0xf] %v7340
  %7381 = vst [vmem:[#allocation3 + $0x74] sm:$0xf] %v7341
  %7382 = vst [vmem:[#allocation3 + $0x78] sm:$0xf] %v7342
  %7383 = vst [vmem:[#allocation3 + $0x7c] sm:$0xf] %v7343
  %7384 = vst [vmem:[#allocation3 + $0x80] sm:$0xf] %v7344
  %7385 = vst [vmem:[#allocation3 + $0x84] sm:$0xf] %v7345
  %7386 = vst [vmem:[#allocation3 + $0x88] sm:$0xf] %v7346
  %7387 = vst [vmem:[#allocation3 + $0x8c] sm:$0xf] %v7347
  %7388 = vst [vmem:[#allocation3 + $0x90] sm:$0xf] %v7348
  %7389 = vst [vmem:[#allocation3 + $0x94] sm:$0xf] %v7349
  %7390 = vst [vmem:[#allocation3 + $0x98] sm:$0xf] %v7350
  %7391 = vst [vmem:[#allocation3 + $0x9c] sm:$0xf] %v7351
  %v7392 = vld [vmem:[#allocation2 + $0x100] sm:$0xf]
  %v7393 = vld [vmem:[#allocation2 + $0x104] sm:$0xf]
  %v7394 = vld [vmem:[#allocation2 + $0x108] sm:$0xf]
  %v7395 = vld [vmem:[#allocation2 + $0x10c] sm:$0xf]
  %v7396 = vld [vmem:[#allocation2 + $0x110] sm:$0xf]
  %v7397 = vld [vmem:[#allocation2 + $0x114] sm:$0xf]
  %v7398 = vld [vmem:[#allocation2 + $0x118] sm:$0xf]
  %v7399 = vld [vmem:[#allocation2 + $0x11c] sm:$0xf]
  %v7400 = vld [vmem:[#allocation2 + $0x120] sm:$0xf]
  %v7401 = vld [vmem:[#allocation2 + $0x124] sm:$0xf]
  %v7402 = vld [vmem:[#allocation2 + $0x128] sm:$0xf]
  %v7403 = vld [vmem:[#allocation2 + $0x12c] sm:$0xf]
  %v7404 = vld [vmem:[#allocation2 + $0x130] sm:$0xf]
  %v7405 = vld [vmem:[#allocation2 + $0x134] sm:$0xf]
  %v7406 = vld [vmem:[#allocation2 + $0x138] sm:$0xf]
  %v7407 = vld [vmem:[#allocation2 + $0x13c] sm:$0xf]
  %v7408 = vld [vmem:[#allocation2 + $0x140] sm:$0xf]
  %v7409 = vld [vmem:[#allocation2 + $0x144] sm:$0xf]
  %v7410 = vld [vmem:[#allocation2 + $0x148] sm:$0xf]
  %v7411 = vld [vmem:[#allocation2 + $0x14c] sm:$0xf]
  %v7412 = vld [vmem:[#allocation2 + $0x150] sm:$0xf]
  %v7413 = vld [vmem:[#allocation2 + $0x154] sm:$0xf]
  %v7414 = vld [vmem:[#allocation2 + $0x158] sm:$0xf]
  %v7415 = vld [vmem:[#allocation2 + $0x15c] sm:$0xf]
  %v7416 = vld [vmem:[#allocation2 + $0x160] sm:$0xf]
  %v7417 = vld [vmem:[#allocation2 + $0x164] sm:$0xf]
  %v7418 = vld [vmem:[#allocation2 + $0x168] sm:$0xf]
  %v7419 = vld [vmem:[#allocation2 + $0x16c] sm:$0xf]
  %v7420 = vld [vmem:[#allocation2 + $0x170] sm:$0xf]
  %v7421 = vld [vmem:[#allocation2 + $0x174] sm:$0xf]
  %v7422 = vld [vmem:[#allocation2 + $0x178] sm:$0xf]
  %v7423 = vld [vmem:[#allocation2 + $0x17c] sm:$0xf]
  %v7424 = vld [vmem:[#allocation2 + $0x180] sm:$0xf]
  %v7425 = vld [vmem:[#allocation2 + $0x184] sm:$0xf]
  %v7426 = vld [vmem:[#allocation2 + $0x188] sm:$0xf]
  %v7427 = vld [vmem:[#allocation2 + $0x18c] sm:$0xf]
  %v7428 = vld [vmem:[#allocation2 + $0x190] sm:$0xf]
  %v7429 = vld [vmem:[#allocation2 + $0x194] sm:$0xf]
  %v7430 = vld [vmem:[#allocation2 + $0x198] sm:$0xf]
  %v7431 = vld [vmem:[#allocation2 + $0x19c] sm:$0xf]
  %v7432 = vld [vmem:[#allocation2 + $0x1a0] sm:$0xf]
  %v7433 = vld [vmem:[#allocation2 + $0x1a4] sm:$0xf]
  %v7434 = vld [vmem:[#allocation2 + $0x1a8] sm:$0xf]
  %v7435 = vld [vmem:[#allocation2 + $0x1ac] sm:$0xf]
  %v7436 = vld [vmem:[#allocation2 + $0x1b0] sm:$0xf]
  %v7437 = vld [vmem:[#allocation2 + $0x1b4] sm:$0xf]
  %v7438 = vld [vmem:[#allocation2 + $0x1b8] sm:$0xf]
  %v7439 = vld [vmem:[#allocation2 + $0x1bc] sm:$0xf]
  %v7440 = vld [vmem:[#allocation2 + $0x1c0] sm:$0xf]
  %v7441 = vld [vmem:[#allocation2 + $0x1c4] sm:$0xf]
  %v7442 = vld [vmem:[#allocation2 + $0x1c8] sm:$0xf]
  %v7443 = vld [vmem:[#allocation2 + $0x1cc] sm:$0xf]
  %v7444 = vld [vmem:[#allocation2 + $0x1d0] sm:$0xf]
  %v7445 = vld [vmem:[#allocation2 + $0x1d4] sm:$0xf]
  %v7446 = vld [vmem:[#allocation2 + $0x1d8] sm:$0xf]
  %v7447 = vld [vmem:[#allocation2 + $0x1dc] sm:$0xf]
  %v7448 = vld [vmem:[#allocation2 + $0x1e0] sm:$0xf]
  %v7449 = vld [vmem:[#allocation2 + $0x1e4] sm:$0xf]
  %v7450 = vld [vmem:[#allocation2 + $0x1e8] sm:$0xf]
  %v7451 = vld [vmem:[#allocation2 + $0x1ec] sm:$0xf]
  %v7452 = vld [vmem:[#allocation2 + $0x1f0] sm:$0xf]
  %v7453 = vld [vmem:[#allocation2 + $0x1f4] sm:$0xf]
  %v7454 = vld [vmem:[#allocation2 + $0x1f8] sm:$0xf]
  %v7455 = vld [vmem:[#allocation2 + $0x1fc] sm:$0xf]
  %v7456 = vld [vmem:[#allocation2 + $0x200] sm:$0xf]
  %v7457 = vld [vmem:[#allocation2 + $0x204] sm:$0xf]
  %v7458 = vld [vmem:[#allocation2 + $0x208] sm:$0xf]
  %v7459 = vld [vmem:[#allocation2 + $0x20c] sm:$0xf]
  %v7460 = vld [vmem:[#allocation2 + $0x210] sm:$0xf]
  %v7461 = vld [vmem:[#allocation2 + $0x214] sm:$0xf]
  %v7462 = vld [vmem:[#allocation2 + $0x218] sm:$0xf]
  %v7463 = vld [vmem:[#allocation2 + $0x21c] sm:$0xf]
  %v7464 = vld [vmem:[#allocation2 + $0x220] sm:$0xf]
  %v7465 = vld [vmem:[#allocation2 + $0x224] sm:$0xf]
  %v7466 = vld [vmem:[#allocation2 + $0x228] sm:$0xf]
  %v7467 = vld [vmem:[#allocation2 + $0x22c] sm:$0xf]
  %v7468 = vld [vmem:[#allocation2 + $0x230] sm:$0xf]
  %v7469 = vld [vmem:[#allocation2 + $0x234] sm:$0xf]
  %v7470 = vld [vmem:[#allocation2 + $0x238] sm:$0xf]
  %v7471 = vld [vmem:[#allocation2 + $0x23c] sm:$0xf]
  %v7472 = vld [vmem:[#allocation2 + $0x240] sm:$0xf]
  %v7473 = vld [vmem:[#allocation2 + $0x244] sm:$0xf]
  %v7474 = vld [vmem:[#allocation2 + $0x248] sm:$0xf]
  %v7475 = vld [vmem:[#allocation2 + $0x24c] sm:$0xf]
  %v7476 = vld [vmem:[#allocation2 + $0x250] sm:$0xf]
  %v7477 = vld [vmem:[#allocation2 + $0x254] sm:$0xf]
  %v7478 = vld [vmem:[#allocation2 + $0x258] sm:$0xf]
  %v7479 = vld [vmem:[#allocation2 + $0x25c] sm:$0xf]
  %v7480 = vld [vmem:[#allocation2 + $0x260] sm:$0xf]
  %v7481 = vld [vmem:[#allocation2 + $0x264] sm:$0xf]
  %v7482 = vld [vmem:[#allocation2 + $0x268] sm:$0xf]
  %v7483 = vld [vmem:[#allocation2 + $0x26c] sm:$0xf]
  %v7484 = vld [vmem:[#allocation2 + $0x270] sm:$0xf]
  %v7485 = vld [vmem:[#allocation2 + $0x274] sm:$0xf]
  %v7486 = vld [vmem:[#allocation2 + $0x278] sm:$0xf]
  %v7487 = vld [vmem:[#allocation2 + $0x27c] sm:$0xf]
  %v7584 = vunpack.c.l.b16 %v7392
  %v7585 = vunpack.c.l.b16 %v7393
  %v7586 = vunpack.c.l.b16 %v7394
  %v7587 = vunpack.c.l.b16 %v7395
  %v7588 = vunpack.c.l.b16 %v7396
  %v7589 = vunpack.c.l.b16 %v7397
  %v7590 = vunpack.c.l.b16 %v7398
  %v7591 = vunpack.c.l.b16 %v7399
  %v7592 = vunpack.c.l.b16 %v7400
  %v7593 = vunpack.c.l.b16 %v7401
  %v7594 = vunpack.c.l.b16 %v7402
  %v7595 = vunpack.c.l.b16 %v7403
  %v7596 = vunpack.c.l.b16 %v7404
  %v7597 = vunpack.c.l.b16 %v7405
  %v7598 = vunpack.c.l.b16 %v7406
  %v7599 = vunpack.c.l.b16 %v7407
  %v7600 = vunpack.c.l.b16 %v7408
  %v7601 = vunpack.c.l.b16 %v7409
  %v7602 = vunpack.c.l.b16 %v7410
  %v7603 = vunpack.c.l.b16 %v7411
  %v7604 = vunpack.c.l.b16 %v7412
  %v7605 = vunpack.c.l.b16 %v7413
  %v7606 = vunpack.c.l.b16 %v7414
  %v7607 = vunpack.c.l.b16 %v7415
  %v7608 = vunpack.c.l.b16 %v7416
  %v7609 = vunpack.c.l.b16 %v7417
  %v7610 = vunpack.c.l.b16 %v7418
  %v7611 = vunpack.c.l.b16 %v7419
  %v7612 = vunpack.c.l.b16 %v7420
  %v7613 = vunpack.c.l.b16 %v7421
  %v7614 = vunpack.c.l.b16 %v7422
  %v7615 = vunpack.c.l.b16 %v7423
  %v7616 = vunpack.c.l.b16 %v7424
  %v7617 = vunpack.c.l.b16 %v7425
  %v7618 = vunpack.c.l.b16 %v7426
  %v7619 = vunpack.c.l.b16 %v7427
  %v7620 = vunpack.c.l.b16 %v7428
  %v7621 = vunpack.c.l.b16 %v7429
  %v7622 = vunpack.c.l.b16 %v7430
  %v7623 = vunpack.c.l.b16 %v7431
  %v7624 = vunpack.c.l.b16 %v7432
  %v7625 = vunpack.c.l.b16 %v7433
  %v7626 = vunpack.c.l.b16 %v7434
  %v7627 = vunpack.c.l.b16 %v7435
  %v7628 = vunpack.c.l.b16 %v7436
  %v7629 = vunpack.c.l.b16 %v7437
  %v7630 = vunpack.c.l.b16 %v7438
  %v7631 = vunpack.c.l.b16 %v7439
  %v7632 = vunpack.c.l.b16 %v7440
  %v7633 = vunpack.c.l.b16 %v7441
  %v7634 = vunpack.c.l.b16 %v7442
  %v7635 = vunpack.c.l.b16 %v7443
  %v7636 = vunpack.c.l.b16 %v7444
  %v7637 = vunpack.c.l.b16 %v7445
  %v7638 = vunpack.c.l.b16 %v7446
  %v7639 = vunpack.c.l.b16 %v7447
  %v7640 = vunpack.c.l.b16 %v7448
  %v7641 = vunpack.c.l.b16 %v7449
  %v7642 = vunpack.c.l.b16 %v7450
  %v7643 = vunpack.c.l.b16 %v7451
  %v7644 = vunpack.c.l.b16 %v7452
  %v7645 = vunpack.c.l.b16 %v7453
  %v7646 = vunpack.c.l.b16 %v7454
  %v7647 = vunpack.c.l.b16 %v7455
  %v7648 = vunpack.c.l.b16 %v7456
  %v7649 = vunpack.c.l.b16 %v7457
  %v7650 = vunpack.c.l.b16 %v7458
  %v7651 = vunpack.c.l.b16 %v7459
  %v7652 = vunpack.c.l.b16 %v7460
  %v7653 = vunpack.c.l.b16 %v7461
  %v7654 = vunpack.c.l.b16 %v7462
  %v7655 = vunpack.c.l.b16 %v7463
  %v7656 = vunpack.c.l.b16 %v7464
  %v7657 = vunpack.c.l.b16 %v7465
  %v7658 = vunpack.c.l.b16 %v7466
  %v7659 = vunpack.c.l.b16 %v7467
  %v7660 = vunpack.c.l.b16 %v7468
  %v7661 = vunpack.c.l.b16 %v7469
  %v7662 = vunpack.c.l.b16 %v7470
  %v7663 = vunpack.c.l.b16 %v7471
  %v7664 = vunpack.c.l.b16 %v7472
  %v7665 = vunpack.c.l.b16 %v7473
  %v7666 = vunpack.c.l.b16 %v7474
  %v7667 = vunpack.c.l.b16 %v7475
  %v7668 = vunpack.c.l.b16 %v7476
  %v7669 = vunpack.c.l.b16 %v7477
  %v7670 = vunpack.c.l.b16 %v7478
  %v7671 = vunpack.c.l.b16 %v7479
  %v7672 = vunpack.c.l.b16 %v7480
  %v7673 = vunpack.c.l.b16 %v7481
  %v7674 = vunpack.c.l.b16 %v7482
  %v7675 = vunpack.c.l.b16 %v7483
  %v7676 = vunpack.c.l.b16 %v7484
  %v7677 = vunpack.c.l.b16 %v7485
  %v7678 = vunpack.c.l.b16 %v7486
  %v7679 = vunpack.c.l.b16 %v7487
  %v7680 = vpack.c.b16 %v7585, %v7584
  %v7681 = vpack.c.b16 %v7587, %v7586
  %v7682 = vpack.c.b16 %v7589, %v7588
  %v7683 = vpack.c.b16 %v7591, %v7590
  %v7684 = vpack.c.b16 %v7593, %v7592
  %v7685 = vpack.c.b16 %v7595, %v7594
  %v7686 = vpack.c.b16 %v7597, %v7596
  %v7687 = vpack.c.b16 %v7599, %v7598
  %v7688 = vpack.c.b16 %v7601, %v7600
  %v7689 = vpack.c.b16 %v7603, %v7602
  %v7690 = vpack.c.b16 %v7605, %v7604
  %v7691 = vpack.c.b16 %v7607, %v7606
  %v7692 = vpack.c.b16 %v7609, %v7608
  %v7693 = vpack.c.b16 %v7611, %v7610
  %v7694 = vpack.c.b16 %v7613, %v7612
  %v7695 = vpack.c.b16 %v7615, %v7614
  %v7696 = vpack.c.b16 %v7617, %v7616
  %v7697 = vpack.c.b16 %v7619, %v7618
  %v7698 = vpack.c.b16 %v7621, %v7620
  %v7699 = vpack.c.b16 %v7623, %v7622
  %v7700 = vpack.c.b16 %v7625, %v7624
  %v7701 = vpack.c.b16 %v7627, %v7626
  %v7702 = vpack.c.b16 %v7629, %v7628
  %v7703 = vpack.c.b16 %v7631, %v7630
  %v7704 = vpack.c.b16 %v7633, %v7632
  %v7705 = vpack.c.b16 %v7635, %v7634
  %v7706 = vpack.c.b16 %v7637, %v7636
  %v7707 = vpack.c.b16 %v7639, %v7638
  %v7708 = vpack.c.b16 %v7641, %v7640
  %v7709 = vpack.c.b16 %v7643, %v7642
  %v7710 = vpack.c.b16 %v7645, %v7644
  %v7711 = vpack.c.b16 %v7647, %v7646
  %v7712 = vpack.c.b16 %v7649, %v7648
  %v7713 = vpack.c.b16 %v7651, %v7650
  %v7714 = vpack.c.b16 %v7653, %v7652
  %v7715 = vpack.c.b16 %v7655, %v7654
  %v7716 = vpack.c.b16 %v7657, %v7656
  %v7717 = vpack.c.b16 %v7659, %v7658
  %v7718 = vpack.c.b16 %v7661, %v7660
  %v7719 = vpack.c.b16 %v7663, %v7662
  %v7720 = vpack.c.b16 %v7665, %v7664
  %v7721 = vpack.c.b16 %v7667, %v7666
  %v7722 = vpack.c.b16 %v7669, %v7668
  %v7723 = vpack.c.b16 %v7671, %v7670
  %v7724 = vpack.c.b16 %v7673, %v7672
  %v7725 = vpack.c.b16 %v7675, %v7674
  %v7726 = vpack.c.b16 %v7677, %v7676
  %v7727 = vpack.c.b16 %v7679, %v7678
  %7776 = vmatprep.subr.bf16.mxu0 0
  %7777 = vmatpush1.bf16.msra.mxu0 %v7687
  %7778 = vmatprep.subr.bf16.mxu0 0
  %7779 = vmatpush1.bf16.msra.mxu0 %v7686
  %7780 = vmatprep.subr.bf16.mxu0 0
  %7781 = vmatpush1.bf16.msra.mxu0 %v7685
  %7782 = vmatprep.subr.bf16.mxu0 0
  %7783 = vmatpush1.bf16.msra.mxu0 %v7684
  %7784 = vmatprep.subr.bf16.mxu0 0
  %7785 = vmatpush1.bf16.msra.mxu0 %v7683
  %7786 = vmatprep.subr.bf16.mxu0 0
  %7787 = vmatpush1.bf16.msra.mxu0 %v7682
  %7788 = vmatprep.subr.bf16.mxu0 0
  %7789 = vmatpush1.bf16.msra.mxu0 %v7681
  %7790 = vmatprep.subr.bf16.mxu0 0
  %7791 = vmatpush1.bf16.msra.mxu0 %v7680
  %7792 = vmatprep.subr.bf16.mxu0 0
  %7793 = vmatpush2.bf16.msra.mxu0 %v7695
  %7794 = vmatprep.subr.bf16.mxu0 0
  %7795 = vmatpush2.bf16.msra.mxu0 %v7694
  %7796 = vmatprep.subr.bf16.mxu0 0
  %7797 = vmatpush2.bf16.msra.mxu0 %v7693
  %7798 = vmatprep.subr.bf16.mxu0 0
  %7799 = vmatpush2.bf16.msra.mxu0 %v7692
  %7800 = vmatprep.subr.bf16.mxu0 0
  %7801 = vmatpush2.bf16.msra.mxu0 %v7691
  %7802 = vmatprep.subr.bf16.mxu0 0
  %7803 = vmatpush2.bf16.msra.mxu0 %v7690
  %7804 = vmatprep.subr.bf16.mxu0 0
  %7805 = vmatpush2.bf16.msra.mxu0 %v7689
  %7806 = vmatprep.subr.bf16.mxu0 0
  %7807 = vmatpush2.bf16.msra.mxu0 %v7688
  %7808 = vmatprep.mubr.bf16.mxu0 %v6526
  %7809 = vmatmul.mubr.bf16.gmra.mxu0 %v6525
  %v7810 = vpop.f32.mrf.mxu0
  %v7811 = vadd.f32 %v6248, %v7810
  %v7812 = vpop.f32.mrf.mxu0
  %v7813 = vpop.f32.mrf.mxu0
  %v7814 = vadd.f32 %v6253, %v7813
  %v7815 = vpop.f32.mrf.mxu0
  %7816 = vmatprep.mubr.bf16.mxu0 %v6532
  %7817 = vmatmul.mubr.bf16.gmra.mxu0 %v6531
  %v7818 = vpop.f32.mrf.mxu0
  %v7819 = vadd.f32 %v6258, %v7818
  %v7820 = vpop.f32.mrf.mxu0
  %v7821 = vpop.f32.mrf.mxu0
  %v7822 = vadd.f32 %v6263, %v7821
  %v7823 = vpop.f32.mrf.mxu0
  %7824 = vmatprep.mubr.bf16.mxu0 %v6538
  %7825 = vmatmul.mubr.bf16.gmra.mxu0 %v6537
  %v7826 = vpop.f32.mrf.mxu0
  %v7827 = vadd.f32 %v6268, %v7826
  %v7828 = vpop.f32.mrf.mxu0
  %v7829 = vpop.f32.mrf.mxu0
  %v7830 = vadd.f32 %v6273, %v7829
  %v7831 = vpop.f32.mrf.mxu0
  %7832 = vmatprep.mubr.bf16.mxu0 %v6544
  %7833 = vmatmul.mubr.bf16.gmra.mxu0 %v6543
  %v7834 = vpop.f32.mrf.mxu0
  %v7835 = vadd.f32 %v6278, %v7834
  %v7836 = vpop.f32.mrf.mxu0
  %v7837 = vpop.f32.mrf.mxu0
  %v7838 = vadd.f32 %v6283, %v7837
  %v7839 = vpop.f32.mrf.mxu0
  %7840 = vmatprep.mubr.bf16.mxu0 %v6550
  %7841 = vmatmul.mubr.bf16.gmra.mxu0 %v6549
  %v7842 = vpop.f32.mrf.mxu0
  %v7843 = vadd.f32 %v6288, %v7842
  %v7844 = vpop.f32.mrf.mxu0
  %v7845 = vpop.f32.mrf.mxu0
  %v7846 = vadd.f32 %v6293, %v7845
  %v7847 = vpop.f32.mrf.mxu0
  %7848 = vmatprep.mubr.bf16.mxu0 %v6556
  %7849 = vmatmul.mubr.bf16.gmra.mxu0 %v6555
  %v7850 = vpop.f32.mrf.mxu0
  %v7851 = vadd.f32 %v6298, %v7850
  %v7852 = vpop.f32.mrf.mxu0
  %v7853 = vpop.f32.mrf.mxu0
  %v7854 = vadd.f32 %v6303, %v7853
  %v7855 = vpop.f32.mrf.mxu0
  %7856 = vmatprep.mubr.bf16.mxu0 %v6562
  %7857 = vmatmul.mubr.bf16.gmra.mxu0 %v6561
  %v7858 = vpop.f32.mrf.mxu0
  %v7859 = vadd.f32 %v6308, %v7858
  %v7860 = vpop.f32.mrf.mxu0
  %v7861 = vpop.f32.mrf.mxu0
  %v7862 = vadd.f32 %v6313, %v7861
  %v7863 = vpop.f32.mrf.mxu0
  %7864 = vmatprep.mubr.bf16.mxu0 %v6568
  %7865 = vmatmul.mubr.bf16.gmra.mxu0 %v6567
  %v7866 = vpop.f32.mrf.mxu0
  %v7867 = vadd.f32 %v6318, %v7866
  %v7868 = vpop.f32.mrf.mxu0
  %v7869 = vpop.f32.mrf.mxu0
  %v7870 = vadd.f32 %v6323, %v7869
  %v7871 = vpop.f32.mrf.mxu0
  %7872 = vmatprep.mubr.bf16.mxu0 %v6574
  %7873 = vmatmul.mubr.bf16.gmra.mxu0 %v6573
  %v7874 = vpop.f32.mrf.mxu0
  %v7875 = vadd.f32 %v6328, %v7874
  %v7876 = vpop.f32.mrf.mxu0
  %v7877 = vpop.f32.mrf.mxu0
  %v7878 = vadd.f32 %v6333, %v7877
  %v7879 = vpop.f32.mrf.mxu0
  %7880 = vmatprep.mubr.bf16.mxu0 %v6580
  %7881 = vmatmul.mubr.bf16.gmra.mxu0 %v6579
  %v7882 = vpop.f32.mrf.mxu0
  %v7883 = vadd.f32 %v6338, %v7882
  %v7884 = vpop.f32.mrf.mxu0
  %v7885 = vpop.f32.mrf.mxu0
  %v7886 = vadd.f32 %v6343, %v7885
  %v7887 = vpop.f32.mrf.mxu0
  %7888 = vdwg.mxu0
  %7889 = vmatprep.subr.bf16.mxu0 0
  %7890 = vmatpush1.bf16.msra.mxu0 %v7703
  %7891 = vmatprep.subr.bf16.mxu0 0
  %7892 = vmatpush1.bf16.msra.mxu0 %v7702
  %7893 = vmatprep.subr.bf16.mxu0 0
  %7894 = vmatpush1.bf16.msra.mxu0 %v7701
  %7895 = vmatprep.subr.bf16.mxu0 0
  %7896 = vmatpush1.bf16.msra.mxu0 %v7700
  %7897 = vmatprep.subr.bf16.mxu0 0
  %7898 = vmatpush1.bf16.msra.mxu0 %v7699
  %7899 = vmatprep.subr.bf16.mxu0 0
  %7900 = vmatpush1.bf16.msra.mxu0 %v7698
  %7901 = vmatprep.subr.bf16.mxu0 0
  %7902 = vmatpush1.bf16.msra.mxu0 %v7697
  %7903 = vmatprep.subr.bf16.mxu0 0
  %7904 = vmatpush1.bf16.msra.mxu0 %v7696
  %7905 = vmatprep.subr.bf16.mxu0 0
  %7906 = vmatpush2.bf16.msra.mxu0 %v7711
  %7907 = vmatprep.subr.bf16.mxu0 0
  %7908 = vmatpush2.bf16.msra.mxu0 %v7710
  %7909 = vmatprep.subr.bf16.mxu0 0
  %7910 = vmatpush2.bf16.msra.mxu0 %v7709
  %7911 = vmatprep.subr.bf16.mxu0 0
  %7912 = vmatpush2.bf16.msra.mxu0 %v7708
  %7913 = vmatprep.subr.bf16.mxu0 0
  %7914 = vmatpush2.bf16.msra.mxu0 %v7707
  %7915 = vmatprep.subr.bf16.mxu0 0
  %7916 = vmatpush2.bf16.msra.mxu0 %v7706
  %7917 = vmatprep.subr.bf16.mxu0 0
  %7918 = vmatpush2.bf16.msra.mxu0 %v7705
  %7919 = vmatprep.subr.bf16.mxu0 0
  %7920 = vmatpush2.bf16.msra.mxu0 %v7704
  %7921 = vmatprep.mubr.bf16.mxu0 %v6528
  %7922 = vmatmul.mubr.bf16.gmra.mxu0 %v6527
  %v7923 = vpop.f32.mrf.mxu0
  %v7924 = vadd.f32 %v7811, %v7923
  %v7925 = vpop.f32.mrf.mxu0
  %v7926 = vpop.f32.mrf.mxu0
  %v7927 = vadd.f32 %v7814, %v7926
  %v7928 = vpop.f32.mrf.mxu0
  %7929 = vmatprep.mubr.bf16.mxu0 %v6534
  %7930 = vmatmul.mubr.bf16.gmra.mxu0 %v6533
  %v7931 = vpop.f32.mrf.mxu0
  %v7932 = vadd.f32 %v7819, %v7931
  %v7933 = vpop.f32.mrf.mxu0
  %v7934 = vpop.f32.mrf.mxu0
  %v7935 = vadd.f32 %v7822, %v7934
  %v7936 = vpop.f32.mrf.mxu0
  %7937 = vmatprep.mubr.bf16.mxu0 %v6540
  %7938 = vmatmul.mubr.bf16.gmra.mxu0 %v6539
  %v7939 = vpop.f32.mrf.mxu0
  %v7940 = vadd.f32 %v7827, %v7939
  %v7941 = vpop.f32.mrf.mxu0
  %v7942 = vpop.f32.mrf.mxu0
  %v7943 = vadd.f32 %v7830, %v7942
  %v7944 = vpop.f32.mrf.mxu0
  %7945 = vmatprep.mubr.bf16.mxu0 %v6546
  %7946 = vmatmul.mubr.bf16.gmra.mxu0 %v6545
  %v7947 = vpop.f32.mrf.mxu0
  %v7948 = vadd.f32 %v7835, %v7947
  %v7949 = vpop.f32.mrf.mxu0
  %v7950 = vpop.f32.mrf.mxu0
  %v7951 = vadd.f32 %v7838, %v7950
  %v7952 = vpop.f32.mrf.mxu0
  %7953 = vmatprep.mubr.bf16.mxu0 %v6552
  %7954 = vmatmul.mubr.bf16.gmra.mxu0 %v6551
  %v7955 = vpop.f32.mrf.mxu0
  %v7956 = vadd.f32 %v7843, %v7955
  %v7957 = vpop.f32.mrf.mxu0
  %v7958 = vpop.f32.mrf.mxu0
  %v7959 = vadd.f32 %v7846, %v7958
  %v7960 = vpop.f32.mrf.mxu0
  %7961 = vmatprep.mubr.bf16.mxu0 %v6558
  %7962 = vmatmul.mubr.bf16.gmra.mxu0 %v6557
  %v7963 = vpop.f32.mrf.mxu0
  %v7964 = vadd.f32 %v7851, %v7963
  %v7965 = vpop.f32.mrf.mxu0
  %v7966 = vpop.f32.mrf.mxu0
  %v7967 = vadd.f32 %v7854, %v7966
  %v7968 = vpop.f32.mrf.mxu0
  %7969 = vmatprep.mubr.bf16.mxu0 %v6564
  %7970 = vmatmul.mubr.bf16.gmra.mxu0 %v6563
  %v7971 = vpop.f32.mrf.mxu0
  %v7972 = vadd.f32 %v7859, %v7971
  %v7973 = vpop.f32.mrf.mxu0
  %v7974 = vpop.f32.mrf.mxu0
  %v7975 = vadd.f32 %v7862, %v7974
  %v7976 = vpop.f32.mrf.mxu0
  %7977 = vmatprep.mubr.bf16.mxu0 %v6570
  %7978 = vmatmul.mubr.bf16.gmra.mxu0 %v6569
  %v7979 = vpop.f32.mrf.mxu0
  %v7980 = vadd.f32 %v7867, %v7979
  %v7981 = vpop.f32.mrf.mxu0
  %v7982 = vpop.f32.mrf.mxu0
  %v7983 = vadd.f32 %v7870, %v7982
  %v7984 = vpop.f32.mrf.mxu0
  %7985 = vmatprep.mubr.bf16.mxu0 %v6576
  %7986 = vmatmul.mubr.bf16.gmra.mxu0 %v6575
  %v7987 = vpop.f32.mrf.mxu0
  %v7988 = vadd.f32 %v7875, %v7987
  %v7989 = vpop.f32.mrf.mxu0
  %v7990 = vpop.f32.mrf.mxu0
  %v7991 = vadd.f32 %v7878, %v7990
  %v7992 = vpop.f32.mrf.mxu0
  %7993 = vmatprep.mubr.bf16.mxu0 %v6582
  %7994 = vmatmul.mubr.bf16.gmra.mxu0 %v6581
  %v7995 = vpop.f32.mrf.mxu0
  %v7996 = vadd.f32 %v7883, %v7995
  %v7997 = vpop.f32.mrf.mxu0
  %v7998 = vpop.f32.mrf.mxu0
  %v7999 = vadd.f32 %v7886, %v7998
  %v8000 = vpop.f32.mrf.mxu0
  %8001 = vdwg.mxu0
  %8002 = vmatprep.subr.bf16.mxu0 0
  %8003 = vmatpush1.bf16.msra.mxu0 %v7719
  %8004 = vmatprep.subr.bf16.mxu0 0
  %8005 = vmatpush1.bf16.msra.mxu0 %v7718
  %8006 = vmatprep.subr.bf16.mxu0 0
  %8007 = vmatpush1.bf16.msra.mxu0 %v7717
  %8008 = vmatprep.subr.bf16.mxu0 0
  %8009 = vmatpush1.bf16.msra.mxu0 %v7716
  %8010 = vmatprep.subr.bf16.mxu0 0
  %8011 = vmatpush1.bf16.msra.mxu0 %v7715
  %8012 = vmatprep.subr.bf16.mxu0 0
  %8013 = vmatpush1.bf16.msra.mxu0 %v7714
  %8014 = vmatprep.subr.bf16.mxu0 0
  %8015 = vmatpush1.bf16.msra.mxu0 %v7713
  %8016 = vmatprep.subr.bf16.mxu0 0
  %8017 = vmatpush1.bf16.msra.mxu0 %v7712
  %8018 = vmatprep.subr.bf16.mxu0 0
  %8019 = vmatpush2.bf16.msra.mxu0 %v7727
  %8020 = vmatprep.subr.bf16.mxu0 0
  %8021 = vmatpush2.bf16.msra.mxu0 %v7726
  %8022 = vmatprep.subr.bf16.mxu0 0
  %8023 = vmatpush2.bf16.msra.mxu0 %v7725
  %8024 = vmatprep.subr.bf16.mxu0 0
  %8025 = vmatpush2.bf16.msra.mxu0 %v7724
  %8026 = vmatprep.subr.bf16.mxu0 0
  %8027 = vmatpush2.bf16.msra.mxu0 %v7723
  %8028 = vmatprep.subr.bf16.mxu0 0
  %8029 = vmatpush2.bf16.msra.mxu0 %v7722
  %8030 = vmatprep.subr.bf16.mxu0 0
  %8031 = vmatpush2.bf16.msra.mxu0 %v7721
  %8032 = vmatprep.subr.bf16.mxu0 0
  %8033 = vmatpush2.bf16.msra.mxu0 %v7720
  %8034 = vmatprep.mubr.bf16.mxu0 %v6530
  %8035 = vmatmul.mubr.bf16.gmra.mxu0 %v6529
  %v8036 = vpop.f32.mrf.mxu0
  %v8037 = vadd.f32 %v7924, %v8036
  %v8038 = vpop.f32.mrf.mxu0
  %v8039 = vpop.f32.mrf.mxu0
  %v8040 = vadd.f32 %v7927, %v8039
  %v8041 = vpop.f32.mrf.mxu0
  %8042 = vmatprep.mubr.bf16.mxu0 %v6536
  %8043 = vmatmul.mubr.bf16.gmra.mxu0 %v6535
  %v8044 = vpop.f32.mrf.mxu0
  %v8045 = vadd.f32 %v7932, %v8044
  %v8046 = vpop.f32.mrf.mxu0
  %v8047 = vpop.f32.mrf.mxu0
  %v8048 = vadd.f32 %v7935, %v8047
  %v8049 = vpop.f32.mrf.mxu0
  %8050 = vmatprep.mubr.bf16.mxu0 %v6542
  %8051 = vmatmul.mubr.bf16.gmra.mxu0 %v6541
  %v8052 = vpop.f32.mrf.mxu0
  %v8053 = vadd.f32 %v7940, %v8052
  %v8054 = vpop.f32.mrf.mxu0
  %v8055 = vpop.f32.mrf.mxu0
  %v8056 = vadd.f32 %v7943, %v8055
  %v8057 = vpop.f32.mrf.mxu0
  %8058 = vmatprep.mubr.bf16.mxu0 %v6548
  %8059 = vmatmul.mubr.bf16.gmra.mxu0 %v6547
  %v8060 = vpop.f32.mrf.mxu0
  %v8061 = vadd.f32 %v7948, %v8060
  %v8062 = vpop.f32.mrf.mxu0
  %v8063 = vpop.f32.mrf.mxu0
  %v8064 = vadd.f32 %v7951, %v8063
  %v8065 = vpop.f32.mrf.mxu0
  %8066 = vmatprep.mubr.bf16.mxu0 %v6554
  %8067 = vmatmul.mubr.bf16.gmra.mxu0 %v6553
  %v8068 = vpop.f32.mrf.mxu0
  %v8069 = vadd.f32 %v7956, %v8068
  %v8070 = vpop.f32.mrf.mxu0
  %v8071 = vpop.f32.mrf.mxu0
  %v8072 = vadd.f32 %v7959, %v8071
  %v8073 = vpop.f32.mrf.mxu0
  %8074 = vmatprep.mubr.bf16.mxu0 %v6560
  %8075 = vmatmul.mubr.bf16.gmra.mxu0 %v6559
  %v8076 = vpop.f32.mrf.mxu0
  %v8077 = vadd.f32 %v7964, %v8076
  %v8078 = vpop.f32.mrf.mxu0
  %v8079 = vpop.f32.mrf.mxu0
  %v8080 = vadd.f32 %v7967, %v8079
  %v8081 = vpop.f32.mrf.mxu0
  %8082 = vmatprep.mubr.bf16.mxu0 %v6566
  %8083 = vmatmul.mubr.bf16.gmra.mxu0 %v6565
  %v8084 = vpop.f32.mrf.mxu0
  %v8085 = vadd.f32 %v7972, %v8084
  %v8086 = vpop.f32.mrf.mxu0
  %v8087 = vpop.f32.mrf.mxu0
  %v8088 = vadd.f32 %v7975, %v8087
  %v8089 = vpop.f32.mrf.mxu0
  %8090 = vmatprep.mubr.bf16.mxu0 %v6572
  %8091 = vmatmul.mubr.bf16.gmra.mxu0 %v6571
  %v8092 = vpop.f32.mrf.mxu0
  %v8093 = vadd.f32 %v7980, %v8092
  %v8094 = vpop.f32.mrf.mxu0
  %v8095 = vpop.f32.mrf.mxu0
  %v8096 = vadd.f32 %v7983, %v8095
  %v8097 = vpop.f32.mrf.mxu0
  %8098 = vmatprep.mubr.bf16.mxu0 %v6578
  %8099 = vmatmul.mubr.bf16.gmra.mxu0 %v6577
  %v8100 = vpop.f32.mrf.mxu0
  %v8101 = vadd.f32 %v7988, %v8100
  %v8102 = vpop.f32.mrf.mxu0
  %v8103 = vpop.f32.mrf.mxu0
  %v8104 = vadd.f32 %v7991, %v8103
  %v8105 = vpop.f32.mrf.mxu0
  %8106 = vmatprep.mubr.bf16.mxu0 %v6584
  %8107 = vmatmul.mubr.bf16.gmra.mxu0 %v6583
  %v8108 = vpop.f32.mrf.mxu0
  %v8109 = vadd.f32 %v7996, %v8108
  %v8110 = vpop.f32.mrf.mxu0
  %v8111 = vpop.f32.mrf.mxu0
  %v8112 = vadd.f32 %v7999, %v8111
  %v8113 = vpop.f32.mrf.mxu0
  %8114 = vdwg.mxu0
  %v8115 = vmax.f32 %v8037, 0.0
  %v8116 = vmax.f32 %v8040, 0.0
  %v8117 = vmax.f32 %v8045, 0.0
  %v8118 = vmax.f32 %v8048, 0.0
  %v8119 = vmax.f32 %v8053, 0.0
  %v8120 = vmax.f32 %v8056, 0.0
  %v8121 = vmax.f32 %v8061, 0.0
  %v8122 = vmax.f32 %v8064, 0.0
  %v8123 = vmax.f32 %v8069, 0.0
  %v8124 = vmax.f32 %v8072, 0.0
  %v8125 = vmax.f32 %v8077, 0.0
  %v8126 = vmax.f32 %v8080, 0.0
  %v8127 = vmax.f32 %v8085, 0.0
  %v8128 = vmax.f32 %v8088, 0.0
  %v8129 = vmax.f32 %v8093, 0.0
  %v8130 = vmax.f32 %v8096, 0.0
  %v8131 = vmax.f32 %v8101, 0.0
  %v8132 = vmax.f32 %v8104, 0.0
  %v8133 = vmax.f32 %v8109, 0.0
  %v8134 = vmax.f32 %v8112, 0.0
  %v8135 = vpack.c.bf16 %v8116, %v8115
  %v8136 = vpack.c.bf16 %v8118, %v8117
  %v8137 = vpack.c.bf16 %v8120, %v8119
  %v8138 = vpack.c.bf16 %v8122, %v8121
  %v8139 = vpack.c.bf16 %v8124, %v8123
  %v8140 = vpack.c.bf16 %v8126, %v8125
  %v8141 = vpack.c.bf16 %v8128, %v8127
  %v8142 = vpack.c.bf16 %v8130, %v8129
  %v8143 = vpack.c.bf16 %v8132, %v8131
  %v8144 = vpack.c.bf16 %v8134, %v8133
  %v8155 = vunpack.c.l.b16 %v8135
  %v8156 = vunpack.c.h.b16 %v8135
  %v8157 = vunpack.c.l.b16 %v8136
  %v8158 = vunpack.c.h.b16 %v8136
  %v8159 = vunpack.c.l.b16 %v8137
  %v8160 = vunpack.c.h.b16 %v8137
  %v8161 = vunpack.c.l.b16 %v8138
  %v8162 = vunpack.c.h.b16 %v8138
  %v8163 = vunpack.c.l.b16 %v8139
  %v8164 = vunpack.c.h.b16 %v8139
  %v8165 = vunpack.c.l.b16 %v8140
  %v8166 = vunpack.c.h.b16 %v8140
  %v8167 = vunpack.c.l.b16 %v8141
  %v8168 = vunpack.c.h.b16 %v8141
  %v8169 = vunpack.c.l.b16 %v8142
  %v8170 = vunpack.c.h.b16 %v8142
  %v8171 = vunpack.c.l.b16 %v8143
  %v8172 = vunpack.c.h.b16 %v8143
  %v8173 = vunpack.c.l.b16 %v8144
  %v8174 = vunpack.c.h.b16 %v8144
  %v8175 = vpack.c.b16 %v8155, %v8155
  %v8176 = vpack.c.b16 %v8156, %v8156
  %v8177 = vpack.c.b16 %v8157, %v8157
  %v8178 = vpack.c.b16 %v8158, %v8158
  %v8179 = vpack.c.b16 %v8159, %v8159
  %v8180 = vpack.c.b16 %v8160, %v8160
  %v8181 = vpack.c.b16 %v8161, %v8161
  %v8182 = vpack.c.b16 %v8162, %v8162
  %v8183 = vpack.c.b16 %v8163, %v8163
  %v8184 = vpack.c.b16 %v8164, %v8164
  %v8185 = vpack.c.b16 %v8165, %v8165
  %v8186 = vpack.c.b16 %v8166, %v8166
  %v8187 = vpack.c.b16 %v8167, %v8167
  %v8188 = vpack.c.b16 %v8168, %v8168
  %v8189 = vpack.c.b16 %v8169, %v8169
  %v8190 = vpack.c.b16 %v8170, %v8170
  %v8191 = vpack.c.b16 %v8171, %v8171
  %v8192 = vpack.c.b16 %v8172, %v8172
  %v8193 = vpack.c.b16 %v8173, %v8173
  %v8194 = vpack.c.b16 %v8174, %v8174
  %8215 = vst [vmem:[#allocation3 + $0xa0] sm:$0xf] %v8175
  %8216 = vst [vmem:[#allocation3 + $0xa4] sm:$0xf] %v8176
  %8217 = vst [vmem:[#allocation3 + $0xa8] sm:$0xf] %v8177
  %8218 = vst [vmem:[#allocation3 + $0xac] sm:$0xf] %v8178
  %8219 = vst [vmem:[#allocation3 + $0xb0] sm:$0xf] %v8179
  %8220 = vst [vmem:[#allocation3 + $0xb4] sm:$0xf] %v8180
  %8221 = vst [vmem:[#allocation3 + $0xb8] sm:$0xf] %v8181
  %8222 = vst [vmem:[#allocation3 + $0xbc] sm:$0xf] %v8182
  %8223 = vst [vmem:[#allocation3 + $0xc0] sm:$0xf] %v8183
  %8224 = vst [vmem:[#allocation3 + $0xc4] sm:$0xf] %v8184
  %8225 = vst [vmem:[#allocation3 + $0xc8] sm:$0xf] %v8185
  %8226 = vst [vmem:[#allocation3 + $0xcc] sm:$0xf] %v8186
  %8227 = vst [vmem:[#allocation3 + $0xd0] sm:$0xf] %v8187
  %8228 = vst [vmem:[#allocation3 + $0xd4] sm:$0xf] %v8188
  %8229 = vst [vmem:[#allocation3 + $0xd8] sm:$0xf] %v8189
  %8230 = vst [vmem:[#allocation3 + $0xdc] sm:$0xf] %v8190
  %8231 = vst [vmem:[#allocation3 + $0xe0] sm:$0xf] %v8191
  %8232 = vst [vmem:[#allocation3 + $0xe4] sm:$0xf] %v8192
  %8233 = vst [vmem:[#allocation3 + $0xe8] sm:$0xf] %v8193
  %8234 = vst [vmem:[#allocation3 + $0xec] sm:$0xf] %v8194
  %v8235 = vld [vmem:[#allocation2 + $0x200] sm:$0xf]
  %v8236 = vld [vmem:[#allocation2 + $0x204] sm:$0xf]
  %v8237 = vld [vmem:[#allocation2 + $0x208] sm:$0xf]
  %v8238 = vld [vmem:[#allocation2 + $0x20c] sm:$0xf]
  %v8239 = vld [vmem:[#allocation2 + $0x210] sm:$0xf]
  %v8240 = vld [vmem:[#allocation2 + $0x214] sm:$0xf]
  %v8241 = vld [vmem:[#allocation2 + $0x218] sm:$0xf]
  %v8242 = vld [vmem:[#allocation2 + $0x21c] sm:$0xf]
  %v8243 = vld [vmem:[#allocation2 + $0x220] sm:$0xf]
  %v8244 = vld [vmem:[#allocation2 + $0x224] sm:$0xf]
  %v8245 = vld [vmem:[#allocation2 + $0x228] sm:$0xf]
  %v8246 = vld [vmem:[#allocation2 + $0x22c] sm:$0xf]
  %v8247 = vld [vmem:[#allocation2 + $0x230] sm:$0xf]
  %v8248 = vld [vmem:[#allocation2 + $0x234] sm:$0xf]
  %v8249 = vld [vmem:[#allocation2 + $0x238] sm:$0xf]
  %v8250 = vld [vmem:[#allocation2 + $0x23c] sm:$0xf]
  %v8251 = vld [vmem:[#allocation2 + $0x240] sm:$0xf]
  %v8252 = vld [vmem:[#allocation2 + $0x244] sm:$0xf]
  %v8253 = vld [vmem:[#allocation2 + $0x248] sm:$0xf]
  %v8254 = vld [vmem:[#allocation2 + $0x24c] sm:$0xf]
  %v8255 = vld [vmem:[#allocation2 + $0x250] sm:$0xf]
  %v8256 = vld [vmem:[#allocation2 + $0x254] sm:$0xf]
  %v8257 = vld [vmem:[#allocation2 + $0x258] sm:$0xf]
  %v8258 = vld [vmem:[#allocation2 + $0x25c] sm:$0xf]
  %v8259 = vld [vmem:[#allocation2 + $0x260] sm:$0xf]
  %v8260 = vld [vmem:[#allocation2 + $0x264] sm:$0xf]
  %v8261 = vld [vmem:[#allocation2 + $0x268] sm:$0xf]
  %v8262 = vld [vmem:[#allocation2 + $0x26c] sm:$0xf]
  %v8263 = vld [vmem:[#allocation2 + $0x270] sm:$0xf]
  %v8264 = vld [vmem:[#allocation2 + $0x274] sm:$0xf]
  %v8265 = vld [vmem:[#allocation2 + $0x278] sm:$0xf]
  %v8266 = vld [vmem:[#allocation2 + $0x27c] sm:$0xf]
  %v8267 = vld [vmem:[#allocation2 + $0x280] sm:$0xf]
  %v8268 = vld [vmem:[#allocation2 + $0x284] sm:$0xf]
  %v8269 = vld [vmem:[#allocation2 + $0x288] sm:$0xf]
  %v8270 = vld [vmem:[#allocation2 + $0x28c] sm:$0xf]
  %v8271 = vld [vmem:[#allocation2 + $0x290] sm:$0xf]
  %v8272 = vld [vmem:[#allocation2 + $0x294] sm:$0xf]
  %v8273 = vld [vmem:[#allocation2 + $0x298] sm:$0xf]
  %v8274 = vld [vmem:[#allocation2 + $0x29c] sm:$0xf]
  %v8275 = vld [vmem:[#allocation2 + $0x2a0] sm:$0xf]
  %v8276 = vld [vmem:[#allocation2 + $0x2a4] sm:$0xf]
  %v8277 = vld [vmem:[#allocation2 + $0x2a8] sm:$0xf]
  %v8278 = vld [vmem:[#allocation2 + $0x2ac] sm:$0xf]
  %v8279 = vld [vmem:[#allocation2 + $0x2b0] sm:$0xf]
  %v8280 = vld [vmem:[#allocation2 + $0x2b4] sm:$0xf]
  %v8281 = vld [vmem:[#allocation2 + $0x2b8] sm:$0xf]
  %v8282 = vld [vmem:[#allocation2 + $0x2bc] sm:$0xf]
  %v8283 = vld [vmem:[#allocation2 + $0x2c0] sm:$0xf]
  %v8284 = vld [vmem:[#allocation2 + $0x2c4] sm:$0xf]
  %v8285 = vld [vmem:[#allocation2 + $0x2c8] sm:$0xf]
  %v8286 = vld [vmem:[#allocation2 + $0x2cc] sm:$0xf]
  %v8287 = vld [vmem:[#allocation2 + $0x2d0] sm:$0xf]
  %v8288 = vld [vmem:[#allocation2 + $0x2d4] sm:$0xf]
  %v8289 = vld [vmem:[#allocation2 + $0x2d8] sm:$0xf]
  %v8290 = vld [vmem:[#allocation2 + $0x2dc] sm:$0xf]
  %v8291 = vld [vmem:[#allocation2 + $0x2e0] sm:$0xf]
  %v8292 = vld [vmem:[#allocation2 + $0x2e4] sm:$0xf]
  %v8293 = vld [vmem:[#allocation2 + $0x2e8] sm:$0xf]
  %v8294 = vld [vmem:[#allocation2 + $0x2ec] sm:$0xf]
  %v8295 = vld [vmem:[#allocation2 + $0x2f0] sm:$0xf]
  %v8296 = vld [vmem:[#allocation2 + $0x2f4] sm:$0xf]
  %v8297 = vld [vmem:[#allocation2 + $0x2f8] sm:$0xf]
  %v8298 = vld [vmem:[#allocation2 + $0x2fc] sm:$0xf]
  %v8299 = vld [vmem:[#allocation2 + $0x300] sm:$0xf]
  %v8300 = vld [vmem:[#allocation2 + $0x304] sm:$0xf]
  %v8301 = vld [vmem:[#allocation2 + $0x308] sm:$0xf]
  %v8302 = vld [vmem:[#allocation2 + $0x30c] sm:$0xf]
  %v8303 = vld [vmem:[#allocation2 + $0x310] sm:$0xf]
  %v8304 = vld [vmem:[#allocation2 + $0x314] sm:$0xf]
  %v8305 = vld [vmem:[#allocation2 + $0x318] sm:$0xf]
  %v8306 = vld [vmem:[#allocation2 + $0x31c] sm:$0xf]
  %v8307 = vld [vmem:[#allocation2 + $0x320] sm:$0xf]
  %v8308 = vld [vmem:[#allocation2 + $0x324] sm:$0xf]
  %v8309 = vld [vmem:[#allocation2 + $0x328] sm:$0xf]
  %v8310 = vld [vmem:[#allocation2 + $0x32c] sm:$0xf]
  %v8311 = vld [vmem:[#allocation2 + $0x330] sm:$0xf]
  %v8312 = vld [vmem:[#allocation2 + $0x334] sm:$0xf]
  %v8313 = vld [vmem:[#allocation2 + $0x338] sm:$0xf]
  %v8314 = vld [vmem:[#allocation2 + $0x33c] sm:$0xf]
  %v8315 = vld [vmem:[#allocation2 + $0x340] sm:$0xf]
  %v8316 = vld [vmem:[#allocation2 + $0x344] sm:$0xf]
  %v8317 = vld [vmem:[#allocation2 + $0x348] sm:$0xf]
  %v8318 = vld [vmem:[#allocation2 + $0x34c] sm:$0xf]
  %v8319 = vld [vmem:[#allocation2 + $0x350] sm:$0xf]
  %v8320 = vld [vmem:[#allocation2 + $0x354] sm:$0xf]
  %v8321 = vld [vmem:[#allocation2 + $0x358] sm:$0xf]
  %v8322 = vld [vmem:[#allocation2 + $0x35c] sm:$0xf]
  %v8323 = vld [vmem:[#allocation2 + $0x360] sm:$0xf]
  %v8324 = vld [vmem:[#allocation2 + $0x364] sm:$0xf]
  %v8325 = vld [vmem:[#allocation2 + $0x368] sm:$0xf]
  %v8326 = vld [vmem:[#allocation2 + $0x36c] sm:$0xf]
  %v8327 = vld [vmem:[#allocation2 + $0x370] sm:$0xf]
  %v8328 = vld [vmem:[#allocation2 + $0x374] sm:$0xf]
  %v8329 = vld [vmem:[#allocation2 + $0x378] sm:$0xf]
  %v8330 = vld [vmem:[#allocation2 + $0x37c] sm:$0xf]
  %v8427 = vunpack.c.l.b16 %v8235
  %v8428 = vunpack.c.l.b16 %v8236
  %v8429 = vunpack.c.l.b16 %v8237
  %v8430 = vunpack.c.l.b16 %v8238
  %v8431 = vunpack.c.l.b16 %v8239
  %v8432 = vunpack.c.l.b16 %v8240
  %v8433 = vunpack.c.l.b16 %v8241
  %v8434 = vunpack.c.l.b16 %v8242
  %v8435 = vunpack.c.l.b16 %v8243
  %v8436 = vunpack.c.l.b16 %v8244
  %v8437 = vunpack.c.l.b16 %v8245
  %v8438 = vunpack.c.l.b16 %v8246
  %v8439 = vunpack.c.l.b16 %v8247
  %v8440 = vunpack.c.l.b16 %v8248
  %v8441 = vunpack.c.l.b16 %v8249
  %v8442 = vunpack.c.l.b16 %v8250
  %v8443 = vunpack.c.l.b16 %v8251
  %v8444 = vunpack.c.l.b16 %v8252
  %v8445 = vunpack.c.l.b16 %v8253
  %v8446 = vunpack.c.l.b16 %v8254
  %v8447 = vunpack.c.l.b16 %v8255
  %v8448 = vunpack.c.l.b16 %v8256
  %v8449 = vunpack.c.l.b16 %v8257
  %v8450 = vunpack.c.l.b16 %v8258
  %v8451 = vunpack.c.l.b16 %v8259
  %v8452 = vunpack.c.l.b16 %v8260
  %v8453 = vunpack.c.l.b16 %v8261
  %v8454 = vunpack.c.l.b16 %v8262
  %v8455 = vunpack.c.l.b16 %v8263
  %v8456 = vunpack.c.l.b16 %v8264
  %v8457 = vunpack.c.l.b16 %v8265
  %v8458 = vunpack.c.l.b16 %v8266
  %v8459 = vunpack.c.l.b16 %v8267
  %v8460 = vunpack.c.l.b16 %v8268
  %v8461 = vunpack.c.l.b16 %v8269
  %v8462 = vunpack.c.l.b16 %v8270
  %v8463 = vunpack.c.l.b16 %v8271
  %v8464 = vunpack.c.l.b16 %v8272
  %v8465 = vunpack.c.l.b16 %v8273
  %v8466 = vunpack.c.l.b16 %v8274
  %v8467 = vunpack.c.l.b16 %v8275
  %v8468 = vunpack.c.l.b16 %v8276
  %v8469 = vunpack.c.l.b16 %v8277
  %v8470 = vunpack.c.l.b16 %v8278
  %v8471 = vunpack.c.l.b16 %v8279
  %v8472 = vunpack.c.l.b16 %v8280
  %v8473 = vunpack.c.l.b16 %v8281
  %v8474 = vunpack.c.l.b16 %v8282
  %v8475 = vunpack.c.l.b16 %v8283
  %v8476 = vunpack.c.l.b16 %v8284
  %v8477 = vunpack.c.l.b16 %v8285
  %v8478 = vunpack.c.l.b16 %v8286
  %v8479 = vunpack.c.l.b16 %v8287
  %v8480 = vunpack.c.l.b16 %v8288
  %v8481 = vunpack.c.l.b16 %v8289
  %v8482 = vunpack.c.l.b16 %v8290
  %v8483 = vunpack.c.l.b16 %v8291
  %v8484 = vunpack.c.l.b16 %v8292
  %v8485 = vunpack.c.l.b16 %v8293
  %v8486 = vunpack.c.l.b16 %v8294
  %v8487 = vunpack.c.l.b16 %v8295
  %v8488 = vunpack.c.l.b16 %v8296
  %v8489 = vunpack.c.l.b16 %v8297
  %v8490 = vunpack.c.l.b16 %v8298
  %v8491 = vunpack.c.l.b16 %v8299
  %v8492 = vunpack.c.l.b16 %v8300
  %v8493 = vunpack.c.l.b16 %v8301
  %v8494 = vunpack.c.l.b16 %v8302
  %v8495 = vunpack.c.l.b16 %v8303
  %v8496 = vunpack.c.l.b16 %v8304
  %v8497 = vunpack.c.l.b16 %v8305
  %v8498 = vunpack.c.l.b16 %v8306
  %v8499 = vunpack.c.l.b16 %v8307
  %v8500 = vunpack.c.l.b16 %v8308
  %v8501 = vunpack.c.l.b16 %v8309
  %v8502 = vunpack.c.l.b16 %v8310
  %v8503 = vunpack.c.l.b16 %v8311
  %v8504 = vunpack.c.l.b16 %v8312
  %v8505 = vunpack.c.l.b16 %v8313
  %v8506 = vunpack.c.l.b16 %v8314
  %v8507 = vunpack.c.l.b16 %v8315
  %v8508 = vunpack.c.l.b16 %v8316
  %v8509 = vunpack.c.l.b16 %v8317
  %v8510 = vunpack.c.l.b16 %v8318
  %v8511 = vunpack.c.l.b16 %v8319
  %v8512 = vunpack.c.l.b16 %v8320
  %v8513 = vunpack.c.l.b16 %v8321
  %v8514 = vunpack.c.l.b16 %v8322
  %v8515 = vunpack.c.l.b16 %v8323
  %v8516 = vunpack.c.l.b16 %v8324
  %v8517 = vunpack.c.l.b16 %v8325
  %v8518 = vunpack.c.l.b16 %v8326
  %v8519 = vunpack.c.l.b16 %v8327
  %v8520 = vunpack.c.l.b16 %v8328
  %v8521 = vunpack.c.l.b16 %v8329
  %v8522 = vunpack.c.l.b16 %v8330
  %v8523 = vpack.c.b16 %v8428, %v8427
  %v8524 = vpack.c.b16 %v8430, %v8429
  %v8525 = vpack.c.b16 %v8432, %v8431
  %v8526 = vpack.c.b16 %v8434, %v8433
  %v8527 = vpack.c.b16 %v8436, %v8435
  %v8528 = vpack.c.b16 %v8438, %v8437
  %v8529 = vpack.c.b16 %v8440, %v8439
  %v8530 = vpack.c.b16 %v8442, %v8441
  %v8531 = vpack.c.b16 %v8444, %v8443
  %v8532 = vpack.c.b16 %v8446, %v8445
  %v8533 = vpack.c.b16 %v8448, %v8447
  %v8534 = vpack.c.b16 %v8450, %v8449
  %v8535 = vpack.c.b16 %v8452, %v8451
  %v8536 = vpack.c.b16 %v8454, %v8453
  %v8537 = vpack.c.b16 %v8456, %v8455
  %v8538 = vpack.c.b16 %v8458, %v8457
  %v8539 = vpack.c.b16 %v8460, %v8459
  %v8540 = vpack.c.b16 %v8462, %v8461
  %v8541 = vpack.c.b16 %v8464, %v8463
  %v8542 = vpack.c.b16 %v8466, %v8465
  %v8543 = vpack.c.b16 %v8468, %v8467
  %v8544 = vpack.c.b16 %v8470, %v8469
  %v8545 = vpack.c.b16 %v8472, %v8471
  %v8546 = vpack.c.b16 %v8474, %v8473
  %v8547 = vpack.c.b16 %v8476, %v8475
  %v8548 = vpack.c.b16 %v8478, %v8477
  %v8549 = vpack.c.b16 %v8480, %v8479
  %v8550 = vpack.c.b16 %v8482, %v8481
  %v8551 = vpack.c.b16 %v8484, %v8483
  %v8552 = vpack.c.b16 %v8486, %v8485
  %v8553 = vpack.c.b16 %v8488, %v8487
  %v8554 = vpack.c.b16 %v8490, %v8489
  %v8555 = vpack.c.b16 %v8492, %v8491
  %v8556 = vpack.c.b16 %v8494, %v8493
  %v8557 = vpack.c.b16 %v8496, %v8495
  %v8558 = vpack.c.b16 %v8498, %v8497
  %v8559 = vpack.c.b16 %v8500, %v8499
  %v8560 = vpack.c.b16 %v8502, %v8501
  %v8561 = vpack.c.b16 %v8504, %v8503
  %v8562 = vpack.c.b16 %v8506, %v8505
  %v8563 = vpack.c.b16 %v8508, %v8507
  %v8564 = vpack.c.b16 %v8510, %v8509
  %v8565 = vpack.c.b16 %v8512, %v8511
  %v8566 = vpack.c.b16 %v8514, %v8513
  %v8567 = vpack.c.b16 %v8516, %v8515
  %v8568 = vpack.c.b16 %v8518, %v8517
  %v8569 = vpack.c.b16 %v8520, %v8519
  %v8570 = vpack.c.b16 %v8522, %v8521
  %8619 = vmatprep.subr.bf16.mxu0 0
  %8620 = vmatpush1.bf16.msra.mxu0 %v8530
  %8621 = vmatprep.subr.bf16.mxu0 0
  %8622 = vmatpush1.bf16.msra.mxu0 %v8529
  %8623 = vmatprep.subr.bf16.mxu0 0
  %8624 = vmatpush1.bf16.msra.mxu0 %v8528
  %8625 = vmatprep.subr.bf16.mxu0 0
  %8626 = vmatpush1.bf16.msra.mxu0 %v8527
  %8627 = vmatprep.subr.bf16.mxu0 0
  %8628 = vmatpush1.bf16.msra.mxu0 %v8526
  %8629 = vmatprep.subr.bf16.mxu0 0
  %8630 = vmatpush1.bf16.msra.mxu0 %v8525
  %8631 = vmatprep.subr.bf16.mxu0 0
  %8632 = vmatpush1.bf16.msra.mxu0 %v8524
  %8633 = vmatprep.subr.bf16.mxu0 0
  %8634 = vmatpush1.bf16.msra.mxu0 %v8523
  %8635 = vmatprep.subr.bf16.mxu0 0
  %8636 = vmatpush2.bf16.msra.mxu0 %v8538
  %8637 = vmatprep.subr.bf16.mxu0 0
  %8638 = vmatpush2.bf16.msra.mxu0 %v8537
  %8639 = vmatprep.subr.bf16.mxu0 0
  %8640 = vmatpush2.bf16.msra.mxu0 %v8536
  %8641 = vmatprep.subr.bf16.mxu0 0
  %8642 = vmatpush2.bf16.msra.mxu0 %v8535
  %8643 = vmatprep.subr.bf16.mxu0 0
  %8644 = vmatpush2.bf16.msra.mxu0 %v8534
  %8645 = vmatprep.subr.bf16.mxu0 0
  %8646 = vmatpush2.bf16.msra.mxu0 %v8533
  %8647 = vmatprep.subr.bf16.mxu0 0
  %8648 = vmatpush2.bf16.msra.mxu0 %v8532
  %8649 = vmatprep.subr.bf16.mxu0 0
  %8650 = vmatpush2.bf16.msra.mxu0 %v8531
  %8651 = vmatprep.mubr.bf16.mxu0 %v6526
  %8652 = vmatmul.mubr.bf16.gmra.mxu0 %v6525
  %v8653 = vpop.f32.mrf.mxu0
  %v8654 = vadd.f32 %v6248, %v8653
  %v8655 = vpop.f32.mrf.mxu0
  %v8656 = vpop.f32.mrf.mxu0
  %v8657 = vadd.f32 %v6253, %v8656
  %v8658 = vpop.f32.mrf.mxu0
  %8659 = vmatprep.mubr.bf16.mxu0 %v6532
  %8660 = vmatmul.mubr.bf16.gmra.mxu0 %v6531
  %v8661 = vpop.f32.mrf.mxu0
  %v8662 = vadd.f32 %v6258, %v8661
  %v8663 = vpop.f32.mrf.mxu0
  %v8664 = vpop.f32.mrf.mxu0
  %v8665 = vadd.f32 %v6263, %v8664
  %v8666 = vpop.f32.mrf.mxu0
  %8667 = vmatprep.mubr.bf16.mxu0 %v6538
  %8668 = vmatmul.mubr.bf16.gmra.mxu0 %v6537
  %v8669 = vpop.f32.mrf.mxu0
  %v8670 = vadd.f32 %v6268, %v8669
  %v8671 = vpop.f32.mrf.mxu0
  %v8672 = vpop.f32.mrf.mxu0
  %v8673 = vadd.f32 %v6273, %v8672
  %v8674 = vpop.f32.mrf.mxu0
  %8675 = vmatprep.mubr.bf16.mxu0 %v6544
  %8676 = vmatmul.mubr.bf16.gmra.mxu0 %v6543
  %v8677 = vpop.f32.mrf.mxu0
  %v8678 = vadd.f32 %v6278, %v8677
  %v8679 = vpop.f32.mrf.mxu0
  %v8680 = vpop.f32.mrf.mxu0
  %v8681 = vadd.f32 %v6283, %v8680
  %v8682 = vpop.f32.mrf.mxu0
  %8683 = vmatprep.mubr.bf16.mxu0 %v6550
  %8684 = vmatmul.mubr.bf16.gmra.mxu0 %v6549
  %v8685 = vpop.f32.mrf.mxu0
  %v8686 = vadd.f32 %v6288, %v8685
  %v8687 = vpop.f32.mrf.mxu0
  %v8688 = vpop.f32.mrf.mxu0
  %v8689 = vadd.f32 %v6293, %v8688
  %v8690 = vpop.f32.mrf.mxu0
  %8691 = vmatprep.mubr.bf16.mxu0 %v6556
  %8692 = vmatmul.mubr.bf16.gmra.mxu0 %v6555
  %v8693 = vpop.f32.mrf.mxu0
  %v8694 = vadd.f32 %v6298, %v8693
  %v8695 = vpop.f32.mrf.mxu0
  %v8696 = vpop.f32.mrf.mxu0
  %v8697 = vadd.f32 %v6303, %v8696
  %v8698 = vpop.f32.mrf.mxu0
  %8699 = vmatprep.mubr.bf16.mxu0 %v6562
  %8700 = vmatmul.mubr.bf16.gmra.mxu0 %v6561
  %v8701 = vpop.f32.mrf.mxu0
  %v8702 = vadd.f32 %v6308, %v8701
  %v8703 = vpop.f32.mrf.mxu0
  %v8704 = vpop.f32.mrf.mxu0
  %v8705 = vadd.f32 %v6313, %v8704
  %v8706 = vpop.f32.mrf.mxu0
  %8707 = vmatprep.mubr.bf16.mxu0 %v6568
  %8708 = vmatmul.mubr.bf16.gmra.mxu0 %v6567
  %v8709 = vpop.f32.mrf.mxu0
  %v8710 = vadd.f32 %v6318, %v8709
  %v8711 = vpop.f32.mrf.mxu0
  %v8712 = vpop.f32.mrf.mxu0
  %v8713 = vadd.f32 %v6323, %v8712
  %v8714 = vpop.f32.mrf.mxu0
  %8715 = vmatprep.mubr.bf16.mxu0 %v6574
  %8716 = vmatmul.mubr.bf16.gmra.mxu0 %v6573
  %v8717 = vpop.f32.mrf.mxu0
  %v8718 = vadd.f32 %v6328, %v8717
  %v8719 = vpop.f32.mrf.mxu0
  %v8720 = vpop.f32.mrf.mxu0
  %v8721 = vadd.f32 %v6333, %v8720
  %v8722 = vpop.f32.mrf.mxu0
  %8723 = vmatprep.mubr.bf16.mxu0 %v6580
  %8724 = vmatmul.mubr.bf16.gmra.mxu0 %v6579
  %v8725 = vpop.f32.mrf.mxu0
  %v8726 = vadd.f32 %v6338, %v8725
  %v8727 = vpop.f32.mrf.mxu0
  %v8728 = vpop.f32.mrf.mxu0
  %v8729 = vadd.f32 %v6343, %v8728
  %v8730 = vpop.f32.mrf.mxu0
  %8731 = vdwg.mxu0
  %8732 = vmatprep.subr.bf16.mxu0 0
  %8733 = vmatpush1.bf16.msra.mxu0 %v8546
  %8734 = vmatprep.subr.bf16.mxu0 0
  %8735 = vmatpush1.bf16.msra.mxu0 %v8545
  %8736 = vmatprep.subr.bf16.mxu0 0
  %8737 = vmatpush1.bf16.msra.mxu0 %v8544
  %8738 = vmatprep.subr.bf16.mxu0 0
  %8739 = vmatpush1.bf16.msra.mxu0 %v8543
  %8740 = vmatprep.subr.bf16.mxu0 0
  %8741 = vmatpush1.bf16.msra.mxu0 %v8542
  %8742 = vmatprep.subr.bf16.mxu0 0
  %8743 = vmatpush1.bf16.msra.mxu0 %v8541
  %8744 = vmatprep.subr.bf16.mxu0 0
  %8745 = vmatpush1.bf16.msra.mxu0 %v8540
  %8746 = vmatprep.subr.bf16.mxu0 0
  %8747 = vmatpush1.bf16.msra.mxu0 %v8539
  %8748 = vmatprep.subr.bf16.mxu0 0
  %8749 = vmatpush2.bf16.msra.mxu0 %v8554
  %8750 = vmatprep.subr.bf16.mxu0 0
  %8751 = vmatpush2.bf16.msra.mxu0 %v8553
  %8752 = vmatprep.subr.bf16.mxu0 0
  %8753 = vmatpush2.bf16.msra.mxu0 %v8552
  %8754 = vmatprep.subr.bf16.mxu0 0
  %8755 = vmatpush2.bf16.msra.mxu0 %v8551
  %8756 = vmatprep.subr.bf16.mxu0 0
  %8757 = vmatpush2.bf16.msra.mxu0 %v8550
  %8758 = vmatprep.subr.bf16.mxu0 0
  %8759 = vmatpush2.bf16.msra.mxu0 %v8549
  %8760 = vmatprep.subr.bf16.mxu0 0
  %8761 = vmatpush2.bf16.msra.mxu0 %v8548
  %8762 = vmatprep.subr.bf16.mxu0 0
  %8763 = vmatpush2.bf16.msra.mxu0 %v8547
  %8764 = vmatprep.mubr.bf16.mxu0 %v6528
  %8765 = vmatmul.mubr.bf16.gmra.mxu0 %v6527
  %v8766 = vpop.f32.mrf.mxu0
  %v8767 = vadd.f32 %v8654, %v8766
  %v8768 = vpop.f32.mrf.mxu0
  %v8769 = vpop.f32.mrf.mxu0
  %v8770 = vadd.f32 %v8657, %v8769
  %v8771 = vpop.f32.mrf.mxu0
  %8772 = vmatprep.mubr.bf16.mxu0 %v6534
  %8773 = vmatmul.mubr.bf16.gmra.mxu0 %v6533
  %v8774 = vpop.f32.mrf.mxu0
  %v8775 = vadd.f32 %v8662, %v8774
  %v8776 = vpop.f32.mrf.mxu0
  %v8777 = vpop.f32.mrf.mxu0
  %v8778 = vadd.f32 %v8665, %v8777
  %v8779 = vpop.f32.mrf.mxu0
  %8780 = vmatprep.mubr.bf16.mxu0 %v6540
  %8781 = vmatmul.mubr.bf16.gmra.mxu0 %v6539
  %v8782 = vpop.f32.mrf.mxu0
  %v8783 = vadd.f32 %v8670, %v8782
  %v8784 = vpop.f32.mrf.mxu0
  %v8785 = vpop.f32.mrf.mxu0
  %v8786 = vadd.f32 %v8673, %v8785
  %v8787 = vpop.f32.mrf.mxu0
  %8788 = vmatprep.mubr.bf16.mxu0 %v6546
  %8789 = vmatmul.mubr.bf16.gmra.mxu0 %v6545
  %v8790 = vpop.f32.mrf.mxu0
  %v8791 = vadd.f32 %v8678, %v8790
  %v8792 = vpop.f32.mrf.mxu0
  %v8793 = vpop.f32.mrf.mxu0
  %v8794 = vadd.f32 %v8681, %v8793
  %v8795 = vpop.f32.mrf.mxu0
  %8796 = vmatprep.mubr.bf16.mxu0 %v6552
  %8797 = vmatmul.mubr.bf16.gmra.mxu0 %v6551
  %v8798 = vpop.f32.mrf.mxu0
  %v8799 = vadd.f32 %v8686, %v8798
  %v8800 = vpop.f32.mrf.mxu0
  %v8801 = vpop.f32.mrf.mxu0
  %v8802 = vadd.f32 %v8689, %v8801
  %v8803 = vpop.f32.mrf.mxu0
  %8804 = vmatprep.mubr.bf16.mxu0 %v6558
  %8805 = vmatmul.mubr.bf16.gmra.mxu0 %v6557
  %v8806 = vpop.f32.mrf.mxu0
  %v8807 = vadd.f32 %v8694, %v8806
  %v8808 = vpop.f32.mrf.mxu0
  %v8809 = vpop.f32.mrf.mxu0
  %v8810 = vadd.f32 %v8697, %v8809
  %v8811 = vpop.f32.mrf.mxu0
  %8812 = vmatprep.mubr.bf16.mxu0 %v6564
  %8813 = vmatmul.mubr.bf16.gmra.mxu0 %v6563
  %v8814 = vpop.f32.mrf.mxu0
  %v8815 = vadd.f32 %v8702, %v8814
  %v8816 = vpop.f32.mrf.mxu0
  %v8817 = vpop.f32.mrf.mxu0
  %v8818 = vadd.f32 %v8705, %v8817
  %v8819 = vpop.f32.mrf.mxu0
  %8820 = vmatprep.mubr.bf16.mxu0 %v6570
  %8821 = vmatmul.mubr.bf16.gmra.mxu0 %v6569
  %v8822 = vpop.f32.mrf.mxu0
  %v8823 = vadd.f32 %v8710, %v8822
  %v8824 = vpop.f32.mrf.mxu0
  %v8825 = vpop.f32.mrf.mxu0
  %v8826 = vadd.f32 %v8713, %v8825
  %v8827 = vpop.f32.mrf.mxu0
  %8828 = vmatprep.mubr.bf16.mxu0 %v6576
  %8829 = vmatmul.mubr.bf16.gmra.mxu0 %v6575
  %v8830 = vpop.f32.mrf.mxu0
  %v8831 = vadd.f32 %v8718, %v8830
  %v8832 = vpop.f32.mrf.mxu0
  %v8833 = vpop.f32.mrf.mxu0
  %v8834 = vadd.f32 %v8721, %v8833
  %v8835 = vpop.f32.mrf.mxu0
  %8836 = vmatprep.mubr.bf16.mxu0 %v6582
  %8837 = vmatmul.mubr.bf16.gmra.mxu0 %v6581
  %v8838 = vpop.f32.mrf.mxu0
  %v8839 = vadd.f32 %v8726, %v8838
  %v8840 = vpop.f32.mrf.mxu0
  %v8841 = vpop.f32.mrf.mxu0
  %v8842 = vadd.f32 %v8729, %v8841
  %v8843 = vpop.f32.mrf.mxu0
  %8844 = vdwg.mxu0
  %8845 = vmatprep.subr.bf16.mxu0 0
  %8846 = vmatpush1.bf16.msra.mxu0 %v8562
  %8847 = vmatprep.subr.bf16.mxu0 0
  %8848 = vmatpush1.bf16.msra.mxu0 %v8561
  %8849 = vmatprep.subr.bf16.mxu0 0
  %8850 = vmatpush1.bf16.msra.mxu0 %v8560
  %8851 = vmatprep.subr.bf16.mxu0 0
  %8852 = vmatpush1.bf16.msra.mxu0 %v8559
  %8853 = vmatprep.subr.bf16.mxu0 0
  %8854 = vmatpush1.bf16.msra.mxu0 %v8558
  %8855 = vmatprep.subr.bf16.mxu0 0
  %8856 = vmatpush1.bf16.msra.mxu0 %v8557
  %8857 = vmatprep.subr.bf16.mxu0 0
  %8858 = vmatpush1.bf16.msra.mxu0 %v8556
  %8859 = vmatprep.subr.bf16.mxu0 0
  %8860 = vmatpush1.bf16.msra.mxu0 %v8555
  %8861 = vmatprep.subr.bf16.mxu0 0
  %8862 = vmatpush2.bf16.msra.mxu0 %v8570
  %8863 = vmatprep.subr.bf16.mxu0 0
  %8864 = vmatpush2.bf16.msra.mxu0 %v8569
  %8865 = vmatprep.subr.bf16.mxu0 0
  %8866 = vmatpush2.bf16.msra.mxu0 %v8568
  %8867 = vmatprep.subr.bf16.mxu0 0
  %8868 = vmatpush2.bf16.msra.mxu0 %v8567
  %8869 = vmatprep.subr.bf16.mxu0 0
  %8870 = vmatpush2.bf16.msra.mxu0 %v8566
  %8871 = vmatprep.subr.bf16.mxu0 0
  %8872 = vmatpush2.bf16.msra.mxu0 %v8565
  %8873 = vmatprep.subr.bf16.mxu0 0
  %8874 = vmatpush2.bf16.msra.mxu0 %v8564
  %8875 = vmatprep.subr.bf16.mxu0 0
  %8876 = vmatpush2.bf16.msra.mxu0 %v8563
  %8877 = vmatprep.mubr.bf16.mxu0 %v6530
  %8878 = vmatmul.mubr.bf16.gmra.mxu0 %v6529
  %v8879 = vpop.f32.mrf.mxu0
  %v8880 = vadd.f32 %v8767, %v8879
  %v8881 = vpop.f32.mrf.mxu0
  %v8882 = vpop.f32.mrf.mxu0
  %v8883 = vadd.f32 %v8770, %v8882
  %v8884 = vpop.f32.mrf.mxu0
  %8885 = vmatprep.mubr.bf16.mxu0 %v6536
  %8886 = vmatmul.mubr.bf16.gmra.mxu0 %v6535
  %v8887 = vpop.f32.mrf.mxu0
  %v8888 = vadd.f32 %v8775, %v8887
  %v8889 = vpop.f32.mrf.mxu0
  %v8890 = vpop.f32.mrf.mxu0
  %v8891 = vadd.f32 %v8778, %v8890
  %v8892 = vpop.f32.mrf.mxu0
  %8893 = vmatprep.mubr.bf16.mxu0 %v6542
  %8894 = vmatmul.mubr.bf16.gmra.mxu0 %v6541
  %v8895 = vpop.f32.mrf.mxu0
  %v8896 = vadd.f32 %v8783, %v8895
  %v8897 = vpop.f32.mrf.mxu0
  %v8898 = vpop.f32.mrf.mxu0
  %v8899 = vadd.f32 %v8786, %v8898
  %v8900 = vpop.f32.mrf.mxu0
  %8901 = vmatprep.mubr.bf16.mxu0 %v6548
  %8902 = vmatmul.mubr.bf16.gmra.mxu0 %v6547
  %v8903 = vpop.f32.mrf.mxu0
  %v8904 = vadd.f32 %v8791, %v8903
  %v8905 = vpop.f32.mrf.mxu0
  %v8906 = vpop.f32.mrf.mxu0
  %v8907 = vadd.f32 %v8794, %v8906
  %v8908 = vpop.f32.mrf.mxu0
  %8909 = vmatprep.mubr.bf16.mxu0 %v6554
  %8910 = vmatmul.mubr.bf16.gmra.mxu0 %v6553
  %v8911 = vpop.f32.mrf.mxu0
  %v8912 = vadd.f32 %v8799, %v8911
  %v8913 = vpop.f32.mrf.mxu0
  %v8914 = vpop.f32.mrf.mxu0
  %v8915 = vadd.f32 %v8802, %v8914
  %v8916 = vpop.f32.mrf.mxu0
  %8917 = vmatprep.mubr.bf16.mxu0 %v6560
  %8918 = vmatmul.mubr.bf16.gmra.mxu0 %v6559
  %v8919 = vpop.f32.mrf.mxu0
  %v8920 = vadd.f32 %v8807, %v8919
  %v8921 = vpop.f32.mrf.mxu0
  %v8922 = vpop.f32.mrf.mxu0
  %v8923 = vadd.f32 %v8810, %v8922
  %v8924 = vpop.f32.mrf.mxu0
  %8925 = vmatprep.mubr.bf16.mxu0 %v6566
  %8926 = vmatmul.mubr.bf16.gmra.mxu0 %v6565
  %v8927 = vpop.f32.mrf.mxu0
  %v8928 = vadd.f32 %v8815, %v8927
  %v8929 = vpop.f32.mrf.mxu0
  %v8930 = vpop.f32.mrf.mxu0
  %v8931 = vadd.f32 %v8818, %v8930
  %v8932 = vpop.f32.mrf.mxu0
  %8933 = vmatprep.mubr.bf16.mxu0 %v6572
  %8934 = vmatmul.mubr.bf16.gmra.mxu0 %v6571
  %v8935 = vpop.f32.mrf.mxu0
  %v8936 = vadd.f32 %v8823, %v8935
  %v8937 = vpop.f32.mrf.mxu0
  %v8938 = vpop.f32.mrf.mxu0
  %v8939 = vadd.f32 %v8826, %v8938
  %v8940 = vpop.f32.mrf.mxu0
  %8941 = vmatprep.mubr.bf16.mxu0 %v6578
  %8942 = vmatmul.mubr.bf16.gmra.mxu0 %v6577
  %v8943 = vpop.f32.mrf.mxu0
  %v8944 = vadd.f32 %v8831, %v8943
  %v8945 = vpop.f32.mrf.mxu0
  %v8946 = vpop.f32.mrf.mxu0
  %v8947 = vadd.f32 %v8834, %v8946
  %v8948 = vpop.f32.mrf.mxu0
  %8949 = vmatprep.mubr.bf16.mxu0 %v6584
  %8950 = vmatmul.mubr.bf16.gmra.mxu0 %v6583
  %v8951 = vpop.f32.mrf.mxu0
  %v8952 = vadd.f32 %v8839, %v8951
  %v8953 = vpop.f32.mrf.mxu0
  %v8954 = vpop.f32.mrf.mxu0
  %v8955 = vadd.f32 %v8842, %v8954
  %v8956 = vpop.f32.mrf.mxu0
  %8957 = vdwg.mxu0
  %v8958 = vmax.f32 %v8880, 0.0
  %v8959 = vmax.f32 %v8883, 0.0
  %v8960 = vmax.f32 %v8888, 0.0
  %v8961 = vmax.f32 %v8891, 0.0
  %v8962 = vmax.f32 %v8896, 0.0
  %v8963 = vmax.f32 %v8899, 0.0
  %v8964 = vmax.f32 %v8904, 0.0
  %v8965 = vmax.f32 %v8907, 0.0
  %v8966 = vmax.f32 %v8912, 0.0
  %v8967 = vmax.f32 %v8915, 0.0
  %v8968 = vmax.f32 %v8920, 0.0
  %v8969 = vmax.f32 %v8923, 0.0
  %v8970 = vmax.f32 %v8928, 0.0
  %v8971 = vmax.f32 %v8931, 0.0
  %v8972 = vmax.f32 %v8936, 0.0
  %v8973 = vmax.f32 %v8939, 0.0
  %v8974 = vmax.f32 %v8944, 0.0
  %v8975 = vmax.f32 %v8947, 0.0
  %v8976 = vmax.f32 %v8952, 0.0
  %v8977 = vmax.f32 %v8955, 0.0
  %v8978 = vpack.c.bf16 %v8959, %v8958
  %v8979 = vpack.c.bf16 %v8961, %v8960
  %v8980 = vpack.c.bf16 %v8963, %v8962
  %v8981 = vpack.c.bf16 %v8965, %v8964
  %v8982 = vpack.c.bf16 %v8967, %v8966
  %v8983 = vpack.c.bf16 %v8969, %v8968
  %v8984 = vpack.c.bf16 %v8971, %v8970
  %v8985 = vpack.c.bf16 %v8973, %v8972
  %v8986 = vpack.c.bf16 %v8975, %v8974
  %v8987 = vpack.c.bf16 %v8977, %v8976
  %v8998 = vunpack.c.l.b16 %v8978
  %v8999 = vunpack.c.h.b16 %v8978
  %v9000 = vunpack.c.l.b16 %v8979
  %v9001 = vunpack.c.h.b16 %v8979
  %v9002 = vunpack.c.l.b16 %v8980
  %v9003 = vunpack.c.h.b16 %v8980
  %v9004 = vunpack.c.l.b16 %v8981
  %v9005 = vunpack.c.h.b16 %v8981
  %v9006 = vunpack.c.l.b16 %v8982
  %v9007 = vunpack.c.h.b16 %v8982
  %v9008 = vunpack.c.l.b16 %v8983
  %v9009 = vunpack.c.h.b16 %v8983
  %v9010 = vunpack.c.l.b16 %v8984
  %v9011 = vunpack.c.h.b16 %v8984
  %v9012 = vunpack.c.l.b16 %v8985
  %v9013 = vunpack.c.h.b16 %v8985
  %v9014 = vunpack.c.l.b16 %v8986
  %v9015 = vunpack.c.h.b16 %v8986
  %v9016 = vunpack.c.l.b16 %v8987
  %v9017 = vunpack.c.h.b16 %v8987
  %v9018 = vpack.c.b16 %v8998, %v8998
  %v9019 = vpack.c.b16 %v8999, %v8999
  %v9020 = vpack.c.b16 %v9000, %v9000
  %v9021 = vpack.c.b16 %v9001, %v9001
  %v9022 = vpack.c.b16 %v9002, %v9002
  %v9023 = vpack.c.b16 %v9003, %v9003
  %v9024 = vpack.c.b16 %v9004, %v9004
  %v9025 = vpack.c.b16 %v9005, %v9005
  %v9026 = vpack.c.b16 %v9006, %v9006
  %v9027 = vpack.c.b16 %v9007, %v9007
  %v9028 = vpack.c.b16 %v9008, %v9008
  %v9029 = vpack.c.b16 %v9009, %v9009
  %v9030 = vpack.c.b16 %v9010, %v9010
  %v9031 = vpack.c.b16 %v9011, %v9011
  %v9032 = vpack.c.b16 %v9012, %v9012
  %v9033 = vpack.c.b16 %v9013, %v9013
  %v9034 = vpack.c.b16 %v9014, %v9014
  %v9035 = vpack.c.b16 %v9015, %v9015
  %v9036 = vpack.c.b16 %v9016, %v9016
  %v9037 = vpack.c.b16 %v9017, %v9017
  %9058 = vst [vmem:[#allocation3 + $0xf0] sm:$0xf] %v9018
  %9059 = vst [vmem:[#allocation3 + $0xf4] sm:$0xf] %v9019
  %9060 = vst [vmem:[#allocation3 + $0xf8] sm:$0xf] %v9020
  %9061 = vst [vmem:[#allocation3 + $0xfc] sm:$0xf] %v9021
  %9062 = vst [vmem:[#allocation3 + $0x100] sm:$0xf] %v9022
  %9063 = vst [vmem:[#allocation3 + $0x104] sm:$0xf] %v9023
  %9064 = vst [vmem:[#allocation3 + $0x108] sm:$0xf] %v9024
  %9065 = vst [vmem:[#allocation3 + $0x10c] sm:$0xf] %v9025
  %9066 = vst [vmem:[#allocation3 + $0x110] sm:$0xf] %v9026
  %9067 = vst [vmem:[#allocation3 + $0x114] sm:$0xf] %v9027
  %9068 = vst [vmem:[#allocation3 + $0x118] sm:$0xf] %v9028
  %9069 = vst [vmem:[#allocation3 + $0x11c] sm:$0xf] %v9029
  %9070 = vst [vmem:[#allocation3 + $0x120] sm:$0xf] %v9030
  %9071 = vst [vmem:[#allocation3 + $0x124] sm:$0xf] %v9031
  %9072 = vst [vmem:[#allocation3 + $0x128] sm:$0xf] %v9032
  %9073 = vst [vmem:[#allocation3 + $0x12c] sm:$0xf] %v9033
  %9074 = vst [vmem:[#allocation3 + $0x130] sm:$0xf] %v9034
  %9075 = vst [vmem:[#allocation3 + $0x134] sm:$0xf] %v9035
  %9076 = vst [vmem:[#allocation3 + $0x138] sm:$0xf] %v9036
  %9077 = vst [vmem:[#allocation3 + $0x13c] sm:$0xf] %v9037
  %v9078 = vld [vmem:[#allocation2 + $0x300] sm:$0xf]
  %v9079 = vld [vmem:[#allocation2 + $0x304] sm:$0xf]
  %v9080 = vld [vmem:[#allocation2 + $0x308] sm:$0xf]
  %v9081 = vld [vmem:[#allocation2 + $0x30c] sm:$0xf]
  %v9082 = vld [vmem:[#allocation2 + $0x310] sm:$0xf]
  %v9083 = vld [vmem:[#allocation2 + $0x314] sm:$0xf]
  %v9084 = vld [vmem:[#allocation2 + $0x318] sm:$0xf]
  %v9085 = vld [vmem:[#allocation2 + $0x31c] sm:$0xf]
  %v9086 = vld [vmem:[#allocation2 + $0x320] sm:$0xf]
  %v9087 = vld [vmem:[#allocation2 + $0x324] sm:$0xf]
  %v9088 = vld [vmem:[#allocation2 + $0x328] sm:$0xf]
  %v9089 = vld [vmem:[#allocation2 + $0x32c] sm:$0xf]
  %v9090 = vld [vmem:[#allocation2 + $0x330] sm:$0xf]
  %v9091 = vld [vmem:[#allocation2 + $0x334] sm:$0xf]
  %v9092 = vld [vmem:[#allocation2 + $0x338] sm:$0xf]
  %v9093 = vld [vmem:[#allocation2 + $0x33c] sm:$0xf]
  %v9094 = vld [vmem:[#allocation2 + $0x340] sm:$0xf]
  %v9095 = vld [vmem:[#allocation2 + $0x344] sm:$0xf]
  %v9096 = vld [vmem:[#allocation2 + $0x348] sm:$0xf]
  %v9097 = vld [vmem:[#allocation2 + $0x34c] sm:$0xf]
  %v9098 = vld [vmem:[#allocation2 + $0x350] sm:$0xf]
  %v9099 = vld [vmem:[#allocation2 + $0x354] sm:$0xf]
  %v9100 = vld [vmem:[#allocation2 + $0x358] sm:$0xf]
  %v9101 = vld [vmem:[#allocation2 + $0x35c] sm:$0xf]
  %v9102 = vld [vmem:[#allocation2 + $0x360] sm:$0xf]
  %v9103 = vld [vmem:[#allocation2 + $0x364] sm:$0xf]
  %v9104 = vld [vmem:[#allocation2 + $0x368] sm:$0xf]
  %v9105 = vld [vmem:[#allocation2 + $0x36c] sm:$0xf]
  %v9106 = vld [vmem:[#allocation2 + $0x370] sm:$0xf]
  %v9107 = vld [vmem:[#allocation2 + $0x374] sm:$0xf]
  %v9108 = vld [vmem:[#allocation2 + $0x378] sm:$0xf]
  %v9109 = vld [vmem:[#allocation2 + $0x37c] sm:$0xf]
  %v9110 = vld [vmem:[#allocation2 + $0x380] sm:$0xf]
  %v9111 = vld [vmem:[#allocation2 + $0x384] sm:$0xf]
  %v9112 = vld [vmem:[#allocation2 + $0x388] sm:$0xf]
  %v9113 = vld [vmem:[#allocation2 + $0x38c] sm:$0xf]
  %v9114 = vld [vmem:[#allocation2 + $0x390] sm:$0xf]
  %v9115 = vld [vmem:[#allocation2 + $0x394] sm:$0xf]
  %v9116 = vld [vmem:[#allocation2 + $0x398] sm:$0xf]
  %v9117 = vld [vmem:[#allocation2 + $0x39c] sm:$0xf]
  %v9118 = vld [vmem:[#allocation2 + $0x3a0] sm:$0xf]
  %v9119 = vld [vmem:[#allocation2 + $0x3a4] sm:$0xf]
  %v9120 = vld [vmem:[#allocation2 + $0x3a8] sm:$0xf]
  %v9121 = vld [vmem:[#allocation2 + $0x3ac] sm:$0xf]
  %v9122 = vld [vmem:[#allocation2 + $0x3b0] sm:$0xf]
  %v9123 = vld [vmem:[#allocation2 + $0x3b4] sm:$0xf]
  %v9124 = vld [vmem:[#allocation2 + $0x3b8] sm:$0xf]
  %v9125 = vld [vmem:[#allocation2 + $0x3bc] sm:$0xf]
  %v9126 = vld [vmem:[#allocation2 + $0x3c0] sm:$0xf]
  %v9127 = vld [vmem:[#allocation2 + $0x3c4] sm:$0xf]
  %v9128 = vld [vmem:[#allocation2 + $0x3c8] sm:$0xf]
  %v9129 = vld [vmem:[#allocation2 + $0x3cc] sm:$0xf]
  %v9130 = vld [vmem:[#allocation2 + $0x3d0] sm:$0xf]
  %v9131 = vld [vmem:[#allocation2 + $0x3d4] sm:$0xf]
  %v9132 = vld [vmem:[#allocation2 + $0x3d8] sm:$0xf]
  %v9133 = vld [vmem:[#allocation2 + $0x3dc] sm:$0xf]
  %v9134 = vld [vmem:[#allocation2 + $0x3e0] sm:$0xf]
  %v9135 = vld [vmem:[#allocation2 + $0x3e4] sm:$0xf]
  %v9136 = vld [vmem:[#allocation2 + $0x3e8] sm:$0xf]
  %v9137 = vld [vmem:[#allocation2 + $0x3ec] sm:$0xf]
  %v9138 = vld [vmem:[#allocation2 + $0x3f0] sm:$0xf]
  %v9139 = vld [vmem:[#allocation2 + $0x3f4] sm:$0xf]
  %v9140 = vld [vmem:[#allocation2 + $0x3f8] sm:$0xf]
  %v9141 = vld [vmem:[#allocation2 + $0x3fc] sm:$0xf]
  %v9142 = vld [vmem:[#allocation2 + $0x400] sm:$0xf]
  %v9143 = vld [vmem:[#allocation2 + $0x404] sm:$0xf]
  %v9144 = vld [vmem:[#allocation2 + $0x408] sm:$0xf]
  %v9145 = vld [vmem:[#allocation2 + $0x40c] sm:$0xf]
  %v9146 = vld [vmem:[#allocation2 + $0x410] sm:$0xf]
  %v9147 = vld [vmem:[#allocation2 + $0x414] sm:$0xf]
  %v9148 = vld [vmem:[#allocation2 + $0x418] sm:$0xf]
  %v9149 = vld [vmem:[#allocation2 + $0x41c] sm:$0xf]
  %v9150 = vld [vmem:[#allocation2 + $0x420] sm:$0xf]
  %v9151 = vld [vmem:[#allocation2 + $0x424] sm:$0xf]
  %v9152 = vld [vmem:[#allocation2 + $0x428] sm:$0xf]
  %v9153 = vld [vmem:[#allocation2 + $0x42c] sm:$0xf]
  %v9154 = vld [vmem:[#allocation2 + $0x430] sm:$0xf]
  %v9155 = vld [vmem:[#allocation2 + $0x434] sm:$0xf]
  %v9156 = vld [vmem:[#allocation2 + $0x438] sm:$0xf]
  %v9157 = vld [vmem:[#allocation2 + $0x43c] sm:$0xf]
  %v9158 = vld [vmem:[#allocation2 + $0x440] sm:$0xf]
  %v9159 = vld [vmem:[#allocation2 + $0x444] sm:$0xf]
  %v9160 = vld [vmem:[#allocation2 + $0x448] sm:$0xf]
  %v9161 = vld [vmem:[#allocation2 + $0x44c] sm:$0xf]
  %v9162 = vld [vmem:[#allocation2 + $0x450] sm:$0xf]
  %v9163 = vld [vmem:[#allocation2 + $0x454] sm:$0xf]
  %v9164 = vld [vmem:[#allocation2 + $0x458] sm:$0xf]
  %v9165 = vld [vmem:[#allocation2 + $0x45c] sm:$0xf]
  %v9166 = vld [vmem:[#allocation2 + $0x460] sm:$0xf]
  %v9167 = vld [vmem:[#allocation2 + $0x464] sm:$0xf]
  %v9168 = vld [vmem:[#allocation2 + $0x468] sm:$0xf]
  %v9169 = vld [vmem:[#allocation2 + $0x46c] sm:$0xf]
  %v9170 = vld [vmem:[#allocation2 + $0x470] sm:$0xf]
  %v9171 = vld [vmem:[#allocation2 + $0x474] sm:$0xf]
  %v9172 = vld [vmem:[#allocation2 + $0x478] sm:$0xf]
  %v9173 = vld [vmem:[#allocation2 + $0x47c] sm:$0xf]
  %v9270 = vunpack.c.l.b16 %v9078
  %v9271 = vunpack.c.l.b16 %v9079
  %v9272 = vunpack.c.l.b16 %v9080
  %v9273 = vunpack.c.l.b16 %v9081
  %v9274 = vunpack.c.l.b16 %v9082
  %v9275 = vunpack.c.l.b16 %v9083
  %v9276 = vunpack.c.l.b16 %v9084
  %v9277 = vunpack.c.l.b16 %v9085
  %v9278 = vunpack.c.l.b16 %v9086
  %v9279 = vunpack.c.l.b16 %v9087
  %v9280 = vunpack.c.l.b16 %v9088
  %v9281 = vunpack.c.l.b16 %v9089
  %v9282 = vunpack.c.l.b16 %v9090
  %v9283 = vunpack.c.l.b16 %v9091
  %v9284 = vunpack.c.l.b16 %v9092
  %v9285 = vunpack.c.l.b16 %v9093
  %v9286 = vunpack.c.l.b16 %v9094
  %v9287 = vunpack.c.l.b16 %v9095
  %v9288 = vunpack.c.l.b16 %v9096
  %v9289 = vunpack.c.l.b16 %v9097
  %v9290 = vunpack.c.l.b16 %v9098
  %v9291 = vunpack.c.l.b16 %v9099
  %v9292 = vunpack.c.l.b16 %v9100
  %v9293 = vunpack.c.l.b16 %v9101
  %v9294 = vunpack.c.l.b16 %v9102
  %v9295 = vunpack.c.l.b16 %v9103
  %v9296 = vunpack.c.l.b16 %v9104
  %v9297 = vunpack.c.l.b16 %v9105
  %v9298 = vunpack.c.l.b16 %v9106
  %v9299 = vunpack.c.l.b16 %v9107
  %v9300 = vunpack.c.l.b16 %v9108
  %v9301 = vunpack.c.l.b16 %v9109
  %v9302 = vunpack.c.l.b16 %v9110
  %v9303 = vunpack.c.l.b16 %v9111
  %v9304 = vunpack.c.l.b16 %v9112
  %v9305 = vunpack.c.l.b16 %v9113
  %v9306 = vunpack.c.l.b16 %v9114
  %v9307 = vunpack.c.l.b16 %v9115
  %v9308 = vunpack.c.l.b16 %v9116
  %v9309 = vunpack.c.l.b16 %v9117
  %v9310 = vunpack.c.l.b16 %v9118
  %v9311 = vunpack.c.l.b16 %v9119
  %v9312 = vunpack.c.l.b16 %v9120
  %v9313 = vunpack.c.l.b16 %v9121
  %v9314 = vunpack.c.l.b16 %v9122
  %v9315 = vunpack.c.l.b16 %v9123
  %v9316 = vunpack.c.l.b16 %v9124
  %v9317 = vunpack.c.l.b16 %v9125
  %v9318 = vunpack.c.l.b16 %v9126
  %v9319 = vunpack.c.l.b16 %v9127
  %v9320 = vunpack.c.l.b16 %v9128
  %v9321 = vunpack.c.l.b16 %v9129
  %v9322 = vunpack.c.l.b16 %v9130
  %v9323 = vunpack.c.l.b16 %v9131
  %v9324 = vunpack.c.l.b16 %v9132
  %v9325 = vunpack.c.l.b16 %v9133
  %v9326 = vunpack.c.l.b16 %v9134
  %v9327 = vunpack.c.l.b16 %v9135
  %v9328 = vunpack.c.l.b16 %v9136
  %v9329 = vunpack.c.l.b16 %v9137
  %v9330 = vunpack.c.l.b16 %v9138
  %v9331 = vunpack.c.l.b16 %v9139
  %v9332 = vunpack.c.l.b16 %v9140
  %v9333 = vunpack.c.l.b16 %v9141
  %v9334 = vunpack.c.l.b16 %v9142
  %v9335 = vunpack.c.l.b16 %v9143
  %v9336 = vunpack.c.l.b16 %v9144
  %v9337 = vunpack.c.l.b16 %v9145
  %v9338 = vunpack.c.l.b16 %v9146
  %v9339 = vunpack.c.l.b16 %v9147
  %v9340 = vunpack.c.l.b16 %v9148
  %v9341 = vunpack.c.l.b16 %v9149
  %v9342 = vunpack.c.l.b16 %v9150
  %v9343 = vunpack.c.l.b16 %v9151
  %v9344 = vunpack.c.l.b16 %v9152
  %v9345 = vunpack.c.l.b16 %v9153
  %v9346 = vunpack.c.l.b16 %v9154
  %v9347 = vunpack.c.l.b16 %v9155
  %v9348 = vunpack.c.l.b16 %v9156
  %v9349 = vunpack.c.l.b16 %v9157
  %v9350 = vunpack.c.l.b16 %v9158
  %v9351 = vunpack.c.l.b16 %v9159
  %v9352 = vunpack.c.l.b16 %v9160
  %v9353 = vunpack.c.l.b16 %v9161
  %v9354 = vunpack.c.l.b16 %v9162
  %v9355 = vunpack.c.l.b16 %v9163
  %v9356 = vunpack.c.l.b16 %v9164
  %v9357 = vunpack.c.l.b16 %v9165
  %v9358 = vunpack.c.l.b16 %v9166
  %v9359 = vunpack.c.l.b16 %v9167
  %v9360 = vunpack.c.l.b16 %v9168
  %v9361 = vunpack.c.l.b16 %v9169
  %v9362 = vunpack.c.l.b16 %v9170
  %v9363 = vunpack.c.l.b16 %v9171
  %v9364 = vunpack.c.l.b16 %v9172
  %v9365 = vunpack.c.l.b16 %v9173
  %v9366 = vpack.c.b16 %v9271, %v9270
  %v9367 = vpack.c.b16 %v9273, %v9272
  %v9368 = vpack.c.b16 %v9275, %v9274
  %v9369 = vpack.c.b16 %v9277, %v9276
  %v9370 = vpack.c.b16 %v9279, %v9278
  %v9371 = vpack.c.b16 %v9281, %v9280
  %v9372 = vpack.c.b16 %v9283, %v9282
  %v9373 = vpack.c.b16 %v9285, %v9284
  %v9374 = vpack.c.b16 %v9287, %v9286
  %v9375 = vpack.c.b16 %v9289, %v9288
  %v9376 = vpack.c.b16 %v9291, %v9290
  %v9377 = vpack.c.b16 %v9293, %v9292
  %v9378 = vpack.c.b16 %v9295, %v9294
  %v9379 = vpack.c.b16 %v9297, %v9296
  %v9380 = vpack.c.b16 %v9299, %v9298
  %v9381 = vpack.c.b16 %v9301, %v9300
  %v9382 = vpack.c.b16 %v9303, %v9302
  %v9383 = vpack.c.b16 %v9305, %v9304
  %v9384 = vpack.c.b16 %v9307, %v9306
  %v9385 = vpack.c.b16 %v9309, %v9308
  %v9386 = vpack.c.b16 %v9311, %v9310
  %v9387 = vpack.c.b16 %v9313, %v9312
  %v9388 = vpack.c.b16 %v9315, %v9314
  %v9389 = vpack.c.b16 %v9317, %v9316
  %v9390 = vpack.c.b16 %v9319, %v9318
  %v9391 = vpack.c.b16 %v9321, %v9320
  %v9392 = vpack.c.b16 %v9323, %v9322
  %v9393 = vpack.c.b16 %v9325, %v9324
  %v9394 = vpack.c.b16 %v9327, %v9326
  %v9395 = vpack.c.b16 %v9329, %v9328
  %v9396 = vpack.c.b16 %v9331, %v9330
  %v9397 = vpack.c.b16 %v9333, %v9332
  %v9398 = vpack.c.b16 %v9335, %v9334
  %v9399 = vpack.c.b16 %v9337, %v9336
  %v9400 = vpack.c.b16 %v9339, %v9338
  %v9401 = vpack.c.b16 %v9341, %v9340
  %v9402 = vpack.c.b16 %v9343, %v9342
  %v9403 = vpack.c.b16 %v9345, %v9344
  %v9404 = vpack.c.b16 %v9347, %v9346
  %v9405 = vpack.c.b16 %v9349, %v9348
  %v9406 = vpack.c.b16 %v9351, %v9350
  %v9407 = vpack.c.b16 %v9353, %v9352
  %v9408 = vpack.c.b16 %v9355, %v9354
  %v9409 = vpack.c.b16 %v9357, %v9356
  %v9410 = vpack.c.b16 %v9359, %v9358
  %v9411 = vpack.c.b16 %v9361, %v9360
  %v9412 = vpack.c.b16 %v9363, %v9362
  %v9413 = vpack.c.b16 %v9365, %v9364
  %9462 = vmatprep.subr.bf16.mxu0 0
  %9463 = vmatpush1.bf16.msra.mxu0 %v9373
  %9464 = vmatprep.subr.bf16.mxu0 0
  %9465 = vmatpush1.bf16.msra.mxu0 %v9372
  %9466 = vmatprep.subr.bf16.mxu0 0
  %9467 = vmatpush1.bf16.msra.mxu0 %v9371
  %9468 = vmatprep.subr.bf16.mxu0 0
  %9469 = vmatpush1.bf16.msra.mxu0 %v9370
  %9470 = vmatprep.subr.bf16.mxu0 0
  %9471 = vmatpush1.bf16.msra.mxu0 %v9369
  %9472 = vmatprep.subr.bf16.mxu0 0
  %9473 = vmatpush1.bf16.msra.mxu0 %v9368
  %9474 = vmatprep.subr.bf16.mxu0 0
  %9475 = vmatpush1.bf16.msra.mxu0 %v9367
  %9476 = vmatprep.subr.bf16.mxu0 0
  %9477 = vmatpush1.bf16.msra.mxu0 %v9366
  %9478 = vmatprep.subr.bf16.mxu0 0
  %9479 = vmatpush2.bf16.msra.mxu0 %v9381
  %9480 = vmatprep.subr.bf16.mxu0 0
  %9481 = vmatpush2.bf16.msra.mxu0 %v9380
  %9482 = vmatprep.subr.bf16.mxu0 0
  %9483 = vmatpush2.bf16.msra.mxu0 %v9379
  %9484 = vmatprep.subr.bf16.mxu0 0
  %9485 = vmatpush2.bf16.msra.mxu0 %v9378
  %9486 = vmatprep.subr.bf16.mxu0 0
  %9487 = vmatpush2.bf16.msra.mxu0 %v9377
  %9488 = vmatprep.subr.bf16.mxu0 0
  %9489 = vmatpush2.bf16.msra.mxu0 %v9376
  %9490 = vmatprep.subr.bf16.mxu0 0
  %9491 = vmatpush2.bf16.msra.mxu0 %v9375
  %9492 = vmatprep.subr.bf16.mxu0 0
  %9493 = vmatpush2.bf16.msra.mxu0 %v9374
  %9494 = vmatprep.mubr.bf16.mxu0 %v6526
  %9495 = vmatmul.mubr.bf16.gmra.mxu0 %v6525
  %v9496 = vpop.f32.mrf.mxu0
  %v9497 = vadd.f32 %v6248, %v9496
  %v9498 = vpop.f32.mrf.mxu0
  %v9499 = vpop.f32.mrf.mxu0
  %v9500 = vadd.f32 %v6253, %v9499
  %v9501 = vpop.f32.mrf.mxu0
  %9502 = vmatprep.mubr.bf16.mxu0 %v6532
  %9503 = vmatmul.mubr.bf16.gmra.mxu0 %v6531
  %v9504 = vpop.f32.mrf.mxu0
  %v9505 = vadd.f32 %v6258, %v9504
  %v9506 = vpop.f32.mrf.mxu0
  %v9507 = vpop.f32.mrf.mxu0
  %v9508 = vadd.f32 %v6263, %v9507
  %v9509 = vpop.f32.mrf.mxu0
  %9510 = vmatprep.mubr.bf16.mxu0 %v6538
  %9511 = vmatmul.mubr.bf16.gmra.mxu0 %v6537
  %v9512 = vpop.f32.mrf.mxu0
  %v9513 = vadd.f32 %v6268, %v9512
  %v9514 = vpop.f32.mrf.mxu0
  %v9515 = vpop.f32.mrf.mxu0
  %v9516 = vadd.f32 %v6273, %v9515
  %v9517 = vpop.f32.mrf.mxu0
  %9518 = vmatprep.mubr.bf16.mxu0 %v6544
  %9519 = vmatmul.mubr.bf16.gmra.mxu0 %v6543
  %v9520 = vpop.f32.mrf.mxu0
  %v9521 = vadd.f32 %v6278, %v9520
  %v9522 = vpop.f32.mrf.mxu0
  %v9523 = vpop.f32.mrf.mxu0
  %v9524 = vadd.f32 %v6283, %v9523
  %v9525 = vpop.f32.mrf.mxu0
  %9526 = vmatprep.mubr.bf16.mxu0 %v6550
  %9527 = vmatmul.mubr.bf16.gmra.mxu0 %v6549
  %v9528 = vpop.f32.mrf.mxu0
  %v9529 = vadd.f32 %v6288, %v9528
  %v9530 = vpop.f32.mrf.mxu0
  %v9531 = vpop.f32.mrf.mxu0
  %v9532 = vadd.f32 %v6293, %v9531
  %v9533 = vpop.f32.mrf.mxu0
  %9534 = vmatprep.mubr.bf16.mxu0 %v6556
  %9535 = vmatmul.mubr.bf16.gmra.mxu0 %v6555
  %v9536 = vpop.f32.mrf.mxu0
  %v9537 = vadd.f32 %v6298, %v9536
  %v9538 = vpop.f32.mrf.mxu0
  %v9539 = vpop.f32.mrf.mxu0
  %v9540 = vadd.f32 %v6303, %v9539
  %v9541 = vpop.f32.mrf.mxu0
  %9542 = vmatprep.mubr.bf16.mxu0 %v6562
  %9543 = vmatmul.mubr.bf16.gmra.mxu0 %v6561
  %v9544 = vpop.f32.mrf.mxu0
  %v9545 = vadd.f32 %v6308, %v9544
  %v9546 = vpop.f32.mrf.mxu0
  %v9547 = vpop.f32.mrf.mxu0
  %v9548 = vadd.f32 %v6313, %v9547
  %v9549 = vpop.f32.mrf.mxu0
  %9550 = vmatprep.mubr.bf16.mxu0 %v6568
  %9551 = vmatmul.mubr.bf16.gmra.mxu0 %v6567
  %v9552 = vpop.f32.mrf.mxu0
  %v9553 = vadd.f32 %v6318, %v9552
  %v9554 = vpop.f32.mrf.mxu0
  %v9555 = vpop.f32.mrf.mxu0
  %v9556 = vadd.f32 %v6323, %v9555
  %v9557 = vpop.f32.mrf.mxu0
  %9558 = vmatprep.mubr.bf16.mxu0 %v6574
  %9559 = vmatmul.mubr.bf16.gmra.mxu0 %v6573
  %v9560 = vpop.f32.mrf.mxu0
  %v9561 = vadd.f32 %v6328, %v9560
  %v9562 = vpop.f32.mrf.mxu0
  %v9563 = vpop.f32.mrf.mxu0
  %v9564 = vadd.f32 %v6333, %v9563
  %v9565 = vpop.f32.mrf.mxu0
  %9566 = vmatprep.mubr.bf16.mxu0 %v6580
  %9567 = vmatmul.mubr.bf16.gmra.mxu0 %v6579
  %v9568 = vpop.f32.mrf.mxu0
  %v9569 = vadd.f32 %v6338, %v9568
  %v9570 = vpop.f32.mrf.mxu0
  %v9571 = vpop.f32.mrf.mxu0
  %v9572 = vadd.f32 %v6343, %v9571
  %v9573 = vpop.f32.mrf.mxu0
  %9574 = vdwg.mxu0
  %9575 = vmatprep.subr.bf16.mxu0 0
  %9576 = vmatpush1.bf16.msra.mxu0 %v9389
  %9577 = vmatprep.subr.bf16.mxu0 0
  %9578 = vmatpush1.bf16.msra.mxu0 %v9388
  %9579 = vmatprep.subr.bf16.mxu0 0
  %9580 = vmatpush1.bf16.msra.mxu0 %v9387
  %9581 = vmatprep.subr.bf16.mxu0 0
  %9582 = vmatpush1.bf16.msra.mxu0 %v9386
  %9583 = vmatprep.subr.bf16.mxu0 0
  %9584 = vmatpush1.bf16.msra.mxu0 %v9385
  %9585 = vmatprep.subr.bf16.mxu0 0
  %9586 = vmatpush1.bf16.msra.mxu0 %v9384
  %9587 = vmatprep.subr.bf16.mxu0 0
  %9588 = vmatpush1.bf16.msra.mxu0 %v9383
  %9589 = vmatprep.subr.bf16.mxu0 0
  %9590 = vmatpush1.bf16.msra.mxu0 %v9382
  %9591 = vmatprep.subr.bf16.mxu0 0
  %9592 = vmatpush2.bf16.msra.mxu0 %v9397
  %9593 = vmatprep.subr.bf16.mxu0 0
  %9594 = vmatpush2.bf16.msra.mxu0 %v9396
  %9595 = vmatprep.subr.bf16.mxu0 0
  %9596 = vmatpush2.bf16.msra.mxu0 %v9395
  %9597 = vmatprep.subr.bf16.mxu0 0
  %9598 = vmatpush2.bf16.msra.mxu0 %v9394
  %9599 = vmatprep.subr.bf16.mxu0 0
  %9600 = vmatpush2.bf16.msra.mxu0 %v9393
  %9601 = vmatprep.subr.bf16.mxu0 0
  %9602 = vmatpush2.bf16.msra.mxu0 %v9392
  %9603 = vmatprep.subr.bf16.mxu0 0
  %9604 = vmatpush2.bf16.msra.mxu0 %v9391
  %9605 = vmatprep.subr.bf16.mxu0 0
  %9606 = vmatpush2.bf16.msra.mxu0 %v9390
  %9607 = vmatprep.mubr.bf16.mxu0 %v6528
  %9608 = vmatmul.mubr.bf16.gmra.mxu0 %v6527
  %v9609 = vpop.f32.mrf.mxu0
  %v9610 = vadd.f32 %v9497, %v9609
  %v9611 = vpop.f32.mrf.mxu0
  %v9612 = vpop.f32.mrf.mxu0
  %v9613 = vadd.f32 %v9500, %v9612
  %v9614 = vpop.f32.mrf.mxu0
  %9615 = vmatprep.mubr.bf16.mxu0 %v6534
  %9616 = vmatmul.mubr.bf16.gmra.mxu0 %v6533
  %v9617 = vpop.f32.mrf.mxu0
  %v9618 = vadd.f32 %v9505, %v9617
  %v9619 = vpop.f32.mrf.mxu0
  %v9620 = vpop.f32.mrf.mxu0
  %v9621 = vadd.f32 %v9508, %v9620
  %v9622 = vpop.f32.mrf.mxu0
  %9623 = vmatprep.mubr.bf16.mxu0 %v6540
  %9624 = vmatmul.mubr.bf16.gmra.mxu0 %v6539
  %v9625 = vpop.f32.mrf.mxu0
  %v9626 = vadd.f32 %v9513, %v9625
  %v9627 = vpop.f32.mrf.mxu0
  %v9628 = vpop.f32.mrf.mxu0
  %v9629 = vadd.f32 %v9516, %v9628
  %v9630 = vpop.f32.mrf.mxu0
  %9631 = vmatprep.mubr.bf16.mxu0 %v6546
  %9632 = vmatmul.mubr.bf16.gmra.mxu0 %v6545
  %v9633 = vpop.f32.mrf.mxu0
  %v9634 = vadd.f32 %v9521, %v9633
  %v9635 = vpop.f32.mrf.mxu0
  %v9636 = vpop.f32.mrf.mxu0
  %v9637 = vadd.f32 %v9524, %v9636
  %v9638 = vpop.f32.mrf.mxu0
  %9639 = vmatprep.mubr.bf16.mxu0 %v6552
  %9640 = vmatmul.mubr.bf16.gmra.mxu0 %v6551
  %v9641 = vpop.f32.mrf.mxu0
  %v9642 = vadd.f32 %v9529, %v9641
  %v9643 = vpop.f32.mrf.mxu0
  %v9644 = vpop.f32.mrf.mxu0
  %v9645 = vadd.f32 %v9532, %v9644
  %v9646 = vpop.f32.mrf.mxu0
  %9647 = vmatprep.mubr.bf16.mxu0 %v6558
  %9648 = vmatmul.mubr.bf16.gmra.mxu0 %v6557
  %v9649 = vpop.f32.mrf.mxu0
  %v9650 = vadd.f32 %v9537, %v9649
  %v9651 = vpop.f32.mrf.mxu0
  %v9652 = vpop.f32.mrf.mxu0
  %v9653 = vadd.f32 %v9540, %v9652
  %v9654 = vpop.f32.mrf.mxu0
  %9655 = vmatprep.mubr.bf16.mxu0 %v6564
  %9656 = vmatmul.mubr.bf16.gmra.mxu0 %v6563
  %v9657 = vpop.f32.mrf.mxu0
  %v9658 = vadd.f32 %v9545, %v9657
  %v9659 = vpop.f32.mrf.mxu0
  %v9660 = vpop.f32.mrf.mxu0
  %v9661 = vadd.f32 %v9548, %v9660
  %v9662 = vpop.f32.mrf.mxu0
  %9663 = vmatprep.mubr.bf16.mxu0 %v6570
  %9664 = vmatmul.mubr.bf16.gmra.mxu0 %v6569
  %v9665 = vpop.f32.mrf.mxu0
  %v9666 = vadd.f32 %v9553, %v9665
  %v9667 = vpop.f32.mrf.mxu0
  %v9668 = vpop.f32.mrf.mxu0
  %v9669 = vadd.f32 %v9556, %v9668
  %v9670 = vpop.f32.mrf.mxu0
  %9671 = vmatprep.mubr.bf16.mxu0 %v6576
  %9672 = vmatmul.mubr.bf16.gmra.mxu0 %v6575
  %v9673 = vpop.f32.mrf.mxu0
  %v9674 = vadd.f32 %v9561, %v9673
  %v9675 = vpop.f32.mrf.mxu0
  %v9676 = vpop.f32.mrf.mxu0
  %v9677 = vadd.f32 %v9564, %v9676
  %v9678 = vpop.f32.mrf.mxu0
  %9679 = vmatprep.mubr.bf16.mxu0 %v6582
  %9680 = vmatmul.mubr.bf16.gmra.mxu0 %v6581
  %v9681 = vpop.f32.mrf.mxu0
  %v9682 = vadd.f32 %v9569, %v9681
  %v9683 = vpop.f32.mrf.mxu0
  %v9684 = vpop.f32.mrf.mxu0
  %v9685 = vadd.f32 %v9572, %v9684
  %v9686 = vpop.f32.mrf.mxu0
  %9687 = vdwg.mxu0
  %9688 = vmatprep.subr.bf16.mxu0 0
  %9689 = vmatpush1.bf16.msra.mxu0 %v9405
  %9690 = vmatprep.subr.bf16.mxu0 0
  %9691 = vmatpush1.bf16.msra.mxu0 %v9404
  %9692 = vmatprep.subr.bf16.mxu0 0
  %9693 = vmatpush1.bf16.msra.mxu0 %v9403
  %9694 = vmatprep.subr.bf16.mxu0 0
  %9695 = vmatpush1.bf16.msra.mxu0 %v9402
  %9696 = vmatprep.subr.bf16.mxu0 0
  %9697 = vmatpush1.bf16.msra.mxu0 %v9401
  %9698 = vmatprep.subr.bf16.mxu0 0
  %9699 = vmatpush1.bf16.msra.mxu0 %v9400
  %9700 = vmatprep.subr.bf16.mxu0 0
  %9701 = vmatpush1.bf16.msra.mxu0 %v9399
  %9702 = vmatprep.subr.bf16.mxu0 0
  %9703 = vmatpush1.bf16.msra.mxu0 %v9398
  %9704 = vmatprep.subr.bf16.mxu0 0
  %9705 = vmatpush2.bf16.msra.mxu0 %v9413
  %9706 = vmatprep.subr.bf16.mxu0 0
  %9707 = vmatpush2.bf16.msra.mxu0 %v9412
  %9708 = vmatprep.subr.bf16.mxu0 0
  %9709 = vmatpush2.bf16.msra.mxu0 %v9411
  %9710 = vmatprep.subr.bf16.mxu0 0
  %9711 = vmatpush2.bf16.msra.mxu0 %v9410
  %9712 = vmatprep.subr.bf16.mxu0 0
  %9713 = vmatpush2.bf16.msra.mxu0 %v9409
  %9714 = vmatprep.subr.bf16.mxu0 0
  %9715 = vmatpush2.bf16.msra.mxu0 %v9408
  %9716 = vmatprep.subr.bf16.mxu0 0
  %9717 = vmatpush2.bf16.msra.mxu0 %v9407
  %9718 = vmatprep.subr.bf16.mxu0 0
  %9719 = vmatpush2.bf16.msra.mxu0 %v9406
  %9720 = vmatprep.mubr.bf16.mxu0 %v6530
  %9721 = vmatmul.mubr.bf16.gmra.mxu0 %v6529
  %v9722 = vpop.f32.mrf.mxu0
  %v9723 = vadd.f32 %v9610, %v9722
  %v9724 = vpop.f32.mrf.mxu0
  %v9725 = vpop.f32.mrf.mxu0
  %v9726 = vadd.f32 %v9613, %v9725
  %v9727 = vpop.f32.mrf.mxu0
  %9728 = vmatprep.mubr.bf16.mxu0 %v6536
  %9729 = vmatmul.mubr.bf16.gmra.mxu0 %v6535
  %v9730 = vpop.f32.mrf.mxu0
  %v9731 = vadd.f32 %v9618, %v9730
  %v9732 = vpop.f32.mrf.mxu0
  %v9733 = vpop.f32.mrf.mxu0
  %v9734 = vadd.f32 %v9621, %v9733
  %v9735 = vpop.f32.mrf.mxu0
  %9736 = vmatprep.mubr.bf16.mxu0 %v6542
  %9737 = vmatmul.mubr.bf16.gmra.mxu0 %v6541
  %v9738 = vpop.f32.mrf.mxu0
  %v9739 = vadd.f32 %v9626, %v9738
  %v9740 = vpop.f32.mrf.mxu0
  %v9741 = vpop.f32.mrf.mxu0
  %v9742 = vadd.f32 %v9629, %v9741
  %v9743 = vpop.f32.mrf.mxu0
  %9744 = vmatprep.mubr.bf16.mxu0 %v6548
  %9745 = vmatmul.mubr.bf16.gmra.mxu0 %v6547
  %v9746 = vpop.f32.mrf.mxu0
  %v9747 = vadd.f32 %v9634, %v9746
  %v9748 = vpop.f32.mrf.mxu0
  %v9749 = vpop.f32.mrf.mxu0
  %v9750 = vadd.f32 %v9637, %v9749
  %v9751 = vpop.f32.mrf.mxu0
  %9752 = vmatprep.mubr.bf16.mxu0 %v6554
  %9753 = vmatmul.mubr.bf16.gmra.mxu0 %v6553
  %v9754 = vpop.f32.mrf.mxu0
  %v9755 = vadd.f32 %v9642, %v9754
  %v9756 = vpop.f32.mrf.mxu0
  %v9757 = vpop.f32.mrf.mxu0
  %v9758 = vadd.f32 %v9645, %v9757
  %v9759 = vpop.f32.mrf.mxu0
  %9760 = vmatprep.mubr.bf16.mxu0 %v6560
  %9761 = vmatmul.mubr.bf16.gmra.mxu0 %v6559
  %v9762 = vpop.f32.mrf.mxu0
  %v9763 = vadd.f32 %v9650, %v9762
  %v9764 = vpop.f32.mrf.mxu0
  %v9765 = vpop.f32.mrf.mxu0
  %v9766 = vadd.f32 %v9653, %v9765
  %v9767 = vpop.f32.mrf.mxu0
  %9768 = vmatprep.mubr.bf16.mxu0 %v6566
  %9769 = vmatmul.mubr.bf16.gmra.mxu0 %v6565
  %v9770 = vpop.f32.mrf.mxu0
  %v9771 = vadd.f32 %v9658, %v9770
  %v9772 = vpop.f32.mrf.mxu0
  %v9773 = vpop.f32.mrf.mxu0
  %v9774 = vadd.f32 %v9661, %v9773
  %v9775 = vpop.f32.mrf.mxu0
  %9776 = vmatprep.mubr.bf16.mxu0 %v6572
  %9777 = vmatmul.mubr.bf16.gmra.mxu0 %v6571
  %v9778 = vpop.f32.mrf.mxu0
  %v9779 = vadd.f32 %v9666, %v9778
  %v9780 = vpop.f32.mrf.mxu0
  %v9781 = vpop.f32.mrf.mxu0
  %v9782 = vadd.f32 %v9669, %v9781
  %v9783 = vpop.f32.mrf.mxu0
  %9784 = vmatprep.mubr.bf16.mxu0 %v6578
  %9785 = vmatmul.mubr.bf16.gmra.mxu0 %v6577
  %v9786 = vpop.f32.mrf.mxu0
  %v9787 = vadd.f32 %v9674, %v9786
  %v9788 = vpop.f32.mrf.mxu0
  %v9789 = vpop.f32.mrf.mxu0
  %v9790 = vadd.f32 %v9677, %v9789
  %v9791 = vpop.f32.mrf.mxu0
  %9792 = vmatprep.mubr.bf16.mxu0 %v6584
  %9793 = vmatmul.mubr.bf16.gmra.mxu0 %v6583
  %v9794 = vpop.f32.mrf.mxu0
  %v9795 = vadd.f32 %v9682, %v9794
  %v9796 = vpop.f32.mrf.mxu0
  %v9797 = vpop.f32.mrf.mxu0
  %v9798 = vadd.f32 %v9685, %v9797
  %v9799 = vpop.f32.mrf.mxu0
  %9800 = vdwg.mxu0
  %v9801 = vmax.f32 %v9723, 0.0
  %v9802 = vmax.f32 %v9726, 0.0
  %v9803 = vmax.f32 %v9731, 0.0
  %v9804 = vmax.f32 %v9734, 0.0
  %v9805 = vmax.f32 %v9739, 0.0
  %v9806 = vmax.f32 %v9742, 0.0
  %v9807 = vmax.f32 %v9747, 0.0
  %v9808 = vmax.f32 %v9750, 0.0
  %v9809 = vmax.f32 %v9755, 0.0
  %v9810 = vmax.f32 %v9758, 0.0
  %v9811 = vmax.f32 %v9763, 0.0
  %v9812 = vmax.f32 %v9766, 0.0
  %v9813 = vmax.f32 %v9771, 0.0
  %v9814 = vmax.f32 %v9774, 0.0
  %v9815 = vmax.f32 %v9779, 0.0
  %v9816 = vmax.f32 %v9782, 0.0
  %v9817 = vmax.f32 %v9787, 0.0
  %v9818 = vmax.f32 %v9790, 0.0
  %v9819 = vmax.f32 %v9795, 0.0
  %v9820 = vmax.f32 %v9798, 0.0
  %v9821 = vpack.c.bf16 %v9802, %v9801
  %v9822 = vpack.c.bf16 %v9804, %v9803
  %v9823 = vpack.c.bf16 %v9806, %v9805
  %v9824 = vpack.c.bf16 %v9808, %v9807
  %v9825 = vpack.c.bf16 %v9810, %v9809
  %v9826 = vpack.c.bf16 %v9812, %v9811
  %v9827 = vpack.c.bf16 %v9814, %v9813
  %v9828 = vpack.c.bf16 %v9816, %v9815
  %v9829 = vpack.c.bf16 %v9818, %v9817
  %v9830 = vpack.c.bf16 %v9820, %v9819
  %v9841 = vunpack.c.l.b16 %v9821
  %v9842 = vunpack.c.h.b16 %v9821
  %v9843 = vunpack.c.l.b16 %v9822
  %v9844 = vunpack.c.h.b16 %v9822
  %v9845 = vunpack.c.l.b16 %v9823
  %v9846 = vunpack.c.h.b16 %v9823
  %v9847 = vunpack.c.l.b16 %v9824
  %v9848 = vunpack.c.h.b16 %v9824
  %v9849 = vunpack.c.l.b16 %v9825
  %v9850 = vunpack.c.h.b16 %v9825
  %v9851 = vunpack.c.l.b16 %v9826
  %v9852 = vunpack.c.h.b16 %v9826
  %v9853 = vunpack.c.l.b16 %v9827
  %v9854 = vunpack.c.h.b16 %v9827
  %v9855 = vunpack.c.l.b16 %v9828
  %v9856 = vunpack.c.h.b16 %v9828
  %v9857 = vunpack.c.l.b16 %v9829
  %v9858 = vunpack.c.h.b16 %v9829
  %v9859 = vunpack.c.l.b16 %v9830
  %v9860 = vunpack.c.h.b16 %v9830
  %v9861 = vpack.c.b16 %v9841, %v9841
  %v9862 = vpack.c.b16 %v9842, %v9842
  %v9863 = vpack.c.b16 %v9843, %v9843
  %v9864 = vpack.c.b16 %v9844, %v9844
  %v9865 = vpack.c.b16 %v9845, %v9845
  %v9866 = vpack.c.b16 %v9846, %v9846
  %v9867 = vpack.c.b16 %v9847, %v9847
  %v9868 = vpack.c.b16 %v9848, %v9848
  %v9869 = vpack.c.b16 %v9849, %v9849
  %v9870 = vpack.c.b16 %v9850, %v9850
  %v9871 = vpack.c.b16 %v9851, %v9851
  %v9872 = vpack.c.b16 %v9852, %v9852
  %v9873 = vpack.c.b16 %v9853, %v9853
  %v9874 = vpack.c.b16 %v9854, %v9854
  %v9875 = vpack.c.b16 %v9855, %v9855
  %v9876 = vpack.c.b16 %v9856, %v9856
  %v9877 = vpack.c.b16 %v9857, %v9857
  %v9878 = vpack.c.b16 %v9858, %v9858
  %v9879 = vpack.c.b16 %v9859, %v9859
  %v9880 = vpack.c.b16 %v9860, %v9860
  %9901 = vst [vmem:[#allocation3 + $0x140] sm:$0xf] %v9861
  %9902 = vst [vmem:[#allocation3 + $0x144] sm:$0xf] %v9862
  %9903 = vst [vmem:[#allocation3 + $0x148] sm:$0xf] %v9863
  %9904 = vst [vmem:[#allocation3 + $0x14c] sm:$0xf] %v9864
  %9905 = vst [vmem:[#allocation3 + $0x150] sm:$0xf] %v9865
  %9906 = vst [vmem:[#allocation3 + $0x154] sm:$0xf] %v9866
  %9907 = vst [vmem:[#allocation3 + $0x158] sm:$0xf] %v9867
  %9908 = vst [vmem:[#allocation3 + $0x15c] sm:$0xf] %v9868
  %9909 = vst [vmem:[#allocation3 + $0x160] sm:$0xf] %v9869
  %9910 = vst [vmem:[#allocation3 + $0x164] sm:$0xf] %v9870
  %9911 = vst [vmem:[#allocation3 + $0x168] sm:$0xf] %v9871
  %9912 = vst [vmem:[#allocation3 + $0x16c] sm:$0xf] %v9872
  %9913 = vst [vmem:[#allocation3 + $0x170] sm:$0xf] %v9873
  %9914 = vst [vmem:[#allocation3 + $0x174] sm:$0xf] %v9874
  %9915 = vst [vmem:[#allocation3 + $0x178] sm:$0xf] %v9875
  %9916 = vst [vmem:[#allocation3 + $0x17c] sm:$0xf] %v9876
  %9917 = vst [vmem:[#allocation3 + $0x180] sm:$0xf] %v9877
  %9918 = vst [vmem:[#allocation3 + $0x184] sm:$0xf] %v9878
  %9919 = vst [vmem:[#allocation3 + $0x188] sm:$0xf] %v9879
  %9920 = vst [vmem:[#allocation3 + $0x18c] sm:$0xf] %v9880
  %v9921 = vld [vmem:[#allocation2 + $0x400] sm:$0xf]
  %v9922 = vld [vmem:[#allocation2 + $0x404] sm:$0xf]
  %v9923 = vld [vmem:[#allocation2 + $0x408] sm:$0xf]
  %v9924 = vld [vmem:[#allocation2 + $0x40c] sm:$0xf]
  %v9925 = vld [vmem:[#allocation2 + $0x410] sm:$0xf]
  %v9926 = vld [vmem:[#allocation2 + $0x414] sm:$0xf]
  %v9927 = vld [vmem:[#allocation2 + $0x418] sm:$0xf]
  %v9928 = vld [vmem:[#allocation2 + $0x41c] sm:$0xf]
  %v9929 = vld [vmem:[#allocation2 + $0x420] sm:$0xf]
  %v9930 = vld [vmem:[#allocation2 + $0x424] sm:$0xf]
  %v9931 = vld [vmem:[#allocation2 + $0x428] sm:$0xf]
  %v9932 = vld [vmem:[#allocation2 + $0x42c] sm:$0xf]
  %v9933 = vld [vmem:[#allocation2 + $0x430] sm:$0xf]
  %v9934 = vld [vmem:[#allocation2 + $0x434] sm:$0xf]
  %v9935 = vld [vmem:[#allocation2 + $0x438] sm:$0xf]
  %v9936 = vld [vmem:[#allocation2 + $0x43c] sm:$0xf]
  %v9937 = vld [vmem:[#allocation2 + $0x440] sm:$0xf]
  %v9938 = vld [vmem:[#allocation2 + $0x444] sm:$0xf]
  %v9939 = vld [vmem:[#allocation2 + $0x448] sm:$0xf]
  %v9940 = vld [vmem:[#allocation2 + $0x44c] sm:$0xf]
  %v9941 = vld [vmem:[#allocation2 + $0x450] sm:$0xf]
  %v9942 = vld [vmem:[#allocation2 + $0x454] sm:$0xf]
  %v9943 = vld [vmem:[#allocation2 + $0x458] sm:$0xf]
  %v9944 = vld [vmem:[#allocation2 + $0x45c] sm:$0xf]
  %v9945 = vld [vmem:[#allocation2 + $0x460] sm:$0xf]
  %v9946 = vld [vmem:[#allocation2 + $0x464] sm:$0xf]
  %v9947 = vld [vmem:[#allocation2 + $0x468] sm:$0xf]
  %v9948 = vld [vmem:[#allocation2 + $0x46c] sm:$0xf]
  %v9949 = vld [vmem:[#allocation2 + $0x470] sm:$0xf]
  %v9950 = vld [vmem:[#allocation2 + $0x474] sm:$0xf]
  %v9951 = vld [vmem:[#allocation2 + $0x478] sm:$0xf]
  %v9952 = vld [vmem:[#allocation2 + $0x47c] sm:$0xf]
  %v9953 = vld [vmem:[#allocation2 + $0x480] sm:$0xf]
  %v9954 = vld [vmem:[#allocation2 + $0x484] sm:$0xf]
  %v9955 = vld [vmem:[#allocation2 + $0x488] sm:$0xf]
  %v9956 = vld [vmem:[#allocation2 + $0x48c] sm:$0xf]
  %v9957 = vld [vmem:[#allocation2 + $0x490] sm:$0xf]
  %v9958 = vld [vmem:[#allocation2 + $0x494] sm:$0xf]
  %v9959 = vld [vmem:[#allocation2 + $0x498] sm:$0xf]
  %v9960 = vld [vmem:[#allocation2 + $0x49c] sm:$0xf]
  %v9961 = vld [vmem:[#allocation2 + $0x4a0] sm:$0xf]
  %v9962 = vld [vmem:[#allocation2 + $0x4a4] sm:$0xf]
  %v9963 = vld [vmem:[#allocation2 + $0x4a8] sm:$0xf]
  %v9964 = vld [vmem:[#allocation2 + $0x4ac] sm:$0xf]
  %v9965 = vld [vmem:[#allocation2 + $0x4b0] sm:$0xf]
  %v9966 = vld [vmem:[#allocation2 + $0x4b4] sm:$0xf]
  %v9967 = vld [vmem:[#allocation2 + $0x4b8] sm:$0xf]
  %v9968 = vld [vmem:[#allocation2 + $0x4bc] sm:$0xf]
  %v9969 = vld [vmem:[#allocation2 + $0x4c0] sm:$0xf]
  %v9970 = vld [vmem:[#allocation2 + $0x4c4] sm:$0xf]
  %v9971 = vld [vmem:[#allocation2 + $0x4c8] sm:$0xf]
  %v9972 = vld [vmem:[#allocation2 + $0x4cc] sm:$0xf]
  %v9973 = vld [vmem:[#allocation2 + $0x4d0] sm:$0xf]
  %v9974 = vld [vmem:[#allocation2 + $0x4d4] sm:$0xf]
  %v9975 = vld [vmem:[#allocation2 + $0x4d8] sm:$0xf]
  %v9976 = vld [vmem:[#allocation2 + $0x4dc] sm:$0xf]
  %v9977 = vld [vmem:[#allocation2 + $0x4e0] sm:$0xf]
  %v9978 = vld [vmem:[#allocation2 + $0x4e4] sm:$0xf]
  %v9979 = vld [vmem:[#allocation2 + $0x4e8] sm:$0xf]
  %v9980 = vld [vmem:[#allocation2 + $0x4ec] sm:$0xf]
  %v9981 = vld [vmem:[#allocation2 + $0x4f0] sm:$0xf]
  %v9982 = vld [vmem:[#allocation2 + $0x4f4] sm:$0xf]
  %v9983 = vld [vmem:[#allocation2 + $0x4f8] sm:$0xf]
  %v9984 = vld [vmem:[#allocation2 + $0x4fc] sm:$0xf]
  %v9985 = vld [vmem:[#allocation2 + $0x500] sm:$0xf]
  %v9986 = vld [vmem:[#allocation2 + $0x504] sm:$0xf]
  %v9987 = vld [vmem:[#allocation2 + $0x508] sm:$0xf]
  %v9988 = vld [vmem:[#allocation2 + $0x50c] sm:$0xf]
  %v9989 = vld [vmem:[#allocation2 + $0x510] sm:$0xf]
  %v9990 = vld [vmem:[#allocation2 + $0x514] sm:$0xf]
  %v9991 = vld [vmem:[#allocation2 + $0x518] sm:$0xf]
  %v9992 = vld [vmem:[#allocation2 + $0x51c] sm:$0xf]
  %v9993 = vld [vmem:[#allocation2 + $0x520] sm:$0xf]
  %v9994 = vld [vmem:[#allocation2 + $0x524] sm:$0xf]
  %v9995 = vld [vmem:[#allocation2 + $0x528] sm:$0xf]
  %v9996 = vld [vmem:[#allocation2 + $0x52c] sm:$0xf]
  %v9997 = vld [vmem:[#allocation2 + $0x530] sm:$0xf]
  %v9998 = vld [vmem:[#allocation2 + $0x534] sm:$0xf]
  %v9999 = vld [vmem:[#allocation2 + $0x538] sm:$0xf]
  %v10000 = vld [vmem:[#allocation2 + $0x53c] sm:$0xf]
  %v10001 = vld [vmem:[#allocation2 + $0x540] sm:$0xf]
  %v10002 = vld [vmem:[#allocation2 + $0x544] sm:$0xf]
  %v10003 = vld [vmem:[#allocation2 + $0x548] sm:$0xf]
  %v10004 = vld [vmem:[#allocation2 + $0x54c] sm:$0xf]
  %v10005 = vld [vmem:[#allocation2 + $0x550] sm:$0xf]
  %v10006 = vld [vmem:[#allocation2 + $0x554] sm:$0xf]
  %v10007 = vld [vmem:[#allocation2 + $0x558] sm:$0xf]
  %v10008 = vld [vmem:[#allocation2 + $0x55c] sm:$0xf]
  %v10009 = vld [vmem:[#allocation2 + $0x560] sm:$0xf]
  %v10010 = vld [vmem:[#allocation2 + $0x564] sm:$0xf]
  %v10011 = vld [vmem:[#allocation2 + $0x568] sm:$0xf]
  %v10012 = vld [vmem:[#allocation2 + $0x56c] sm:$0xf]
  %v10013 = vld [vmem:[#allocation2 + $0x570] sm:$0xf]
  %v10014 = vld [vmem:[#allocation2 + $0x574] sm:$0xf]
  %v10015 = vld [vmem:[#allocation2 + $0x578] sm:$0xf]
  %v10016 = vld [vmem:[#allocation2 + $0x57c] sm:$0xf]
  %v10113 = vunpack.c.l.b16 %v9921
  %v10114 = vunpack.c.l.b16 %v9922
  %v10115 = vunpack.c.l.b16 %v9923
  %v10116 = vunpack.c.l.b16 %v9924
  %v10117 = vunpack.c.l.b16 %v9925
  %v10118 = vunpack.c.l.b16 %v9926
  %v10119 = vunpack.c.l.b16 %v9927
  %v10120 = vunpack.c.l.b16 %v9928
  %v10121 = vunpack.c.l.b16 %v9929
  %v10122 = vunpack.c.l.b16 %v9930
  %v10123 = vunpack.c.l.b16 %v9931
  %v10124 = vunpack.c.l.b16 %v9932
  %v10125 = vunpack.c.l.b16 %v9933
  %v10126 = vunpack.c.l.b16 %v9934
  %v10127 = vunpack.c.l.b16 %v9935
  %v10128 = vunpack.c.l.b16 %v9936
  %v10129 = vunpack.c.l.b16 %v9937
  %v10130 = vunpack.c.l.b16 %v9938
  %v10131 = vunpack.c.l.b16 %v9939
  %v10132 = vunpack.c.l.b16 %v9940
  %v10133 = vunpack.c.l.b16 %v9941
  %v10134 = vunpack.c.l.b16 %v9942
  %v10135 = vunpack.c.l.b16 %v9943
  %v10136 = vunpack.c.l.b16 %v9944
  %v10137 = vunpack.c.l.b16 %v9945
  %v10138 = vunpack.c.l.b16 %v9946
  %v10139 = vunpack.c.l.b16 %v9947
  %v10140 = vunpack.c.l.b16 %v9948
  %v10141 = vunpack.c.l.b16 %v9949
  %v10142 = vunpack.c.l.b16 %v9950
  %v10143 = vunpack.c.l.b16 %v9951
  %v10144 = vunpack.c.l.b16 %v9952
  %v10145 = vunpack.c.l.b16 %v9953
  %v10146 = vunpack.c.l.b16 %v9954
  %v10147 = vunpack.c.l.b16 %v9955
  %v10148 = vunpack.c.l.b16 %v9956
  %v10149 = vunpack.c.l.b16 %v9957
  %v10150 = vunpack.c.l.b16 %v9958
  %v10151 = vunpack.c.l.b16 %v9959
  %v10152 = vunpack.c.l.b16 %v9960
  %v10153 = vunpack.c.l.b16 %v9961
  %v10154 = vunpack.c.l.b16 %v9962
  %v10155 = vunpack.c.l.b16 %v9963
  %v10156 = vunpack.c.l.b16 %v9964
  %v10157 = vunpack.c.l.b16 %v9965
  %v10158 = vunpack.c.l.b16 %v9966
  %v10159 = vunpack.c.l.b16 %v9967
  %v10160 = vunpack.c.l.b16 %v9968
  %v10161 = vunpack.c.l.b16 %v9969
  %v10162 = vunpack.c.l.b16 %v9970
  %v10163 = vunpack.c.l.b16 %v9971
  %v10164 = vunpack.c.l.b16 %v9972
  %v10165 = vunpack.c.l.b16 %v9973
  %v10166 = vunpack.c.l.b16 %v9974
  %v10167 = vunpack.c.l.b16 %v9975
  %v10168 = vunpack.c.l.b16 %v9976
  %v10169 = vunpack.c.l.b16 %v9977
  %v10170 = vunpack.c.l.b16 %v9978
  %v10171 = vunpack.c.l.b16 %v9979
  %v10172 = vunpack.c.l.b16 %v9980
  %v10173 = vunpack.c.l.b16 %v9981
  %v10174 = vunpack.c.l.b16 %v9982
  %v10175 = vunpack.c.l.b16 %v9983
  %v10176 = vunpack.c.l.b16 %v9984
  %v10177 = vunpack.c.l.b16 %v9985
  %v10178 = vunpack.c.l.b16 %v9986
  %v10179 = vunpack.c.l.b16 %v9987
  %v10180 = vunpack.c.l.b16 %v9988
  %v10181 = vunpack.c.l.b16 %v9989
  %v10182 = vunpack.c.l.b16 %v9990
  %v10183 = vunpack.c.l.b16 %v9991
  %v10184 = vunpack.c.l.b16 %v9992
  %v10185 = vunpack.c.l.b16 %v9993
  %v10186 = vunpack.c.l.b16 %v9994
  %v10187 = vunpack.c.l.b16 %v9995
  %v10188 = vunpack.c.l.b16 %v9996
  %v10189 = vunpack.c.l.b16 %v9997
  %v10190 = vunpack.c.l.b16 %v9998
  %v10191 = vunpack.c.l.b16 %v9999
  %v10192 = vunpack.c.l.b16 %v10000
  %v10193 = vunpack.c.l.b16 %v10001
  %v10194 = vunpack.c.l.b16 %v10002
  %v10195 = vunpack.c.l.b16 %v10003
  %v10196 = vunpack.c.l.b16 %v10004
  %v10197 = vunpack.c.l.b16 %v10005
  %v10198 = vunpack.c.l.b16 %v10006
  %v10199 = vunpack.c.l.b16 %v10007
  %v10200 = vunpack.c.l.b16 %v10008
  %v10201 = vunpack.c.l.b16 %v10009
  %v10202 = vunpack.c.l.b16 %v10010
  %v10203 = vunpack.c.l.b16 %v10011
  %v10204 = vunpack.c.l.b16 %v10012
  %v10205 = vunpack.c.l.b16 %v10013
  %v10206 = vunpack.c.l.b16 %v10014
  %v10207 = vunpack.c.l.b16 %v10015
  %v10208 = vunpack.c.l.b16 %v10016
  %v10209 = vpack.c.b16 %v10114, %v10113
  %v10210 = vpack.c.b16 %v10116, %v10115
  %v10211 = vpack.c.b16 %v10118, %v10117
  %v10212 = vpack.c.b16 %v10120, %v10119
  %v10213 = vpack.c.b16 %v10122, %v10121
  %v10214 = vpack.c.b16 %v10124, %v10123
  %v10215 = vpack.c.b16 %v10126, %v10125
  %v10216 = vpack.c.b16 %v10128, %v10127
  %v10217 = vpack.c.b16 %v10130, %v10129
  %v10218 = vpack.c.b16 %v10132, %v10131
  %v10219 = vpack.c.b16 %v10134, %v10133
  %v10220 = vpack.c.b16 %v10136, %v10135
  %v10221 = vpack.c.b16 %v10138, %v10137
  %v10222 = vpack.c.b16 %v10140, %v10139
  %v10223 = vpack.c.b16 %v10142, %v10141
  %v10224 = vpack.c.b16 %v10144, %v10143
  %v10225 = vpack.c.b16 %v10146, %v10145
  %v10226 = vpack.c.b16 %v10148, %v10147
  %v10227 = vpack.c.b16 %v10150, %v10149
  %v10228 = vpack.c.b16 %v10152, %v10151
  %v10229 = vpack.c.b16 %v10154, %v10153
  %v10230 = vpack.c.b16 %v10156, %v10155
  %v10231 = vpack.c.b16 %v10158, %v10157
  %v10232 = vpack.c.b16 %v10160, %v10159
  %v10233 = vpack.c.b16 %v10162, %v10161
  %v10234 = vpack.c.b16 %v10164, %v10163
  %v10235 = vpack.c.b16 %v10166, %v10165
  %v10236 = vpack.c.b16 %v10168, %v10167
  %v10237 = vpack.c.b16 %v10170, %v10169
  %v10238 = vpack.c.b16 %v10172, %v10171
  %v10239 = vpack.c.b16 %v10174, %v10173
  %v10240 = vpack.c.b16 %v10176, %v10175
  %v10241 = vpack.c.b16 %v10178, %v10177
  %v10242 = vpack.c.b16 %v10180, %v10179
  %v10243 = vpack.c.b16 %v10182, %v10181
  %v10244 = vpack.c.b16 %v10184, %v10183
  %v10245 = vpack.c.b16 %v10186, %v10185
  %v10246 = vpack.c.b16 %v10188, %v10187
  %v10247 = vpack.c.b16 %v10190, %v10189
  %v10248 = vpack.c.b16 %v10192, %v10191
  %v10249 = vpack.c.b16 %v10194, %v10193
  %v10250 = vpack.c.b16 %v10196, %v10195
  %v10251 = vpack.c.b16 %v10198, %v10197
  %v10252 = vpack.c.b16 %v10200, %v10199
  %v10253 = vpack.c.b16 %v10202, %v10201
  %v10254 = vpack.c.b16 %v10204, %v10203
  %v10255 = vpack.c.b16 %v10206, %v10205
  %v10256 = vpack.c.b16 %v10208, %v10207
  %10305 = vmatprep.subr.bf16.mxu0 0
  %10306 = vmatpush1.bf16.msra.mxu0 %v10216
  %10307 = vmatprep.subr.bf16.mxu0 0
  %10308 = vmatpush1.bf16.msra.mxu0 %v10215
  %10309 = vmatprep.subr.bf16.mxu0 0
  %10310 = vmatpush1.bf16.msra.mxu0 %v10214
  %10311 = vmatprep.subr.bf16.mxu0 0
  %10312 = vmatpush1.bf16.msra.mxu0 %v10213
  %10313 = vmatprep.subr.bf16.mxu0 0
  %10314 = vmatpush1.bf16.msra.mxu0 %v10212
  %10315 = vmatprep.subr.bf16.mxu0 0
  %10316 = vmatpush1.bf16.msra.mxu0 %v10211
  %10317 = vmatprep.subr.bf16.mxu0 0
  %10318 = vmatpush1.bf16.msra.mxu0 %v10210
  %10319 = vmatprep.subr.bf16.mxu0 0
  %10320 = vmatpush1.bf16.msra.mxu0 %v10209
  %10321 = vmatprep.subr.bf16.mxu0 0
  %10322 = vmatpush2.bf16.msra.mxu0 %v10224
  %10323 = vmatprep.subr.bf16.mxu0 0
  %10324 = vmatpush2.bf16.msra.mxu0 %v10223
  %10325 = vmatprep.subr.bf16.mxu0 0
  %10326 = vmatpush2.bf16.msra.mxu0 %v10222
  %10327 = vmatprep.subr.bf16.mxu0 0
  %10328 = vmatpush2.bf16.msra.mxu0 %v10221
  %10329 = vmatprep.subr.bf16.mxu0 0
  %10330 = vmatpush2.bf16.msra.mxu0 %v10220
  %10331 = vmatprep.subr.bf16.mxu0 0
  %10332 = vmatpush2.bf16.msra.mxu0 %v10219
  %10333 = vmatprep.subr.bf16.mxu0 0
  %10334 = vmatpush2.bf16.msra.mxu0 %v10218
  %10335 = vmatprep.subr.bf16.mxu0 0
  %10336 = vmatpush2.bf16.msra.mxu0 %v10217
  %10337 = vmatprep.mubr.bf16.mxu0 %v6526
  %10338 = vmatmul.mubr.bf16.gmra.mxu0 %v6525
  %v10339 = vpop.f32.mrf.mxu0
  %v10340 = vadd.f32 %v6248, %v10339
  %v10341 = vpop.f32.mrf.mxu0
  %v10342 = vpop.f32.mrf.mxu0
  %v10343 = vadd.f32 %v6253, %v10342
  %v10344 = vpop.f32.mrf.mxu0
  %10345 = vmatprep.mubr.bf16.mxu0 %v6532
  %10346 = vmatmul.mubr.bf16.gmra.mxu0 %v6531
  %v10347 = vpop.f32.mrf.mxu0
  %v10348 = vadd.f32 %v6258, %v10347
  %v10349 = vpop.f32.mrf.mxu0
  %v10350 = vpop.f32.mrf.mxu0
  %v10351 = vadd.f32 %v6263, %v10350
  %v10352 = vpop.f32.mrf.mxu0
  %10353 = vmatprep.mubr.bf16.mxu0 %v6538
  %10354 = vmatmul.mubr.bf16.gmra.mxu0 %v6537
  %v10355 = vpop.f32.mrf.mxu0
  %v10356 = vadd.f32 %v6268, %v10355
  %v10357 = vpop.f32.mrf.mxu0
  %v10358 = vpop.f32.mrf.mxu0
  %v10359 = vadd.f32 %v6273, %v10358
  %v10360 = vpop.f32.mrf.mxu0
  %10361 = vmatprep.mubr.bf16.mxu0 %v6544
  %10362 = vmatmul.mubr.bf16.gmra.mxu0 %v6543
  %v10363 = vpop.f32.mrf.mxu0
  %v10364 = vadd.f32 %v6278, %v10363
  %v10365 = vpop.f32.mrf.mxu0
  %v10366 = vpop.f32.mrf.mxu0
  %v10367 = vadd.f32 %v6283, %v10366
  %v10368 = vpop.f32.mrf.mxu0
  %10369 = vmatprep.mubr.bf16.mxu0 %v6550
  %10370 = vmatmul.mubr.bf16.gmra.mxu0 %v6549
  %v10371 = vpop.f32.mrf.mxu0
  %v10372 = vadd.f32 %v6288, %v10371
  %v10373 = vpop.f32.mrf.mxu0
  %v10374 = vpop.f32.mrf.mxu0
  %v10375 = vadd.f32 %v6293, %v10374
  %v10376 = vpop.f32.mrf.mxu0
  %10377 = vmatprep.mubr.bf16.mxu0 %v6556
  %10378 = vmatmul.mubr.bf16.gmra.mxu0 %v6555
  %v10379 = vpop.f32.mrf.mxu0
  %v10380 = vadd.f32 %v6298, %v10379
  %v10381 = vpop.f32.mrf.mxu0
  %v10382 = vpop.f32.mrf.mxu0
  %v10383 = vadd.f32 %v6303, %v10382
  %v10384 = vpop.f32.mrf.mxu0
  %10385 = vmatprep.mubr.bf16.mxu0 %v6562
  %10386 = vmatmul.mubr.bf16.gmra.mxu0 %v6561
  %v10387 = vpop.f32.mrf.mxu0
  %v10388 = vadd.f32 %v6308, %v10387
  %v10389 = vpop.f32.mrf.mxu0
  %v10390 = vpop.f32.mrf.mxu0
  %v10391 = vadd.f32 %v6313, %v10390
  %v10392 = vpop.f32.mrf.mxu0
  %10393 = vmatprep.mubr.bf16.mxu0 %v6568
  %10394 = vmatmul.mubr.bf16.gmra.mxu0 %v6567
  %v10395 = vpop.f32.mrf.mxu0
  %v10396 = vadd.f32 %v6318, %v10395
  %v10397 = vpop.f32.mrf.mxu0
  %v10398 = vpop.f32.mrf.mxu0
  %v10399 = vadd.f32 %v6323, %v10398
  %v10400 = vpop.f32.mrf.mxu0
  %10401 = vmatprep.mubr.bf16.mxu0 %v6574
  %10402 = vmatmul.mubr.bf16.gmra.mxu0 %v6573
  %v10403 = vpop.f32.mrf.mxu0
  %v10404 = vadd.f32 %v6328, %v10403
  %v10405 = vpop.f32.mrf.mxu0
  %v10406 = vpop.f32.mrf.mxu0
  %v10407 = vadd.f32 %v6333, %v10406
  %v10408 = vpop.f32.mrf.mxu0
  %10409 = vmatprep.mubr.bf16.mxu0 %v6580
  %10410 = vmatmul.mubr.bf16.gmra.mxu0 %v6579
  %v10411 = vpop.f32.mrf.mxu0
  %v10412 = vadd.f32 %v6338, %v10411
  %v10413 = vpop.f32.mrf.mxu0
  %v10414 = vpop.f32.mrf.mxu0
  %v10415 = vadd.f32 %v6343, %v10414
  %v10416 = vpop.f32.mrf.mxu0
  %10417 = vdwg.mxu0
  %10418 = vmatprep.subr.bf16.mxu0 0
  %10419 = vmatpush1.bf16.msra.mxu0 %v10232
  %10420 = vmatprep.subr.bf16.mxu0 0
  %10421 = vmatpush1.bf16.msra.mxu0 %v10231
  %10422 = vmatprep.subr.bf16.mxu0 0
  %10423 = vmatpush1.bf16.msra.mxu0 %v10230
  %10424 = vmatprep.subr.bf16.mxu0 0
  %10425 = vmatpush1.bf16.msra.mxu0 %v10229
  %10426 = vmatprep.subr.bf16.mxu0 0
  %10427 = vmatpush1.bf16.msra.mxu0 %v10228
  %10428 = vmatprep.subr.bf16.mxu0 0
  %10429 = vmatpush1.bf16.msra.mxu0 %v10227
  %10430 = vmatprep.subr.bf16.mxu0 0
  %10431 = vmatpush1.bf16.msra.mxu0 %v10226
  %10432 = vmatprep.subr.bf16.mxu0 0
  %10433 = vmatpush1.bf16.msra.mxu0 %v10225
  %10434 = vmatprep.subr.bf16.mxu0 0
  %10435 = vmatpush2.bf16.msra.mxu0 %v10240
  %10436 = vmatprep.subr.bf16.mxu0 0
  %10437 = vmatpush2.bf16.msra.mxu0 %v10239
  %10438 = vmatprep.subr.bf16.mxu0 0
  %10439 = vmatpush2.bf16.msra.mxu0 %v10238
  %10440 = vmatprep.subr.bf16.mxu0 0
  %10441 = vmatpush2.bf16.msra.mxu0 %v10237
  %10442 = vmatprep.subr.bf16.mxu0 0
  %10443 = vmatpush2.bf16.msra.mxu0 %v10236
  %10444 = vmatprep.subr.bf16.mxu0 0
  %10445 = vmatpush2.bf16.msra.mxu0 %v10235
  %10446 = vmatprep.subr.bf16.mxu0 0
  %10447 = vmatpush2.bf16.msra.mxu0 %v10234
  %10448 = vmatprep.subr.bf16.mxu0 0
  %10449 = vmatpush2.bf16.msra.mxu0 %v10233
  %10450 = vmatprep.mubr.bf16.mxu0 %v6528
  %10451 = vmatmul.mubr.bf16.gmra.mxu0 %v6527
  %v10452 = vpop.f32.mrf.mxu0
  %v10453 = vadd.f32 %v10340, %v10452
  %v10454 = vpop.f32.mrf.mxu0
  %v10455 = vpop.f32.mrf.mxu0
  %v10456 = vadd.f32 %v10343, %v10455
  %v10457 = vpop.f32.mrf.mxu0
  %10458 = vmatprep.mubr.bf16.mxu0 %v6534
  %10459 = vmatmul.mubr.bf16.gmra.mxu0 %v6533
  %v10460 = vpop.f32.mrf.mxu0
  %v10461 = vadd.f32 %v10348, %v10460
  %v10462 = vpop.f32.mrf.mxu0
  %v10463 = vpop.f32.mrf.mxu0
  %v10464 = vadd.f32 %v10351, %v10463
  %v10465 = vpop.f32.mrf.mxu0
  %10466 = vmatprep.mubr.bf16.mxu0 %v6540
  %10467 = vmatmul.mubr.bf16.gmra.mxu0 %v6539
  %v10468 = vpop.f32.mrf.mxu0
  %v10469 = vadd.f32 %v10356, %v10468
  %v10470 = vpop.f32.mrf.mxu0
  %v10471 = vpop.f32.mrf.mxu0
  %v10472 = vadd.f32 %v10359, %v10471
  %v10473 = vpop.f32.mrf.mxu0
  %10474 = vmatprep.mubr.bf16.mxu0 %v6546
  %10475 = vmatmul.mubr.bf16.gmra.mxu0 %v6545
  %v10476 = vpop.f32.mrf.mxu0
  %v10477 = vadd.f32 %v10364, %v10476
  %v10478 = vpop.f32.mrf.mxu0
  %v10479 = vpop.f32.mrf.mxu0
  %v10480 = vadd.f32 %v10367, %v10479
  %v10481 = vpop.f32.mrf.mxu0
  %10482 = vmatprep.mubr.bf16.mxu0 %v6552
  %10483 = vmatmul.mubr.bf16.gmra.mxu0 %v6551
  %v10484 = vpop.f32.mrf.mxu0
  %v10485 = vadd.f32 %v10372, %v10484
  %v10486 = vpop.f32.mrf.mxu0
  %v10487 = vpop.f32.mrf.mxu0
  %v10488 = vadd.f32 %v10375, %v10487
  %v10489 = vpop.f32.mrf.mxu0
  %10490 = vmatprep.mubr.bf16.mxu0 %v6558
  %10491 = vmatmul.mubr.bf16.gmra.mxu0 %v6557
  %v10492 = vpop.f32.mrf.mxu0
  %v10493 = vadd.f32 %v10380, %v10492
  %v10494 = vpop.f32.mrf.mxu0
  %v10495 = vpop.f32.mrf.mxu0
  %v10496 = vadd.f32 %v10383, %v10495
  %v10497 = vpop.f32.mrf.mxu0
  %10498 = vmatprep.mubr.bf16.mxu0 %v6564
  %10499 = vmatmul.mubr.bf16.gmra.mxu0 %v6563
  %v10500 = vpop.f32.mrf.mxu0
  %v10501 = vadd.f32 %v10388, %v10500
  %v10502 = vpop.f32.mrf.mxu0
  %v10503 = vpop.f32.mrf.mxu0
  %v10504 = vadd.f32 %v10391, %v10503
  %v10505 = vpop.f32.mrf.mxu0
  %10506 = vmatprep.mubr.bf16.mxu0 %v6570
  %10507 = vmatmul.mubr.bf16.gmra.mxu0 %v6569
  %v10508 = vpop.f32.mrf.mxu0
  %v10509 = vadd.f32 %v10396, %v10508
  %v10510 = vpop.f32.mrf.mxu0
  %v10511 = vpop.f32.mrf.mxu0
  %v10512 = vadd.f32 %v10399, %v10511
  %v10513 = vpop.f32.mrf.mxu0
  %10514 = vmatprep.mubr.bf16.mxu0 %v6576
  %10515 = vmatmul.mubr.bf16.gmra.mxu0 %v6575
  %v10516 = vpop.f32.mrf.mxu0
  %v10517 = vadd.f32 %v10404, %v10516
  %v10518 = vpop.f32.mrf.mxu0
  %v10519 = vpop.f32.mrf.mxu0
  %v10520 = vadd.f32 %v10407, %v10519
  %v10521 = vpop.f32.mrf.mxu0
  %10522 = vmatprep.mubr.bf16.mxu0 %v6582
  %10523 = vmatmul.mubr.bf16.gmra.mxu0 %v6581
  %v10524 = vpop.f32.mrf.mxu0
  %v10525 = vadd.f32 %v10412, %v10524
  %v10526 = vpop.f32.mrf.mxu0
  %v10527 = vpop.f32.mrf.mxu0
  %v10528 = vadd.f32 %v10415, %v10527
  %v10529 = vpop.f32.mrf.mxu0
  %10530 = vdwg.mxu0
  %10531 = vmatprep.subr.bf16.mxu0 0
  %10532 = vmatpush1.bf16.msra.mxu0 %v10248
  %10533 = vmatprep.subr.bf16.mxu0 0
  %10534 = vmatpush1.bf16.msra.mxu0 %v10247
  %10535 = vmatprep.subr.bf16.mxu0 0
  %10536 = vmatpush1.bf16.msra.mxu0 %v10246
  %10537 = vmatprep.subr.bf16.mxu0 0
  %10538 = vmatpush1.bf16.msra.mxu0 %v10245
  %10539 = vmatprep.subr.bf16.mxu0 0
  %10540 = vmatpush1.bf16.msra.mxu0 %v10244
  %10541 = vmatprep.subr.bf16.mxu0 0
  %10542 = vmatpush1.bf16.msra.mxu0 %v10243
  %10543 = vmatprep.subr.bf16.mxu0 0
  %10544 = vmatpush1.bf16.msra.mxu0 %v10242
  %10545 = vmatprep.subr.bf16.mxu0 0
  %10546 = vmatpush1.bf16.msra.mxu0 %v10241
  %10547 = vmatprep.subr.bf16.mxu0 0
  %10548 = vmatpush2.bf16.msra.mxu0 %v10256
  %10549 = vmatprep.subr.bf16.mxu0 0
  %10550 = vmatpush2.bf16.msra.mxu0 %v10255
  %10551 = vmatprep.subr.bf16.mxu0 0
  %10552 = vmatpush2.bf16.msra.mxu0 %v10254
  %10553 = vmatprep.subr.bf16.mxu0 0
  %10554 = vmatpush2.bf16.msra.mxu0 %v10253
  %10555 = vmatprep.subr.bf16.mxu0 0
  %10556 = vmatpush2.bf16.msra.mxu0 %v10252
  %10557 = vmatprep.subr.bf16.mxu0 0
  %10558 = vmatpush2.bf16.msra.mxu0 %v10251
  %10559 = vmatprep.subr.bf16.mxu0 0
  %10560 = vmatpush2.bf16.msra.mxu0 %v10250
  %10561 = vmatprep.subr.bf16.mxu0 0
  %10562 = vmatpush2.bf16.msra.mxu0 %v10249
  %10563 = vmatprep.mubr.bf16.mxu0 %v6530
  %10564 = vmatmul.mubr.bf16.gmra.mxu0 %v6529
  %v10565 = vpop.f32.mrf.mxu0
  %v10566 = vadd.f32 %v10453, %v10565
  %v10567 = vpop.f32.mrf.mxu0
  %v10568 = vpop.f32.mrf.mxu0
  %v10569 = vadd.f32 %v10456, %v10568
  %v10570 = vpop.f32.mrf.mxu0
  %10571 = vmatprep.mubr.bf16.mxu0 %v6536
  %10572 = vmatmul.mubr.bf16.gmra.mxu0 %v6535
  %v10573 = vpop.f32.mrf.mxu0
  %v10574 = vadd.f32 %v10461, %v10573
  %v10575 = vpop.f32.mrf.mxu0
  %v10576 = vpop.f32.mrf.mxu0
  %v10577 = vadd.f32 %v10464, %v10576
  %v10578 = vpop.f32.mrf.mxu0
  %10579 = vmatprep.mubr.bf16.mxu0 %v6542
  %10580 = vmatmul.mubr.bf16.gmra.mxu0 %v6541
  %v10581 = vpop.f32.mrf.mxu0
  %v10582 = vadd.f32 %v10469, %v10581
  %v10583 = vpop.f32.mrf.mxu0
  %v10584 = vpop.f32.mrf.mxu0
  %v10585 = vadd.f32 %v10472, %v10584
  %v10586 = vpop.f32.mrf.mxu0
  %10587 = vmatprep.mubr.bf16.mxu0 %v6548
  %10588 = vmatmul.mubr.bf16.gmra.mxu0 %v6547
  %v10589 = vpop.f32.mrf.mxu0
  %v10590 = vadd.f32 %v10477, %v10589
  %v10591 = vpop.f32.mrf.mxu0
  %v10592 = vpop.f32.mrf.mxu0
  %v10593 = vadd.f32 %v10480, %v10592
  %v10594 = vpop.f32.mrf.mxu0
  %10595 = vmatprep.mubr.bf16.mxu0 %v6554
  %10596 = vmatmul.mubr.bf16.gmra.mxu0 %v6553
  %v10597 = vpop.f32.mrf.mxu0
  %v10598 = vadd.f32 %v10485, %v10597
  %v10599 = vpop.f32.mrf.mxu0
  %v10600 = vpop.f32.mrf.mxu0
  %v10601 = vadd.f32 %v10488, %v10600
  %v10602 = vpop.f32.mrf.mxu0
  %10603 = vmatprep.mubr.bf16.mxu0 %v6560
  %10604 = vmatmul.mubr.bf16.gmra.mxu0 %v6559
  %v10605 = vpop.f32.mrf.mxu0
  %v10606 = vadd.f32 %v10493, %v10605
  %v10607 = vpop.f32.mrf.mxu0
  %v10608 = vpop.f32.mrf.mxu0
  %v10609 = vadd.f32 %v10496, %v10608
  %v10610 = vpop.f32.mrf.mxu0
  %10611 = vmatprep.mubr.bf16.mxu0 %v6566
  %10612 = vmatmul.mubr.bf16.gmra.mxu0 %v6565
  %v10613 = vpop.f32.mrf.mxu0
  %v10614 = vadd.f32 %v10501, %v10613
  %v10615 = vpop.f32.mrf.mxu0
  %v10616 = vpop.f32.mrf.mxu0
  %v10617 = vadd.f32 %v10504, %v10616
  %v10618 = vpop.f32.mrf.mxu0
  %10619 = vmatprep.mubr.bf16.mxu0 %v6572
  %10620 = vmatmul.mubr.bf16.gmra.mxu0 %v6571
  %v10621 = vpop.f32.mrf.mxu0
  %v10622 = vadd.f32 %v10509, %v10621
  %v10623 = vpop.f32.mrf.mxu0
  %v10624 = vpop.f32.mrf.mxu0
  %v10625 = vadd.f32 %v10512, %v10624
  %v10626 = vpop.f32.mrf.mxu0
  %10627 = vmatprep.mubr.bf16.mxu0 %v6578
  %10628 = vmatmul.mubr.bf16.gmra.mxu0 %v6577
  %v10629 = vpop.f32.mrf.mxu0
  %v10630 = vadd.f32 %v10517, %v10629
  %v10631 = vpop.f32.mrf.mxu0
  %v10632 = vpop.f32.mrf.mxu0
  %v10633 = vadd.f32 %v10520, %v10632
  %v10634 = vpop.f32.mrf.mxu0
  %10635 = vmatprep.mubr.bf16.mxu0 %v6584
  %10636 = vmatmul.mubr.bf16.gmra.mxu0 %v6583
  %v10637 = vpop.f32.mrf.mxu0
  %v10638 = vadd.f32 %v10525, %v10637
  %v10639 = vpop.f32.mrf.mxu0
  %v10640 = vpop.f32.mrf.mxu0
  %v10641 = vadd.f32 %v10528, %v10640
  %v10642 = vpop.f32.mrf.mxu0
  %10643 = vdwg.mxu0
  %v10644 = vmax.f32 %v10566, 0.0
  %v10645 = vmax.f32 %v10569, 0.0
  %v10646 = vmax.f32 %v10574, 0.0
  %v10647 = vmax.f32 %v10577, 0.0
  %v10648 = vmax.f32 %v10582, 0.0
  %v10649 = vmax.f32 %v10585, 0.0
  %v10650 = vmax.f32 %v10590, 0.0
  %v10651 = vmax.f32 %v10593, 0.0
  %v10652 = vmax.f32 %v10598, 0.0
  %v10653 = vmax.f32 %v10601, 0.0
  %v10654 = vmax.f32 %v10606, 0.0
  %v10655 = vmax.f32 %v10609, 0.0
  %v10656 = vmax.f32 %v10614, 0.0
  %v10657 = vmax.f32 %v10617, 0.0
  %v10658 = vmax.f32 %v10622, 0.0
  %v10659 = vmax.f32 %v10625, 0.0
  %v10660 = vmax.f32 %v10630, 0.0
  %v10661 = vmax.f32 %v10633, 0.0
  %v10662 = vmax.f32 %v10638, 0.0
  %v10663 = vmax.f32 %v10641, 0.0
  %v10664 = vpack.c.bf16 %v10645, %v10644
  %v10665 = vpack.c.bf16 %v10647, %v10646
  %v10666 = vpack.c.bf16 %v10649, %v10648
  %v10667 = vpack.c.bf16 %v10651, %v10650
  %v10668 = vpack.c.bf16 %v10653, %v10652
  %v10669 = vpack.c.bf16 %v10655, %v10654
  %v10670 = vpack.c.bf16 %v10657, %v10656
  %v10671 = vpack.c.bf16 %v10659, %v10658
  %v10672 = vpack.c.bf16 %v10661, %v10660
  %v10673 = vpack.c.bf16 %v10663, %v10662
  %v10684 = vunpack.c.l.b16 %v10664
  %v10685 = vunpack.c.h.b16 %v10664
  %v10686 = vunpack.c.l.b16 %v10665
  %v10687 = vunpack.c.h.b16 %v10665
  %v10688 = vunpack.c.l.b16 %v10666
  %v10689 = vunpack.c.h.b16 %v10666
  %v10690 = vunpack.c.l.b16 %v10667
  %v10691 = vunpack.c.h.b16 %v10667
  %v10692 = vunpack.c.l.b16 %v10668
  %v10693 = vunpack.c.h.b16 %v10668
  %v10694 = vunpack.c.l.b16 %v10669
  %v10695 = vunpack.c.h.b16 %v10669
  %v10696 = vunpack.c.l.b16 %v10670
  %v10697 = vunpack.c.h.b16 %v10670
  %v10698 = vunpack.c.l.b16 %v10671
  %v10699 = vunpack.c.h.b16 %v10671
  %v10700 = vunpack.c.l.b16 %v10672
  %v10701 = vunpack.c.h.b16 %v10672
  %v10702 = vunpack.c.l.b16 %v10673
  %v10703 = vunpack.c.h.b16 %v10673
  %v10704 = vpack.c.b16 %v10684, %v10684
  %v10705 = vpack.c.b16 %v10685, %v10685
  %v10706 = vpack.c.b16 %v10686, %v10686
  %v10707 = vpack.c.b16 %v10687, %v10687
  %v10708 = vpack.c.b16 %v10688, %v10688
  %v10709 = vpack.c.b16 %v10689, %v10689
  %v10710 = vpack.c.b16 %v10690, %v10690
  %v10711 = vpack.c.b16 %v10691, %v10691
  %v10712 = vpack.c.b16 %v10692, %v10692
  %v10713 = vpack.c.b16 %v10693, %v10693
  %v10714 = vpack.c.b16 %v10694, %v10694
  %v10715 = vpack.c.b16 %v10695, %v10695
  %v10716 = vpack.c.b16 %v10696, %v10696
  %v10717 = vpack.c.b16 %v10697, %v10697
  %v10718 = vpack.c.b16 %v10698, %v10698
  %v10719 = vpack.c.b16 %v10699, %v10699
  %v10720 = vpack.c.b16 %v10700, %v10700
  %v10721 = vpack.c.b16 %v10701, %v10701
  %v10722 = vpack.c.b16 %v10702, %v10702
  %v10723 = vpack.c.b16 %v10703, %v10703
  %10744 = vst [vmem:[#allocation3 + $0x190] sm:$0xf] %v10704
  %10745 = vst [vmem:[#allocation3 + $0x194] sm:$0xf] %v10705
  %10746 = vst [vmem:[#allocation3 + $0x198] sm:$0xf] %v10706
  %10747 = vst [vmem:[#allocation3 + $0x19c] sm:$0xf] %v10707
  %10748 = vst [vmem:[#allocation3 + $0x1a0] sm:$0xf] %v10708
  %10749 = vst [vmem:[#allocation3 + $0x1a4] sm:$0xf] %v10709
  %10750 = vst [vmem:[#allocation3 + $0x1a8] sm:$0xf] %v10710
  %10751 = vst [vmem:[#allocation3 + $0x1ac] sm:$0xf] %v10711
  %10752 = vst [vmem:[#allocation3 + $0x1b0] sm:$0xf] %v10712
  %10753 = vst [vmem:[#allocation3 + $0x1b4] sm:$0xf] %v10713
  %10754 = vst [vmem:[#allocation3 + $0x1b8] sm:$0xf] %v10714
  %10755 = vst [vmem:[#allocation3 + $0x1bc] sm:$0xf] %v10715
  %10756 = vst [vmem:[#allocation3 + $0x1c0] sm:$0xf] %v10716
  %10757 = vst [vmem:[#allocation3 + $0x1c4] sm:$0xf] %v10717
  %10758 = vst [vmem:[#allocation3 + $0x1c8] sm:$0xf] %v10718
  %10759 = vst [vmem:[#allocation3 + $0x1cc] sm:$0xf] %v10719
  %10760 = vst [vmem:[#allocation3 + $0x1d0] sm:$0xf] %v10720
  %10761 = vst [vmem:[#allocation3 + $0x1d4] sm:$0xf] %v10721
  %10762 = vst [vmem:[#allocation3 + $0x1d8] sm:$0xf] %v10722
  %10763 = vst [vmem:[#allocation3 + $0x1dc] sm:$0xf] %v10723
  %v10764 = vld [vmem:[#allocation2 + $0x500] sm:$0xf]
  %v10765 = vld [vmem:[#allocation2 + $0x504] sm:$0xf]
  %v10766 = vld [vmem:[#allocation2 + $0x508] sm:$0xf]
  %v10767 = vld [vmem:[#allocation2 + $0x50c] sm:$0xf]
  %v10768 = vld [vmem:[#allocation2 + $0x510] sm:$0xf]
  %v10769 = vld [vmem:[#allocation2 + $0x514] sm:$0xf]
  %v10770 = vld [vmem:[#allocation2 + $0x518] sm:$0xf]
  %v10771 = vld [vmem:[#allocation2 + $0x51c] sm:$0xf]
  %v10772 = vld [vmem:[#allocation2 + $0x520] sm:$0xf]
  %v10773 = vld [vmem:[#allocation2 + $0x524] sm:$0xf]
  %v10774 = vld [vmem:[#allocation2 + $0x528] sm:$0xf]
  %v10775 = vld [vmem:[#allocation2 + $0x52c] sm:$0xf]
  %v10776 = vld [vmem:[#allocation2 + $0x530] sm:$0xf]
  %v10777 = vld [vmem:[#allocation2 + $0x534] sm:$0xf]
  %v10778 = vld [vmem:[#allocation2 + $0x538] sm:$0xf]
  %v10779 = vld [vmem:[#allocation2 + $0x53c] sm:$0xf]
  %v10780 = vld [vmem:[#allocation2 + $0x540] sm:$0xf]
  %v10781 = vld [vmem:[#allocation2 + $0x544] sm:$0xf]
  %v10782 = vld [vmem:[#allocation2 + $0x548] sm:$0xf]
  %v10783 = vld [vmem:[#allocation2 + $0x54c] sm:$0xf]
  %v10784 = vld [vmem:[#allocation2 + $0x550] sm:$0xf]
  %v10785 = vld [vmem:[#allocation2 + $0x554] sm:$0xf]
  %v10786 = vld [vmem:[#allocation2 + $0x558] sm:$0xf]
  %v10787 = vld [vmem:[#allocation2 + $0x55c] sm:$0xf]
  %v10788 = vld [vmem:[#allocation2 + $0x560] sm:$0xf]
  %v10789 = vld [vmem:[#allocation2 + $0x564] sm:$0xf]
  %v10790 = vld [vmem:[#allocation2 + $0x568] sm:$0xf]
  %v10791 = vld [vmem:[#allocation2 + $0x56c] sm:$0xf]
  %v10792 = vld [vmem:[#allocation2 + $0x570] sm:$0xf]
  %v10793 = vld [vmem:[#allocation2 + $0x574] sm:$0xf]
  %v10794 = vld [vmem:[#allocation2 + $0x578] sm:$0xf]
  %v10795 = vld [vmem:[#allocation2 + $0x57c] sm:$0xf]
  %v10796 = vld [vmem:[#allocation2 + $0x580] sm:$0xf]
  %v10797 = vld [vmem:[#allocation2 + $0x584] sm:$0xf]
  %v10798 = vld [vmem:[#allocation2 + $0x588] sm:$0xf]
  %v10799 = vld [vmem:[#allocation2 + $0x58c] sm:$0xf]
  %v10800 = vld [vmem:[#allocation2 + $0x590] sm:$0xf]
  %v10801 = vld [vmem:[#allocation2 + $0x594] sm:$0xf]
  %v10802 = vld [vmem:[#allocation2 + $0x598] sm:$0xf]
  %v10803 = vld [vmem:[#allocation2 + $0x59c] sm:$0xf]
  %v10804 = vld [vmem:[#allocation2 + $0x5a0] sm:$0xf]
  %v10805 = vld [vmem:[#allocation2 + $0x5a4] sm:$0xf]
  %v10806 = vld [vmem:[#allocation2 + $0x5a8] sm:$0xf]
  %v10807 = vld [vmem:[#allocation2 + $0x5ac] sm:$0xf]
  %v10808 = vld [vmem:[#allocation2 + $0x5b0] sm:$0xf]
  %v10809 = vld [vmem:[#allocation2 + $0x5b4] sm:$0xf]
  %v10810 = vld [vmem:[#allocation2 + $0x5b8] sm:$0xf]
  %v10811 = vld [vmem:[#allocation2 + $0x5bc] sm:$0xf]
  %v10812 = vld [vmem:[#allocation2 + $0x5c0] sm:$0xf]
  %v10813 = vld [vmem:[#allocation2 + $0x5c4] sm:$0xf]
  %v10814 = vld [vmem:[#allocation2 + $0x5c8] sm:$0xf]
  %v10815 = vld [vmem:[#allocation2 + $0x5cc] sm:$0xf]
  %v10816 = vld [vmem:[#allocation2 + $0x5d0] sm:$0xf]
  %v10817 = vld [vmem:[#allocation2 + $0x5d4] sm:$0xf]
  %v10818 = vld [vmem:[#allocation2 + $0x5d8] sm:$0xf]
  %v10819 = vld [vmem:[#allocation2 + $0x5dc] sm:$0xf]
  %v10820 = vld [vmem:[#allocation2 + $0x5e0] sm:$0xf]
  %v10821 = vld [vmem:[#allocation2 + $0x5e4] sm:$0xf]
  %v10822 = vld [vmem:[#allocation2 + $0x5e8] sm:$0xf]
  %v10823 = vld [vmem:[#allocation2 + $0x5ec] sm:$0xf]
  %v10824 = vld [vmem:[#allocation2 + $0x5f0] sm:$0xf]
  %v10825 = vld [vmem:[#allocation2 + $0x5f4] sm:$0xf]
  %v10826 = vld [vmem:[#allocation2 + $0x5f8] sm:$0xf]
  %v10827 = vld [vmem:[#allocation2 + $0x5fc] sm:$0xf]
  %v10828 = vld [vmem:[#allocation2 + $0x600] sm:$0xf]
  %v10829 = vld [vmem:[#allocation2 + $0x604] sm:$0xf]
  %v10830 = vld [vmem:[#allocation2 + $0x608] sm:$0xf]
  %v10831 = vld [vmem:[#allocation2 + $0x60c] sm:$0xf]
  %v10832 = vld [vmem:[#allocation2 + $0x610] sm:$0xf]
  %v10833 = vld [vmem:[#allocation2 + $0x614] sm:$0xf]
  %v10834 = vld [vmem:[#allocation2 + $0x618] sm:$0xf]
  %v10835 = vld [vmem:[#allocation2 + $0x61c] sm:$0xf]
  %v10836 = vld [vmem:[#allocation2 + $0x620] sm:$0xf]
  %v10837 = vld [vmem:[#allocation2 + $0x624] sm:$0xf]
  %v10838 = vld [vmem:[#allocation2 + $0x628] sm:$0xf]
  %v10839 = vld [vmem:[#allocation2 + $0x62c] sm:$0xf]
  %v10840 = vld [vmem:[#allocation2 + $0x630] sm:$0xf]
  %v10841 = vld [vmem:[#allocation2 + $0x634] sm:$0xf]
  %v10842 = vld [vmem:[#allocation2 + $0x638] sm:$0xf]
  %v10843 = vld [vmem:[#allocation2 + $0x63c] sm:$0xf]
  %v10844 = vld [vmem:[#allocation2 + $0x640] sm:$0xf]
  %v10845 = vld [vmem:[#allocation2 + $0x644] sm:$0xf]
  %v10846 = vld [vmem:[#allocation2 + $0x648] sm:$0xf]
  %v10847 = vld [vmem:[#allocation2 + $0x64c] sm:$0xf]
  %v10848 = vld [vmem:[#allocation2 + $0x650] sm:$0xf]
  %v10849 = vld [vmem:[#allocation2 + $0x654] sm:$0xf]
  %v10850 = vld [vmem:[#allocation2 + $0x658] sm:$0xf]
  %v10851 = vld [vmem:[#allocation2 + $0x65c] sm:$0xf]
  %v10852 = vld [vmem:[#allocation2 + $0x660] sm:$0xf]
  %v10853 = vld [vmem:[#allocation2 + $0x664] sm:$0xf]
  %v10854 = vld [vmem:[#allocation2 + $0x668] sm:$0xf]
  %v10855 = vld [vmem:[#allocation2 + $0x66c] sm:$0xf]
  %v10856 = vld [vmem:[#allocation2 + $0x670] sm:$0xf]
  %v10857 = vld [vmem:[#allocation2 + $0x674] sm:$0xf]
  %v10858 = vld [vmem:[#allocation2 + $0x678] sm:$0xf]
  %v10859 = vld [vmem:[#allocation2 + $0x67c] sm:$0xf]
  %v10956 = vunpack.c.l.b16 %v10764
  %v10957 = vunpack.c.l.b16 %v10765
  %v10958 = vunpack.c.l.b16 %v10766
  %v10959 = vunpack.c.l.b16 %v10767
  %v10960 = vunpack.c.l.b16 %v10768
  %v10961 = vunpack.c.l.b16 %v10769
  %v10962 = vunpack.c.l.b16 %v10770
  %v10963 = vunpack.c.l.b16 %v10771
  %v10964 = vunpack.c.l.b16 %v10772
  %v10965 = vunpack.c.l.b16 %v10773
  %v10966 = vunpack.c.l.b16 %v10774
  %v10967 = vunpack.c.l.b16 %v10775
  %v10968 = vunpack.c.l.b16 %v10776
  %v10969 = vunpack.c.l.b16 %v10777
  %v10970 = vunpack.c.l.b16 %v10778
  %v10971 = vunpack.c.l.b16 %v10779
  %v10972 = vunpack.c.l.b16 %v10780
  %v10973 = vunpack.c.l.b16 %v10781
  %v10974 = vunpack.c.l.b16 %v10782
  %v10975 = vunpack.c.l.b16 %v10783
  %v10976 = vunpack.c.l.b16 %v10784
  %v10977 = vunpack.c.l.b16 %v10785
  %v10978 = vunpack.c.l.b16 %v10786
  %v10979 = vunpack.c.l.b16 %v10787
  %v10980 = vunpack.c.l.b16 %v10788
  %v10981 = vunpack.c.l.b16 %v10789
  %v10982 = vunpack.c.l.b16 %v10790
  %v10983 = vunpack.c.l.b16 %v10791
  %v10984 = vunpack.c.l.b16 %v10792
  %v10985 = vunpack.c.l.b16 %v10793
  %v10986 = vunpack.c.l.b16 %v10794
  %v10987 = vunpack.c.l.b16 %v10795
  %v10988 = vunpack.c.l.b16 %v10796
  %v10989 = vunpack.c.l.b16 %v10797
  %v10990 = vunpack.c.l.b16 %v10798
  %v10991 = vunpack.c.l.b16 %v10799
  %v10992 = vunpack.c.l.b16 %v10800
  %v10993 = vunpack.c.l.b16 %v10801
  %v10994 = vunpack.c.l.b16 %v10802
  %v10995 = vunpack.c.l.b16 %v10803
  %v10996 = vunpack.c.l.b16 %v10804
  %v10997 = vunpack.c.l.b16 %v10805
  %v10998 = vunpack.c.l.b16 %v10806
  %v10999 = vunpack.c.l.b16 %v10807
  %v11000 = vunpack.c.l.b16 %v10808
  %v11001 = vunpack.c.l.b16 %v10809
  %v11002 = vunpack.c.l.b16 %v10810
  %v11003 = vunpack.c.l.b16 %v10811
  %v11004 = vunpack.c.l.b16 %v10812
  %v11005 = vunpack.c.l.b16 %v10813
  %v11006 = vunpack.c.l.b16 %v10814
  %v11007 = vunpack.c.l.b16 %v10815
  %v11008 = vunpack.c.l.b16 %v10816
  %v11009 = vunpack.c.l.b16 %v10817
  %v11010 = vunpack.c.l.b16 %v10818
  %v11011 = vunpack.c.l.b16 %v10819
  %v11012 = vunpack.c.l.b16 %v10820
  %v11013 = vunpack.c.l.b16 %v10821
  %v11014 = vunpack.c.l.b16 %v10822
  %v11015 = vunpack.c.l.b16 %v10823
  %v11016 = vunpack.c.l.b16 %v10824
  %v11017 = vunpack.c.l.b16 %v10825
  %v11018 = vunpack.c.l.b16 %v10826
  %v11019 = vunpack.c.l.b16 %v10827
  %v11020 = vunpack.c.l.b16 %v10828
  %v11021 = vunpack.c.l.b16 %v10829
  %v11022 = vunpack.c.l.b16 %v10830
  %v11023 = vunpack.c.l.b16 %v10831
  %v11024 = vunpack.c.l.b16 %v10832
  %v11025 = vunpack.c.l.b16 %v10833
  %v11026 = vunpack.c.l.b16 %v10834
  %v11027 = vunpack.c.l.b16 %v10835
  %v11028 = vunpack.c.l.b16 %v10836
  %v11029 = vunpack.c.l.b16 %v10837
  %v11030 = vunpack.c.l.b16 %v10838
  %v11031 = vunpack.c.l.b16 %v10839
  %v11032 = vunpack.c.l.b16 %v10840
  %v11033 = vunpack.c.l.b16 %v10841
  %v11034 = vunpack.c.l.b16 %v10842
  %v11035 = vunpack.c.l.b16 %v10843
  %v11036 = vunpack.c.l.b16 %v10844
  %v11037 = vunpack.c.l.b16 %v10845
  %v11038 = vunpack.c.l.b16 %v10846
  %v11039 = vunpack.c.l.b16 %v10847
  %v11040 = vunpack.c.l.b16 %v10848
  %v11041 = vunpack.c.l.b16 %v10849
  %v11042 = vunpack.c.l.b16 %v10850
  %v11043 = vunpack.c.l.b16 %v10851
  %v11044 = vunpack.c.l.b16 %v10852
  %v11045 = vunpack.c.l.b16 %v10853
  %v11046 = vunpack.c.l.b16 %v10854
  %v11047 = vunpack.c.l.b16 %v10855
  %v11048 = vunpack.c.l.b16 %v10856
  %v11049 = vunpack.c.l.b16 %v10857
  %v11050 = vunpack.c.l.b16 %v10858
  %v11051 = vunpack.c.l.b16 %v10859
  %v11052 = vpack.c.b16 %v10957, %v10956
  %v11053 = vpack.c.b16 %v10959, %v10958
  %v11054 = vpack.c.b16 %v10961, %v10960
  %v11055 = vpack.c.b16 %v10963, %v10962
  %v11056 = vpack.c.b16 %v10965, %v10964
  %v11057 = vpack.c.b16 %v10967, %v10966
  %v11058 = vpack.c.b16 %v10969, %v10968
  %v11059 = vpack.c.b16 %v10971, %v10970
  %v11060 = vpack.c.b16 %v10973, %v10972
  %v11061 = vpack.c.b16 %v10975, %v10974
  %v11062 = vpack.c.b16 %v10977, %v10976
  %v11063 = vpack.c.b16 %v10979, %v10978
  %v11064 = vpack.c.b16 %v10981, %v10980
  %v11065 = vpack.c.b16 %v10983, %v10982
  %v11066 = vpack.c.b16 %v10985, %v10984
  %v11067 = vpack.c.b16 %v10987, %v10986
  %v11068 = vpack.c.b16 %v10989, %v10988
  %v11069 = vpack.c.b16 %v10991, %v10990
  %v11070 = vpack.c.b16 %v10993, %v10992
  %v11071 = vpack.c.b16 %v10995, %v10994
  %v11072 = vpack.c.b16 %v10997, %v10996
  %v11073 = vpack.c.b16 %v10999, %v10998
  %v11074 = vpack.c.b16 %v11001, %v11000
  %v11075 = vpack.c.b16 %v11003, %v11002
  %v11076 = vpack.c.b16 %v11005, %v11004
  %v11077 = vpack.c.b16 %v11007, %v11006
  %v11078 = vpack.c.b16 %v11009, %v11008
  %v11079 = vpack.c.b16 %v11011, %v11010
  %v11080 = vpack.c.b16 %v11013, %v11012
  %v11081 = vpack.c.b16 %v11015, %v11014
  %v11082 = vpack.c.b16 %v11017, %v11016
  %v11083 = vpack.c.b16 %v11019, %v11018
  %v11084 = vpack.c.b16 %v11021, %v11020
  %v11085 = vpack.c.b16 %v11023, %v11022
  %v11086 = vpack.c.b16 %v11025, %v11024
  %v11087 = vpack.c.b16 %v11027, %v11026
  %v11088 = vpack.c.b16 %v11029, %v11028
  %v11089 = vpack.c.b16 %v11031, %v11030
  %v11090 = vpack.c.b16 %v11033, %v11032
  %v11091 = vpack.c.b16 %v11035, %v11034
  %v11092 = vpack.c.b16 %v11037, %v11036
  %v11093 = vpack.c.b16 %v11039, %v11038
  %v11094 = vpack.c.b16 %v11041, %v11040
  %v11095 = vpack.c.b16 %v11043, %v11042
  %v11096 = vpack.c.b16 %v11045, %v11044
  %v11097 = vpack.c.b16 %v11047, %v11046
  %v11098 = vpack.c.b16 %v11049, %v11048
  %v11099 = vpack.c.b16 %v11051, %v11050
  %11148 = vmatprep.subr.bf16.mxu0 0
  %11149 = vmatpush1.bf16.msra.mxu0 %v11059
  %11150 = vmatprep.subr.bf16.mxu0 0
  %11151 = vmatpush1.bf16.msra.mxu0 %v11058
  %11152 = vmatprep.subr.bf16.mxu0 0
  %11153 = vmatpush1.bf16.msra.mxu0 %v11057
  %11154 = vmatprep.subr.bf16.mxu0 0
  %11155 = vmatpush1.bf16.msra.mxu0 %v11056
  %11156 = vmatprep.subr.bf16.mxu0 0
  %11157 = vmatpush1.bf16.msra.mxu0 %v11055
  %11158 = vmatprep.subr.bf16.mxu0 0
  %11159 = vmatpush1.bf16.msra.mxu0 %v11054
  %11160 = vmatprep.subr.bf16.mxu0 0
  %11161 = vmatpush1.bf16.msra.mxu0 %v11053
  %11162 = vmatprep.subr.bf16.mxu0 0
  %11163 = vmatpush1.bf16.msra.mxu0 %v11052
  %11164 = vmatprep.subr.bf16.mxu0 0
  %11165 = vmatpush2.bf16.msra.mxu0 %v11067
  %11166 = vmatprep.subr.bf16.mxu0 0
  %11167 = vmatpush2.bf16.msra.mxu0 %v11066
  %11168 = vmatprep.subr.bf16.mxu0 0
  %11169 = vmatpush2.bf16.msra.mxu0 %v11065
  %11170 = vmatprep.subr.bf16.mxu0 0
  %11171 = vmatpush2.bf16.msra.mxu0 %v11064
  %11172 = vmatprep.subr.bf16.mxu0 0
  %11173 = vmatpush2.bf16.msra.mxu0 %v11063
  %11174 = vmatprep.subr.bf16.mxu0 0
  %11175 = vmatpush2.bf16.msra.mxu0 %v11062
  %11176 = vmatprep.subr.bf16.mxu0 0
  %11177 = vmatpush2.bf16.msra.mxu0 %v11061
  %11178 = vmatprep.subr.bf16.mxu0 0
  %11179 = vmatpush2.bf16.msra.mxu0 %v11060
  %11180 = vmatprep.mubr.bf16.mxu0 %v6526
  %11181 = vmatmul.mubr.bf16.gmra.mxu0 %v6525
  %v11182 = vpop.f32.mrf.mxu0
  %v11183 = vadd.f32 %v6248, %v11182
  %v11184 = vpop.f32.mrf.mxu0
  %v11185 = vpop.f32.mrf.mxu0
  %v11186 = vadd.f32 %v6253, %v11185
  %v11187 = vpop.f32.mrf.mxu0
  %11188 = vmatprep.mubr.bf16.mxu0 %v6532
  %11189 = vmatmul.mubr.bf16.gmra.mxu0 %v6531
  %v11190 = vpop.f32.mrf.mxu0
  %v11191 = vadd.f32 %v6258, %v11190
  %v11192 = vpop.f32.mrf.mxu0
  %v11193 = vpop.f32.mrf.mxu0
  %v11194 = vadd.f32 %v6263, %v11193
  %v11195 = vpop.f32.mrf.mxu0
  %11196 = vmatprep.mubr.bf16.mxu0 %v6538
  %11197 = vmatmul.mubr.bf16.gmra.mxu0 %v6537
  %v11198 = vpop.f32.mrf.mxu0
  %v11199 = vadd.f32 %v6268, %v11198
  %v11200 = vpop.f32.mrf.mxu0
  %v11201 = vpop.f32.mrf.mxu0
  %v11202 = vadd.f32 %v6273, %v11201
  %v11203 = vpop.f32.mrf.mxu0
  %11204 = vmatprep.mubr.bf16.mxu0 %v6544
  %11205 = vmatmul.mubr.bf16.gmra.mxu0 %v6543
  %v11206 = vpop.f32.mrf.mxu0
  %v11207 = vadd.f32 %v6278, %v11206
  %v11208 = vpop.f32.mrf.mxu0
  %v11209 = vpop.f32.mrf.mxu0
  %v11210 = vadd.f32 %v6283, %v11209
  %v11211 = vpop.f32.mrf.mxu0
  %11212 = vmatprep.mubr.bf16.mxu0 %v6550
  %11213 = vmatmul.mubr.bf16.gmra.mxu0 %v6549
  %v11214 = vpop.f32.mrf.mxu0
  %v11215 = vadd.f32 %v6288, %v11214
  %v11216 = vpop.f32.mrf.mxu0
  %v11217 = vpop.f32.mrf.mxu0
  %v11218 = vadd.f32 %v6293, %v11217
  %v11219 = vpop.f32.mrf.mxu0
  %11220 = vmatprep.mubr.bf16.mxu0 %v6556
  %11221 = vmatmul.mubr.bf16.gmra.mxu0 %v6555
  %v11222 = vpop.f32.mrf.mxu0
  %v11223 = vadd.f32 %v6298, %v11222
  %v11224 = vpop.f32.mrf.mxu0
  %v11225 = vpop.f32.mrf.mxu0
  %v11226 = vadd.f32 %v6303, %v11225
  %v11227 = vpop.f32.mrf.mxu0
  %11228 = vmatprep.mubr.bf16.mxu0 %v6562
  %11229 = vmatmul.mubr.bf16.gmra.mxu0 %v6561
  %v11230 = vpop.f32.mrf.mxu0
  %v11231 = vadd.f32 %v6308, %v11230
  %v11232 = vpop.f32.mrf.mxu0
  %v11233 = vpop.f32.mrf.mxu0
  %v11234 = vadd.f32 %v6313, %v11233
  %v11235 = vpop.f32.mrf.mxu0
  %11236 = vmatprep.mubr.bf16.mxu0 %v6568
  %11237 = vmatmul.mubr.bf16.gmra.mxu0 %v6567
  %v11238 = vpop.f32.mrf.mxu0
  %v11239 = vadd.f32 %v6318, %v11238
  %v11240 = vpop.f32.mrf.mxu0
  %v11241 = vpop.f32.mrf.mxu0
  %v11242 = vadd.f32 %v6323, %v11241
  %v11243 = vpop.f32.mrf.mxu0
  %11244 = vmatprep.mubr.bf16.mxu0 %v6574
  %11245 = vmatmul.mubr.bf16.gmra.mxu0 %v6573
  %v11246 = vpop.f32.mrf.mxu0
  %v11247 = vadd.f32 %v6328, %v11246
  %v11248 = vpop.f32.mrf.mxu0
  %v11249 = vpop.f32.mrf.mxu0
  %v11250 = vadd.f32 %v6333, %v11249
  %v11251 = vpop.f32.mrf.mxu0
  %11252 = vmatprep.mubr.bf16.mxu0 %v6580
  %11253 = vmatmul.mubr.bf16.gmra.mxu0 %v6579
  %v11254 = vpop.f32.mrf.mxu0
  %v11255 = vadd.f32 %v6338, %v11254
  %v11256 = vpop.f32.mrf.mxu0
  %v11257 = vpop.f32.mrf.mxu0
  %v11258 = vadd.f32 %v6343, %v11257
  %v11259 = vpop.f32.mrf.mxu0
  %11260 = vdwg.mxu0
  %11261 = vmatprep.subr.bf16.mxu0 0
  %11262 = vmatpush1.bf16.msra.mxu0 %v11075
  %11263 = vmatprep.subr.bf16.mxu0 0
  %11264 = vmatpush1.bf16.msra.mxu0 %v11074
  %11265 = vmatprep.subr.bf16.mxu0 0
  %11266 = vmatpush1.bf16.msra.mxu0 %v11073
  %11267 = vmatprep.subr.bf16.mxu0 0
  %11268 = vmatpush1.bf16.msra.mxu0 %v11072
  %11269 = vmatprep.subr.bf16.mxu0 0
  %11270 = vmatpush1.bf16.msra.mxu0 %v11071
  %11271 = vmatprep.subr.bf16.mxu0 0
  %11272 = vmatpush1.bf16.msra.mxu0 %v11070
  %11273 = vmatprep.subr.bf16.mxu0 0
  %11274 = vmatpush1.bf16.msra.mxu0 %v11069
  %11275 = vmatprep.subr.bf16.mxu0 0
  %11276 = vmatpush1.bf16.msra.mxu0 %v11068
  %11277 = vmatprep.subr.bf16.mxu0 0
  %11278 = vmatpush2.bf16.msra.mxu0 %v11083
  %11279 = vmatprep.subr.bf16.mxu0 0
  %11280 = vmatpush2.bf16.msra.mxu0 %v11082
  %11281 = vmatprep.subr.bf16.mxu0 0
  %11282 = vmatpush2.bf16.msra.mxu0 %v11081
  %11283 = vmatprep.subr.bf16.mxu0 0
  %11284 = vmatpush2.bf16.msra.mxu0 %v11080
  %11285 = vmatprep.subr.bf16.mxu0 0
  %11286 = vmatpush2.bf16.msra.mxu0 %v11079
  %11287 = vmatprep.subr.bf16.mxu0 0
  %11288 = vmatpush2.bf16.msra.mxu0 %v11078
  %11289 = vmatprep.subr.bf16.mxu0 0
  %11290 = vmatpush2.bf16.msra.mxu0 %v11077
  %11291 = vmatprep.subr.bf16.mxu0 0
  %11292 = vmatpush2.bf16.msra.mxu0 %v11076
  %11293 = vmatprep.mubr.bf16.mxu0 %v6528
  %11294 = vmatmul.mubr.bf16.gmra.mxu0 %v6527
  %v11295 = vpop.f32.mrf.mxu0
  %v11296 = vadd.f32 %v11183, %v11295
  %v11297 = vpop.f32.mrf.mxu0
  %v11298 = vpop.f32.mrf.mxu0
  %v11299 = vadd.f32 %v11186, %v11298
  %v11300 = vpop.f32.mrf.mxu0
  %11301 = vmatprep.mubr.bf16.mxu0 %v6534
  %11302 = vmatmul.mubr.bf16.gmra.mxu0 %v6533
  %v11303 = vpop.f32.mrf.mxu0
  %v11304 = vadd.f32 %v11191, %v11303
  %v11305 = vpop.f32.mrf.mxu0
  %v11306 = vpop.f32.mrf.mxu0
  %v11307 = vadd.f32 %v11194, %v11306
  %v11308 = vpop.f32.mrf.mxu0
  %11309 = vmatprep.mubr.bf16.mxu0 %v6540
  %11310 = vmatmul.mubr.bf16.gmra.mxu0 %v6539
  %v11311 = vpop.f32.mrf.mxu0
  %v11312 = vadd.f32 %v11199, %v11311
  %v11313 = vpop.f32.mrf.mxu0
  %v11314 = vpop.f32.mrf.mxu0
  %v11315 = vadd.f32 %v11202, %v11314
  %v11316 = vpop.f32.mrf.mxu0
  %11317 = vmatprep.mubr.bf16.mxu0 %v6546
  %11318 = vmatmul.mubr.bf16.gmra.mxu0 %v6545
  %v11319 = vpop.f32.mrf.mxu0
  %v11320 = vadd.f32 %v11207, %v11319
  %v11321 = vpop.f32.mrf.mxu0
  %v11322 = vpop.f32.mrf.mxu0
  %v11323 = vadd.f32 %v11210, %v11322
  %v11324 = vpop.f32.mrf.mxu0
  %11325 = vmatprep.mubr.bf16.mxu0 %v6552
  %11326 = vmatmul.mubr.bf16.gmra.mxu0 %v6551
  %v11327 = vpop.f32.mrf.mxu0
  %v11328 = vadd.f32 %v11215, %v11327
  %v11329 = vpop.f32.mrf.mxu0
  %v11330 = vpop.f32.mrf.mxu0
  %v11331 = vadd.f32 %v11218, %v11330
  %v11332 = vpop.f32.mrf.mxu0
  %11333 = vmatprep.mubr.bf16.mxu0 %v6558
  %11334 = vmatmul.mubr.bf16.gmra.mxu0 %v6557
  %v11335 = vpop.f32.mrf.mxu0
  %v11336 = vadd.f32 %v11223, %v11335
  %v11337 = vpop.f32.mrf.mxu0
  %v11338 = vpop.f32.mrf.mxu0
  %v11339 = vadd.f32 %v11226, %v11338
  %v11340 = vpop.f32.mrf.mxu0
  %11341 = vmatprep.mubr.bf16.mxu0 %v6564
  %11342 = vmatmul.mubr.bf16.gmra.mxu0 %v6563
  %v11343 = vpop.f32.mrf.mxu0
  %v11344 = vadd.f32 %v11231, %v11343
  %v11345 = vpop.f32.mrf.mxu0
  %v11346 = vpop.f32.mrf.mxu0
  %v11347 = vadd.f32 %v11234, %v11346
  %v11348 = vpop.f32.mrf.mxu0
  %11349 = vmatprep.mubr.bf16.mxu0 %v6570
  %11350 = vmatmul.mubr.bf16.gmra.mxu0 %v6569
  %v11351 = vpop.f32.mrf.mxu0
  %v11352 = vadd.f32 %v11239, %v11351
  %v11353 = vpop.f32.mrf.mxu0
  %v11354 = vpop.f32.mrf.mxu0
  %v11355 = vadd.f32 %v11242, %v11354
  %v11356 = vpop.f32.mrf.mxu0
  %11357 = vmatprep.mubr.bf16.mxu0 %v6576
  %11358 = vmatmul.mubr.bf16.gmra.mxu0 %v6575
  %v11359 = vpop.f32.mrf.mxu0
  %v11360 = vadd.f32 %v11247, %v11359
  %v11361 = vpop.f32.mrf.mxu0
  %v11362 = vpop.f32.mrf.mxu0
  %v11363 = vadd.f32 %v11250, %v11362
  %v11364 = vpop.f32.mrf.mxu0
  %11365 = vmatprep.mubr.bf16.mxu0 %v6582
  %11366 = vmatmul.mubr.bf16.gmra.mxu0 %v6581
  %v11367 = vpop.f32.mrf.mxu0
  %v11368 = vadd.f32 %v11255, %v11367
  %v11369 = vpop.f32.mrf.mxu0
  %v11370 = vpop.f32.mrf.mxu0
  %v11371 = vadd.f32 %v11258, %v11370
  %v11372 = vpop.f32.mrf.mxu0
  %11373 = vdwg.mxu0
  %11374 = vmatprep.subr.bf16.mxu0 0
  %11375 = vmatpush1.bf16.msra.mxu0 %v11091
  %11376 = vmatprep.subr.bf16.mxu0 0
  %11377 = vmatpush1.bf16.msra.mxu0 %v11090
  %11378 = vmatprep.subr.bf16.mxu0 0
  %11379 = vmatpush1.bf16.msra.mxu0 %v11089
  %11380 = vmatprep.subr.bf16.mxu0 0
  %11381 = vmatpush1.bf16.msra.mxu0 %v11088
  %11382 = vmatprep.subr.bf16.mxu0 0
  %11383 = vmatpush1.bf16.msra.mxu0 %v11087
  %11384 = vmatprep.subr.bf16.mxu0 0
  %11385 = vmatpush1.bf16.msra.mxu0 %v11086
  %11386 = vmatprep.subr.bf16.mxu0 0
  %11387 = vmatpush1.bf16.msra.mxu0 %v11085
  %11388 = vmatprep.subr.bf16.mxu0 0
  %11389 = vmatpush1.bf16.msra.mxu0 %v11084
  %11390 = vmatprep.subr.bf16.mxu0 0
  %11391 = vmatpush2.bf16.msra.mxu0 %v11099
  %11392 = vmatprep.subr.bf16.mxu0 0
  %11393 = vmatpush2.bf16.msra.mxu0 %v11098
  %11394 = vmatprep.subr.bf16.mxu0 0
  %11395 = vmatpush2.bf16.msra.mxu0 %v11097
  %11396 = vmatprep.subr.bf16.mxu0 0
  %11397 = vmatpush2.bf16.msra.mxu0 %v11096
  %11398 = vmatprep.subr.bf16.mxu0 0
  %11399 = vmatpush2.bf16.msra.mxu0 %v11095
  %11400 = vmatprep.subr.bf16.mxu0 0
  %11401 = vmatpush2.bf16.msra.mxu0 %v11094
  %11402 = vmatprep.subr.bf16.mxu0 0
  %11403 = vmatpush2.bf16.msra.mxu0 %v11093
  %11404 = vmatprep.subr.bf16.mxu0 0
  %11405 = vmatpush2.bf16.msra.mxu0 %v11092
  %11406 = vmatprep.mubr.bf16.mxu0 %v6530
  %11407 = vmatmul.mubr.bf16.gmra.mxu0 %v6529
  %v11408 = vpop.f32.mrf.mxu0
  %v11409 = vadd.f32 %v11296, %v11408
  %v11410 = vpop.f32.mrf.mxu0
  %v11411 = vpop.f32.mrf.mxu0
  %v11412 = vadd.f32 %v11299, %v11411
  %v11413 = vpop.f32.mrf.mxu0
  %11414 = vmatprep.mubr.bf16.mxu0 %v6536
  %11415 = vmatmul.mubr.bf16.gmra.mxu0 %v6535
  %v11416 = vpop.f32.mrf.mxu0
  %v11417 = vadd.f32 %v11304, %v11416
  %v11418 = vpop.f32.mrf.mxu0
  %v11419 = vpop.f32.mrf.mxu0
  %v11420 = vadd.f32 %v11307, %v11419
  %v11421 = vpop.f32.mrf.mxu0
  %11422 = vmatprep.mubr.bf16.mxu0 %v6542
  %11423 = vmatmul.mubr.bf16.gmra.mxu0 %v6541
  %v11424 = vpop.f32.mrf.mxu0
  %v11425 = vadd.f32 %v11312, %v11424
  %v11426 = vpop.f32.mrf.mxu0
  %v11427 = vpop.f32.mrf.mxu0
  %v11428 = vadd.f32 %v11315, %v11427
  %v11429 = vpop.f32.mrf.mxu0
  %11430 = vmatprep.mubr.bf16.mxu0 %v6548
  %11431 = vmatmul.mubr.bf16.gmra.mxu0 %v6547
  %v11432 = vpop.f32.mrf.mxu0
  %v11433 = vadd.f32 %v11320, %v11432
  %v11434 = vpop.f32.mrf.mxu0
  %v11435 = vpop.f32.mrf.mxu0
  %v11436 = vadd.f32 %v11323, %v11435
  %v11437 = vpop.f32.mrf.mxu0
  %11438 = vmatprep.mubr.bf16.mxu0 %v6554
  %11439 = vmatmul.mubr.bf16.gmra.mxu0 %v6553
  %v11440 = vpop.f32.mrf.mxu0
  %v11441 = vadd.f32 %v11328, %v11440
  %v11442 = vpop.f32.mrf.mxu0
  %v11443 = vpop.f32.mrf.mxu0
  %v11444 = vadd.f32 %v11331, %v11443
  %v11445 = vpop.f32.mrf.mxu0
  %11446 = vmatprep.mubr.bf16.mxu0 %v6560
  %11447 = vmatmul.mubr.bf16.gmra.mxu0 %v6559
  %v11448 = vpop.f32.mrf.mxu0
  %v11449 = vadd.f32 %v11336, %v11448
  %v11450 = vpop.f32.mrf.mxu0
  %v11451 = vpop.f32.mrf.mxu0
  %v11452 = vadd.f32 %v11339, %v11451
  %v11453 = vpop.f32.mrf.mxu0
  %11454 = vmatprep.mubr.bf16.mxu0 %v6566
  %11455 = vmatmul.mubr.bf16.gmra.mxu0 %v6565
  %v11456 = vpop.f32.mrf.mxu0
  %v11457 = vadd.f32 %v11344, %v11456
  %v11458 = vpop.f32.mrf.mxu0
  %v11459 = vpop.f32.mrf.mxu0
  %v11460 = vadd.f32 %v11347, %v11459
  %v11461 = vpop.f32.mrf.mxu0
  %11462 = vmatprep.mubr.bf16.mxu0 %v6572
  %11463 = vmatmul.mubr.bf16.gmra.mxu0 %v6571
  %v11464 = vpop.f32.mrf.mxu0
  %v11465 = vadd.f32 %v11352, %v11464
  %v11466 = vpop.f32.mrf.mxu0
  %v11467 = vpop.f32.mrf.mxu0
  %v11468 = vadd.f32 %v11355, %v11467
  %v11469 = vpop.f32.mrf.mxu0
  %11470 = vmatprep.mubr.bf16.mxu0 %v6578
  %11471 = vmatmul.mubr.bf16.gmra.mxu0 %v6577
  %v11472 = vpop.f32.mrf.mxu0
  %v11473 = vadd.f32 %v11360, %v11472
  %v11474 = vpop.f32.mrf.mxu0
  %v11475 = vpop.f32.mrf.mxu0
  %v11476 = vadd.f32 %v11363, %v11475
  %v11477 = vpop.f32.mrf.mxu0
  %11478 = vmatprep.mubr.bf16.mxu0 %v6584
  %11479 = vmatmul.mubr.bf16.gmra.mxu0 %v6583
  %v11480 = vpop.f32.mrf.mxu0
  %v11481 = vadd.f32 %v11368, %v11480
  %v11482 = vpop.f32.mrf.mxu0
  %v11483 = vpop.f32.mrf.mxu0
  %v11484 = vadd.f32 %v11371, %v11483
  %v11485 = vpop.f32.mrf.mxu0
  %11486 = vdwg.mxu0
  %v11487 = vmax.f32 %v11409, 0.0
  %v11488 = vmax.f32 %v11412, 0.0
  %v11489 = vmax.f32 %v11417, 0.0
  %v11490 = vmax.f32 %v11420, 0.0
  %v11491 = vmax.f32 %v11425, 0.0
  %v11492 = vmax.f32 %v11428, 0.0
  %v11493 = vmax.f32 %v11433, 0.0
  %v11494 = vmax.f32 %v11436, 0.0
  %v11495 = vmax.f32 %v11441, 0.0
  %v11496 = vmax.f32 %v11444, 0.0
  %v11497 = vmax.f32 %v11449, 0.0
  %v11498 = vmax.f32 %v11452, 0.0
  %v11499 = vmax.f32 %v11457, 0.0
  %v11500 = vmax.f32 %v11460, 0.0
  %v11501 = vmax.f32 %v11465, 0.0
  %v11502 = vmax.f32 %v11468, 0.0
  %v11503 = vmax.f32 %v11473, 0.0
  %v11504 = vmax.f32 %v11476, 0.0
  %v11505 = vmax.f32 %v11481, 0.0
  %v11506 = vmax.f32 %v11484, 0.0
  %v11507 = vpack.c.bf16 %v11488, %v11487
  %v11508 = vpack.c.bf16 %v11490, %v11489
  %v11509 = vpack.c.bf16 %v11492, %v11491
  %v11510 = vpack.c.bf16 %v11494, %v11493
  %v11511 = vpack.c.bf16 %v11496, %v11495
  %v11512 = vpack.c.bf16 %v11498, %v11497
  %v11513 = vpack.c.bf16 %v11500, %v11499
  %v11514 = vpack.c.bf16 %v11502, %v11501
  %v11515 = vpack.c.bf16 %v11504, %v11503
  %v11516 = vpack.c.bf16 %v11506, %v11505
  %v11527 = vunpack.c.l.b16 %v11507
  %v11528 = vunpack.c.h.b16 %v11507
  %v11529 = vunpack.c.l.b16 %v11508
  %v11530 = vunpack.c.h.b16 %v11508
  %v11531 = vunpack.c.l.b16 %v11509
  %v11532 = vunpack.c.h.b16 %v11509
  %v11533 = vunpack.c.l.b16 %v11510
  %v11534 = vunpack.c.h.b16 %v11510
  %v11535 = vunpack.c.l.b16 %v11511
  %v11536 = vunpack.c.h.b16 %v11511
  %v11537 = vunpack.c.l.b16 %v11512
  %v11538 = vunpack.c.h.b16 %v11512
  %v11539 = vunpack.c.l.b16 %v11513
  %v11540 = vunpack.c.h.b16 %v11513
  %v11541 = vunpack.c.l.b16 %v11514
  %v11542 = vunpack.c.h.b16 %v11514
  %v11543 = vunpack.c.l.b16 %v11515
  %v11544 = vunpack.c.h.b16 %v11515
  %v11545 = vunpack.c.l.b16 %v11516
  %v11546 = vunpack.c.h.b16 %v11516
  %v11547 = vpack.c.b16 %v11527, %v11527
  %v11548 = vpack.c.b16 %v11528, %v11528
  %v11549 = vpack.c.b16 %v11529, %v11529
  %v11550 = vpack.c.b16 %v11530, %v11530
  %v11551 = vpack.c.b16 %v11531, %v11531
  %v11552 = vpack.c.b16 %v11532, %v11532
  %v11553 = vpack.c.b16 %v11533, %v11533
  %v11554 = vpack.c.b16 %v11534, %v11534
  %v11555 = vpack.c.b16 %v11535, %v11535
  %v11556 = vpack.c.b16 %v11536, %v11536
  %v11557 = vpack.c.b16 %v11537, %v11537
  %v11558 = vpack.c.b16 %v11538, %v11538
  %v11559 = vpack.c.b16 %v11539, %v11539
  %v11560 = vpack.c.b16 %v11540, %v11540
  %v11561 = vpack.c.b16 %v11541, %v11541
  %v11562 = vpack.c.b16 %v11542, %v11542
  %v11563 = vpack.c.b16 %v11543, %v11543
  %v11564 = vpack.c.b16 %v11544, %v11544
  %v11565 = vpack.c.b16 %v11545, %v11545
  %v11566 = vpack.c.b16 %v11546, %v11546
  %11587 = vst [vmem:[#allocation3 + $0x1e0] sm:$0xf] %v11547
  %11588 = vst [vmem:[#allocation3 + $0x1e4] sm:$0xf] %v11548
  %11589 = vst [vmem:[#allocation3 + $0x1e8] sm:$0xf] %v11549
  %11590 = vst [vmem:[#allocation3 + $0x1ec] sm:$0xf] %v11550
  %11591 = vst [vmem:[#allocation3 + $0x1f0] sm:$0xf] %v11551
  %11592 = vst [vmem:[#allocation3 + $0x1f4] sm:$0xf] %v11552
  %11593 = vst [vmem:[#allocation3 + $0x1f8] sm:$0xf] %v11553
  %11594 = vst [vmem:[#allocation3 + $0x1fc] sm:$0xf] %v11554
  %11595 = vst [vmem:[#allocation3 + $0x200] sm:$0xf] %v11555
  %11596 = vst [vmem:[#allocation3 + $0x204] sm:$0xf] %v11556
  %11597 = vst [vmem:[#allocation3 + $0x208] sm:$0xf] %v11557
  %11598 = vst [vmem:[#allocation3 + $0x20c] sm:$0xf] %v11558
  %11599 = vst [vmem:[#allocation3 + $0x210] sm:$0xf] %v11559
  %11600 = vst [vmem:[#allocation3 + $0x214] sm:$0xf] %v11560
  %11601 = vst [vmem:[#allocation3 + $0x218] sm:$0xf] %v11561
  %11602 = vst [vmem:[#allocation3 + $0x21c] sm:$0xf] %v11562
  %11603 = vst [vmem:[#allocation3 + $0x220] sm:$0xf] %v11563
  %11604 = vst [vmem:[#allocation3 + $0x224] sm:$0xf] %v11564
  %11605 = vst [vmem:[#allocation3 + $0x228] sm:$0xf] %v11565
  %11606 = vst [vmem:[#allocation3 + $0x22c] sm:$0xf] %v11566
  %v11607 = vld [vmem:[#allocation2 + $0x600] sm:$0xf]
  %v11608 = vld [vmem:[#allocation2 + $0x604] sm:$0xf]
  %v11609 = vld [vmem:[#allocation2 + $0x608] sm:$0xf]
  %v11610 = vld [vmem:[#allocation2 + $0x60c] sm:$0xf]
  %v11611 = vld [vmem:[#allocation2 + $0x610] sm:$0xf]
  %v11612 = vld [vmem:[#allocation2 + $0x614] sm:$0xf]
  %v11613 = vld [vmem:[#allocation2 + $0x618] sm:$0xf]
  %v11614 = vld [vmem:[#allocation2 + $0x61c] sm:$0xf]
  %v11615 = vld [vmem:[#allocation2 + $0x620] sm:$0xf]
  %v11616 = vld [vmem:[#allocation2 + $0x624] sm:$0xf]
  %v11617 = vld [vmem:[#allocation2 + $0x628] sm:$0xf]
  %v11618 = vld [vmem:[#allocation2 + $0x62c] sm:$0xf]
  %v11619 = vld [vmem:[#allocation2 + $0x630] sm:$0xf]
  %v11620 = vld [vmem:[#allocation2 + $0x634] sm:$0xf]
  %v11621 = vld [vmem:[#allocation2 + $0x638] sm:$0xf]
  %v11622 = vld [vmem:[#allocation2 + $0x63c] sm:$0xf]
  %v11623 = vld [vmem:[#allocation2 + $0x640] sm:$0xf]
  %v11624 = vld [vmem:[#allocation2 + $0x644] sm:$0xf]
  %v11625 = vld [vmem:[#allocation2 + $0x648] sm:$0xf]
  %v11626 = vld [vmem:[#allocation2 + $0x64c] sm:$0xf]
  %v11627 = vld [vmem:[#allocation2 + $0x650] sm:$0xf]
  %v11628 = vld [vmem:[#allocation2 + $0x654] sm:$0xf]
  %v11629 = vld [vmem:[#allocation2 + $0x658] sm:$0xf]
  %v11630 = vld [vmem:[#allocation2 + $0x65c] sm:$0xf]
  %v11631 = vld [vmem:[#allocation2 + $0x660] sm:$0xf]
  %v11632 = vld [vmem:[#allocation2 + $0x664] sm:$0xf]
  %v11633 = vld [vmem:[#allocation2 + $0x668] sm:$0xf]
  %v11634 = vld [vmem:[#allocation2 + $0x66c] sm:$0xf]
  %v11635 = vld [vmem:[#allocation2 + $0x670] sm:$0xf]
  %v11636 = vld [vmem:[#allocation2 + $0x674] sm:$0xf]
  %v11637 = vld [vmem:[#allocation2 + $0x678] sm:$0xf]
  %v11638 = vld [vmem:[#allocation2 + $0x67c] sm:$0xf]
  %v11639 = vld [vmem:[#allocation2 + $0x680] sm:$0xf]
  %v11640 = vld [vmem:[#allocation2 + $0x684] sm:$0xf]
  %v11641 = vld [vmem:[#allocation2 + $0x688] sm:$0xf]
  %v11642 = vld [vmem:[#allocation2 + $0x68c] sm:$0xf]
  %v11643 = vld [vmem:[#allocation2 + $0x690] sm:$0xf]
  %v11644 = vld [vmem:[#allocation2 + $0x694] sm:$0xf]
  %v11645 = vld [vmem:[#allocation2 + $0x698] sm:$0xf]
  %v11646 = vld [vmem:[#allocation2 + $0x69c] sm:$0xf]
  %v11647 = vld [vmem:[#allocation2 + $0x6a0] sm:$0xf]
  %v11648 = vld [vmem:[#allocation2 + $0x6a4] sm:$0xf]
  %v11649 = vld [vmem:[#allocation2 + $0x6a8] sm:$0xf]
  %v11650 = vld [vmem:[#allocation2 + $0x6ac] sm:$0xf]
  %v11651 = vld [vmem:[#allocation2 + $0x6b0] sm:$0xf]
  %v11652 = vld [vmem:[#allocation2 + $0x6b4] sm:$0xf]
  %v11653 = vld [vmem:[#allocation2 + $0x6b8] sm:$0xf]
  %v11654 = vld [vmem:[#allocation2 + $0x6bc] sm:$0xf]
  %v11655 = vld [vmem:[#allocation2 + $0x6c0] sm:$0xf]
  %v11656 = vld [vmem:[#allocation2 + $0x6c4] sm:$0xf]
  %v11657 = vld [vmem:[#allocation2 + $0x6c8] sm:$0xf]
  %v11658 = vld [vmem:[#allocation2 + $0x6cc] sm:$0xf]
  %v11659 = vld [vmem:[#allocation2 + $0x6d0] sm:$0xf]
  %v11660 = vld [vmem:[#allocation2 + $0x6d4] sm:$0xf]
  %v11661 = vld [vmem:[#allocation2 + $0x6d8] sm:$0xf]
  %v11662 = vld [vmem:[#allocation2 + $0x6dc] sm:$0xf]
  %v11663 = vld [vmem:[#allocation2 + $0x6e0] sm:$0xf]
  %v11664 = vld [vmem:[#allocation2 + $0x6e4] sm:$0xf]
  %v11665 = vld [vmem:[#allocation2 + $0x6e8] sm:$0xf]
  %v11666 = vld [vmem:[#allocation2 + $0x6ec] sm:$0xf]
  %v11667 = vld [vmem:[#allocation2 + $0x6f0] sm:$0xf]
  %v11668 = vld [vmem:[#allocation2 + $0x6f4] sm:$0xf]
  %v11669 = vld [vmem:[#allocation2 + $0x6f8] sm:$0xf]
  %v11670 = vld [vmem:[#allocation2 + $0x6fc] sm:$0xf]
  %v11671 = vld [vmem:[#allocation2 + $0x700] sm:$0xf]
  %v11672 = vld [vmem:[#allocation2 + $0x704] sm:$0xf]
  %v11673 = vld [vmem:[#allocation2 + $0x708] sm:$0xf]
  %v11674 = vld [vmem:[#allocation2 + $0x70c] sm:$0xf]
  %v11675 = vld [vmem:[#allocation2 + $0x710] sm:$0xf]
  %v11676 = vld [vmem:[#allocation2 + $0x714] sm:$0xf]
  %v11677 = vld [vmem:[#allocation2 + $0x718] sm:$0xf]
  %v11678 = vld [vmem:[#allocation2 + $0x71c] sm:$0xf]
  %v11679 = vld [vmem:[#allocation2 + $0x720] sm:$0xf]
  %v11680 = vld [vmem:[#allocation2 + $0x724] sm:$0xf]
  %v11681 = vld [vmem:[#allocation2 + $0x728] sm:$0xf]
  %v11682 = vld [vmem:[#allocation2 + $0x72c] sm:$0xf]
  %v11683 = vld [vmem:[#allocation2 + $0x730] sm:$0xf]
  %v11684 = vld [vmem:[#allocation2 + $0x734] sm:$0xf]
  %v11685 = vld [vmem:[#allocation2 + $0x738] sm:$0xf]
  %v11686 = vld [vmem:[#allocation2 + $0x73c] sm:$0xf]
  %v11687 = vld [vmem:[#allocation2 + $0x740] sm:$0xf]
  %v11688 = vld [vmem:[#allocation2 + $0x744] sm:$0xf]
  %v11689 = vld [vmem:[#allocation2 + $0x748] sm:$0xf]
  %v11690 = vld [vmem:[#allocation2 + $0x74c] sm:$0xf]
  %v11691 = vld [vmem:[#allocation2 + $0x750] sm:$0xf]
  %v11692 = vld [vmem:[#allocation2 + $0x754] sm:$0xf]
  %v11693 = vld [vmem:[#allocation2 + $0x758] sm:$0xf]
  %v11694 = vld [vmem:[#allocation2 + $0x75c] sm:$0xf]
  %v11695 = vld [vmem:[#allocation2 + $0x760] sm:$0xf]
  %v11696 = vld [vmem:[#allocation2 + $0x764] sm:$0xf]
  %v11697 = vld [vmem:[#allocation2 + $0x768] sm:$0xf]
  %v11698 = vld [vmem:[#allocation2 + $0x76c] sm:$0xf]
  %v11699 = vld [vmem:[#allocation2 + $0x770] sm:$0xf]
  %v11700 = vld [vmem:[#allocation2 + $0x774] sm:$0xf]
  %v11701 = vld [vmem:[#allocation2 + $0x778] sm:$0xf]
  %v11702 = vld [vmem:[#allocation2 + $0x77c] sm:$0xf]
  %v11799 = vunpack.c.l.b16 %v11607
  %v11800 = vunpack.c.l.b16 %v11608
  %v11801 = vunpack.c.l.b16 %v11609
  %v11802 = vunpack.c.l.b16 %v11610
  %v11803 = vunpack.c.l.b16 %v11611
  %v11804 = vunpack.c.l.b16 %v11612
  %v11805 = vunpack.c.l.b16 %v11613
  %v11806 = vunpack.c.l.b16 %v11614
  %v11807 = vunpack.c.l.b16 %v11615
  %v11808 = vunpack.c.l.b16 %v11616
  %v11809 = vunpack.c.l.b16 %v11617
  %v11810 = vunpack.c.l.b16 %v11618
  %v11811 = vunpack.c.l.b16 %v11619
  %v11812 = vunpack.c.l.b16 %v11620
  %v11813 = vunpack.c.l.b16 %v11621
  %v11814 = vunpack.c.l.b16 %v11622
  %v11815 = vunpack.c.l.b16 %v11623
  %v11816 = vunpack.c.l.b16 %v11624
  %v11817 = vunpack.c.l.b16 %v11625
  %v11818 = vunpack.c.l.b16 %v11626
  %v11819 = vunpack.c.l.b16 %v11627
  %v11820 = vunpack.c.l.b16 %v11628
  %v11821 = vunpack.c.l.b16 %v11629
  %v11822 = vunpack.c.l.b16 %v11630
  %v11823 = vunpack.c.l.b16 %v11631
  %v11824 = vunpack.c.l.b16 %v11632
  %v11825 = vunpack.c.l.b16 %v11633
  %v11826 = vunpack.c.l.b16 %v11634
  %v11827 = vunpack.c.l.b16 %v11635
  %v11828 = vunpack.c.l.b16 %v11636
  %v11829 = vunpack.c.l.b16 %v11637
  %v11830 = vunpack.c.l.b16 %v11638
  %v11831 = vunpack.c.l.b16 %v11639
  %v11832 = vunpack.c.l.b16 %v11640
  %v11833 = vunpack.c.l.b16 %v11641
  %v11834 = vunpack.c.l.b16 %v11642
  %v11835 = vunpack.c.l.b16 %v11643
  %v11836 = vunpack.c.l.b16 %v11644
  %v11837 = vunpack.c.l.b16 %v11645
  %v11838 = vunpack.c.l.b16 %v11646
  %v11839 = vunpack.c.l.b16 %v11647
  %v11840 = vunpack.c.l.b16 %v11648
  %v11841 = vunpack.c.l.b16 %v11649
  %v11842 = vunpack.c.l.b16 %v11650
  %v11843 = vunpack.c.l.b16 %v11651
  %v11844 = vunpack.c.l.b16 %v11652
  %v11845 = vunpack.c.l.b16 %v11653
  %v11846 = vunpack.c.l.b16 %v11654
  %v11847 = vunpack.c.l.b16 %v11655
  %v11848 = vunpack.c.l.b16 %v11656
  %v11849 = vunpack.c.l.b16 %v11657
  %v11850 = vunpack.c.l.b16 %v11658
  %v11851 = vunpack.c.l.b16 %v11659
  %v11852 = vunpack.c.l.b16 %v11660
  %v11853 = vunpack.c.l.b16 %v11661
  %v11854 = vunpack.c.l.b16 %v11662
  %v11855 = vunpack.c.l.b16 %v11663
  %v11856 = vunpack.c.l.b16 %v11664
  %v11857 = vunpack.c.l.b16 %v11665
  %v11858 = vunpack.c.l.b16 %v11666
  %v11859 = vunpack.c.l.b16 %v11667
  %v11860 = vunpack.c.l.b16 %v11668
  %v11861 = vunpack.c.l.b16 %v11669
  %v11862 = vunpack.c.l.b16 %v11670
  %v11863 = vunpack.c.l.b16 %v11671
  %v11864 = vunpack.c.l.b16 %v11672
  %v11865 = vunpack.c.l.b16 %v11673
  %v11866 = vunpack.c.l.b16 %v11674
  %v11867 = vunpack.c.l.b16 %v11675
  %v11868 = vunpack.c.l.b16 %v11676
  %v11869 = vunpack.c.l.b16 %v11677
  %v11870 = vunpack.c.l.b16 %v11678
  %v11871 = vunpack.c.l.b16 %v11679
  %v11872 = vunpack.c.l.b16 %v11680
  %v11873 = vunpack.c.l.b16 %v11681
  %v11874 = vunpack.c.l.b16 %v11682
  %v11875 = vunpack.c.l.b16 %v11683
  %v11876 = vunpack.c.l.b16 %v11684
  %v11877 = vunpack.c.l.b16 %v11685
  %v11878 = vunpack.c.l.b16 %v11686
  %v11879 = vunpack.c.l.b16 %v11687
  %v11880 = vunpack.c.l.b16 %v11688
  %v11881 = vunpack.c.l.b16 %v11689
  %v11882 = vunpack.c.l.b16 %v11690
  %v11883 = vunpack.c.l.b16 %v11691
  %v11884 = vunpack.c.l.b16 %v11692
  %v11885 = vunpack.c.l.b16 %v11693
  %v11886 = vunpack.c.l.b16 %v11694
  %v11887 = vunpack.c.l.b16 %v11695
  %v11888 = vunpack.c.l.b16 %v11696
  %v11889 = vunpack.c.l.b16 %v11697
  %v11890 = vunpack.c.l.b16 %v11698
  %v11891 = vunpack.c.l.b16 %v11699
  %v11892 = vunpack.c.l.b16 %v11700
  %v11893 = vunpack.c.l.b16 %v11701
  %v11894 = vunpack.c.l.b16 %v11702
  %v11895 = vpack.c.b16 %v11800, %v11799
  %v11896 = vpack.c.b16 %v11802, %v11801
  %v11897 = vpack.c.b16 %v11804, %v11803
  %v11898 = vpack.c.b16 %v11806, %v11805
  %v11899 = vpack.c.b16 %v11808, %v11807
  %v11900 = vpack.c.b16 %v11810, %v11809
  %v11901 = vpack.c.b16 %v11812, %v11811
  %v11902 = vpack.c.b16 %v11814, %v11813
  %v11903 = vpack.c.b16 %v11816, %v11815
  %v11904 = vpack.c.b16 %v11818, %v11817
  %v11905 = vpack.c.b16 %v11820, %v11819
  %v11906 = vpack.c.b16 %v11822, %v11821
  %v11907 = vpack.c.b16 %v11824, %v11823
  %v11908 = vpack.c.b16 %v11826, %v11825
  %v11909 = vpack.c.b16 %v11828, %v11827
  %v11910 = vpack.c.b16 %v11830, %v11829
  %v11911 = vpack.c.b16 %v11832, %v11831
  %v11912 = vpack.c.b16 %v11834, %v11833
  %v11913 = vpack.c.b16 %v11836, %v11835
  %v11914 = vpack.c.b16 %v11838, %v11837
  %v11915 = vpack.c.b16 %v11840, %v11839
  %v11916 = vpack.c.b16 %v11842, %v11841
  %v11917 = vpack.c.b16 %v11844, %v11843
  %v11918 = vpack.c.b16 %v11846, %v11845
  %v11919 = vpack.c.b16 %v11848, %v11847
  %v11920 = vpack.c.b16 %v11850, %v11849
  %v11921 = vpack.c.b16 %v11852, %v11851
  %v11922 = vpack.c.b16 %v11854, %v11853
  %v11923 = vpack.c.b16 %v11856, %v11855
  %v11924 = vpack.c.b16 %v11858, %v11857
  %v11925 = vpack.c.b16 %v11860, %v11859
  %v11926 = vpack.c.b16 %v11862, %v11861
  %v11927 = vpack.c.b16 %v11864, %v11863
  %v11928 = vpack.c.b16 %v11866, %v11865
  %v11929 = vpack.c.b16 %v11868, %v11867
  %v11930 = vpack.c.b16 %v11870, %v11869
  %v11931 = vpack.c.b16 %v11872, %v11871
  %v11932 = vpack.c.b16 %v11874, %v11873
  %v11933 = vpack.c.b16 %v11876, %v11875
  %v11934 = vpack.c.b16 %v11878, %v11877
  %v11935 = vpack.c.b16 %v11880, %v11879
  %v11936 = vpack.c.b16 %v11882, %v11881
  %v11937 = vpack.c.b16 %v11884, %v11883
  %v11938 = vpack.c.b16 %v11886, %v11885
  %v11939 = vpack.c.b16 %v11888, %v11887
  %v11940 = vpack.c.b16 %v11890, %v11889
  %v11941 = vpack.c.b16 %v11892, %v11891
  %v11942 = vpack.c.b16 %v11894, %v11893
  %11991 = vmatprep.subr.bf16.mxu0 0
  %11992 = vmatpush1.bf16.msra.mxu0 %v11902
  %11993 = vmatprep.subr.bf16.mxu0 0
  %11994 = vmatpush1.bf16.msra.mxu0 %v11901
  %11995 = vmatprep.subr.bf16.mxu0 0
  %11996 = vmatpush1.bf16.msra.mxu0 %v11900
  %11997 = vmatprep.subr.bf16.mxu0 0
  %11998 = vmatpush1.bf16.msra.mxu0 %v11899
  %11999 = vmatprep.subr.bf16.mxu0 0
  %12000 = vmatpush1.bf16.msra.mxu0 %v11898
  %12001 = vmatprep.subr.bf16.mxu0 0
  %12002 = vmatpush1.bf16.msra.mxu0 %v11897
  %12003 = vmatprep.subr.bf16.mxu0 0
  %12004 = vmatpush1.bf16.msra.mxu0 %v11896
  %12005 = vmatprep.subr.bf16.mxu0 0
  %12006 = vmatpush1.bf16.msra.mxu0 %v11895
  %12007 = vmatprep.subr.bf16.mxu0 0
  %12008 = vmatpush2.bf16.msra.mxu0 %v11910
  %12009 = vmatprep.subr.bf16.mxu0 0
  %12010 = vmatpush2.bf16.msra.mxu0 %v11909
  %12011 = vmatprep.subr.bf16.mxu0 0
  %12012 = vmatpush2.bf16.msra.mxu0 %v11908
  %12013 = vmatprep.subr.bf16.mxu0 0
  %12014 = vmatpush2.bf16.msra.mxu0 %v11907
  %12015 = vmatprep.subr.bf16.mxu0 0
  %12016 = vmatpush2.bf16.msra.mxu0 %v11906
  %12017 = vmatprep.subr.bf16.mxu0 0
  %12018 = vmatpush2.bf16.msra.mxu0 %v11905
  %12019 = vmatprep.subr.bf16.mxu0 0
  %12020 = vmatpush2.bf16.msra.mxu0 %v11904
  %12021 = vmatprep.subr.bf16.mxu0 0
  %12022 = vmatpush2.bf16.msra.mxu0 %v11903
  %12023 = vmatprep.mubr.bf16.mxu0 %v6526
  %12024 = vmatmul.mubr.bf16.gmra.mxu0 %v6525
  %v12025 = vpop.f32.mrf.mxu0
  %v12026 = vadd.f32 %v6248, %v12025
  %v12027 = vpop.f32.mrf.mxu0
  %v12028 = vpop.f32.mrf.mxu0
  %v12029 = vadd.f32 %v6253, %v12028
  %v12030 = vpop.f32.mrf.mxu0
  %12031 = vmatprep.mubr.bf16.mxu0 %v6532
  %12032 = vmatmul.mubr.bf16.gmra.mxu0 %v6531
  %v12033 = vpop.f32.mrf.mxu0
  %v12034 = vadd.f32 %v6258, %v12033
  %v12035 = vpop.f32.mrf.mxu0
  %v12036 = vpop.f32.mrf.mxu0
  %v12037 = vadd.f32 %v6263, %v12036
  %v12038 = vpop.f32.mrf.mxu0
  %12039 = vmatprep.mubr.bf16.mxu0 %v6538
  %12040 = vmatmul.mubr.bf16.gmra.mxu0 %v6537
  %v12041 = vpop.f32.mrf.mxu0
  %v12042 = vadd.f32 %v6268, %v12041
  %v12043 = vpop.f32.mrf.mxu0
  %v12044 = vpop.f32.mrf.mxu0
  %v12045 = vadd.f32 %v6273, %v12044
  %v12046 = vpop.f32.mrf.mxu0
  %12047 = vmatprep.mubr.bf16.mxu0 %v6544
  %12048 = vmatmul.mubr.bf16.gmra.mxu0 %v6543
  %v12049 = vpop.f32.mrf.mxu0
  %v12050 = vadd.f32 %v6278, %v12049
  %v12051 = vpop.f32.mrf.mxu0
  %v12052 = vpop.f32.mrf.mxu0
  %v12053 = vadd.f32 %v6283, %v12052
  %v12054 = vpop.f32.mrf.mxu0
  %12055 = vmatprep.mubr.bf16.mxu0 %v6550
  %12056 = vmatmul.mubr.bf16.gmra.mxu0 %v6549
  %v12057 = vpop.f32.mrf.mxu0
  %v12058 = vadd.f32 %v6288, %v12057
  %v12059 = vpop.f32.mrf.mxu0
  %v12060 = vpop.f32.mrf.mxu0
  %v12061 = vadd.f32 %v6293, %v12060
  %v12062 = vpop.f32.mrf.mxu0
  %12063 = vmatprep.mubr.bf16.mxu0 %v6556
  %12064 = vmatmul.mubr.bf16.gmra.mxu0 %v6555
  %v12065 = vpop.f32.mrf.mxu0
  %v12066 = vadd.f32 %v6298, %v12065
  %v12067 = vpop.f32.mrf.mxu0
  %v12068 = vpop.f32.mrf.mxu0
  %v12069 = vadd.f32 %v6303, %v12068
  %v12070 = vpop.f32.mrf.mxu0
  %12071 = vmatprep.mubr.bf16.mxu0 %v6562
  %12072 = vmatmul.mubr.bf16.gmra.mxu0 %v6561
  %v12073 = vpop.f32.mrf.mxu0
  %v12074 = vadd.f32 %v6308, %v12073
  %v12075 = vpop.f32.mrf.mxu0
  %v12076 = vpop.f32.mrf.mxu0
  %v12077 = vadd.f32 %v6313, %v12076
  %v12078 = vpop.f32.mrf.mxu0
  %12079 = vmatprep.mubr.bf16.mxu0 %v6568
  %12080 = vmatmul.mubr.bf16.gmra.mxu0 %v6567
  %v12081 = vpop.f32.mrf.mxu0
  %v12082 = vadd.f32 %v6318, %v12081
  %v12083 = vpop.f32.mrf.mxu0
  %v12084 = vpop.f32.mrf.mxu0
  %v12085 = vadd.f32 %v6323, %v12084
  %v12086 = vpop.f32.mrf.mxu0
  %12087 = vmatprep.mubr.bf16.mxu0 %v6574
  %12088 = vmatmul.mubr.bf16.gmra.mxu0 %v6573
  %v12089 = vpop.f32.mrf.mxu0
  %v12090 = vadd.f32 %v6328, %v12089
  %v12091 = vpop.f32.mrf.mxu0
  %v12092 = vpop.f32.mrf.mxu0
  %v12093 = vadd.f32 %v6333, %v12092
  %v12094 = vpop.f32.mrf.mxu0
  %12095 = vmatprep.mubr.bf16.mxu0 %v6580
  %12096 = vmatmul.mubr.bf16.gmra.mxu0 %v6579
  %v12097 = vpop.f32.mrf.mxu0
  %v12098 = vadd.f32 %v6338, %v12097
  %v12099 = vpop.f32.mrf.mxu0
  %v12100 = vpop.f32.mrf.mxu0
  %v12101 = vadd.f32 %v6343, %v12100
  %v12102 = vpop.f32.mrf.mxu0
  %12103 = vdwg.mxu0
  %12104 = vmatprep.subr.bf16.mxu0 0
  %12105 = vmatpush1.bf16.msra.mxu0 %v11918
  %12106 = vmatprep.subr.bf16.mxu0 0
  %12107 = vmatpush1.bf16.msra.mxu0 %v11917
  %12108 = vmatprep.subr.bf16.mxu0 0
  %12109 = vmatpush1.bf16.msra.mxu0 %v11916
  %12110 = vmatprep.subr.bf16.mxu0 0
  %12111 = vmatpush1.bf16.msra.mxu0 %v11915
  %12112 = vmatprep.subr.bf16.mxu0 0
  %12113 = vmatpush1.bf16.msra.mxu0 %v11914
  %12114 = vmatprep.subr.bf16.mxu0 0
  %12115 = vmatpush1.bf16.msra.mxu0 %v11913
  %12116 = vmatprep.subr.bf16.mxu0 0
  %12117 = vmatpush1.bf16.msra.mxu0 %v11912
  %12118 = vmatprep.subr.bf16.mxu0 0
  %12119 = vmatpush1.bf16.msra.mxu0 %v11911
  %12120 = vmatprep.subr.bf16.mxu0 0
  %12121 = vmatpush2.bf16.msra.mxu0 %v11926
  %12122 = vmatprep.subr.bf16.mxu0 0
  %12123 = vmatpush2.bf16.msra.mxu0 %v11925
  %12124 = vmatprep.subr.bf16.mxu0 0
  %12125 = vmatpush2.bf16.msra.mxu0 %v11924
  %12126 = vmatprep.subr.bf16.mxu0 0
  %12127 = vmatpush2.bf16.msra.mxu0 %v11923
  %12128 = vmatprep.subr.bf16.mxu0 0
  %12129 = vmatpush2.bf16.msra.mxu0 %v11922
  %12130 = vmatprep.subr.bf16.mxu0 0
  %12131 = vmatpush2.bf16.msra.mxu0 %v11921
  %12132 = vmatprep.subr.bf16.mxu0 0
  %12133 = vmatpush2.bf16.msra.mxu0 %v11920
  %12134 = vmatprep.subr.bf16.mxu0 0
  %12135 = vmatpush2.bf16.msra.mxu0 %v11919
  %12136 = vmatprep.mubr.bf16.mxu0 %v6528
  %12137 = vmatmul.mubr.bf16.gmra.mxu0 %v6527
  %v12138 = vpop.f32.mrf.mxu0
  %v12139 = vadd.f32 %v12026, %v12138
  %v12140 = vpop.f32.mrf.mxu0
  %v12141 = vpop.f32.mrf.mxu0
  %v12142 = vadd.f32 %v12029, %v12141
  %v12143 = vpop.f32.mrf.mxu0
  %12144 = vmatprep.mubr.bf16.mxu0 %v6534
  %12145 = vmatmul.mubr.bf16.gmra.mxu0 %v6533
  %v12146 = vpop.f32.mrf.mxu0
  %v12147 = vadd.f32 %v12034, %v12146
  %v12148 = vpop.f32.mrf.mxu0
  %v12149 = vpop.f32.mrf.mxu0
  %v12150 = vadd.f32 %v12037, %v12149
  %v12151 = vpop.f32.mrf.mxu0
  %12152 = vmatprep.mubr.bf16.mxu0 %v6540
  %12153 = vmatmul.mubr.bf16.gmra.mxu0 %v6539
  %v12154 = vpop.f32.mrf.mxu0
  %v12155 = vadd.f32 %v12042, %v12154
  %v12156 = vpop.f32.mrf.mxu0
  %v12157 = vpop.f32.mrf.mxu0
  %v12158 = vadd.f32 %v12045, %v12157
  %v12159 = vpop.f32.mrf.mxu0
  %12160 = vmatprep.mubr.bf16.mxu0 %v6546
  %12161 = vmatmul.mubr.bf16.gmra.mxu0 %v6545
  %v12162 = vpop.f32.mrf.mxu0
  %v12163 = vadd.f32 %v12050, %v12162
  %v12164 = vpop.f32.mrf.mxu0
  %v12165 = vpop.f32.mrf.mxu0
  %v12166 = vadd.f32 %v12053, %v12165
  %v12167 = vpop.f32.mrf.mxu0
  %12168 = vmatprep.mubr.bf16.mxu0 %v6552
  %12169 = vmatmul.mubr.bf16.gmra.mxu0 %v6551
  %v12170 = vpop.f32.mrf.mxu0
  %v12171 = vadd.f32 %v12058, %v12170
  %v12172 = vpop.f32.mrf.mxu0
  %v12173 = vpop.f32.mrf.mxu0
  %v12174 = vadd.f32 %v12061, %v12173
  %v12175 = vpop.f32.mrf.mxu0
  %12176 = vmatprep.mubr.bf16.mxu0 %v6558
  %12177 = vmatmul.mubr.bf16.gmra.mxu0 %v6557
  %v12178 = vpop.f32.mrf.mxu0
  %v12179 = vadd.f32 %v12066, %v12178
  %v12180 = vpop.f32.mrf.mxu0
  %v12181 = vpop.f32.mrf.mxu0
  %v12182 = vadd.f32 %v12069, %v12181
  %v12183 = vpop.f32.mrf.mxu0
  %12184 = vmatprep.mubr.bf16.mxu0 %v6564
  %12185 = vmatmul.mubr.bf16.gmra.mxu0 %v6563
  %v12186 = vpop.f32.mrf.mxu0
  %v12187 = vadd.f32 %v12074, %v12186
  %v12188 = vpop.f32.mrf.mxu0
  %v12189 = vpop.f32.mrf.mxu0
  %v12190 = vadd.f32 %v12077, %v12189
  %v12191 = vpop.f32.mrf.mxu0
  %12192 = vmatprep.mubr.bf16.mxu0 %v6570
  %12193 = vmatmul.mubr.bf16.gmra.mxu0 %v6569
  %v12194 = vpop.f32.mrf.mxu0
  %v12195 = vadd.f32 %v12082, %v12194
  %v12196 = vpop.f32.mrf.mxu0
  %v12197 = vpop.f32.mrf.mxu0
  %v12198 = vadd.f32 %v12085, %v12197
  %v12199 = vpop.f32.mrf.mxu0
  %12200 = vmatprep.mubr.bf16.mxu0 %v6576
  %12201 = vmatmul.mubr.bf16.gmra.mxu0 %v6575
  %v12202 = vpop.f32.mrf.mxu0
  %v12203 = vadd.f32 %v12090, %v12202
  %v12204 = vpop.f32.mrf.mxu0
  %v12205 = vpop.f32.mrf.mxu0
  %v12206 = vadd.f32 %v12093, %v12205
  %v12207 = vpop.f32.mrf.mxu0
  %12208 = vmatprep.mubr.bf16.mxu0 %v6582
  %12209 = vmatmul.mubr.bf16.gmra.mxu0 %v6581
  %v12210 = vpop.f32.mrf.mxu0
  %v12211 = vadd.f32 %v12098, %v12210
  %v12212 = vpop.f32.mrf.mxu0
  %v12213 = vpop.f32.mrf.mxu0
  %v12214 = vadd.f32 %v12101, %v12213
  %v12215 = vpop.f32.mrf.mxu0
  %12216 = vdwg.mxu0
  %12217 = vmatprep.subr.bf16.mxu0 0
  %12218 = vmatpush1.bf16.msra.mxu0 %v11934
  %12219 = vmatprep.subr.bf16.mxu0 0
  %12220 = vmatpush1.bf16.msra.mxu0 %v11933
  %12221 = vmatprep.subr.bf16.mxu0 0
  %12222 = vmatpush1.bf16.msra.mxu0 %v11932
  %12223 = vmatprep.subr.bf16.mxu0 0
  %12224 = vmatpush1.bf16.msra.mxu0 %v11931
  %12225 = vmatprep.subr.bf16.mxu0 0
  %12226 = vmatpush1.bf16.msra.mxu0 %v11930
  %12227 = vmatprep.subr.bf16.mxu0 0
  %12228 = vmatpush1.bf16.msra.mxu0 %v11929
  %12229 = vmatprep.subr.bf16.mxu0 0
  %12230 = vmatpush1.bf16.msra.mxu0 %v11928
  %12231 = vmatprep.subr.bf16.mxu0 0
  %12232 = vmatpush1.bf16.msra.mxu0 %v11927
  %12233 = vmatprep.subr.bf16.mxu0 0
  %12234 = vmatpush2.bf16.msra.mxu0 %v11942
  %12235 = vmatprep.subr.bf16.mxu0 0
  %12236 = vmatpush2.bf16.msra.mxu0 %v11941
  %12237 = vmatprep.subr.bf16.mxu0 0
  %12238 = vmatpush2.bf16.msra.mxu0 %v11940
  %12239 = vmatprep.subr.bf16.mxu0 0
  %12240 = vmatpush2.bf16.msra.mxu0 %v11939
  %12241 = vmatprep.subr.bf16.mxu0 0
  %12242 = vmatpush2.bf16.msra.mxu0 %v11938
  %12243 = vmatprep.subr.bf16.mxu0 0
  %12244 = vmatpush2.bf16.msra.mxu0 %v11937
  %12245 = vmatprep.subr.bf16.mxu0 0
  %12246 = vmatpush2.bf16.msra.mxu0 %v11936
  %12247 = vmatprep.subr.bf16.mxu0 0
  %12248 = vmatpush2.bf16.msra.mxu0 %v11935
  %12249 = vmatprep.mubr.bf16.mxu0 %v6530
  %12250 = vmatmul.mubr.bf16.gmra.mxu0 %v6529
  %v12251 = vpop.f32.mrf.mxu0
  %v12252 = vadd.f32 %v12139, %v12251
  %v12253 = vpop.f32.mrf.mxu0
  %v12254 = vpop.f32.mrf.mxu0
  %v12255 = vadd.f32 %v12142, %v12254
  %v12256 = vpop.f32.mrf.mxu0
  %12257 = vmatprep.mubr.bf16.mxu0 %v6536
  %12258 = vmatmul.mubr.bf16.gmra.mxu0 %v6535
  %v12259 = vpop.f32.mrf.mxu0
  %v12260 = vadd.f32 %v12147, %v12259
  %v12261 = vpop.f32.mrf.mxu0
  %v12262 = vpop.f32.mrf.mxu0
  %v12263 = vadd.f32 %v12150, %v12262
  %v12264 = vpop.f32.mrf.mxu0
  %12265 = vmatprep.mubr.bf16.mxu0 %v6542
  %12266 = vmatmul.mubr.bf16.gmra.mxu0 %v6541
  %v12267 = vpop.f32.mrf.mxu0
  %v12268 = vadd.f32 %v12155, %v12267
  %v12269 = vpop.f32.mrf.mxu0
  %v12270 = vpop.f32.mrf.mxu0
  %v12271 = vadd.f32 %v12158, %v12270
  %v12272 = vpop.f32.mrf.mxu0
  %12273 = vmatprep.mubr.bf16.mxu0 %v6548
  %12274 = vmatmul.mubr.bf16.gmra.mxu0 %v6547
  %v12275 = vpop.f32.mrf.mxu0
  %v12276 = vadd.f32 %v12163, %v12275
  %v12277 = vpop.f32.mrf.mxu0
  %v12278 = vpop.f32.mrf.mxu0
  %v12279 = vadd.f32 %v12166, %v12278
  %v12280 = vpop.f32.mrf.mxu0
  %12281 = vmatprep.mubr.bf16.mxu0 %v6554
  %12282 = vmatmul.mubr.bf16.gmra.mxu0 %v6553
  %v12283 = vpop.f32.mrf.mxu0
  %v12284 = vadd.f32 %v12171, %v12283
  %v12285 = vpop.f32.mrf.mxu0
  %v12286 = vpop.f32.mrf.mxu0
  %v12287 = vadd.f32 %v12174, %v12286
  %v12288 = vpop.f32.mrf.mxu0
  %12289 = vmatprep.mubr.bf16.mxu0 %v6560
  %12290 = vmatmul.mubr.bf16.gmra.mxu0 %v6559
  %v12291 = vpop.f32.mrf.mxu0
  %v12292 = vadd.f32 %v12179, %v12291
  %v12293 = vpop.f32.mrf.mxu0
  %v12294 = vpop.f32.mrf.mxu0
  %v12295 = vadd.f32 %v12182, %v12294
  %v12296 = vpop.f32.mrf.mxu0
  %12297 = vmatprep.mubr.bf16.mxu0 %v6566
  %12298 = vmatmul.mubr.bf16.gmra.mxu0 %v6565
  %v12299 = vpop.f32.mrf.mxu0
  %v12300 = vadd.f32 %v12187, %v12299
  %v12301 = vpop.f32.mrf.mxu0
  %v12302 = vpop.f32.mrf.mxu0
  %v12303 = vadd.f32 %v12190, %v12302
  %v12304 = vpop.f32.mrf.mxu0
  %12305 = vmatprep.mubr.bf16.mxu0 %v6572
  %12306 = vmatmul.mubr.bf16.gmra.mxu0 %v6571
  %v12307 = vpop.f32.mrf.mxu0
  %v12308 = vadd.f32 %v12195, %v12307
  %v12309 = vpop.f32.mrf.mxu0
  %v12310 = vpop.f32.mrf.mxu0
  %v12311 = vadd.f32 %v12198, %v12310
  %v12312 = vpop.f32.mrf.mxu0
  %12313 = vmatprep.mubr.bf16.mxu0 %v6578
  %12314 = vmatmul.mubr.bf16.gmra.mxu0 %v6577
  %v12315 = vpop.f32.mrf.mxu0
  %v12316 = vadd.f32 %v12203, %v12315
  %v12317 = vpop.f32.mrf.mxu0
  %v12318 = vpop.f32.mrf.mxu0
  %v12319 = vadd.f32 %v12206, %v12318
  %v12320 = vpop.f32.mrf.mxu0
  %12321 = vmatprep.mubr.bf16.mxu0 %v6584
  %12322 = vmatmul.mubr.bf16.gmra.mxu0 %v6583
  %v12323 = vpop.f32.mrf.mxu0
  %v12324 = vadd.f32 %v12211, %v12323
  %v12325 = vpop.f32.mrf.mxu0
  %v12326 = vpop.f32.mrf.mxu0
  %v12327 = vadd.f32 %v12214, %v12326
  %v12328 = vpop.f32.mrf.mxu0
  %12329 = vdwg.mxu0
  %v12330 = vmax.f32 %v12252, 0.0
  %v12331 = vmax.f32 %v12255, 0.0
  %v12332 = vmax.f32 %v12260, 0.0
  %v12333 = vmax.f32 %v12263, 0.0
  %v12334 = vmax.f32 %v12268, 0.0
  %v12335 = vmax.f32 %v12271, 0.0
  %v12336 = vmax.f32 %v12276, 0.0
  %v12337 = vmax.f32 %v12279, 0.0
  %v12338 = vmax.f32 %v12284, 0.0
  %v12339 = vmax.f32 %v12287, 0.0
  %v12340 = vmax.f32 %v12292, 0.0
  %v12341 = vmax.f32 %v12295, 0.0
  %v12342 = vmax.f32 %v12300, 0.0
  %v12343 = vmax.f32 %v12303, 0.0
  %v12344 = vmax.f32 %v12308, 0.0
  %v12345 = vmax.f32 %v12311, 0.0
  %v12346 = vmax.f32 %v12316, 0.0
  %v12347 = vmax.f32 %v12319, 0.0
  %v12348 = vmax.f32 %v12324, 0.0
  %v12349 = vmax.f32 %v12327, 0.0
  %v12350 = vpack.c.bf16 %v12331, %v12330
  %v12351 = vpack.c.bf16 %v12333, %v12332
  %v12352 = vpack.c.bf16 %v12335, %v12334
  %v12353 = vpack.c.bf16 %v12337, %v12336
  %v12354 = vpack.c.bf16 %v12339, %v12338
  %v12355 = vpack.c.bf16 %v12341, %v12340
  %v12356 = vpack.c.bf16 %v12343, %v12342
  %v12357 = vpack.c.bf16 %v12345, %v12344
  %v12358 = vpack.c.bf16 %v12347, %v12346
  %v12359 = vpack.c.bf16 %v12349, %v12348
  %v12370 = vunpack.c.l.b16 %v12350
  %v12371 = vunpack.c.h.b16 %v12350
  %v12372 = vunpack.c.l.b16 %v12351
  %v12373 = vunpack.c.h.b16 %v12351
  %v12374 = vunpack.c.l.b16 %v12352
  %v12375 = vunpack.c.h.b16 %v12352
  %v12376 = vunpack.c.l.b16 %v12353
  %v12377 = vunpack.c.h.b16 %v12353
  %v12378 = vunpack.c.l.b16 %v12354
  %v12379 = vunpack.c.h.b16 %v12354
  %v12380 = vunpack.c.l.b16 %v12355
  %v12381 = vunpack.c.h.b16 %v12355
  %v12382 = vunpack.c.l.b16 %v12356
  %v12383 = vunpack.c.h.b16 %v12356
  %v12384 = vunpack.c.l.b16 %v12357
  %v12385 = vunpack.c.h.b16 %v12357
  %v12386 = vunpack.c.l.b16 %v12358
  %v12387 = vunpack.c.h.b16 %v12358
  %v12388 = vunpack.c.l.b16 %v12359
  %v12389 = vunpack.c.h.b16 %v12359
  %v12390 = vpack.c.b16 %v12370, %v12370
  %v12391 = vpack.c.b16 %v12371, %v12371
  %v12392 = vpack.c.b16 %v12372, %v12372
  %v12393 = vpack.c.b16 %v12373, %v12373
  %v12394 = vpack.c.b16 %v12374, %v12374
  %v12395 = vpack.c.b16 %v12375, %v12375
  %v12396 = vpack.c.b16 %v12376, %v12376
  %v12397 = vpack.c.b16 %v12377, %v12377
  %v12398 = vpack.c.b16 %v12378, %v12378
  %v12399 = vpack.c.b16 %v12379, %v12379
  %v12400 = vpack.c.b16 %v12380, %v12380
  %v12401 = vpack.c.b16 %v12381, %v12381
  %v12402 = vpack.c.b16 %v12382, %v12382
  %v12403 = vpack.c.b16 %v12383, %v12383
  %v12404 = vpack.c.b16 %v12384, %v12384
  %v12405 = vpack.c.b16 %v12385, %v12385
  %v12406 = vpack.c.b16 %v12386, %v12386
  %v12407 = vpack.c.b16 %v12387, %v12387
  %v12408 = vpack.c.b16 %v12388, %v12388
  %v12409 = vpack.c.b16 %v12389, %v12389
  %12430 = vst [vmem:[#allocation3 + $0x230] sm:$0xf] %v12390
  %12431 = vst [vmem:[#allocation3 + $0x234] sm:$0xf] %v12391
  %12432 = vst [vmem:[#allocation3 + $0x238] sm:$0xf] %v12392
  %12433 = vst [vmem:[#allocation3 + $0x23c] sm:$0xf] %v12393
  %12434 = vst [vmem:[#allocation3 + $0x240] sm:$0xf] %v12394
  %12435 = vst [vmem:[#allocation3 + $0x244] sm:$0xf] %v12395
  %12436 = vst [vmem:[#allocation3 + $0x248] sm:$0xf] %v12396
  %12437 = vst [vmem:[#allocation3 + $0x24c] sm:$0xf] %v12397
  %12438 = vst [vmem:[#allocation3 + $0x250] sm:$0xf] %v12398
  %12439 = vst [vmem:[#allocation3 + $0x254] sm:$0xf] %v12399
  %12440 = vst [vmem:[#allocation3 + $0x258] sm:$0xf] %v12400
  %12441 = vst [vmem:[#allocation3 + $0x25c] sm:$0xf] %v12401
  %12442 = vst [vmem:[#allocation3 + $0x260] sm:$0xf] %v12402
  %12443 = vst [vmem:[#allocation3 + $0x264] sm:$0xf] %v12403
  %12444 = vst [vmem:[#allocation3 + $0x268] sm:$0xf] %v12404
  %12445 = vst [vmem:[#allocation3 + $0x26c] sm:$0xf] %v12405
  %12446 = vst [vmem:[#allocation3 + $0x270] sm:$0xf] %v12406
  %12447 = vst [vmem:[#allocation3 + $0x274] sm:$0xf] %v12407
  %12448 = vst [vmem:[#allocation3 + $0x278] sm:$0xf] %v12408
  %12449 = vst [vmem:[#allocation3 + $0x27c] sm:$0xf] %v12409
  %v12450 = vld [vmem:[%s5] sm:$0xff]
  %v12451 = vld [vmem:[%s5 + $0x8] sm:$0xff]
  %v12452 = vld [vmem:[%s5 + $0x10] sm:$0xff]
  %v12453 = vld [vmem:[%s5 + $0x18] sm:$0xff]
  %v12454 = vld [vmem:[%s5 + $0x20] sm:$0xff]
  %v12455 = vld [vmem:[%s5 + $0x28] sm:$0xff]
  %v12456 = vld [vmem:[%s5 + $0x30] sm:$0xff]
  %v12457 = vld [vmem:[%s5 + $0x38] sm:$0xff]
  %v12458 = vld [vmem:[%s5 + $0x40] sm:$0xff]
  %v12459 = vld [vmem:[%s5 + $0x48] sm:$0xff]
  %v12460 = vld [vmem:[%s6] sm:$0xff]
  %v12461 = vld [vmem:[%s6 + $0x8] sm:$0xff]
  %v12462 = vld [vmem:[%s6 + $0x10] sm:$0xff]
  %v12463 = vld [vmem:[%s6 + $0x18] sm:$0xff]
  %v12464 = vld [vmem:[%s6 + $0x20] sm:$0xff]
  %v12465 = vld [vmem:[#allocation3] sm:$0xf]
  %v12466 = vld [vmem:[#allocation3 + $0x4] sm:$0xf]
  %v12467 = vld [vmem:[#allocation3 + $0x8] sm:$0xf]
  %v12468 = vld [vmem:[#allocation3 + $0xc] sm:$0xf]
  %v12469 = vld [vmem:[#allocation3 + $0x10] sm:$0xf]
  %v12470 = vld [vmem:[#allocation3 + $0x14] sm:$0xf]
  %v12471 = vld [vmem:[#allocation3 + $0x18] sm:$0xf]
  %v12472 = vld [vmem:[#allocation3 + $0x1c] sm:$0xf]
  %v12473 = vld [vmem:[#allocation3 + $0x20] sm:$0xf]
  %v12474 = vld [vmem:[#allocation3 + $0x24] sm:$0xf]
  %v12475 = vld [vmem:[#allocation3 + $0x28] sm:$0xf]
  %v12476 = vld [vmem:[#allocation3 + $0x2c] sm:$0xf]
  %v12477 = vld [vmem:[#allocation3 + $0x30] sm:$0xf]
  %v12478 = vld [vmem:[#allocation3 + $0x34] sm:$0xf]
  %v12479 = vld [vmem:[#allocation3 + $0x38] sm:$0xf]
  %v12480 = vld [vmem:[#allocation3 + $0x3c] sm:$0xf]
  %v12481 = vld [vmem:[#allocation3 + $0x40] sm:$0xf]
  %v12482 = vld [vmem:[#allocation3 + $0x44] sm:$0xf]
  %v12483 = vld [vmem:[#allocation3 + $0x48] sm:$0xf]
  %v12484 = vld [vmem:[#allocation3 + $0x4c] sm:$0xf]
  %v12485 = vld [vmem:[#allocation3 + $0x50] sm:$0xf]
  %v12486 = vld [vmem:[#allocation3 + $0x54] sm:$0xf]
  %v12487 = vld [vmem:[#allocation3 + $0x58] sm:$0xf]
  %v12488 = vld [vmem:[#allocation3 + $0x5c] sm:$0xf]
  %v12489 = vld [vmem:[#allocation3 + $0x60] sm:$0xf]
  %v12490 = vld [vmem:[#allocation3 + $0x64] sm:$0xf]
  %v12491 = vld [vmem:[#allocation3 + $0x68] sm:$0xf]
  %v12492 = vld [vmem:[#allocation3 + $0x6c] sm:$0xf]
  %v12493 = vld [vmem:[#allocation3 + $0x70] sm:$0xf]
  %v12494 = vld [vmem:[#allocation3 + $0x74] sm:$0xf]
  %v12495 = vld [vmem:[#allocation3 + $0x78] sm:$0xf]
  %v12496 = vld [vmem:[#allocation3 + $0x7c] sm:$0xf]
  %v12497 = vld [vmem:[#allocation3 + $0x80] sm:$0xf]
  %v12498 = vld [vmem:[#allocation3 + $0x84] sm:$0xf]
  %v12499 = vld [vmem:[#allocation3 + $0x88] sm:$0xf]
  %v12500 = vld [vmem:[#allocation3 + $0x8c] sm:$0xf]
  %v12501 = vld [vmem:[#allocation3 + $0x90] sm:$0xf]
  %v12502 = vld [vmem:[#allocation3 + $0x94] sm:$0xf]
  %v12503 = vld [vmem:[#allocation3 + $0x98] sm:$0xf]
  %v12504 = vld [vmem:[#allocation3 + $0x9c] sm:$0xf]
  %v12505 = vld [vmem:[#allocation3 + $0xa0] sm:$0xf]
  %v12506 = vld [vmem:[#allocation3 + $0xa4] sm:$0xf]
  %v12507 = vld [vmem:[#allocation3 + $0xa8] sm:$0xf]
  %v12508 = vld [vmem:[#allocation3 + $0xac] sm:$0xf]
  %v12509 = vld [vmem:[#allocation3 + $0xb0] sm:$0xf]
  %v12510 = vld [vmem:[#allocation3 + $0xb4] sm:$0xf]
  %v12511 = vld [vmem:[#allocation3 + $0xb8] sm:$0xf]
  %v12512 = vld [vmem:[#allocation3 + $0xbc] sm:$0xf]
  %v12513 = vld [vmem:[#allocation3 + $0xc0] sm:$0xf]
  %v12514 = vld [vmem:[#allocation3 + $0xc4] sm:$0xf]
  %v12515 = vld [vmem:[#allocation3 + $0xc8] sm:$0xf]
  %v12516 = vld [vmem:[#allocation3 + $0xcc] sm:$0xf]
  %v12517 = vld [vmem:[#allocation3 + $0xd0] sm:$0xf]
  %v12518 = vld [vmem:[#allocation3 + $0xd4] sm:$0xf]
  %v12519 = vld [vmem:[#allocation3 + $0xd8] sm:$0xf]
  %v12520 = vld [vmem:[#allocation3 + $0xdc] sm:$0xf]
  %v12521 = vld [vmem:[#allocation3 + $0xe0] sm:$0xf]
  %v12522 = vld [vmem:[#allocation3 + $0xe4] sm:$0xf]
  %v12523 = vld [vmem:[#allocation3 + $0xe8] sm:$0xf]
  %v12524 = vld [vmem:[#allocation3 + $0xec] sm:$0xf]
  %12526 = vset.pattern.permute.xlu0 0
  %12527 = vperm.xlu0 %12526, %v12460
  %v12528 = vpop.permute.xlu0 %12527
  %12531 = vset.pattern.permute.xlu0 0
  %12532 = vperm.xlu0 %12531, %v12461
  %v12533 = vpop.permute.xlu0 %12532
  %12536 = vset.pattern.permute.xlu0 0
  %12537 = vperm.xlu0 %12536, %v12462
  %v12538 = vpop.permute.xlu0 %12537
  %12541 = vset.pattern.permute.xlu0 0
  %12542 = vperm.xlu0 %12541, %v12463
  %v12543 = vpop.permute.xlu0 %12542
  %12546 = vset.pattern.permute.xlu0 0
  %12547 = vperm.xlu0 %12546, %v12464
  %v12548 = vpop.permute.xlu0 %12547
  %v12560 = vunpack.c.l.b16 %v12450
  %v12561 = vunpack.c.h.b16 %v12450
  %v12562 = vunpack.c.l.b16 %v12451
  %v12563 = vunpack.c.h.b16 %v12451
  %v12564 = vunpack.c.l.b16 %v12452
  %v12565 = vunpack.c.h.b16 %v12452
  %v12566 = vunpack.c.l.b16 %v12453
  %v12567 = vunpack.c.h.b16 %v12453
  %v12568 = vunpack.c.l.b16 %v12454
  %v12569 = vunpack.c.h.b16 %v12454
  %v12570 = vunpack.c.l.b16 %v12455
  %v12571 = vunpack.c.h.b16 %v12455
  %v12572 = vunpack.c.l.b16 %v12456
  %v12573 = vunpack.c.h.b16 %v12456
  %v12574 = vunpack.c.l.b16 %v12457
  %v12575 = vunpack.c.h.b16 %v12457
  %v12576 = vunpack.c.l.b16 %v12458
  %v12577 = vunpack.c.h.b16 %v12458
  %v12578 = vunpack.c.l.b16 %v12459
  %v12579 = vunpack.c.h.b16 %v12459
  %v12580 = vpack.c.b16 %v12564, %v12560
  %v12581 = vpack.c.b16 %v12565, %v12561
  %v12582 = vpack.c.b16 %v12566, %v12562
  %v12583 = vpack.c.b16 %v12567, %v12563
  %v12584 = vpack.c.b16 %v12572, %v12568
  %v12585 = vpack.c.b16 %v12573, %v12569
  %v12586 = vpack.c.b16 %v12574, %v12570
  %v12587 = vpack.c.b16 %v12575, %v12571
  %v12588 = vpack.c.b16 %v12576, %v12576
  %v12589 = vpack.c.b16 %v12577, %v12577
  %v12590 = vpack.c.b16 %v12578, %v12578
  %v12591 = vpack.c.b16 %v12579, %v12579
  %v12661 = vunpack.c.l.b16 %v12465
  %v12662 = vunpack.c.l.b16 %v12466
  %v12663 = vunpack.c.l.b16 %v12467
  %v12664 = vunpack.c.l.b16 %v12468
  %v12665 = vunpack.c.l.b16 %v12469
  %v12666 = vunpack.c.l.b16 %v12470
  %v12667 = vunpack.c.l.b16 %v12471
  %v12668 = vunpack.c.l.b16 %v12472
  %v12669 = vunpack.c.l.b16 %v12473
  %v12670 = vunpack.c.l.b16 %v12474
  %v12671 = vunpack.c.l.b16 %v12475
  %v12672 = vunpack.c.l.b16 %v12476
  %v12673 = vunpack.c.l.b16 %v12477
  %v12674 = vunpack.c.l.b16 %v12478
  %v12675 = vunpack.c.l.b16 %v12479
  %v12676 = vunpack.c.l.b16 %v12480
  %v12677 = vunpack.c.l.b16 %v12481
  %v12678 = vunpack.c.l.b16 %v12482
  %v12679 = vunpack.c.l.b16 %v12483
  %v12680 = vunpack.c.l.b16 %v12484
  %v12681 = vunpack.c.l.b16 %v12485
  %v12682 = vunpack.c.l.b16 %v12486
  %v12683 = vunpack.c.l.b16 %v12487
  %v12684 = vunpack.c.l.b16 %v12488
  %v12685 = vunpack.c.l.b16 %v12489
  %v12686 = vunpack.c.l.b16 %v12490
  %v12687 = vunpack.c.l.b16 %v12491
  %v12688 = vunpack.c.l.b16 %v12492
  %v12689 = vunpack.c.l.b16 %v12493
  %v12690 = vunpack.c.l.b16 %v12494
  %v12691 = vunpack.c.l.b16 %v12495
  %v12692 = vunpack.c.l.b16 %v12496
  %v12693 = vunpack.c.l.b16 %v12497
  %v12694 = vunpack.c.l.b16 %v12498
  %v12695 = vunpack.c.l.b16 %v12499
  %v12696 = vunpack.c.l.b16 %v12500
  %v12697 = vunpack.c.l.b16 %v12501
  %v12698 = vunpack.c.l.b16 %v12502
  %v12699 = vunpack.c.l.b16 %v12503
  %v12700 = vunpack.c.l.b16 %v12504
  %v12701 = vunpack.c.l.b16 %v12505
  %v12702 = vunpack.c.l.b16 %v12506
  %v12703 = vunpack.c.l.b16 %v12507
  %v12704 = vunpack.c.l.b16 %v12508
  %v12705 = vunpack.c.l.b16 %v12509
  %v12706 = vunpack.c.l.b16 %v12510
  %v12707 = vunpack.c.l.b16 %v12511
  %v12708 = vunpack.c.l.b16 %v12512
  %v12709 = vunpack.c.l.b16 %v12513
  %v12710 = vunpack.c.l.b16 %v12514
  %v12711 = vunpack.c.l.b16 %v12515
  %v12712 = vunpack.c.l.b16 %v12516
  %v12713 = vunpack.c.l.b16 %v12517
  %v12714 = vunpack.c.l.b16 %v12518
  %v12715 = vunpack.c.l.b16 %v12519
  %v12716 = vunpack.c.l.b16 %v12520
  %v12717 = vunpack.c.l.b16 %v12521
  %v12718 = vunpack.c.l.b16 %v12522
  %v12719 = vunpack.c.l.b16 %v12523
  %v12720 = vunpack.c.l.b16 %v12524
  %v12721 = vpack.c.b16 %v12662, %v12661
  %v12722 = vpack.c.b16 %v12664, %v12663
  %v12723 = vpack.c.b16 %v12666, %v12665
  %v12724 = vpack.c.b16 %v12668, %v12667
  %v12725 = vpack.c.b16 %v12670, %v12669
  %v12726 = vpack.c.b16 %v12672, %v12671
  %v12727 = vpack.c.b16 %v12674, %v12673
  %v12728 = vpack.c.b16 %v12676, %v12675
  %v12729 = vpack.c.b16 %v12678, %v12677
  %v12730 = vpack.c.b16 %v12680, %v12679
  %v12731 = vpack.c.b16 %v12682, %v12681
  %v12732 = vpack.c.b16 %v12684, %v12683
  %v12733 = vpack.c.b16 %v12686, %v12685
  %v12734 = vpack.c.b16 %v12688, %v12687
  %v12735 = vpack.c.b16 %v12690, %v12689
  %v12736 = vpack.c.b16 %v12692, %v12691
  %v12737 = vpack.c.b16 %v12694, %v12693
  %v12738 = vpack.c.b16 %v12696, %v12695
  %v12739 = vpack.c.b16 %v12698, %v12697
  %v12740 = vpack.c.b16 %v12700, %v12699
  %v12741 = vpack.c.b16 %v12702, %v12701
  %v12742 = vpack.c.b16 %v12704, %v12703
  %v12743 = vpack.c.b16 %v12706, %v12705
  %v12744 = vpack.c.b16 %v12708, %v12707
  %v12745 = vpack.c.b16 %v12710, %v12709
  %v12746 = vpack.c.b16 %v12712, %v12711
  %v12747 = vpack.c.b16 %v12714, %v12713
  %v12748 = vpack.c.b16 %v12716, %v12715
  %v12749 = vpack.c.b16 %v12718, %v12717
  %v12750 = vpack.c.b16 %v12720, %v12719
  %v12782 = vsel %vm414, %v12583, 0
  %v12785 = vsel %vm414, %v12587, 0
  %v12788 = vsel %vm414, %v12591, 0
  %12790 = vmatprep.subr.bf16.mxu0 0
  %12791 = vmatpush1.bf16.msra.mxu0 %v12728
  %12792 = vmatprep.subr.bf16.mxu0 0
  %12793 = vmatpush1.bf16.msra.mxu0 %v12727
  %12794 = vmatprep.subr.bf16.mxu0 0
  %12795 = vmatpush1.bf16.msra.mxu0 %v12726
  %12796 = vmatprep.subr.bf16.mxu0 0
  %12797 = vmatpush1.bf16.msra.mxu0 %v12725
  %12798 = vmatprep.subr.bf16.mxu0 0
  %12799 = vmatpush1.bf16.msra.mxu0 %v12724
  %12800 = vmatprep.subr.bf16.mxu0 0
  %12801 = vmatpush1.bf16.msra.mxu0 %v12723
  %12802 = vmatprep.subr.bf16.mxu0 0
  %12803 = vmatpush1.bf16.msra.mxu0 %v12722
  %12804 = vmatprep.subr.bf16.mxu0 0
  %12805 = vmatpush1.bf16.msra.mxu0 %v12721
  %12806 = vmatprep.subr.bf16.mxu0 0
  %12807 = vmatpush2.bf16.msra.mxu0 %v12736
  %12808 = vmatprep.subr.bf16.mxu0 0
  %12809 = vmatpush2.bf16.msra.mxu0 %v12735
  %12810 = vmatprep.subr.bf16.mxu0 0
  %12811 = vmatpush2.bf16.msra.mxu0 %v12734
  %12812 = vmatprep.subr.bf16.mxu0 0
  %12813 = vmatpush2.bf16.msra.mxu0 %v12733
  %12814 = vmatprep.subr.bf16.mxu0 0
  %12815 = vmatpush2.bf16.msra.mxu0 %v12732
  %12816 = vmatprep.subr.bf16.mxu0 0
  %12817 = vmatpush2.bf16.msra.mxu0 %v12731
  %12818 = vmatprep.subr.bf16.mxu0 0
  %12819 = vmatpush2.bf16.msra.mxu0 %v12730
  %12820 = vmatprep.subr.bf16.mxu0 0
  %12821 = vmatpush2.bf16.msra.mxu0 %v12729
  %12822 = vmatprep.mubr.bf16.mxu0 %v12581
  %12823 = vmatmul.mubr.bf16.gmra.mxu0 %v12580
  %v12824 = vpop.f32.mrf.mxu0
  %v12825 = vadd.f32 %v12528, %v12824
  %v12826 = vpop.f32.mrf.mxu0
  %v12827 = vpop.f32.mrf.mxu0
  %v12828 = vadd.f32 %v12533, %v12827
  %v12829 = vpop.f32.mrf.mxu0
  %12830 = vmatprep.mubr.bf16.mxu0 %v12585
  %12831 = vmatmul.mubr.bf16.gmra.mxu0 %v12584
  %v12832 = vpop.f32.mrf.mxu0
  %v12833 = vadd.f32 %v12538, %v12832
  %v12834 = vpop.f32.mrf.mxu0
  %v12835 = vpop.f32.mrf.mxu0
  %v12836 = vadd.f32 %v12543, %v12835
  %v12837 = vpop.f32.mrf.mxu0
  %12838 = vmatprep.mubr.bf16.mxu0 %v12589
  %12839 = vmatmul.mubr.bf16.gmra.mxu0 %v12588
  %v12840 = vpop.f32.mrf.mxu0
  %v12841 = vadd.f32 %v12548, %v12840
  %v12842 = vpop.f32.mrf.mxu0
  %v12843 = vpop.f32.mrf.mxu0
  %v12844 = vpop.f32.mrf.mxu0
  %12845 = vdwg.mxu0
  %12846 = vmatprep.subr.bf16.mxu0 0
  %12847 = vmatpush1.bf16.msra.mxu0 %v12744
  %12848 = vmatprep.subr.bf16.mxu0 0
  %12849 = vmatpush1.bf16.msra.mxu0 %v12743
  %12850 = vmatprep.subr.bf16.mxu0 0
  %12851 = vmatpush1.bf16.msra.mxu0 %v12742
  %12852 = vmatprep.subr.bf16.mxu0 0
  %12853 = vmatpush1.bf16.msra.mxu0 %v12741
  %12854 = vmatprep.subr.bf16.mxu0 0
  %12855 = vmatpush1.bf16.msra.mxu0 %v12740
  %12856 = vmatprep.subr.bf16.mxu0 0
  %12857 = vmatpush1.bf16.msra.mxu0 %v12739
  %12858 = vmatprep.subr.bf16.mxu0 0
  %12859 = vmatpush1.bf16.msra.mxu0 %v12738
  %12860 = vmatprep.subr.bf16.mxu0 0
  %12861 = vmatpush1.bf16.msra.mxu0 %v12737
  %12862 = vmatprep.subr.bf16.mxu0 0
  %12863 = vmatpush2.bf16.msra.mxu0 0
  %12864 = vmatprep.subr.bf16.mxu0 0
  %12865 = vmatpush2.bf16.msra.mxu0 0
  %12866 = vmatprep.subr.bf16.mxu0 0
  %12867 = vmatpush2.bf16.msra.mxu0 %v12750
  %12868 = vmatprep.subr.bf16.mxu0 0
  %12869 = vmatpush2.bf16.msra.mxu0 %v12749
  %12870 = vmatprep.subr.bf16.mxu0 0
  %12871 = vmatpush2.bf16.msra.mxu0 %v12748
  %12872 = vmatprep.subr.bf16.mxu0 0
  %12873 = vmatpush2.bf16.msra.mxu0 %v12747
  %12874 = vmatprep.subr.bf16.mxu0 0
  %12875 = vmatpush2.bf16.msra.mxu0 %v12746
  %12876 = vmatprep.subr.bf16.mxu0 0
  %12877 = vmatpush2.bf16.msra.mxu0 %v12745
  %12878 = vmatprep.mubr.bf16.mxu0 %v12782
  %12879 = vmatmul.mubr.bf16.gmra.mxu0 %v12582
  %v12880 = vpop.f32.mrf.mxu0
  %v12881 = vadd.f32 %v12825, %v12880
  %v12882 = vpop.f32.mrf.mxu0
  %v12883 = vpop.f32.mrf.mxu0
  %v12884 = vadd.f32 %v12828, %v12883
  %v12885 = vpop.f32.mrf.mxu0
  %12886 = vmatprep.mubr.bf16.mxu0 %v12785
  %12887 = vmatmul.mubr.bf16.gmra.mxu0 %v12586
  %v12888 = vpop.f32.mrf.mxu0
  %v12889 = vadd.f32 %v12833, %v12888
  %v12890 = vpop.f32.mrf.mxu0
  %v12891 = vpop.f32.mrf.mxu0
  %v12892 = vadd.f32 %v12836, %v12891
  %v12893 = vpop.f32.mrf.mxu0
  %12894 = vmatprep.mubr.bf16.mxu0 %v12788
  %12895 = vmatmul.mubr.bf16.gmra.mxu0 %v12590
  %v12896 = vpop.f32.mrf.mxu0
  %v12897 = vadd.f32 %v12841, %v12896
  %v12898 = vpop.f32.mrf.mxu0
  %v12899 = vpop.f32.mrf.mxu0
  %v12900 = vpop.f32.mrf.mxu0
  %12901 = vdwg.mxu0
  %v12902 = vmax.f32 %v12881, 0.0
  %v12903 = vmax.f32 %v12884, 0.0
  %v12904 = vmax.f32 %v12889, 0.0
  %v12905 = vmax.f32 %v12892, 0.0
  %v12906 = vmax.f32 %v12897, 0.0
  %v12907 = vld [vmem:[#allocation3 + $0xa0] sm:$0xf]
  %v12908 = vld [vmem:[#allocation3 + $0xa4] sm:$0xf]
  %v12909 = vld [vmem:[#allocation3 + $0xa8] sm:$0xf]
  %v12910 = vld [vmem:[#allocation3 + $0xac] sm:$0xf]
  %v12911 = vld [vmem:[#allocation3 + $0xb0] sm:$0xf]
  %v12912 = vld [vmem:[#allocation3 + $0xb4] sm:$0xf]
  %v12913 = vld [vmem:[#allocation3 + $0xb8] sm:$0xf]
  %v12914 = vld [vmem:[#allocation3 + $0xbc] sm:$0xf]
  %v12915 = vld [vmem:[#allocation3 + $0xc0] sm:$0xf]
  %v12916 = vld [vmem:[#allocation3 + $0xc4] sm:$0xf]
  %v12917 = vld [vmem:[#allocation3 + $0xc8] sm:$0xf]
  %v12918 = vld [vmem:[#allocation3 + $0xcc] sm:$0xf]
  %v12919 = vld [vmem:[#allocation3 + $0xd0] sm:$0xf]
  %v12920 = vld [vmem:[#allocation3 + $0xd4] sm:$0xf]
  %v12921 = vld [vmem:[#allocation3 + $0xd8] sm:$0xf]
  %v12922 = vld [vmem:[#allocation3 + $0xdc] sm:$0xf]
  %v12923 = vld [vmem:[#allocation3 + $0xe0] sm:$0xf]
  %v12924 = vld [vmem:[#allocation3 + $0xe4] sm:$0xf]
  %v12925 = vld [vmem:[#allocation3 + $0xe8] sm:$0xf]
  %v12926 = vld [vmem:[#allocation3 + $0xec] sm:$0xf]
  %v12927 = vld [vmem:[#allocation3 + $0xf0] sm:$0xf]
  %v12928 = vld [vmem:[#allocation3 + $0xf4] sm:$0xf]
  %v12929 = vld [vmem:[#allocation3 + $0xf8] sm:$0xf]
  %v12930 = vld [vmem:[#allocation3 + $0xfc] sm:$0xf]
  %v12931 = vld [vmem:[#allocation3 + $0x100] sm:$0xf]
  %v12932 = vld [vmem:[#allocation3 + $0x104] sm:$0xf]
  %v12933 = vld [vmem:[#allocation3 + $0x108] sm:$0xf]
  %v12934 = vld [vmem:[#allocation3 + $0x10c] sm:$0xf]
  %v12935 = vld [vmem:[#allocation3 + $0x110] sm:$0xf]
  %v12936 = vld [vmem:[#allocation3 + $0x114] sm:$0xf]
  %v12937 = vld [vmem:[#allocation3 + $0x118] sm:$0xf]
  %v12938 = vld [vmem:[#allocation3 + $0x11c] sm:$0xf]
  %v12939 = vld [vmem:[#allocation3 + $0x120] sm:$0xf]
  %v12940 = vld [vmem:[#allocation3 + $0x124] sm:$0xf]
  %v12941 = vld [vmem:[#allocation3 + $0x128] sm:$0xf]
  %v12942 = vld [vmem:[#allocation3 + $0x12c] sm:$0xf]
  %v12943 = vld [vmem:[#allocation3 + $0x130] sm:$0xf]
  %v12944 = vld [vmem:[#allocation3 + $0x134] sm:$0xf]
  %v12945 = vld [vmem:[#allocation3 + $0x138] sm:$0xf]
  %v12946 = vld [vmem:[#allocation3 + $0x13c] sm:$0xf]
  %v12947 = vld [vmem:[#allocation3 + $0x140] sm:$0xf]
  %v12948 = vld [vmem:[#allocation3 + $0x144] sm:$0xf]
  %v12949 = vld [vmem:[#allocation3 + $0x148] sm:$0xf]
  %v12950 = vld [vmem:[#allocation3 + $0x14c] sm:$0xf]
  %v12951 = vld [vmem:[#allocation3 + $0x150] sm:$0xf]
  %v12952 = vld [vmem:[#allocation3 + $0x154] sm:$0xf]
  %v12953 = vld [vmem:[#allocation3 + $0x158] sm:$0xf]
  %v12954 = vld [vmem:[#allocation3 + $0x15c] sm:$0xf]
  %v12955 = vld [vmem:[#allocation3 + $0x160] sm:$0xf]
  %v12956 = vld [vmem:[#allocation3 + $0x164] sm:$0xf]
  %v12957 = vld [vmem:[#allocation3 + $0x168] sm:$0xf]
  %v12958 = vld [vmem:[#allocation3 + $0x16c] sm:$0xf]
  %v12959 = vld [vmem:[#allocation3 + $0x170] sm:$0xf]
  %v12960 = vld [vmem:[#allocation3 + $0x174] sm:$0xf]
  %v12961 = vld [vmem:[#allocation3 + $0x178] sm:$0xf]
  %v12962 = vld [vmem:[#allocation3 + $0x17c] sm:$0xf]
  %v12963 = vld [vmem:[#allocation3 + $0x180] sm:$0xf]
  %v12964 = vld [vmem:[#allocation3 + $0x184] sm:$0xf]
  %v12965 = vld [vmem:[#allocation3 + $0x188] sm:$0xf]
  %v12966 = vld [vmem:[#allocation3 + $0x18c] sm:$0xf]
  %v13027 = vunpack.c.l.b16 %v12907
  %v13028 = vunpack.c.l.b16 %v12908
  %v13029 = vunpack.c.l.b16 %v12909
  %v13030 = vunpack.c.l.b16 %v12910
  %v13031 = vunpack.c.l.b16 %v12911
  %v13032 = vunpack.c.l.b16 %v12912
  %v13033 = vunpack.c.l.b16 %v12913
  %v13034 = vunpack.c.l.b16 %v12914
  %v13035 = vunpack.c.l.b16 %v12915
  %v13036 = vunpack.c.l.b16 %v12916
  %v13037 = vunpack.c.l.b16 %v12917
  %v13038 = vunpack.c.l.b16 %v12918
  %v13039 = vunpack.c.l.b16 %v12919
  %v13040 = vunpack.c.l.b16 %v12920
  %v13041 = vunpack.c.l.b16 %v12921
  %v13042 = vunpack.c.l.b16 %v12922
  %v13043 = vunpack.c.l.b16 %v12923
  %v13044 = vunpack.c.l.b16 %v12924
  %v13045 = vunpack.c.l.b16 %v12925
  %v13046 = vunpack.c.l.b16 %v12926
  %v13047 = vunpack.c.l.b16 %v12927
  %v13048 = vunpack.c.l.b16 %v12928
  %v13049 = vunpack.c.l.b16 %v12929
  %v13050 = vunpack.c.l.b16 %v12930
  %v13051 = vunpack.c.l.b16 %v12931
  %v13052 = vunpack.c.l.b16 %v12932
  %v13053 = vunpack.c.l.b16 %v12933
  %v13054 = vunpack.c.l.b16 %v12934
  %v13055 = vunpack.c.l.b16 %v12935
  %v13056 = vunpack.c.l.b16 %v12936
  %v13057 = vunpack.c.l.b16 %v12937
  %v13058 = vunpack.c.l.b16 %v12938
  %v13059 = vunpack.c.l.b16 %v12939
  %v13060 = vunpack.c.l.b16 %v12940
  %v13061 = vunpack.c.l.b16 %v12941
  %v13062 = vunpack.c.l.b16 %v12942
  %v13063 = vunpack.c.l.b16 %v12943
  %v13064 = vunpack.c.l.b16 %v12944
  %v13065 = vunpack.c.l.b16 %v12945
  %v13066 = vunpack.c.l.b16 %v12946
  %v13067 = vunpack.c.l.b16 %v12947
  %v13068 = vunpack.c.l.b16 %v12948
  %v13069 = vunpack.c.l.b16 %v12949
  %v13070 = vunpack.c.l.b16 %v12950
  %v13071 = vunpack.c.l.b16 %v12951
  %v13072 = vunpack.c.l.b16 %v12952
  %v13073 = vunpack.c.l.b16 %v12953
  %v13074 = vunpack.c.l.b16 %v12954
  %v13075 = vunpack.c.l.b16 %v12955
  %v13076 = vunpack.c.l.b16 %v12956
  %v13077 = vunpack.c.l.b16 %v12957
  %v13078 = vunpack.c.l.b16 %v12958
  %v13079 = vunpack.c.l.b16 %v12959
  %v13080 = vunpack.c.l.b16 %v12960
  %v13081 = vunpack.c.l.b16 %v12961
  %v13082 = vunpack.c.l.b16 %v12962
  %v13083 = vunpack.c.l.b16 %v12963
  %v13084 = vunpack.c.l.b16 %v12964
  %v13085 = vunpack.c.l.b16 %v12965
  %v13086 = vunpack.c.l.b16 %v12966
  %v13087 = vpack.c.b16 %v13028, %v13027
  %v13088 = vpack.c.b16 %v13030, %v13029
  %v13089 = vpack.c.b16 %v13032, %v13031
  %v13090 = vpack.c.b16 %v13034, %v13033
  %v13091 = vpack.c.b16 %v13036, %v13035
  %v13092 = vpack.c.b16 %v13038, %v13037
  %v13093 = vpack.c.b16 %v13040, %v13039
  %v13094 = vpack.c.b16 %v13042, %v13041
  %v13095 = vpack.c.b16 %v13044, %v13043
  %v13096 = vpack.c.b16 %v13046, %v13045
  %v13097 = vpack.c.b16 %v13048, %v13047
  %v13098 = vpack.c.b16 %v13050, %v13049
  %v13099 = vpack.c.b16 %v13052, %v13051
  %v13100 = vpack.c.b16 %v13054, %v13053
  %v13101 = vpack.c.b16 %v13056, %v13055
  %v13102 = vpack.c.b16 %v13058, %v13057
  %v13103 = vpack.c.b16 %v13060, %v13059
  %v13104 = vpack.c.b16 %v13062, %v13061
  %v13105 = vpack.c.b16 %v13064, %v13063
  %v13106 = vpack.c.b16 %v13066, %v13065
  %v13107 = vpack.c.b16 %v13068, %v13067
  %v13108 = vpack.c.b16 %v13070, %v13069
  %v13109 = vpack.c.b16 %v13072, %v13071
  %v13110 = vpack.c.b16 %v13074, %v13073
  %v13111 = vpack.c.b16 %v13076, %v13075
  %v13112 = vpack.c.b16 %v13078, %v13077
  %v13113 = vpack.c.b16 %v13080, %v13079
  %v13114 = vpack.c.b16 %v13082, %v13081
  %v13115 = vpack.c.b16 %v13084, %v13083
  %v13116 = vpack.c.b16 %v13086, %v13085
  %13147 = vmatprep.subr.bf16.mxu0 0
  %13148 = vmatpush1.bf16.msra.mxu0 %v13094
  %13149 = vmatprep.subr.bf16.mxu0 0
  %13150 = vmatpush1.bf16.msra.mxu0 %v13093
  %13151 = vmatprep.subr.bf16.mxu0 0
  %13152 = vmatpush1.bf16.msra.mxu0 %v13092
  %13153 = vmatprep.subr.bf16.mxu0 0
  %13154 = vmatpush1.bf16.msra.mxu0 %v13091
  %13155 = vmatprep.subr.bf16.mxu0 0
  %13156 = vmatpush1.bf16.msra.mxu0 %v13090
  %13157 = vmatprep.subr.bf16.mxu0 0
  %13158 = vmatpush1.bf16.msra.mxu0 %v13089
  %13159 = vmatprep.subr.bf16.mxu0 0
  %13160 = vmatpush1.bf16.msra.mxu0 %v13088
  %13161 = vmatprep.subr.bf16.mxu0 0
  %13162 = vmatpush1.bf16.msra.mxu0 %v13087
  %13163 = vmatprep.subr.bf16.mxu0 0
  %13164 = vmatpush2.bf16.msra.mxu0 %v13102
  %13165 = vmatprep.subr.bf16.mxu0 0
  %13166 = vmatpush2.bf16.msra.mxu0 %v13101
  %13167 = vmatprep.subr.bf16.mxu0 0
  %13168 = vmatpush2.bf16.msra.mxu0 %v13100
  %13169 = vmatprep.subr.bf16.mxu0 0
  %13170 = vmatpush2.bf16.msra.mxu0 %v13099
  %13171 = vmatprep.subr.bf16.mxu0 0
  %13172 = vmatpush2.bf16.msra.mxu0 %v13098
  %13173 = vmatprep.subr.bf16.mxu0 0
  %13174 = vmatpush2.bf16.msra.mxu0 %v13097
  %13175 = vmatprep.subr.bf16.mxu0 0
  %13176 = vmatpush2.bf16.msra.mxu0 %v13096
  %13177 = vmatprep.subr.bf16.mxu0 0
  %13178 = vmatpush2.bf16.msra.mxu0 %v13095
  %13179 = vmatprep.mubr.bf16.mxu0 %v12581
  %13180 = vmatmul.mubr.bf16.gmra.mxu0 %v12580
  %v13181 = vpop.f32.mrf.mxu0
  %v13182 = vadd.f32 %v12528, %v13181
  %v13183 = vpop.f32.mrf.mxu0
  %v13184 = vpop.f32.mrf.mxu0
  %v13185 = vadd.f32 %v12533, %v13184
  %v13186 = vpop.f32.mrf.mxu0
  %13187 = vmatprep.mubr.bf16.mxu0 %v12585
  %13188 = vmatmul.mubr.bf16.gmra.mxu0 %v12584
  %v13189 = vpop.f32.mrf.mxu0
  %v13190 = vadd.f32 %v12538, %v13189
  %v13191 = vpop.f32.mrf.mxu0
  %v13192 = vpop.f32.mrf.mxu0
  %v13193 = vadd.f32 %v12543, %v13192
  %v13194 = vpop.f32.mrf.mxu0
  %13195 = vmatprep.mubr.bf16.mxu0 %v12589
  %13196 = vmatmul.mubr.bf16.gmra.mxu0 %v12588
  %v13197 = vpop.f32.mrf.mxu0
  %v13198 = vadd.f32 %v12548, %v13197
  %v13199 = vpop.f32.mrf.mxu0
  %v13200 = vpop.f32.mrf.mxu0
  %v13201 = vpop.f32.mrf.mxu0
  %13202 = vdwg.mxu0
  %13203 = vmatprep.subr.bf16.mxu0 0
  %13204 = vmatpush1.bf16.msra.mxu0 %v13110
  %13205 = vmatprep.subr.bf16.mxu0 0
  %13206 = vmatpush1.bf16.msra.mxu0 %v13109
  %13207 = vmatprep.subr.bf16.mxu0 0
  %13208 = vmatpush1.bf16.msra.mxu0 %v13108
  %13209 = vmatprep.subr.bf16.mxu0 0
  %13210 = vmatpush1.bf16.msra.mxu0 %v13107
  %13211 = vmatprep.subr.bf16.mxu0 0
  %13212 = vmatpush1.bf16.msra.mxu0 %v13106
  %13213 = vmatprep.subr.bf16.mxu0 0
  %13214 = vmatpush1.bf16.msra.mxu0 %v13105
  %13215 = vmatprep.subr.bf16.mxu0 0
  %13216 = vmatpush1.bf16.msra.mxu0 %v13104
  %13217 = vmatprep.subr.bf16.mxu0 0
  %13218 = vmatpush1.bf16.msra.mxu0 %v13103
  %13219 = vmatprep.subr.bf16.mxu0 0
  %13220 = vmatpush2.bf16.msra.mxu0 0
  %13221 = vmatprep.subr.bf16.mxu0 0
  %13222 = vmatpush2.bf16.msra.mxu0 0
  %13223 = vmatprep.subr.bf16.mxu0 0
  %13224 = vmatpush2.bf16.msra.mxu0 %v13116
  %13225 = vmatprep.subr.bf16.mxu0 0
  %13226 = vmatpush2.bf16.msra.mxu0 %v13115
  %13227 = vmatprep.subr.bf16.mxu0 0
  %13228 = vmatpush2.bf16.msra.mxu0 %v13114
  %13229 = vmatprep.subr.bf16.mxu0 0
  %13230 = vmatpush2.bf16.msra.mxu0 %v13113
  %13231 = vmatprep.subr.bf16.mxu0 0
  %13232 = vmatpush2.bf16.msra.mxu0 %v13112
  %13233 = vmatprep.subr.bf16.mxu0 0
  %13234 = vmatpush2.bf16.msra.mxu0 %v13111
  %13235 = vmatprep.mubr.bf16.mxu0 %v12782
  %13236 = vmatmul.mubr.bf16.gmra.mxu0 %v12582
  %v13237 = vpop.f32.mrf.mxu0
  %v13238 = vadd.f32 %v13182, %v13237
  %v13239 = vpop.f32.mrf.mxu0
  %v13240 = vpop.f32.mrf.mxu0
  %v13241 = vadd.f32 %v13185, %v13240
  %v13242 = vpop.f32.mrf.mxu0
  %13243 = vmatprep.mubr.bf16.mxu0 %v12785
  %13244 = vmatmul.mubr.bf16.gmra.mxu0 %v12586
  %v13245 = vpop.f32.mrf.mxu0
  %v13246 = vadd.f32 %v13190, %v13245
  %v13247 = vpop.f32.mrf.mxu0
  %v13248 = vpop.f32.mrf.mxu0
  %v13249 = vadd.f32 %v13193, %v13248
  %v13250 = vpop.f32.mrf.mxu0
  %13251 = vmatprep.mubr.bf16.mxu0 %v12788
  %13252 = vmatmul.mubr.bf16.gmra.mxu0 %v12590
  %v13253 = vpop.f32.mrf.mxu0
  %v13254 = vadd.f32 %v13198, %v13253
  %v13255 = vpop.f32.mrf.mxu0
  %v13256 = vpop.f32.mrf.mxu0
  %v13257 = vpop.f32.mrf.mxu0
  %13258 = vdwg.mxu0
  %v13259 = vmax.f32 %v13238, 0.0
  %v13260 = vmax.f32 %v13241, 0.0
  %v13261 = vmax.f32 %v13246, 0.0
  %v13262 = vmax.f32 %v13249, 0.0
  %v13263 = vmax.f32 %v13254, 0.0
  %v13264 = vld [vmem:[#allocation3 + $0x140] sm:$0xf]
  %v13265 = vld [vmem:[#allocation3 + $0x144] sm:$0xf]
  %v13266 = vld [vmem:[#allocation3 + $0x148] sm:$0xf]
  %v13267 = vld [vmem:[#allocation3 + $0x14c] sm:$0xf]
  %v13268 = vld [vmem:[#allocation3 + $0x150] sm:$0xf]
  %v13269 = vld [vmem:[#allocation3 + $0x154] sm:$0xf]
  %v13270 = vld [vmem:[#allocation3 + $0x158] sm:$0xf]
  %v13271 = vld [vmem:[#allocation3 + $0x15c] sm:$0xf]
  %v13272 = vld [vmem:[#allocation3 + $0x160] sm:$0xf]
  %v13273 = vld [vmem:[#allocation3 + $0x164] sm:$0xf]
  %v13274 = vld [vmem:[#allocation3 + $0x168] sm:$0xf]
  %v13275 = vld [vmem:[#allocation3 + $0x16c] sm:$0xf]
  %v13276 = vld [vmem:[#allocation3 + $0x170] sm:$0xf]
  %v13277 = vld [vmem:[#allocation3 + $0x174] sm:$0xf]
  %v13278 = vld [vmem:[#allocation3 + $0x178] sm:$0xf]
  %v13279 = vld [vmem:[#allocation3 + $0x17c] sm:$0xf]
  %v13280 = vld [vmem:[#allocation3 + $0x180] sm:$0xf]
  %v13281 = vld [vmem:[#allocation3 + $0x184] sm:$0xf]
  %v13282 = vld [vmem:[#allocation3 + $0x188] sm:$0xf]
  %v13283 = vld [vmem:[#allocation3 + $0x18c] sm:$0xf]
  %v13284 = vld [vmem:[#allocation3 + $0x190] sm:$0xf]
  %v13285 = vld [vmem:[#allocation3 + $0x194] sm:$0xf]
  %v13286 = vld [vmem:[#allocation3 + $0x198] sm:$0xf]
  %v13287 = vld [vmem:[#allocation3 + $0x19c] sm:$0xf]
  %v13288 = vld [vmem:[#allocation3 + $0x1a0] sm:$0xf]
  %v13289 = vld [vmem:[#allocation3 + $0x1a4] sm:$0xf]
  %v13290 = vld [vmem:[#allocation3 + $0x1a8] sm:$0xf]
  %v13291 = vld [vmem:[#allocation3 + $0x1ac] sm:$0xf]
  %v13292 = vld [vmem:[#allocation3 + $0x1b0] sm:$0xf]
  %v13293 = vld [vmem:[#allocation3 + $0x1b4] sm:$0xf]
  %v13294 = vld [vmem:[#allocation3 + $0x1b8] sm:$0xf]
  %v13295 = vld [vmem:[#allocation3 + $0x1bc] sm:$0xf]
  %v13296 = vld [vmem:[#allocation3 + $0x1c0] sm:$0xf]
  %v13297 = vld [vmem:[#allocation3 + $0x1c4] sm:$0xf]
  %v13298 = vld [vmem:[#allocation3 + $0x1c8] sm:$0xf]
  %v13299 = vld [vmem:[#allocation3 + $0x1cc] sm:$0xf]
  %v13300 = vld [vmem:[#allocation3 + $0x1d0] sm:$0xf]
  %v13301 = vld [vmem:[#allocation3 + $0x1d4] sm:$0xf]
  %v13302 = vld [vmem:[#allocation3 + $0x1d8] sm:$0xf]
  %v13303 = vld [vmem:[#allocation3 + $0x1dc] sm:$0xf]
  %v13304 = vld [vmem:[#allocation3 + $0x1e0] sm:$0xf]
  %v13305 = vld [vmem:[#allocation3 + $0x1e4] sm:$0xf]
  %v13306 = vld [vmem:[#allocation3 + $0x1e8] sm:$0xf]
  %v13307 = vld [vmem:[#allocation3 + $0x1ec] sm:$0xf]
  %v13308 = vld [vmem:[#allocation3 + $0x1f0] sm:$0xf]
  %v13309 = vld [vmem:[#allocation3 + $0x1f4] sm:$0xf]
  %v13310 = vld [vmem:[#allocation3 + $0x1f8] sm:$0xf]
  %v13311 = vld [vmem:[#allocation3 + $0x1fc] sm:$0xf]
  %v13312 = vld [vmem:[#allocation3 + $0x200] sm:$0xf]
  %v13313 = vld [vmem:[#allocation3 + $0x204] sm:$0xf]
  %v13314 = vld [vmem:[#allocation3 + $0x208] sm:$0xf]
  %v13315 = vld [vmem:[#allocation3 + $0x20c] sm:$0xf]
  %v13316 = vld [vmem:[#allocation3 + $0x210] sm:$0xf]
  %v13317 = vld [vmem:[#allocation3 + $0x214] sm:$0xf]
  %v13318 = vld [vmem:[#allocation3 + $0x218] sm:$0xf]
  %v13319 = vld [vmem:[#allocation3 + $0x21c] sm:$0xf]
  %v13320 = vld [vmem:[#allocation3 + $0x220] sm:$0xf]
  %v13321 = vld [vmem:[#allocation3 + $0x224] sm:$0xf]
  %v13322 = vld [vmem:[#allocation3 + $0x228] sm:$0xf]
  %v13323 = vld [vmem:[#allocation3 + $0x22c] sm:$0xf]
  %v13384 = vunpack.c.l.b16 %v13264
  %v13385 = vunpack.c.l.b16 %v13265
  %v13386 = vunpack.c.l.b16 %v13266
  %v13387 = vunpack.c.l.b16 %v13267
  %v13388 = vunpack.c.l.b16 %v13268
  %v13389 = vunpack.c.l.b16 %v13269
  %v13390 = vunpack.c.l.b16 %v13270
  %v13391 = vunpack.c.l.b16 %v13271
  %v13392 = vunpack.c.l.b16 %v13272
  %v13393 = vunpack.c.l.b16 %v13273
  %v13394 = vunpack.c.l.b16 %v13274
  %v13395 = vunpack.c.l.b16 %v13275
  %v13396 = vunpack.c.l.b16 %v13276
  %v13397 = vunpack.c.l.b16 %v13277
  %v13398 = vunpack.c.l.b16 %v13278
  %v13399 = vunpack.c.l.b16 %v13279
  %v13400 = vunpack.c.l.b16 %v13280
  %v13401 = vunpack.c.l.b16 %v13281
  %v13402 = vunpack.c.l.b16 %v13282
  %v13403 = vunpack.c.l.b16 %v13283
  %v13404 = vunpack.c.l.b16 %v13284
  %v13405 = vunpack.c.l.b16 %v13285
  %v13406 = vunpack.c.l.b16 %v13286
  %v13407 = vunpack.c.l.b16 %v13287
  %v13408 = vunpack.c.l.b16 %v13288
  %v13409 = vunpack.c.l.b16 %v13289
  %v13410 = vunpack.c.l.b16 %v13290
  %v13411 = vunpack.c.l.b16 %v13291
  %v13412 = vunpack.c.l.b16 %v13292
  %v13413 = vunpack.c.l.b16 %v13293
  %v13414 = vunpack.c.l.b16 %v13294
  %v13415 = vunpack.c.l.b16 %v13295
  %v13416 = vunpack.c.l.b16 %v13296
  %v13417 = vunpack.c.l.b16 %v13297
  %v13418 = vunpack.c.l.b16 %v13298
  %v13419 = vunpack.c.l.b16 %v13299
  %v13420 = vunpack.c.l.b16 %v13300
  %v13421 = vunpack.c.l.b16 %v13301
  %v13422 = vunpack.c.l.b16 %v13302
  %v13423 = vunpack.c.l.b16 %v13303
  %v13424 = vunpack.c.l.b16 %v13304
  %v13425 = vunpack.c.l.b16 %v13305
  %v13426 = vunpack.c.l.b16 %v13306
  %v13427 = vunpack.c.l.b16 %v13307
  %v13428 = vunpack.c.l.b16 %v13308
  %v13429 = vunpack.c.l.b16 %v13309
  %v13430 = vunpack.c.l.b16 %v13310
  %v13431 = vunpack.c.l.b16 %v13311
  %v13432 = vunpack.c.l.b16 %v13312
  %v13433 = vunpack.c.l.b16 %v13313
  %v13434 = vunpack.c.l.b16 %v13314
  %v13435 = vunpack.c.l.b16 %v13315
  %v13436 = vunpack.c.l.b16 %v13316
  %v13437 = vunpack.c.l.b16 %v13317
  %v13438 = vunpack.c.l.b16 %v13318
  %v13439 = vunpack.c.l.b16 %v13319
  %v13440 = vunpack.c.l.b16 %v13320
  %v13441 = vunpack.c.l.b16 %v13321
  %v13442 = vunpack.c.l.b16 %v13322
  %v13443 = vunpack.c.l.b16 %v13323
  %v13444 = vpack.c.b16 %v13385, %v13384
  %v13445 = vpack.c.b16 %v13387, %v13386
  %v13446 = vpack.c.b16 %v13389, %v13388
  %v13447 = vpack.c.b16 %v13391, %v13390
  %v13448 = vpack.c.b16 %v13393, %v13392
  %v13449 = vpack.c.b16 %v13395, %v13394
  %v13450 = vpack.c.b16 %v13397, %v13396
  %v13451 = vpack.c.b16 %v13399, %v13398
  %v13452 = vpack.c.b16 %v13401, %v13400
  %v13453 = vpack.c.b16 %v13403, %v13402
  %v13454 = vpack.c.b16 %v13405, %v13404
  %v13455 = vpack.c.b16 %v13407, %v13406
  %v13456 = vpack.c.b16 %v13409, %v13408
  %v13457 = vpack.c.b16 %v13411, %v13410
  %v13458 = vpack.c.b16 %v13413, %v13412
  %v13459 = vpack.c.b16 %v13415, %v13414
  %v13460 = vpack.c.b16 %v13417, %v13416
  %v13461 = vpack.c.b16 %v13419, %v13418
  %v13462 = vpack.c.b16 %v13421, %v13420
  %v13463 = vpack.c.b16 %v13423, %v13422
  %v13464 = vpack.c.b16 %v13425, %v13424
  %v13465 = vpack.c.b16 %v13427, %v13426
  %v13466 = vpack.c.b16 %v13429, %v13428
  %v13467 = vpack.c.b16 %v13431, %v13430
  %v13468 = vpack.c.b16 %v13433, %v13432
  %v13469 = vpack.c.b16 %v13435, %v13434
  %v13470 = vpack.c.b16 %v13437, %v13436
  %v13471 = vpack.c.b16 %v13439, %v13438
  %v13472 = vpack.c.b16 %v13441, %v13440
  %v13473 = vpack.c.b16 %v13443, %v13442
  %13504 = vmatprep.subr.bf16.mxu0 0
  %13505 = vmatpush1.bf16.msra.mxu0 %v13451
  %13506 = vmatprep.subr.bf16.mxu0 0
  %13507 = vmatpush1.bf16.msra.mxu0 %v13450
  %13508 = vmatprep.subr.bf16.mxu0 0
  %13509 = vmatpush1.bf16.msra.mxu0 %v13449
  %13510 = vmatprep.subr.bf16.mxu0 0
  %13511 = vmatpush1.bf16.msra.mxu0 %v13448
  %13512 = vmatprep.subr.bf16.mxu0 0
  %13513 = vmatpush1.bf16.msra.mxu0 %v13447
  %13514 = vmatprep.subr.bf16.mxu0 0
  %13515 = vmatpush1.bf16.msra.mxu0 %v13446
  %13516 = vmatprep.subr.bf16.mxu0 0
  %13517 = vmatpush1.bf16.msra.mxu0 %v13445
  %13518 = vmatprep.subr.bf16.mxu0 0
  %13519 = vmatpush1.bf16.msra.mxu0 %v13444
  %13520 = vmatprep.subr.bf16.mxu0 0
  %13521 = vmatpush2.bf16.msra.mxu0 %v13459
  %13522 = vmatprep.subr.bf16.mxu0 0
  %13523 = vmatpush2.bf16.msra.mxu0 %v13458
  %13524 = vmatprep.subr.bf16.mxu0 0
  %13525 = vmatpush2.bf16.msra.mxu0 %v13457
  %13526 = vmatprep.subr.bf16.mxu0 0
  %13527 = vmatpush2.bf16.msra.mxu0 %v13456
  %13528 = vmatprep.subr.bf16.mxu0 0
  %13529 = vmatpush2.bf16.msra.mxu0 %v13455
  %13530 = vmatprep.subr.bf16.mxu0 0
  %13531 = vmatpush2.bf16.msra.mxu0 %v13454
  %13532 = vmatprep.subr.bf16.mxu0 0
  %13533 = vmatpush2.bf16.msra.mxu0 %v13453
  %13534 = vmatprep.subr.bf16.mxu0 0
  %13535 = vmatpush2.bf16.msra.mxu0 %v13452
  %13536 = vmatprep.mubr.bf16.mxu0 %v12581
  %13537 = vmatmul.mubr.bf16.gmra.mxu0 %v12580
  %v13538 = vpop.f32.mrf.mxu0
  %v13539 = vadd.f32 %v12528, %v13538
  %v13540 = vpop.f32.mrf.mxu0
  %v13541 = vpop.f32.mrf.mxu0
  %v13542 = vadd.f32 %v12533, %v13541
  %v13543 = vpop.f32.mrf.mxu0
  %13544 = vmatprep.mubr.bf16.mxu0 %v12585
  %13545 = vmatmul.mubr.bf16.gmra.mxu0 %v12584
  %v13546 = vpop.f32.mrf.mxu0
  %v13547 = vadd.f32 %v12538, %v13546
  %v13548 = vpop.f32.mrf.mxu0
  %v13549 = vpop.f32.mrf.mxu0
  %v13550 = vadd.f32 %v12543, %v13549
  %v13551 = vpop.f32.mrf.mxu0
  %13552 = vmatprep.mubr.bf16.mxu0 %v12589
  %13553 = vmatmul.mubr.bf16.gmra.mxu0 %v12588
  %v13554 = vpop.f32.mrf.mxu0
  %v13555 = vadd.f32 %v12548, %v13554
  %v13556 = vpop.f32.mrf.mxu0
  %v13557 = vpop.f32.mrf.mxu0
  %v13558 = vpop.f32.mrf.mxu0
  %13559 = vdwg.mxu0
  %13560 = vmatprep.subr.bf16.mxu0 0
  %13561 = vmatpush1.bf16.msra.mxu0 %v13467
  %13562 = vmatprep.subr.bf16.mxu0 0
  %13563 = vmatpush1.bf16.msra.mxu0 %v13466
  %13564 = vmatprep.subr.bf16.mxu0 0
  %13565 = vmatpush1.bf16.msra.mxu0 %v13465
  %13566 = vmatprep.subr.bf16.mxu0 0
  %13567 = vmatpush1.bf16.msra.mxu0 %v13464
  %13568 = vmatprep.subr.bf16.mxu0 0
  %13569 = vmatpush1.bf16.msra.mxu0 %v13463
  %13570 = vmatprep.subr.bf16.mxu0 0
  %13571 = vmatpush1.bf16.msra.mxu0 %v13462
  %13572 = vmatprep.subr.bf16.mxu0 0
  %13573 = vmatpush1.bf16.msra.mxu0 %v13461
  %13574 = vmatprep.subr.bf16.mxu0 0
  %13575 = vmatpush1.bf16.msra.mxu0 %v13460
  %13576 = vmatprep.subr.bf16.mxu0 0
  %13577 = vmatpush2.bf16.msra.mxu0 0
  %13578 = vmatprep.subr.bf16.mxu0 0
  %13579 = vmatpush2.bf16.msra.mxu0 0
  %13580 = vmatprep.subr.bf16.mxu0 0
  %13581 = vmatpush2.bf16.msra.mxu0 %v13473
  %13582 = vmatprep.subr.bf16.mxu0 0
  %13583 = vmatpush2.bf16.msra.mxu0 %v13472
  %13584 = vmatprep.subr.bf16.mxu0 0
  %13585 = vmatpush2.bf16.msra.mxu0 %v13471
  %13586 = vmatprep.subr.bf16.mxu0 0
  %13587 = vmatpush2.bf16.msra.mxu0 %v13470
  %13588 = vmatprep.subr.bf16.mxu0 0
  %13589 = vmatpush2.bf16.msra.mxu0 %v13469
  %13590 = vmatprep.subr.bf16.mxu0 0
  %13591 = vmatpush2.bf16.msra.mxu0 %v13468
  %13592 = vmatprep.mubr.bf16.mxu0 %v12782
  %13593 = vmatmul.mubr.bf16.gmra.mxu0 %v12582
  %v13594 = vpop.f32.mrf.mxu0
  %v13595 = vadd.f32 %v13539, %v13594
  %v13596 = vpop.f32.mrf.mxu0
  %v13597 = vpop.f32.mrf.mxu0
  %v13598 = vadd.f32 %v13542, %v13597
  %v13599 = vpop.f32.mrf.mxu0
  %13600 = vmatprep.mubr.bf16.mxu0 %v12785
  %13601 = vmatmul.mubr.bf16.gmra.mxu0 %v12586
  %v13602 = vpop.f32.mrf.mxu0
  %v13603 = vadd.f32 %v13547, %v13602
  %v13604 = vpop.f32.mrf.mxu0
  %v13605 = vpop.f32.mrf.mxu0
  %v13606 = vadd.f32 %v13550, %v13605
  %v13607 = vpop.f32.mrf.mxu0
  %13608 = vmatprep.mubr.bf16.mxu0 %v12788
  %13609 = vmatmul.mubr.bf16.gmra.mxu0 %v12590
  %v13610 = vpop.f32.mrf.mxu0
  %v13611 = vadd.f32 %v13555, %v13610
  %v13612 = vpop.f32.mrf.mxu0
  %v13613 = vpop.f32.mrf.mxu0
  %v13614 = vpop.f32.mrf.mxu0
  %13615 = vdwg.mxu0
  %v13616 = vmax.f32 %v13595, 0.0
  %v13617 = vmax.f32 %v13598, 0.0
  %v13618 = vmax.f32 %v13603, 0.0
  %v13619 = vmax.f32 %v13606, 0.0
  %v13620 = vmax.f32 %v13611, 0.0
  %v13621 = vld [vmem:[#allocation3 + $0x1e0] sm:$0xf]
  %v13622 = vld [vmem:[#allocation3 + $0x1e4] sm:$0xf]
  %v13623 = vld [vmem:[#allocation3 + $0x1e8] sm:$0xf]
  %v13624 = vld [vmem:[#allocation3 + $0x1ec] sm:$0xf]
  %v13625 = vld [vmem:[#allocation3 + $0x1f0] sm:$0xf]
  %v13626 = vld [vmem:[#allocation3 + $0x1f4] sm:$0xf]
  %v13627 = vld [vmem:[#allocation3 + $0x1f8] sm:$0xf]
  %v13628 = vld [vmem:[#allocation3 + $0x1fc] sm:$0xf]
  %v13629 = vld [vmem:[#allocation3 + $0x200] sm:$0xf]
  %v13630 = vld [vmem:[#allocation3 + $0x204] sm:$0xf]
  %v13631 = vld [vmem:[#allocation3 + $0x208] sm:$0xf]
  %v13632 = vld [vmem:[#allocation3 + $0x20c] sm:$0xf]
  %v13633 = vld [vmem:[#allocation3 + $0x210] sm:$0xf]
  %v13634 = vld [vmem:[#allocation3 + $0x214] sm:$0xf]
  %v13635 = vld [vmem:[#allocation3 + $0x218] sm:$0xf]
  %v13636 = vld [vmem:[#allocation3 + $0x21c] sm:$0xf]
  %v13637 = vld [vmem:[#allocation3 + $0x220] sm:$0xf]
  %v13638 = vld [vmem:[#allocation3 + $0x224] sm:$0xf]
  %v13639 = vld [vmem:[#allocation3 + $0x228] sm:$0xf]
  %v13640 = vld [vmem:[#allocation3 + $0x22c] sm:$0xf]
  %v13641 = vld [vmem:[#allocation3 + $0x230] sm:$0xf]
  %v13642 = vld [vmem:[#allocation3 + $0x234] sm:$0xf]
  %v13643 = vld [vmem:[#allocation3 + $0x238] sm:$0xf]
  %v13644 = vld [vmem:[#allocation3 + $0x23c] sm:$0xf]
  %v13645 = vld [vmem:[#allocation3 + $0x240] sm:$0xf]
  %v13646 = vld [vmem:[#allocation3 + $0x244] sm:$0xf]
  %v13647 = vld [vmem:[#allocation3 + $0x248] sm:$0xf]
  %v13648 = vld [vmem:[#allocation3 + $0x24c] sm:$0xf]
  %v13649 = vld [vmem:[#allocation3 + $0x250] sm:$0xf]
  %v13650 = vld [vmem:[#allocation3 + $0x254] sm:$0xf]
  %v13651 = vld [vmem:[#allocation3 + $0x258] sm:$0xf]
  %v13652 = vld [vmem:[#allocation3 + $0x25c] sm:$0xf]
  %v13653 = vld [vmem:[#allocation3 + $0x260] sm:$0xf]
  %v13654 = vld [vmem:[#allocation3 + $0x264] sm:$0xf]
  %v13655 = vld [vmem:[#allocation3 + $0x268] sm:$0xf]
  %v13656 = vld [vmem:[#allocation3 + $0x26c] sm:$0xf]
  %v13657 = vld [vmem:[#allocation3 + $0x270] sm:$0xf]
  %v13658 = vld [vmem:[#allocation3 + $0x274] sm:$0xf]
  %v13659 = vld [vmem:[#allocation3 + $0x278] sm:$0xf]
  %v13660 = vld [vmem:[#allocation3 + $0x27c] sm:$0xf]
  %v13661 = vld [vmem:[#allocation3 + $0x280] sm:$0xf]
  %v13662 = vld [vmem:[#allocation3 + $0x284] sm:$0xf]
  %v13663 = vld [vmem:[#allocation3 + $0x288] sm:$0xf]
  %v13664 = vld [vmem:[#allocation3 + $0x28c] sm:$0xf]
  %v13665 = vld [vmem:[#allocation3 + $0x290] sm:$0xf]
  %v13666 = vld [vmem:[#allocation3 + $0x294] sm:$0xf]
  %v13667 = vld [vmem:[#allocation3 + $0x298] sm:$0xf]
  %v13668 = vld [vmem:[#allocation3 + $0x29c] sm:$0xf]
  %v13669 = vld [vmem:[#allocation3 + $0x2a0] sm:$0xf]
  %v13670 = vld [vmem:[#allocation3 + $0x2a4] sm:$0xf]
  %v13671 = vld [vmem:[#allocation3 + $0x2a8] sm:$0xf]
  %v13672 = vld [vmem:[#allocation3 + $0x2ac] sm:$0xf]
  %v13673 = vld [vmem:[#allocation3 + $0x2b0] sm:$0xf]
  %v13674 = vld [vmem:[#allocation3 + $0x2b4] sm:$0xf]
  %v13675 = vld [vmem:[#allocation3 + $0x2b8] sm:$0xf]
  %v13676 = vld [vmem:[#allocation3 + $0x2bc] sm:$0xf]
  %v13677 = vld [vmem:[#allocation3 + $0x2c0] sm:$0xf]
  %v13678 = vld [vmem:[#allocation3 + $0x2c4] sm:$0xf]
  %v13679 = vld [vmem:[#allocation3 + $0x2c8] sm:$0xf]
  %v13680 = vld [vmem:[#allocation3 + $0x2cc] sm:$0xf]
  %v13741 = vunpack.c.l.b16 %v13621
  %v13742 = vunpack.c.l.b16 %v13622
  %v13743 = vunpack.c.l.b16 %v13623
  %v13744 = vunpack.c.l.b16 %v13624
  %v13745 = vunpack.c.l.b16 %v13625
  %v13746 = vunpack.c.l.b16 %v13626
  %v13747 = vunpack.c.l.b16 %v13627
  %v13748 = vunpack.c.l.b16 %v13628
  %v13749 = vunpack.c.l.b16 %v13629
  %v13750 = vunpack.c.l.b16 %v13630
  %v13751 = vunpack.c.l.b16 %v13631
  %v13752 = vunpack.c.l.b16 %v13632
  %v13753 = vunpack.c.l.b16 %v13633
  %v13754 = vunpack.c.l.b16 %v13634
  %v13755 = vunpack.c.l.b16 %v13635
  %v13756 = vunpack.c.l.b16 %v13636
  %v13757 = vunpack.c.l.b16 %v13637
  %v13758 = vunpack.c.l.b16 %v13638
  %v13759 = vunpack.c.l.b16 %v13639
  %v13760 = vunpack.c.l.b16 %v13640
  %v13761 = vunpack.c.l.b16 %v13641
  %v13762 = vunpack.c.l.b16 %v13642
  %v13763 = vunpack.c.l.b16 %v13643
  %v13764 = vunpack.c.l.b16 %v13644
  %v13765 = vunpack.c.l.b16 %v13645
  %v13766 = vunpack.c.l.b16 %v13646
  %v13767 = vunpack.c.l.b16 %v13647
  %v13768 = vunpack.c.l.b16 %v13648
  %v13769 = vunpack.c.l.b16 %v13649
  %v13770 = vunpack.c.l.b16 %v13650
  %v13771 = vunpack.c.l.b16 %v13651
  %v13772 = vunpack.c.l.b16 %v13652
  %v13773 = vunpack.c.l.b16 %v13653
  %v13774 = vunpack.c.l.b16 %v13654
  %v13775 = vunpack.c.l.b16 %v13655
  %v13776 = vunpack.c.l.b16 %v13656
  %v13777 = vunpack.c.l.b16 %v13657
  %v13778 = vunpack.c.l.b16 %v13658
  %v13779 = vunpack.c.l.b16 %v13659
  %v13780 = vunpack.c.l.b16 %v13660
  %v13781 = vunpack.c.l.b16 %v13661
  %v13782 = vunpack.c.l.b16 %v13662
  %v13783 = vunpack.c.l.b16 %v13663
  %v13784 = vunpack.c.l.b16 %v13664
  %v13785 = vunpack.c.l.b16 %v13665
  %v13786 = vunpack.c.l.b16 %v13666
  %v13787 = vunpack.c.l.b16 %v13667
  %v13788 = vunpack.c.l.b16 %v13668
  %v13789 = vunpack.c.l.b16 %v13669
  %v13790 = vunpack.c.l.b16 %v13670
  %v13791 = vunpack.c.l.b16 %v13671
  %v13792 = vunpack.c.l.b16 %v13672
  %v13793 = vunpack.c.l.b16 %v13673
  %v13794 = vunpack.c.l.b16 %v13674
  %v13795 = vunpack.c.l.b16 %v13675
  %v13796 = vunpack.c.l.b16 %v13676
  %v13797 = vunpack.c.l.b16 %v13677
  %v13798 = vunpack.c.l.b16 %v13678
  %v13799 = vunpack.c.l.b16 %v13679
  %v13800 = vunpack.c.l.b16 %v13680
  %v13801 = vpack.c.b16 %v13742, %v13741
  %v13802 = vpack.c.b16 %v13744, %v13743
  %v13803 = vpack.c.b16 %v13746, %v13745
  %v13804 = vpack.c.b16 %v13748, %v13747
  %v13805 = vpack.c.b16 %v13750, %v13749
  %v13806 = vpack.c.b16 %v13752, %v13751
  %v13807 = vpack.c.b16 %v13754, %v13753
  %v13808 = vpack.c.b16 %v13756, %v13755
  %v13809 = vpack.c.b16 %v13758, %v13757
  %v13810 = vpack.c.b16 %v13760, %v13759
  %v13811 = vpack.c.b16 %v13762, %v13761
  %v13812 = vpack.c.b16 %v13764, %v13763
  %v13813 = vpack.c.b16 %v13766, %v13765
  %v13814 = vpack.c.b16 %v13768, %v13767
  %v13815 = vpack.c.b16 %v13770, %v13769
  %v13816 = vpack.c.b16 %v13772, %v13771
  %v13817 = vpack.c.b16 %v13774, %v13773
  %v13818 = vpack.c.b16 %v13776, %v13775
  %v13819 = vpack.c.b16 %v13778, %v13777
  %v13820 = vpack.c.b16 %v13780, %v13779
  %v13821 = vpack.c.b16 %v13782, %v13781
  %v13822 = vpack.c.b16 %v13784, %v13783
  %v13823 = vpack.c.b16 %v13786, %v13785
  %v13824 = vpack.c.b16 %v13788, %v13787
  %v13825 = vpack.c.b16 %v13790, %v13789
  %v13826 = vpack.c.b16 %v13792, %v13791
  %v13827 = vpack.c.b16 %v13794, %v13793
  %v13828 = vpack.c.b16 %v13796, %v13795
  %v13829 = vpack.c.b16 %v13798, %v13797
  %v13830 = vpack.c.b16 %v13800, %v13799
  %13861 = vmatprep.subr.bf16.mxu0 0
  %13862 = vmatpush1.bf16.msra.mxu0 %v13808
  %13863 = vmatprep.subr.bf16.mxu0 0
  %13864 = vmatpush1.bf16.msra.mxu0 %v13807
  %13865 = vmatprep.subr.bf16.mxu0 0
  %13866 = vmatpush1.bf16.msra.mxu0 %v13806
  %13867 = vmatprep.subr.bf16.mxu0 0
  %13868 = vmatpush1.bf16.msra.mxu0 %v13805
  %13869 = vmatprep.subr.bf16.mxu0 0
  %13870 = vmatpush1.bf16.msra.mxu0 %v13804
  %13871 = vmatprep.subr.bf16.mxu0 0
  %13872 = vmatpush1.bf16.msra.mxu0 %v13803
  %13873 = vmatprep.subr.bf16.mxu0 0
  %13874 = vmatpush1.bf16.msra.mxu0 %v13802
  %13875 = vmatprep.subr.bf16.mxu0 0
  %13876 = vmatpush1.bf16.msra.mxu0 %v13801
  %13877 = vmatprep.subr.bf16.mxu0 0
  %13878 = vmatpush2.bf16.msra.mxu0 %v13816
  %13879 = vmatprep.subr.bf16.mxu0 0
  %13880 = vmatpush2.bf16.msra.mxu0 %v13815
  %13881 = vmatprep.subr.bf16.mxu0 0
  %13882 = vmatpush2.bf16.msra.mxu0 %v13814
  %13883 = vmatprep.subr.bf16.mxu0 0
  %13884 = vmatpush2.bf16.msra.mxu0 %v13813
  %13885 = vmatprep.subr.bf16.mxu0 0
  %13886 = vmatpush2.bf16.msra.mxu0 %v13812
  %13887 = vmatprep.subr.bf16.mxu0 0
  %13888 = vmatpush2.bf16.msra.mxu0 %v13811
  %13889 = vmatprep.subr.bf16.mxu0 0
  %13890 = vmatpush2.bf16.msra.mxu0 %v13810
  %13891 = vmatprep.subr.bf16.mxu0 0
  %13892 = vmatpush2.bf16.msra.mxu0 %v13809
  %13893 = vmatprep.mubr.bf16.mxu0 %v12581
  %13894 = vmatmul.mubr.bf16.gmra.mxu0 %v12580
  %v13895 = vpop.f32.mrf.mxu0
  %v13896 = vadd.f32 %v12528, %v13895
  %v13897 = vpop.f32.mrf.mxu0
  %v13898 = vpop.f32.mrf.mxu0
  %v13899 = vadd.f32 %v12533, %v13898
  %v13900 = vpop.f32.mrf.mxu0
  %13901 = vmatprep.mubr.bf16.mxu0 %v12585
  %13902 = vmatmul.mubr.bf16.gmra.mxu0 %v12584
  %v13903 = vpop.f32.mrf.mxu0
  %v13904 = vadd.f32 %v12538, %v13903
  %v13905 = vpop.f32.mrf.mxu0
  %v13906 = vpop.f32.mrf.mxu0
  %v13907 = vadd.f32 %v12543, %v13906
  %v13908 = vpop.f32.mrf.mxu0
  %13909 = vmatprep.mubr.bf16.mxu0 %v12589
  %13910 = vmatmul.mubr.bf16.gmra.mxu0 %v12588
  %v13911 = vpop.f32.mrf.mxu0
  %v13912 = vadd.f32 %v12548, %v13911
  %v13913 = vpop.f32.mrf.mxu0
  %v13914 = vpop.f32.mrf.mxu0
  %v13915 = vpop.f32.mrf.mxu0
  %13916 = vdwg.mxu0
  %13917 = vmatprep.subr.bf16.mxu0 0
  %13918 = vmatpush1.bf16.msra.mxu0 %v13824
  %13919 = vmatprep.subr.bf16.mxu0 0
  %13920 = vmatpush1.bf16.msra.mxu0 %v13823
  %13921 = vmatprep.subr.bf16.mxu0 0
  %13922 = vmatpush1.bf16.msra.mxu0 %v13822
  %13923 = vmatprep.subr.bf16.mxu0 0
  %13924 = vmatpush1.bf16.msra.mxu0 %v13821
  %13925 = vmatprep.subr.bf16.mxu0 0
  %13926 = vmatpush1.bf16.msra.mxu0 %v13820
  %13927 = vmatprep.subr.bf16.mxu0 0
  %13928 = vmatpush1.bf16.msra.mxu0 %v13819
  %13929 = vmatprep.subr.bf16.mxu0 0
  %13930 = vmatpush1.bf16.msra.mxu0 %v13818
  %13931 = vmatprep.subr.bf16.mxu0 0
  %13932 = vmatpush1.bf16.msra.mxu0 %v13817
  %13933 = vmatprep.subr.bf16.mxu0 0
  %13934 = vmatpush2.bf16.msra.mxu0 0
  %13935 = vmatprep.subr.bf16.mxu0 0
  %13936 = vmatpush2.bf16.msra.mxu0 0
  %13937 = vmatprep.subr.bf16.mxu0 0
  %13938 = vmatpush2.bf16.msra.mxu0 %v13830
  %13939 = vmatprep.subr.bf16.mxu0 0
  %13940 = vmatpush2.bf16.msra.mxu0 %v13829
  %13941 = vmatprep.subr.bf16.mxu0 0
  %13942 = vmatpush2.bf16.msra.mxu0 %v13828
  %13943 = vmatprep.subr.bf16.mxu0 0
  %13944 = vmatpush2.bf16.msra.mxu0 %v13827
  %13945 = vmatprep.subr.bf16.mxu0 0
  %13946 = vmatpush2.bf16.msra.mxu0 %v13826
  %13947 = vmatprep.subr.bf16.mxu0 0
  %13948 = vmatpush2.bf16.msra.mxu0 %v13825
  %13949 = vmatprep.mubr.bf16.mxu0 %v12782
  %13950 = vmatmul.mubr.bf16.gmra.mxu0 %v12582
  %v13951 = vpop.f32.mrf.mxu0
  %v13952 = vadd.f32 %v13896, %v13951
  %v13953 = vpop.f32.mrf.mxu0
  %v13954 = vpop.f32.mrf.mxu0
  %v13955 = vadd.f32 %v13899, %v13954
  %v13956 = vpop.f32.mrf.mxu0
  %13957 = vmatprep.mubr.bf16.mxu0 %v12785
  %13958 = vmatmul.mubr.bf16.gmra.mxu0 %v12586
  %v13959 = vpop.f32.mrf.mxu0
  %v13960 = vadd.f32 %v13904, %v13959
  %v13961 = vpop.f32.mrf.mxu0
  %v13962 = vpop.f32.mrf.mxu0
  %v13963 = vadd.f32 %v13907, %v13962
  %v13964 = vpop.f32.mrf.mxu0
  %13965 = vmatprep.mubr.bf16.mxu0 %v12788
  %13966 = vmatmul.mubr.bf16.gmra.mxu0 %v12590
  %v13967 = vpop.f32.mrf.mxu0
  %v13968 = vadd.f32 %v13912, %v13967
  %v13969 = vpop.f32.mrf.mxu0
  %v13970 = vpop.f32.mrf.mxu0
  %v13971 = vpop.f32.mrf.mxu0
  %13972 = vdwg.mxu0
  %v13973 = vmax.f32 %v13952, 0.0
  %v13974 = vmax.f32 %v13955, 0.0
  %v13975 = vmax.f32 %v13960, 0.0
  %v13976 = vmax.f32 %v13963, 0.0
  %v13977 = vmax.f32 %v13968, 0.0
  %v13978 = vld [vmem:[%s7] sm:$0xff]
  %v13979 = vld [vmem:[%s7 + $0x8] sm:$0xff]
  %v13980 = vld [vmem:[%s7 + $0x10] sm:$0x3]
  %v13981 = vld [vmem:[%s7 + $0x18] sm:$0x3]
  %vm13982 = vcmask 261120
  %v13984 = vsel %vm13982, %v13979, 0
  %v13987 = vsel %vm13982, %v13981, 0
  %13989 = vmatprep.subr.mxu0 0.0
  %13990 = vmatpush1.msra.mxu0 %v13973
  %13991 = vmatprep.subr.mxu0 0.0
  %13992 = vmatpush1.msra.mxu0 %v13620
  %13993 = vmatprep.subr.mxu0 0.0
  %13994 = vmatpush1.msra.mxu0 %v13619
  %13995 = vmatprep.subr.mxu0 0.0
  %13996 = vmatpush1.msra.mxu0 %v13618
  %13997 = vmatprep.subr.mxu0 0.0
  %13998 = vmatpush1.msra.mxu0 %v13617
  %13999 = vmatprep.subr.mxu0 0.0
  %14000 = vmatpush1.msra.mxu0 %v13616
  %14001 = vmatprep.subr.mxu0 0.0
  %14002 = vmatpush1.msra.mxu0 %v13263
  %14003 = vmatprep.subr.mxu0 0.0
  %14004 = vmatpush1.msra.mxu0 %v13262
  %14005 = vmatprep.subr.mxu0 0.0
  %14006 = vmatpush1.msra.mxu0 %v13261
  %14007 = vmatprep.subr.mxu0 0.0
  %14008 = vmatpush1.msra.mxu0 %v13260
  %14009 = vmatprep.subr.mxu0 0.0
  %14010 = vmatpush1.msra.mxu0 %v13259
  %14011 = vmatprep.subr.mxu0 0.0
  %14012 = vmatpush1.msra.mxu0 %v12906
  %14013 = vmatprep.subr.mxu0 0.0
  %14014 = vmatpush1.msra.mxu0 %v12905
  %14015 = vmatprep.subr.mxu0 0.0
  %14016 = vmatpush1.msra.mxu0 %v12904
  %14017 = vmatprep.subr.mxu0 0.0
  %14018 = vmatpush1.msra.mxu0 %v12903
  %14019 = vmatprep.subr.mxu0 0.0
  %14020 = vmatpush1.msra.mxu0 %v12902
  %14021 = vmatprep.subr.mxu0 0.0
  %14022 = vmatpush2.msra.mxu0 0.0
  %14023 = vmatprep.subr.mxu0 0.0
  %14024 = vmatpush2.msra.mxu0 0.0
  %14025 = vmatprep.subr.mxu0 0.0
  %14026 = vmatpush2.msra.mxu0 0.0
  %14027 = vmatprep.subr.mxu0 0.0
  %14028 = vmatpush2.msra.mxu0 0.0
  %14029 = vmatprep.subr.mxu0 0.0
  %14030 = vmatpush2.msra.mxu0 0.0
  %14031 = vmatprep.subr.mxu0 0.0
  %14032 = vmatpush2.msra.mxu0 0.0
  %14033 = vmatprep.subr.mxu0 0.0
  %14034 = vmatpush2.msra.mxu0 0.0
  %14035 = vmatprep.subr.mxu0 0.0
  %14036 = vmatpush2.msra.mxu0 0.0
  %14037 = vmatprep.subr.mxu0 0.0
  %14038 = vmatpush2.msra.mxu0 0.0
  %14039 = vmatprep.subr.mxu0 0.0
  %14040 = vmatpush2.msra.mxu0 0.0
  %14041 = vmatprep.subr.mxu0 0.0
  %14042 = vmatpush2.msra.mxu0 0.0
  %14043 = vmatprep.subr.mxu0 0.0
  %14044 = vmatpush2.msra.mxu0 0.0
  %14045 = vmatprep.subr.mxu0 0.0
  %14046 = vmatpush2.msra.mxu0 %v13977
  %14047 = vmatprep.subr.mxu0 0.0
  %14048 = vmatpush2.msra.mxu0 %v13976
  %14049 = vmatprep.subr.mxu0 0.0
  %14050 = vmatpush2.msra.mxu0 %v13975
  %14051 = vmatprep.subr.mxu0 0.0
  %14052 = vmatpush2.msra.mxu0 %v13974
  %14053 = vmatprep.mubr.f32.mxu0 %v13984
  %14054 = vmatmul.mubr.f32.gmra.mxu0 %v13978
  %v14055 = vpop.f32.mrf.mxu0
  %v14056 = vadd.f32 0.0, %v14055
  %v14057 = vpop.f32.mrf.mxu0
  %14058 = vmatprep.mubr.f32.mxu0 %v13987
  %14059 = vmatmul.mubr.f32.gmra.mxu0 %v13980
  %v14060 = vpop.f32.mrf.mxu0
  %v14061 = vadd.f32 0.0, %v14060
  %v14062 = vpop.f32.mrf.mxu0
  %14063 = vdwg.mxu0
  %14064 = vst [vmem:[%s8] sm:$0xff] %v14056
  %14065 = vst [vmem:[%s8 + $0x8] sm:$0x3] %v14061
  // Predicated region
  $region34: #{mnist_cnn_forward.1} parent=0 // pred_check
    _
  $region35: #{mnist_cnn_forward.1} parent=0 // pred_check_branch
    %14067 = sbr.rel (0) target = $region37
  $region36: #{mnist_cnn_forward.1} parent=0 // pred_region
    _
  $region37: #{mnist_cnn_forward.1} parent=0 // pred_fallthru
    _
  // Predicated region
  $region38: #{mnist_cnn_forward.1} parent=0 // pred_check
    _
  $region39: #{mnist_cnn_forward.1} parent=0 // pred_check_branch
    %14069 = sbr.rel (0) target = $region41
  $region40: #{mnist_cnn_forward.1} parent=0 // pred_region
    _
  $region41: #{mnist_cnn_forward.1} parent=0 // pred_fallthru
    _

</llo_original>
